<compile_context>
chip_gen: v7x
topology: tpu7x:2x2x1
jax: 0.10.0
libtpu: 0.0.40
codegen_flags: <defaults>
</compile_context>

<pallas_src>
import functools

import jax
import jax.numpy as jnp
import numpy as np
from jax.experimental import pallas as pl
from jax.experimental.pallas import tpu as pltpu

LN_EPS = 1e-5
NEG_INF = -1e9  # large finite value (safer than float32 min before softmax)


# ---------------------------------------------------------------------------
# In-kernel helpers
# ---------------------------------------------------------------------------
def _layer_norm(x, w, b):
    mu = jnp.mean(x, axis=-1, keepdims=True)
    var = jnp.mean(jnp.square(x - mu), axis=-1, keepdims=True)
    return (x - mu) * jax.lax.rsqrt(var + LN_EPS) * w + b


# ---------------------------------------------------------------------------
# Pallas kernel: one grid step == one encoder layer (+ fused final LN)
# ---------------------------------------------------------------------------
def clip_encoder_kernel(x_ref, mask_ref,
                        ln1_w, ln1_b, qkv_w, qkv_b, o_w, o_b,
                        ln2_w, ln2_b, fc1_w, fc1_b, fc2_w, fc2_b,
                        fln_w, fln_b,
                        out_ref, *, num_heads):
    layer = pl.program_id(0)
    n_layers = pl.num_programs(0)

    # Residual stream lives in the (resident) output block across the L axis.
    @pl.when(layer == 0)
    def _():
        out_ref[...] = x_ref[...]

    B, S, D = x_ref.shape
    H = num_heads
    Dh = D // H
    M = B * S

    x = out_ref[...].reshape(M, D)                      # (B*S, D) f32 residual

    # ---- self-attention block (pre-LN) ----
    h = _layer_norm(x, ln1_w[0], ln1_b[0])
    qkv = jnp.dot(h.astype(jnp.bfloat16), qkv_w[0],
                  preferred_element_type=jnp.float32) + qkv_b[0]   # (M, 3D)
    q, k, v = jnp.split(qkv, 3, axis=-1)
    q = q * (Dh ** -0.5)

    q = q.reshape(B, S, H, Dh)
    k = k.reshape(B, S, H, Dh)
    v = v.reshape(B, S, H, Dh)
    mask = mask_ref[...]                                # (S, S) additive bias

    attn_rows = []
    for b in range(B):                                  # B is small & static
        scores = jnp.einsum('qhd,khd->hqk', q[b], k[b],
                            preferred_element_type=jnp.float32)    # (H, S, S)
        scores = scores + mask[None, :, :]
        probs = jax.nn.softmax(scores, axis=-1)
        a = jnp.einsum('hqk,khd->qhd', probs, v[b],
                       preferred_element_type=jnp.float32)         # (S, H, Dh)
        attn_rows.append(a.reshape(S, D))
    attn = jnp.concatenate(attn_rows, axis=0)                       # (M, D)

    attn = jnp.dot(attn.astype(jnp.bfloat16), o_w[0],
                   preferred_element_type=jnp.float32) + o_b[0]
    res1 = x + attn

    # ---- MLP block (pre-LN, quick_gelu) ----
    h2 = _layer_norm(res1, ln2_w[0], ln2_b[0])
    m = jnp.dot(h2.astype(jnp.bfloat16), fc1_w[0],
                preferred_element_type=jnp.float32) + fc1_b[0]
    m = m * jax.nn.sigmoid(1.702 * m)                   # quick_gelu (f32)
    m = jnp.dot(m.astype(jnp.bfloat16), fc2_w[0],
                preferred_element_type=jnp.float32) + fc2_b[0]

    out_ref[...] = (res1 + m).reshape(B, S, D)

    # ---- fused final LayerNorm on the last layer ----
    @pl.when(layer == n_layers - 1)
    def _():
        y = out_ref[...].reshape(M, D)
        out_ref[...] = _layer_norm(y, fln_w[...], fln_b[...]).reshape(B, S, D)


# ---------------------------------------------------------------------------
# Parameter prep: stack, pre-transpose (in, out), fuse qkv, cast to bf16
# ---------------------------------------------------------------------------
def _prepare_kernel_params(params):
    layers = params['layers']
    f32, bf16 = jnp.float32, jnp.bfloat16

    def stack(fn, dtype):
        return jnp.stack([fn(p) for p in layers], axis=0).astype(dtype)

    return {
        'ln1_w': stack(lambda p: p['ln1_w'][None, :], f32),           # (L,1,D)
        'ln1_b': stack(lambda p: p['ln1_b'][None, :], f32),
        'qkv_w': stack(lambda p: jnp.concatenate(
            [p['q_w'].T, p['k_w'].T, p['v_w'].T], axis=1), bf16),     # (L,D,3D)
        'qkv_b': stack(lambda p: jnp.concatenate(
            [p['q_b'], p['k_b'], p['v_b']], axis=0)[None, :], f32),   # (L,1,3D)
        'o_w': stack(lambda p: p['o_w'].T, bf16),                     # (L,D,D)
        'o_b': stack(lambda p: p['o_b'][None, :], f32),
        'ln2_w': stack(lambda p: p['ln2_w'][None, :], f32),
        'ln2_b': stack(lambda p: p['ln2_b'][None, :], f32),
        'fc1_w': stack(lambda p: p['fc1_w'].T, bf16),                 # (L,D,I)
        'fc1_b': stack(lambda p: p['fc1_b'][None, :], f32),
        'fc2_w': stack(lambda p: p['fc2_w'].T, bf16),                 # (L,I,D)
        'fc2_b': stack(lambda p: p['fc2_b'][None, :], f32),
        'fln_w': params['final_ln_w'][None, :].astype(f32),           # (1,D)
        'fln_b': params['final_ln_b'][None, :].astype(f32),
    }


# ---------------------------------------------------------------------------
# pallas_call wrapper
# ---------------------------------------------------------------------------
def clip_text_encoder(token_ids, params, num_heads):
    """Pallas CLIP text encoder forward: returns last_hidden_state (B, S, D)."""
    B, S = token_ids.shape
    D = params['token_embedding'].shape[1]

    tok = jnp.take(params['token_embedding'], token_ids, axis=0)      # (B,S,D)
    pos = params['position_embedding'][None, :S, :]                   # (1,S,D)
    x = (tok + pos).astype(jnp.float32)

    kp = _prepare_kernel_params(params)
    L = kp['qkv_w'].shape[0]
    I = kp['fc1_w'].shape[2]

    # Additive causal mask, built once (hoisted out of the per-layer body).
    row = jnp.arange(S)[:, None]
    col = jnp.arange(S)[None, :]
    mask = jnp.where(col <= row, 0.0, NEG_INF).astype(jnp.float32)    # (S,S)

    per_layer_vec = lambda d: pl.BlockSpec((1, 1, d), lambda l: (l, 0, 0))
    per_layer_mat = lambda d1, d2: pl.BlockSpec((1, d1, d2),
                                                lambda l: (l, 0, 0))

    in_specs = [
        pl.BlockSpec((B, S, D), lambda l: (0, 0, 0)),   # x (DMA'd once)
        pl.BlockSpec((S, S), lambda l: (0, 0)),         # causal mask (resident)
        per_layer_vec(D), per_layer_vec(D),             # ln1 w/b
        per_layer_mat(D, 3 * D), per_layer_vec(3 * D),  # fused qkv w/b
        per_layer_mat(D, D), per_layer_vec(D),          # out proj w/b
        per_layer_vec(D), per_layer_vec(D),             # ln2 w/b
        per_layer_mat(D, I), per_layer_vec(I),          # fc1 w/b
        per_layer_mat(I, D), per_layer_vec(D),          # fc2 w/b
        pl.BlockSpec((1, D), lambda l: (0, 0)),         # final LN w
        pl.BlockSpec((1, D), lambda l: (0, 0)),         # final LN b
    ]

    # TODO(synk): for large B on v7x, add a leading "parallel" batch-tile grid
    # axis so both TensorCores are used; for SD-style B<=2 it is not worth the
    # duplicated weight streaming.
    return pl.pallas_call(
        functools.partial(clip_encoder_kernel, num_heads=num_heads),
        out_shape=jax.ShapeDtypeStruct((B, S, D), jnp.float32),
        grid_spec=pltpu.PrefetchScalarGridSpec(
            num_scalar_prefetch=0,
            grid=(L,),
            in_specs=in_specs,
            out_specs=pl.BlockSpec((B, S, D), lambda l: (0, 0, 0)),
        ),
        compiler_params=pltpu.CompilerParams(
            dimension_semantics=("arbitrary",),          # L carries the residual
            vmem_limit_bytes=48 * 1024 * 1024,           # room for 2x bf16 weights
        ),
    )(x, mask,
      kp['ln1_w'], kp['ln1_b'], kp['qkv_w'], kp['qkv_b'],
      kp['o_w'], kp['o_b'], kp['ln2_w'], kp['ln2_b'],
      kp['fc1_w'], kp['fc1_b'], kp['fc2_w'], kp['fc2_b'],
      kp['fln_w'], kp['fln_b'])


# ---------------------------------------------------------------------------
# Pure-JAX f32 reference (for correctness check)
# ---------------------------------------------------------------------------
def _ref_layer(x, p, num_heads):
    B, S, D = x.shape
    H = num_heads
    Dh = D // H

    def ln(v, w, b):
        mu = jnp.mean(v, axis=-1, keepdims=True)
        var = jnp.mean(jnp.square(v - mu), axis=-1, keepdims=True)
        return (v - mu) * jax.lax.rsqrt(var + LN_EPS) * w + b

    h = ln(x, p['ln1_w'], p['ln1_b'])
    q = (h @ p['q_w'].T + p['q_b']) * (Dh ** -0.5)
    k = h @ p['k_w'].T + p['k_b']
    v = h @ p['v_w'].T + p['v_b']
    q = q.reshape(B, S, H, Dh)
    k = k.reshape(B, S, H, Dh)
    v = v.reshape(B, S, H, Dh)
    s = jnp.einsum('bqhd,bkhd->bhqk', q, k)
    row = jnp.arange(S)[:, None]
    col = jnp.arange(S)[None, :]
    s = s + jnp.where(col <= row, 0.0, NEG_INF)[None, None]
    p_attn = jax.nn.softmax(s, axis=-1)
    a = jnp.einsum('bhqk,bkhd->bqhd', p_attn, v).reshape(B, S, D)
    res1 = x + a @ p['o_w'].T + p['o_b']
    h2 = ln(res1, p['ln2_w'], p['ln2_b'])
    m = h2 @ p['fc1_w'].T + p['fc1_b']
    m = m * jax.nn.sigmoid(1.702 * m)
    m = m @ p['fc2_w'].T + p['fc2_b']
    return res1 + m


def clip_text_encoder_ref(token_ids, params, num_heads):
    B, S = token_ids.shape
    x = jnp.take(params['token_embedding'], token_ids, axis=0)
    x = x + params['position_embedding'][None, :S, :]
    for layer in params['layers']:
        x = _ref_layer(x, layer, num_heads)
    mu = jnp.mean(x, axis=-1, keepdims=True)
    var = jnp.mean(jnp.square(x - mu), axis=-1, keepdims=True)
    return (x - mu) * jax.lax.rsqrt(var + LN_EPS) * params['final_ln_w'] \
        + params['final_ln_b']


# ---------------------------------------------------------------------------
# Deterministic parameter init (synthetic, PyTorch nn.Linear convention)
# ---------------------------------------------------------------------------
def init_params(key, vocab, max_pos, hidden, n_layers, intermediate):
    keys = jax.random.split(key, 2 + n_layers)
    f32 = jnp.float32
    params = {
        'token_embedding': 0.02 * jax.random.normal(keys[0], (vocab, hidden), f32),
        'position_embedding': 0.01 * jax.random.normal(keys[1], (max_pos, hidden), f32),
        'layers': [],
        'final_ln_w': jnp.ones((hidden,), f32),
        'final_ln_b': jnp.zeros((hidden,), f32),
    }
    for li in range(n_layers):
        ks = jax.random.split(keys[2 + li], 6)
        params['layers'].append({
            'ln1_w': jnp.ones((hidden,), f32), 'ln1_b': jnp.zeros((hidden,), f32),
            'q_w': 0.02 * jax.random.normal(ks[0], (hidden, hidden), f32),
            'q_b': jnp.zeros((hidden,), f32),
            'k_w': 0.02 * jax.random.normal(ks[1], (hidden, hidden), f32),
            'k_b': jnp.zeros((hidden,), f32),
            'v_w': 0.02 * jax.random.normal(ks[2], (hidden, hidden), f32),
            'v_b': jnp.zeros((hidden,), f32),
            'o_w': 0.02 * jax.random.normal(ks[3], (hidden, hidden), f32),
            'o_b': jnp.zeros((hidden,), f32),
            'ln2_w': jnp.ones((hidden,), f32), 'ln2_b': jnp.zeros((hidden,), f32),
            'fc1_w': 0.02 * jax.random.normal(ks[4], (intermediate, hidden), f32),
            'fc1_b': jnp.zeros((intermediate,), f32),
            'fc2_w': 0.02 * jax.random.normal(ks[5], (hidden, intermediate), f32),
            'fc2_b': jnp.zeros((hidden,), f32),
        })
    return params


# ---------------------------------------------------------------------------
if __name__ == "__main__":
    # Small, CLIP-like config (real model: S=77, D=512, 12 layers, 8 heads).
    B, S, D = 2, 8, 32
    NUM_HEADS = 2
    NUM_LAYERS = 2
    VOCAB = 100
    INTERMEDIATE = 4 * D

    key = jax.random.PRNGKey(0)
    k_tok, k_param = jax.random.split(key)
    token_ids = jax.random.randint(k_tok, (B, S), 0, VOCAB, dtype=jnp.int32)
    params = init_params(k_param, VOCAB, S, D, NUM_LAYERS, INTERMEDIATE)

    out = clip_text_encoder(token_ids, params, NUM_HEADS)
    out = jax.block_until_ready(out)
    assert out.shape == (B, S, D)

    ref = jax.block_until_ready(clip_text_encoder_ref(token_ids, params, NUM_HEADS))
    # Tolerance accounts for bf16 weight storage on the matmul path (f32 accum);
    # structural errors (mask / LN / ordering) would be O(1).
    np.testing.assert_allclose(np.asarray(out), np.asarray(ref),
                               rtol=5e-2, atol=5e-2)

    print("KERNEL_OK")
</pallas_src>

<mosaic_0001>
module attributes {stable_mosaic.version = 11 : i64} {
  func.func @clip_encoder_kernel(%arg0: i32, %arg1: memref<2x8x32xf32, #tpu.memory_space<vmem>>, %arg2: memref<8x8xf32, #tpu.memory_space<vmem>>, %arg3: memref<1x1x32xf32, #tpu.memory_space<vmem>>, %arg4: memref<1x1x32xf32, #tpu.memory_space<vmem>>, %arg5: memref<1x32x96xbf16, #tpu.memory_space<vmem>>, %arg6: memref<1x1x96xf32, #tpu.memory_space<vmem>>, %arg7: memref<1x32x32xbf16, #tpu.memory_space<vmem>>, %arg8: memref<1x1x32xf32, #tpu.memory_space<vmem>>, %arg9: memref<1x1x32xf32, #tpu.memory_space<vmem>>, %arg10: memref<1x1x32xf32, #tpu.memory_space<vmem>>, %arg11: memref<1x32x128xbf16, #tpu.memory_space<vmem>>, %arg12: memref<1x1x128xf32, #tpu.memory_space<vmem>>, %arg13: memref<1x128x32xbf16, #tpu.memory_space<vmem>>, %arg14: memref<1x1x32xf32, #tpu.memory_space<vmem>>, %arg15: memref<1x32xf32, #tpu.memory_space<vmem>>, %arg16: memref<1x32xf32, #tpu.memory_space<vmem>>, %arg17: memref<2x8x32xf32, #tpu.memory_space<vmem>>) attributes {dimension_semantics = [#tpu.dimension_semantics<arbitrary>], iteration_bounds = array<i64: 2>, scalar_prefetch = 0 : i64, scratch_operands = 0 : i64, tpu.core_type = #tpu.core_type<tc>, window_params = [{pipeline_mode = #tpu.pipeline_mode<synchronous>, transform_indices = @transform_0, window_bounds = array<i64: 2, 8, 32>}, {pipeline_mode = #tpu.pipeline_mode<synchronous>, transform_indices = @transform_1, window_bounds = array<i64: 8, 8>}, {transform_indices = @transform_2, window_bounds = array<i64: 1, 1, 32>}, {transform_indices = @transform_3, window_bounds = array<i64: 1, 1, 32>}, {transform_indices = @transform_4, window_bounds = array<i64: 1, 32, 96>}, {transform_indices = @transform_5, window_bounds = array<i64: 1, 1, 96>}, {transform_indices = @transform_6, window_bounds = array<i64: 1, 32, 32>}, {transform_indices = @transform_7, window_bounds = array<i64: 1, 1, 32>}, {transform_indices = @transform_8, window_bounds = array<i64: 1, 1, 32>}, {transform_indices = @transform_9, window_bounds = array<i64: 1, 1, 32>}, {transform_indices = @transform_10, window_bounds = array<i64: 1, 32, 128>}, {transform_indices = @transform_11, window_bounds = array<i64: 1, 1, 128>}, {transform_indices = @transform_12, window_bounds = array<i64: 1, 128, 32>}, {transform_indices = @transform_13, window_bounds = array<i64: 1, 1, 32>}, {pipeline_mode = #tpu.pipeline_mode<synchronous>, transform_indices = @transform_14, window_bounds = array<i64: 1, 32>}, {pipeline_mode = #tpu.pipeline_mode<synchronous>, transform_indices = @transform_15, window_bounds = array<i64: 1, 32>}, {pipeline_mode = #tpu.pipeline_mode<synchronous>, transform_indices = @transform_16, window_bounds = array<i64: 2, 8, 32>}]} {
    %c0_i32 = arith.constant 0 : i32
    %0 = arith.cmpi eq, %arg0, %c0_i32 : i32
    %1 = arith.extui %0 : i1 to i32
    %c0_i32_0 = arith.constant 0 : i32
    %2 = arith.cmpi ne, %1, %c0_i32_0 : i32
    scf.if %2 {
      %c0_71 = arith.constant 0 : index
      %c0_72 = arith.constant 0 : index
      %c0_73 = arith.constant 0 : index
      %162 = vector.load %arg1[%c0_71, %c0_72, %c0_73] : memref<2x8x32xf32, #tpu.memory_space<vmem>>, vector<2x8x32xf32>
      %c0_74 = arith.constant 0 : index
      %c0_75 = arith.constant 0 : index
      %c0_76 = arith.constant 0 : index
      %163 = vector.load %arg17[%c0_74, %c0_75, %c0_76] : memref<2x8x32xf32, #tpu.memory_space<vmem>>, vector<2x8x32xf32>
      tpu.vector_store %arg17[%c0_74, %c0_75, %c0_76], %162 {strides = array<i32>} : memref<2x8x32xf32, #tpu.memory_space<vmem>>, vector<2x8x32xf32>,
    } else {
    }
    %c0 = arith.constant 0 : index
    %c0_1 = arith.constant 0 : index
    %c0_2 = arith.constant 0 : index
    %3 = vector.load %arg17[%c0, %c0_1, %c0_2] : memref<2x8x32xf32, #tpu.memory_space<vmem>>, vector<2x8x32xf32>
    %4 = vector.shape_cast %3 : vector<2x8x32xf32> to vector<16x32xf32>
    %c0_3 = arith.constant 0 : index
    %c0_4 = arith.constant 0 : index
    %c0_5 = arith.constant 0 : index
    %5 = vector.load %arg3[%c0_3, %c0_4, %c0_5] : memref<1x1x32xf32, #tpu.memory_space<vmem>>, vector<1x1x32xf32>
    %6 = vector.shape_cast %5 : vector<1x1x32xf32> to vector<1x32xf32>
    %c0_6 = arith.constant 0 : index
    %c0_7 = arith.constant 0 : index
    %c0_8 = arith.constant 0 : index
    %7 = vector.load %arg4[%c0_6, %c0_7, %c0_8] : memref<1x1x32xf32, #tpu.memory_space<vmem>>, vector<1x1x32xf32>
    %8 = vector.shape_cast %7 : vector<1x1x32xf32> to vector<1x32xf32>
    %cst = arith.constant dense<0.000000e+00> : vector<16xf32>
    %9 = vector.multi_reduction <add>, %4, %cst [1] : vector<16x32xf32> to vector<16xf32>
    %10 = vector.shape_cast %9 : vector<16xf32> to vector<16x1xf32>
    %cst_9 = arith.constant 3.200000e+01 : f32
    %11 = vector.broadcast %cst_9 : f32 to vector<16x1xf32>
    %12 = arith.divf %10, %11 : vector<16x1xf32>
    %13 = vector.broadcast %12 : vector<16x1xf32> to vector<16x32xf32>
    %14 = arith.subf %4, %13 : vector<16x32xf32>
    %15 = arith.mulf %14, %14 : vector<16x32xf32>
    %cst_10 = arith.constant dense<0.000000e+00> : vector<16xf32>
    %16 = vector.multi_reduction <add>, %15, %cst_10 [1] : vector<16x32xf32> to vector<16xf32>
    %17 = vector.shape_cast %16 : vector<16xf32> to vector<16x1xf32>
    %cst_11 = arith.constant 3.200000e+01 : f32
    %18 = vector.broadcast %cst_11 : f32 to vector<16x1xf32>
    %19 = arith.divf %17, %18 : vector<16x1xf32>
    %20 = vector.broadcast %12 : vector<16x1xf32> to vector<16x32xf32>
    %21 = arith.subf %4, %20 : vector<16x32xf32>
    %cst_12 = arith.constant 9.99999974E-6 : f32
    %22 = vector.broadcast %cst_12 : f32 to vector<16x1xf32>
    %23 = arith.addf %19, %22 : vector<16x1xf32>
    %24 = math.rsqrt %23 : vector<16x1xf32>
    %25 = vector.broadcast %24 : vector<16x1xf32> to vector<16x32xf32>
    %26 = arith.mulf %21, %25 : vector<16x32xf32>
    %27 = vector.broadcast %6 : vector<1x32xf32> to vector<16x32xf32>
    %28 = arith.mulf %26, %27 : vector<16x32xf32>
    %29 = vector.broadcast %8 : vector<1x32xf32> to vector<16x32xf32>
    %30 = arith.addf %28, %29 : vector<16x32xf32>
    %31 = arith.truncf %30 : vector<16x32xf32> to vector<16x32xbf16>
    %c0_13 = arith.constant 0 : index
    %c0_14 = arith.constant 0 : index
    %c0_15 = arith.constant 0 : index
    %32 = vector.load %arg5[%c0_13, %c0_14, %c0_15] : memref<1x32x96xbf16, #tpu.memory_space<vmem>>, vector<1x32x96xbf16>
    %33 = vector.shape_cast %32 : vector<1x32x96xbf16> to vector<32x96xbf16>
    %cst_16 = arith.constant dense<0.000000e+00> : vector<16x96xf32>
    %34 = tpu.matmul %31, %33, %cst_16 {dimension_numbers = #tpu.dot_dimension_numbers<[1], [0], [0], [1], [0, 0, 1, 1], [], []>} : vector<16x32xbf16>, vector<32x96xbf16>, vector<16x96xf32> -> vector<16x96xf32>
    %c0_17 = arith.constant 0 : index
    %c0_18 = arith.constant 0 : index
    %c0_19 = arith.constant 0 : index
    %35 = vector.load %arg6[%c0_17, %c0_18, %c0_19] : memref<1x1x96xf32, #tpu.memory_space<vmem>>, vector<1x1x96xf32>
    %36 = vector.shape_cast %35 : vector<1x1x96xf32> to vector<1x96xf32>
    %37 = vector.broadcast %36 : vector<1x96xf32> to vector<16x96xf32>
    %38 = arith.addf %34, %37 : vector<16x96xf32>
    %39 = vector.extract_strided_slice %38 {offsets = [0, 0], sizes = [16, 32], strides = [1, 1]} : vector<16x96xf32> to vector<16x32xf32>
    %40 = vector.extract_strided_slice %38 {offsets = [0, 32], sizes = [16, 32], strides = [1, 1]} : vector<16x96xf32> to vector<16x32xf32>
    %41 = vector.extract_strided_slice %38 {offsets = [0, 64], sizes = [16, 32], strides = [1, 1]} : vector<16x96xf32> to vector<16x32xf32>
    %cst_20 = arith.constant 2.500000e-01 : f32
    %42 = vector.broadcast %cst_20 : f32 to vector<16x32xf32>
    %43 = arith.mulf %39, %42 : vector<16x32xf32>
    %44 = vector.shape_cast %43 : vector<16x32xf32> to vector<2x8x2x16xf32>
    %45 = vector.shape_cast %40 : vector<16x32xf32> to vector<2x8x2x16xf32>
    %46 = vector.shape_cast %41 : vector<16x32xf32> to vector<2x8x2x16xf32>
    %c0_21 = arith.constant 0 : index
    %c0_22 = arith.constant 0 : index
    %47 = vector.load %arg2[%c0_21, %c0_22] : memref<8x8xf32, #tpu.memory_space<vmem>>, vector<8x8xf32>
    %48 = vector.extract_strided_slice %44 {offsets = [0, 0, 0, 0], sizes = [1, 8, 2, 16], strides = [1, 1, 1, 1]} : vector<2x8x2x16xf32> to vector<1x8x2x16xf32>
    %49 = vector.shape_cast %48 : vector<1x8x2x16xf32> to vector<8x2x16xf32>
    %50 = vector.extract_strided_slice %45 {offsets = [0, 0, 0, 0], sizes = [1, 8, 2, 16], strides = [1, 1, 1, 1]} : vector<2x8x2x16xf32> to vector<1x8x2x16xf32>
    %51 = vector.shape_cast %50 : vector<1x8x2x16xf32> to vector<8x2x16xf32>
    "tpu.trace_start"() <{level = 10 : i32, message = "qhd,khd->hqk"}> : () -> ()
    %cst_23 = arith.constant dense<0.000000e+00> : vector<2x8x8xf32>
    %52 = tpu.matmul %49, %51, %cst_23 {dimension_numbers = #tpu.dot_dimension_numbers<[2], [2], [0], [0], [0, 1, 0, 0, 1, 0], [1], [1]>} : vector<8x2x16xf32>, vector<8x2x16xf32>, vector<2x8x8xf32> -> vector<2x8x8xf32>
    "tpu.trace_stop"() : () -> ()
    %53 = vector.shape_cast %47 : vector<8x8xf32> to vector<1x8x8xf32>
    %54 = vector.broadcast %53 : vector<1x8x8xf32> to vector<2x8x8xf32>
    %55 = arith.addf %52, %54 : vector<2x8x8xf32>
    %cst_24 = arith.constant dense<0xFF800000> : vector<2x8xf32>
    %56 = vector.multi_reduction <maximumf>, %55, %cst_24 [2] : vector<2x8x8xf32> to vector<2x8xf32>
    %cst_25 = arith.constant 0xFF800000 : f32
    %57 = vector.broadcast %cst_25 : f32 to vector<2x8xf32>
    %58 = arith.maximumf %57, %56 : vector<2x8xf32>
    %59 = vector.shape_cast %58 : vector<2x8xf32> to vector<2x8x1xf32>
    %60 = vector.broadcast %59 : vector<2x8x1xf32> to vector<2x8x8xf32>
    %61 = arith.subf %55, %60 : vector<2x8x8xf32>
    %62 = math.exp %61 : vector<2x8x8xf32>
    %cst_26 = arith.constant dense<0.000000e+00> : vector<2x8xf32>
    %63 = vector.multi_reduction <add>, %62, %cst_26 [2] : vector<2x8x8xf32> to vector<2x8xf32>
    %64 = vector.shape_cast %63 : vector<2x8xf32> to vector<2x8x1xf32>
    %65 = vector.broadcast %64 : vector<2x8x1xf32> to vector<2x8x8xf32>
    %66 = arith.divf %62, %65 : vector<2x8x8xf32>
    %67 = vector.extract_strided_slice %46 {offsets = [0, 0, 0, 0], sizes = [1, 8, 2, 16], strides = [1, 1, 1, 1]} : vector<2x8x2x16xf32> to vector<1x8x2x16xf32>
    %68 = vector.shape_cast %67 : vector<1x8x2x16xf32> to vector<8x2x16xf32>
    "tpu.trace_start"() <{level = 10 : i32, message = "hqk,khd->qhd"}> : () -> ()
    %cst_27 = arith.constant dense<0.000000e+00> : vector<2x16x8xf32>
    %69 = tpu.matmul %68, %66, %cst_27 {dimension_numbers = #tpu.dot_dimension_numbers<[0], [2], [2], [1], [0, 1, 0, 2, 1, 1], [1], [0]>} : vector<8x2x16xf32>, vector<2x8x8xf32>, vector<2x16x8xf32> -> vector<2x16x8xf32>
    %70 = tpu.transpose %69, [2, 0, 1] : vector<2x16x8xf32> -> vector<8x2x16xf32>
    "tpu.trace_stop"() : () -> ()
    %71 = vector.shape_cast %70 : vector<8x2x16xf32> to vector<8x32xf32>
    %72 = vector.extract_strided_slice %44 {offsets = [1, 0, 0, 0], sizes = [1, 8, 2, 16], strides = [1, 1, 1, 1]} : vector<2x8x2x16xf32> to vector<1x8x2x16xf32>
    %73 = vector.shape_cast %72 : vector<1x8x2x16xf32> to vector<8x2x16xf32>
    %74 = vector.extract_strided_slice %45 {offsets = [1, 0, 0, 0], sizes = [1, 8, 2, 16], strides = [1, 1, 1, 1]} : vector<2x8x2x16xf32> to vector<1x8x2x16xf32>
    %75 = vector.shape_cast %74 : vector<1x8x2x16xf32> to vector<8x2x16xf32>
    "tpu.trace_start"() <{level = 10 : i32, message = "qhd,khd->hqk"}> : () -> ()
    %cst_28 = arith.constant dense<0.000000e+00> : vector<2x8x8xf32>
    %76 = tpu.matmul %73, %75, %cst_28 {dimension_numbers = #tpu.dot_dimension_numbers<[2], [2], [0], [0], [0, 1, 0, 0, 1, 0], [1], [1]>} : vector<8x2x16xf32>, vector<8x2x16xf32>, vector<2x8x8xf32> -> vector<2x8x8xf32>
    "tpu.trace_stop"() : () -> ()
    %77 = vector.shape_cast %47 : vector<8x8xf32> to vector<1x8x8xf32>
    %78 = vector.broadcast %77 : vector<1x8x8xf32> to vector<2x8x8xf32>
    %79 = arith.addf %76, %78 : vector<2x8x8xf32>
    %cst_29 = arith.constant dense<0xFF800000> : vector<2x8xf32>
    %80 = vector.multi_reduction <maximumf>, %79, %cst_29 [2] : vector<2x8x8xf32> to vector<2x8xf32>
    %cst_30 = arith.constant 0xFF800000 : f32
    %81 = vector.broadcast %cst_30 : f32 to vector<2x8xf32>
    %82 = arith.maximumf %81, %80 : vector<2x8xf32>
    %83 = vector.shape_cast %82 : vector<2x8xf32> to vector<2x8x1xf32>
    %84 = vector.broadcast %83 : vector<2x8x1xf32> to vector<2x8x8xf32>
    %85 = arith.subf %79, %84 : vector<2x8x8xf32>
    %86 = math.exp %85 : vector<2x8x8xf32>
    %cst_31 = arith.constant dense<0.000000e+00> : vector<2x8xf32>
    %87 = vector.multi_reduction <add>, %86, %cst_31 [2] : vector<2x8x8xf32> to vector<2x8xf32>
    %88 = vector.shape_cast %87 : vector<2x8xf32> to vector<2x8x1xf32>
    %89 = vector.broadcast %88 : vector<2x8x1xf32> to vector<2x8x8xf32>
    %90 = arith.divf %86, %89 : vector<2x8x8xf32>
    %91 = vector.extract_strided_slice %46 {offsets = [1, 0, 0, 0], sizes = [1, 8, 2, 16], strides = [1, 1, 1, 1]} : vector<2x8x2x16xf32> to vector<1x8x2x16xf32>
    %92 = vector.shape_cast %91 : vector<1x8x2x16xf32> to vector<8x2x16xf32>
    "tpu.trace_start"() <{level = 10 : i32, message = "hqk,khd->qhd"}> : () -> ()
    %cst_32 = arith.constant dense<0.000000e+00> : vector<2x16x8xf32>
    %93 = tpu.matmul %92, %90, %cst_32 {dimension_numbers = #tpu.dot_dimension_numbers<[0], [2], [2], [1], [0, 1, 0, 2, 1, 1], [1], [0]>} : vector<8x2x16xf32>, vector<2x8x8xf32>, vector<2x16x8xf32> -> vector<2x16x8xf32>
    %94 = tpu.transpose %93, [2, 0, 1] : vector<2x16x8xf32> -> vector<8x2x16xf32>
    "tpu.trace_stop"() : () -> ()
    %95 = vector.shape_cast %94 : vector<8x2x16xf32> to vector<8x32xf32>
    %96 = tpu.concatenate %71, %95 in 0 : vector<8x32xf32>, vector<8x32xf32> -> vector<16x32xf32>
    %97 = arith.truncf %96 : vector<16x32xf32> to vector<16x32xbf16>
    %c0_33 = arith.constant 0 : index
    %c0_34 = arith.constant 0 : index
    %c0_35 = arith.constant 0 : index
    %98 = vector.load %arg7[%c0_33, %c0_34, %c0_35] : memref<1x32x32xbf16, #tpu.memory_space<vmem>>, vector<1x32x32xbf16>
    %99 = vector.shape_cast %98 : vector<1x32x32xbf16> to vector<32x32xbf16>
    %cst_36 = arith.constant dense<0.000000e+00> : vector<16x32xf32>
    %100 = tpu.matmul %97, %99, %cst_36 {dimension_numbers = #tpu.dot_dimension_numbers<[1], [0], [0], [1], [0, 0, 1, 1], [], []>} : vector<16x32xbf16>, vector<32x32xbf16>, vector<16x32xf32> -> vector<16x32xf32>
    %c0_37 = arith.constant 0 : index
    %c0_38 = arith.constant 0 : index
    %c0_39 = arith.constant 0 : index
    %101 = vector.load %arg8[%c0_37, %c0_38, %c0_39] : memref<1x1x32xf32, #tpu.memory_space<vmem>>, vector<1x1x32xf32>
    %102 = vector.shape_cast %101 : vector<1x1x32xf32> to vector<1x32xf32>
    %103 = vector.broadcast %102 : vector<1x32xf32> to vector<16x32xf32>
    %104 = arith.addf %100, %103 : vector<16x32xf32>
    %105 = arith.addf %4, %104 : vector<16x32xf32>
    %c0_40 = arith.constant 0 : index
    %c0_41 = arith.constant 0 : index
    %c0_42 = arith.constant 0 : index
    %106 = vector.load %arg9[%c0_40, %c0_41, %c0_42] : memref<1x1x32xf32, #tpu.memory_space<vmem>>, vector<1x1x32xf32>
    %107 = vector.shape_cast %106 : vector<1x1x32xf32> to vector<1x32xf32>
    %c0_43 = arith.constant 0 : index
    %c0_44 = arith.constant 0 : index
    %c0_45 = arith.constant 0 : index
    %108 = vector.load %arg10[%c0_43, %c0_44, %c0_45] : memref<1x1x32xf32, #tpu.memory_space<vmem>>, vector<1x1x32xf32>
    %109 = vector.shape_cast %108 : vector<1x1x32xf32> to vector<1x32xf32>
    %cst_46 = arith.constant dense<0.000000e+00> : vector<16xf32>
    %110 = vector.multi_reduction <add>, %105, %cst_46 [1] : vector<16x32xf32> to vector<16xf32>
    %111 = vector.shape_cast %110 : vector<16xf32> to vector<16x1xf32>
    %cst_47 = arith.constant 3.200000e+01 : f32
    %112 = vector.broadcast %cst_47 : f32 to vector<16x1xf32>
    %113 = arith.divf %111, %112 : vector<16x1xf32>
    %114 = vector.broadcast %113 : vector<16x1xf32> to vector<16x32xf32>
    %115 = arith.subf %105, %114 : vector<16x32xf32>
    %116 = arith.mulf %115, %115 : vector<16x32xf32>
    %cst_48 = arith.constant dense<0.000000e+00> : vector<16xf32>
    %117 = vector.multi_reduction <add>, %116, %cst_48 [1] : vector<16x32xf32> to vector<16xf32>
    %118 = vector.shape_cast %117 : vector<16xf32> to vector<16x1xf32>
    %cst_49 = arith.constant 3.200000e+01 : f32
    %119 = vector.broadcast %cst_49 : f32 to vector<16x1xf32>
    %120 = arith.divf %118, %119 : vector<16x1xf32>
    %121 = vector.broadcast %113 : vector<16x1xf32> to vector<16x32xf32>
    %122 = arith.subf %105, %121 : vector<16x32xf32>
    %cst_50 = arith.constant 9.99999974E-6 : f32
    %123 = vector.broadcast %cst_50 : f32 to vector<16x1xf32>
    %124 = arith.addf %120, %123 : vector<16x1xf32>
    %125 = math.rsqrt %124 : vector<16x1xf32>
    %126 = vector.broadcast %125 : vector<16x1xf32> to vector<16x32xf32>
    %127 = arith.mulf %122, %126 : vector<16x32xf32>
    %128 = vector.broadcast %107 : vector<1x32xf32> to vector<16x32xf32>
    %129 = arith.mulf %127, %128 : vector<16x32xf32>
    %130 = vector.broadcast %109 : vector<1x32xf32> to vector<16x32xf32>
    %131 = arith.addf %129, %130 : vector<16x32xf32>
    %132 = arith.truncf %131 : vector<16x32xf32> to vector<16x32xbf16>
    %c0_51 = arith.constant 0 : index
    %c0_52 = arith.constant 0 : index
    %c0_53 = arith.constant 0 : index
    %133 = vector.load %arg11[%c0_51, %c0_52, %c0_53] : memref<1x32x128xbf16, #tpu.memory_space<vmem>>, vector<1x32x128xbf16>
    %134 = vector.shape_cast %133 : vector<1x32x128xbf16> to vector<32x128xbf16>
    %cst_54 = arith.constant dense<0.000000e+00> : vector<16x128xf32>
    %135 = tpu.matmul %132, %134, %cst_54 {dimension_numbers = #tpu.dot_dimension_numbers<[1], [0], [0], [1], [0, 0, 1, 1], [], []>} : vector<16x32xbf16>, vector<32x128xbf16>, vector<16x128xf32> -> vector<16x128xf32>
    %c0_55 = arith.constant 0 : index
    %c0_56 = arith.constant 0 : index
    %c0_57 = arith.constant 0 : index
    %136 = vector.load %arg12[%c0_55, %c0_56, %c0_57] : memref<1x1x128xf32, #tpu.memory_space<vmem>>, vector<1x1x128xf32>
    %137 = vector.shape_cast %136 : vector<1x1x128xf32> to vector<1x128xf32>
    %138 = vector.broadcast %137 : vector<1x128xf32> to vector<16x128xf32>
    %139 = arith.addf %135, %138 : vector<16x128xf32>
    %cst_58 = arith.constant 1.702000e+00 : f32
    %140 = vector.broadcast %cst_58 : f32 to vector<16x128xf32>
    %141 = arith.mulf %140, %139 : vector<16x128xf32>
    %142 = arith.negf %141 : vector<16x128xf32>
    %143 = math.exp %142 : vector<16x128xf32>
    %cst_59 = arith.constant 1.000000e+00 : f32
    %144 = vector.broadcast %cst_59 : f32 to vector<16x128xf32>
    %145 = arith.addf %144, %143 : vector<16x128xf32>
    %146 = arith.divf %144, %145 : vector<16x128xf32>
    %147 = arith.mulf %139, %146 : vector<16x128xf32>
    %148 = arith.truncf %147 : vector<16x128xf32> to vector<16x128xbf16>
    %c0_60 = arith.constant 0 : index
    %c0_61 = arith.constant 0 : index
    %c0_62 = arith.constant 0 : index
    %149 = vector.load %arg13[%c0_60, %c0_61, %c0_62] : memref<1x128x32xbf16, #tpu.memory_space<vmem>>, vector<1x128x32xbf16>
    %150 = vector.shape_cast %149 : vector<1x128x32xbf16> to vector<128x32xbf16>
    %cst_63 = arith.constant dense<0.000000e+00> : vector<16x32xf32>
    %151 = tpu.matmul %148, %150, %cst_63 {dimension_numbers = #tpu.dot_dimension_numbers<[1], [0], [0], [1], [0, 0, 1, 1], [], []>} : vector<16x128xbf16>, vector<128x32xbf16>, vector<16x32xf32> -> vector<16x32xf32>
    %c0_64 = arith.constant 0 : index
    %c0_65 = arith.constant 0 : index
    %c0_66 = arith.constant 0 : index
    %152 = vector.load %arg14[%c0_64, %c0_65, %c0_66] : memref<1x1x32xf32, #tpu.memory_space<vmem>>, vector<1x1x32xf32>
    %153 = vector.shape_cast %152 : vector<1x1x32xf32> to vector<1x32xf32>
    %154 = vector.broadcast %153 : vector<1x32xf32> to vector<16x32xf32>
    %155 = arith.addf %151, %154 : vector<16x32xf32>
    %156 = arith.addf %105, %155 : vector<16x32xf32>
    %157 = vector.shape_cast %156 : vector<16x32xf32> to vector<2x8x32xf32>
    %c0_67 = arith.constant 0 : index
    %c0_68 = arith.constant 0 : index
    %c0_69 = arith.constant 0 : index
    %158 = vector.load %arg17[%c0_67, %c0_68, %c0_69] : memref<2x8x32xf32, #tpu.memory_space<vmem>>, vector<2x8x32xf32>
    tpu.vector_store %arg17[%c0_67, %c0_68, %c0_69], %157 {strides = array<i32>} : memref<2x8x32xf32, #tpu.memory_space<vmem>>, vector<2x8x32xf32>,
    %c1_i32 = arith.constant 1 : i32
    %159 = arith.cmpi eq, %arg0, %c1_i32 : i32
    %160 = arith.extui %159 : i1 to i32
    %c0_i32_70 = arith.constant 0 : i32
    %161 = arith.cmpi ne, %160, %c0_i32_70 : i32
    scf.if %161 {
      %c0_71 = arith.constant 0 : index
      %c0_72 = arith.constant 0 : index
      %c0_73 = arith.constant 0 : index
      %162 = vector.load %arg17[%c0_71, %c0_72, %c0_73] : memref<2x8x32xf32, #tpu.memory_space<vmem>>, vector<2x8x32xf32>
      %163 = vector.shape_cast %162 : vector<2x8x32xf32> to vector<16x32xf32>
      %c0_74 = arith.constant 0 : index
      %c0_75 = arith.constant 0 : index
      %164 = vector.load %arg15[%c0_74, %c0_75] : memref<1x32xf32, #tpu.memory_space<vmem>>, vector<1x32xf32>
      %c0_76 = arith.constant 0 : index
      %c0_77 = arith.constant 0 : index
      %165 = vector.load %arg16[%c0_76, %c0_77] : memref<1x32xf32, #tpu.memory_space<vmem>>, vector<1x32xf32>
      %cst_78 = arith.constant dense<0.000000e+00> : vector<16xf32>
      %166 = vector.multi_reduction <add>, %163, %cst_78 [1] : vector<16x32xf32> to vector<16xf32>
      %167 = vector.shape_cast %166 : vector<16xf32> to vector<16x1xf32>
      %cst_79 = arith.constant 3.200000e+01 : f32
      %168 = vector.broadcast %cst_79 : f32 to vector<16x1xf32>
      %169 = arith.divf %167, %168 : vector<16x1xf32>
      %170 = vector.broadcast %169 : vector<16x1xf32> to vector<16x32xf32>
      %171 = arith.subf %163, %170 : vector<16x32xf32>
      %172 = arith.mulf %171, %171 : vector<16x32xf32>
      %cst_80 = arith.constant dense<0.000000e+00> : vector<16xf32>
      %173 = vector.multi_reduction <add>, %172, %cst_80 [1] : vector<16x32xf32> to vector<16xf32>
      %174 = vector.shape_cast %173 : vector<16xf32> to vector<16x1xf32>
      %cst_81 = arith.constant 3.200000e+01 : f32
      %175 = vector.broadcast %cst_81 : f32 to vector<16x1xf32>
      %176 = arith.divf %174, %175 : vector<16x1xf32>
      %177 = vector.broadcast %169 : vector<16x1xf32> to vector<16x32xf32>
      %178 = arith.subf %163, %177 : vector<16x32xf32>
      %cst_82 = arith.constant 9.99999974E-6 : f32
      %179 = vector.broadcast %cst_82 : f32 to vector<16x1xf32>
      %180 = arith.addf %176, %179 : vector<16x1xf32>
      %181 = math.rsqrt %180 : vector<16x1xf32>
      %182 = vector.broadcast %181 : vector<16x1xf32> to vector<16x32xf32>
      %183 = arith.mulf %178, %182 : vector<16x32xf32>
      %184 = vector.broadcast %164 : vector<1x32xf32> to vector<16x32xf32>
      %185 = arith.mulf %183, %184 : vector<16x32xf32>
      %186 = vector.broadcast %165 : vector<1x32xf32> to vector<16x32xf32>
      %187 = arith.addf %185, %186 : vector<16x32xf32>
      %188 = vector.shape_cast %187 : vector<16x32xf32> to vector<2x8x32xf32>
      %c0_83 = arith.constant 0 : index
      %c0_84 = arith.constant 0 : index
      %c0_85 = arith.constant 0 : index
      %189 = vector.load %arg17[%c0_83, %c0_84, %c0_85] : memref<2x8x32xf32, #tpu.memory_space<vmem>>, vector<2x8x32xf32>
      tpu.vector_store %arg17[%c0_83, %c0_84, %c0_85], %188 {strides = array<i32>} : memref<2x8x32xf32, #tpu.memory_space<vmem>>, vector<2x8x32xf32>,
    } else {
    }
    return
  }
  func.func @transform_0(%arg0: i32) -> (i32, i32, i32) {
    %c0_i32 = arith.constant 0 : i32
    %c0_i32_0 = arith.constant 0 : i32
    %c0_i32_1 = arith.constant 0 : i32
    %c0_i32_2 = arith.constant 0 : i32
    return %c0_i32, %c0_i32_0, %c0_i32_1 : i32, i32, i32
  }
  func.func @transform_1(%arg0: i32) -> (i32, i32) {
    %c0_i32 = arith.constant 0 : i32
    %c0_i32_0 = arith.constant 0 : i32
    %c0_i32_1 = arith.constant 0 : i32
    return %c0_i32, %c0_i32_0 : i32, i32
  }
  func.func @transform_2(%arg0: i32) -> (i32, i32, i32) {
    %c0_i32 = arith.constant 0 : i32
    %c0_i32_0 = arith.constant 0 : i32
    %c0_i32_1 = arith.constant 0 : i32
    return %arg0, %c0_i32, %c0_i32_0 : i32, i32, i32
  }
  func.func @transform_3(%arg0: i32) -> (i32, i32, i32) {
    %c0_i32 = arith.constant 0 : i32
    %c0_i32_0 = arith.constant 0 : i32
    %c0_i32_1 = arith.constant 0 : i32
    return %arg0, %c0_i32, %c0_i32_0 : i32, i32, i32
  }
  func.func @transform_4(%arg0: i32) -> (i32, i32, i32) {
    %c0_i32 = arith.constant 0 : i32
    %c0_i32_0 = arith.constant 0 : i32
    %c0_i32_1 = arith.constant 0 : i32
    return %arg0, %c0_i32, %c0_i32_0 : i32, i32, i32
  }
  func.func @transform_5(%arg0: i32) -> (i32, i32, i32) {
    %c0_i32 = arith.constant 0 : i32
    %c0_i32_0 = arith.constant 0 : i32
    %c0_i32_1 = arith.constant 0 : i32
    return %arg0, %c0_i32, %c0_i32_0 : i32, i32, i32
  }
  func.func @transform_6(%arg0: i32) -> (i32, i32, i32) {
    %c0_i32 = arith.constant 0 : i32
    %c0_i32_0 = arith.constant 0 : i32
    %c0_i32_1 = arith.constant 0 : i32
    return %arg0, %c0_i32, %c0_i32_0 : i32, i32, i32
  }
  func.func @transform_7(%arg0: i32) -> (i32, i32, i32) {
    %c0_i32 = arith.constant 0 : i32
    %c0_i32_0 = arith.constant 0 : i32
    %c0_i32_1 = arith.constant 0 : i32
    return %arg0, %c0_i32, %c0_i32_0 : i32, i32, i32
  }
  func.func @transform_8(%arg0: i32) -> (i32, i32, i32) {
    %c0_i32 = arith.constant 0 : i32
    %c0_i32_0 = arith.constant 0 : i32
    %c0_i32_1 = arith.constant 0 : i32
    return %arg0, %c0_i32, %c0_i32_0 : i32, i32, i32
  }
  func.func @transform_9(%arg0: i32) -> (i32, i32, i32) {
    %c0_i32 = arith.constant 0 : i32
    %c0_i32_0 = arith.constant 0 : i32
    %c0_i32_1 = arith.constant 0 : i32
    return %arg0, %c0_i32, %c0_i32_0 : i32, i32, i32
  }
  func.func @transform_10(%arg0: i32) -> (i32, i32, i32) {
    %c0_i32 = arith.constant 0 : i32
    %c0_i32_0 = arith.constant 0 : i32
    %c0_i32_1 = arith.constant 0 : i32
    return %arg0, %c0_i32, %c0_i32_0 : i32, i32, i32
  }
  func.func @transform_11(%arg0: i32) -> (i32, i32, i32) {
    %c0_i32 = arith.constant 0 : i32
    %c0_i32_0 = arith.constant 0 : i32
    %c0_i32_1 = arith.constant 0 : i32
    return %arg0, %c0_i32, %c0_i32_0 : i32, i32, i32
  }
  func.func @transform_12(%arg0: i32) -> (i32, i32, i32) {
    %c0_i32 = arith.constant 0 : i32
    %c0_i32_0 = arith.constant 0 : i32
    %c0_i32_1 = arith.constant 0 : i32
    return %arg0, %c0_i32, %c0_i32_0 : i32, i32, i32
  }
  func.func @transform_13(%arg0: i32) -> (i32, i32, i32) {
    %c0_i32 = arith.constant 0 : i32
    %c0_i32_0 = arith.constant 0 : i32
    %c0_i32_1 = arith.constant 0 : i32
    return %arg0, %c0_i32, %c0_i32_0 : i32, i32, i32
  }
  func.func @transform_14(%arg0: i32) -> (i32, i32) {
    %c0_i32 = arith.constant 0 : i32
    %c0_i32_0 = arith.constant 0 : i32
    %c0_i32_1 = arith.constant 0 : i32
    return %c0_i32, %c0_i32_0 : i32, i32
  }
  func.func @transform_15(%arg0: i32) -> (i32, i32) {
    %c0_i32 = arith.constant 0 : i32
    %c0_i32_0 = arith.constant 0 : i32
    %c0_i32_1 = arith.constant 0 : i32
    return %c0_i32, %c0_i32_0 : i32, i32
  }
  func.func @transform_16(%arg0: i32) -> (i32, i32, i32) {
    %c0_i32 = arith.constant 0 : i32
    %c0_i32_0 = arith.constant 0 : i32
    %c0_i32_1 = arith.constant 0 : i32
    %c0_i32_2 = arith.constant 0 : i32
    return %c0_i32, %c0_i32_0, %c0_i32_1 : i32, i32, i32
  }
}

</mosaic_0001>

<llo_original>
// kernel: tpu_custom_call.1
$region0: #{tpu_custom_call.1}
  #allocation0 [shape = 'u32[]', space=smem, size = 0x4, offset = 0x4, fixed_abs, tag = 'smem constant byte address 0x4 - core index']
  #allocation1 [shape = 'u32[144,128]{1,0:T(1,128)}', space=vmem, size = 0x12000, scoped, tag = 'internal scratch']
  %s0 = inlined_call_operand.vmem [shape: f32[2,8,32], index: 0, kind: input, shape index: {}]
  %s1 = inlined_call_operand.vmem [shape: f32[8,8], index: 1, kind: input, shape index: {}]
  %s2 = inlined_call_operand.vmem [shape: f32[2,1,32], index: 2, kind: input, shape index: {}]
  %s3 = inlined_call_operand.vmem [shape: f32[2,1,32], index: 3, kind: input, shape index: {}]
  %s4 = inlined_call_operand.vmem [shape: bf16[2,32,96], index: 4, kind: input, shape index: {}]
  %s5 = inlined_call_operand.vmem [shape: f32[2,1,96], index: 5, kind: input, shape index: {}]
  %s6 = inlined_call_operand.vmem [shape: bf16[2,32,32], index: 6, kind: input, shape index: {}]
  %s7 = inlined_call_operand.vmem [shape: f32[2,1,32], index: 7, kind: input, shape index: {}]
  %s8 = inlined_call_operand.vmem [shape: f32[2,1,32], index: 8, kind: input, shape index: {}]
  %s9 = inlined_call_operand.vmem [shape: f32[2,1,32], index: 9, kind: input, shape index: {}]
  %s10 = inlined_call_operand.vmem [shape: bf16[2,32,128], index: 10, kind: input, shape index: {}]
  %s11 = inlined_call_operand.vmem [shape: f32[2,1,128], index: 11, kind: input, shape index: {}]
  %s12 = inlined_call_operand.vmem [shape: bf16[2,128,32], index: 12, kind: input, shape index: {}]
  %s13 = inlined_call_operand.vmem [shape: f32[2,1,32], index: 13, kind: input, shape index: {}]
  %s14 = inlined_call_operand.vmem [shape: f32[1,32], index: 14, kind: input, shape index: {}]
  %s15 = inlined_call_operand.vmem [shape: f32[1,32], index: 15, kind: input, shape index: {}]
  %s16 = inlined_call_operand.hbm [shape: f32[2,8,32], index: 16, kind: output, shape index: {}]
  %s17 = sld [smem:[#allocation0]]
  $region105: #{tpu_custom_call.1} parent=0
    _
  %s19 = ssub.s32 1, %s17
  %s20 = scalar_select 0, %s19, %s17
  $region1: #{tpu_custom_call.1} parent=0
    #allocation2 [shape = 'u8[8192]{0}', space=vmem, size = 0x2000, scoped, tag = 'output window, operand 0, single buffered']
    #allocation3 [shape = 's32[2]{0}', space=sflag, size = 0x8, scoped, tag = 'scoped memory for tpu_custom_call.1']
    %21 = vsyncpa [#allocation3], 0
    loop: start=0, step=1, limit=4
    $region2: #{tpu_custom_call.1} parent=1 // loop_pre_header
      _
    $region3: #{tpu_custom_call.1} parent=1 // loop_header
      %s23 = sphi 0, %s27
      %p24 = scmp.ge.s32.totalorder %s23, 4
      %s31 = sphi 0, %s31
      %s33 = sphi 0, %s31
      %s34 = sphi 0, %s33
      %s48 = sphi 0, %s34
      %s52 = sphi 0, %s52
      %s54 = sphi 0, %s52
      %s55 = sphi 0, %s54
      %s69 = sphi 0, %s55
      %s75 = sphi 0, %s77
      %s78 = sphi 0, %s75
      %s79 = sphi 0, %s78
      %s95 = sphi 0, %s79
      %s101 = sphi 0, %s103
      %s104 = sphi 0, %s101
      %s105 = sphi 0, %s104
      %s121 = sphi 0, %s105
      %s127 = sphi 0, %s129
      %s130 = sphi 0, %s127
      %s131 = sphi 0, %s130
      %s147 = sphi 0, %s131
      %s153 = sphi 0, %s155
      %s156 = sphi 0, %s153
      %s157 = sphi 0, %s156
      %s173 = sphi 0, %s157
      %s179 = sphi 0, %s181
      %s182 = sphi 0, %s179
      %s183 = sphi 0, %s182
      %s199 = sphi 0, %s183
      %s205 = sphi 0, %s207
      %s208 = sphi 0, %s205
      %s209 = sphi 0, %s208
      %s225 = sphi 0, %s209
      %s231 = sphi 0, %s233
      %s234 = sphi 0, %s231
      %s235 = sphi 0, %s234
      %s251 = sphi 0, %s235
      %s257 = sphi 0, %s259
      %s260 = sphi 0, %s257
      %s261 = sphi 0, %s260
      %s277 = sphi 0, %s261
      %s283 = sphi 0, %s285
      %s286 = sphi 0, %s283
      %s287 = sphi 0, %s286
      %s303 = sphi 0, %s287
      %s309 = sphi 0, %s311
      %s312 = sphi 0, %s309
      %s313 = sphi 0, %s312
      %s329 = sphi 0, %s313
      %s335 = sphi 0, %s337
      %s338 = sphi 0, %s335
      %s339 = sphi 0, %s338
      %s355 = sphi 0, %s339
      %s361 = sphi 0, %s363
      %s364 = sphi 0, %s361
      %s365 = sphi 0, %s364
      %s381 = sphi 0, %s365
      %s385 = sphi 0, %s385
      %s387 = sphi 0, %s385
      %s388 = sphi 0, %s387
      %s402 = sphi 0, %s388
      %s406 = sphi 0, %s406
      %s408 = sphi 0, %s406
      %s409 = sphi 0, %s408
      %s423 = sphi 0, %s409
      %s427 = sphi 0, %s427
      %s429 = sphi 0, %s427
      %s430 = sphi 0, %s429
      %s444 = sphi 0, %s430
    $region4: #{tpu_custom_call.1} parent=1 // loop_header_branch
      %26 = sbr.rel (%p24) target = $region8
    $region5: #{tpu_custom_call.1} parent=1 // loop_body
      %s28 = ssub.s32 %s23, 1
      %s29 = ssub.s32 %s23, 2
      %s30 = sadd.s32 %s23, 1
      %s32 = sadd.s32 %s31, 1
      %p35 = scmp.eq.s32.totalorder %s23, 1
      %p36 = scmp.ne.s32.totalorder %s31, %s33
      %p37 = scmp.eq.s32.totalorder %s23, 0
      %p38 = por %p36, %p37
      %p39 = scmp.ne.s32.totalorder %s31, %s33
      %p40 = scmp.eq.s32.totalorder %s28, 1
      %p41 = por %p39, %p40
      %p42 = scmp.ne.s32.totalorder %s33, %s34
      %p43 = scmp.eq.s32.totalorder %s28, 0
      %p44 = por %p42, %p43
      %p45 = scmp.ne.s32.totalorder %s33, %s34
      %p46 = scmp.eq.s32.totalorder %s29, 1
      %p47 = por %p45, %p46
      %p49 = scmp.ne.s32.totalorder %s34, %s48
      %p50 = scmp.eq.s32.totalorder %s29, 0
      %p51 = por %p49, %p50
      %s53 = sadd.s32 %s52, 1
      %p56 = scmp.eq.s32.totalorder %s23, 1
      %p57 = scmp.ne.s32.totalorder %s52, %s54
      %p58 = scmp.eq.s32.totalorder %s23, 0
      %p59 = por %p57, %p58
      %p60 = scmp.ne.s32.totalorder %s52, %s54
      %p61 = scmp.eq.s32.totalorder %s28, 1
      %p62 = por %p60, %p61
      %p63 = scmp.ne.s32.totalorder %s54, %s55
      %p64 = scmp.eq.s32.totalorder %s28, 0
      %p65 = por %p63, %p64
      %p66 = scmp.ne.s32.totalorder %s54, %s55
      %p67 = scmp.eq.s32.totalorder %s29, 1
      %p68 = por %p66, %p67
      %p70 = scmp.ne.s32.totalorder %s55, %s69
      %p71 = scmp.eq.s32.totalorder %s29, 0
      %p72 = por %p70, %p71
      %s73 = ssub.s32 %s23, %s30
      %p74 = scmp.eq.s32.totalorder %s73, 0
      %s76 = sadd.s32 %s75, 1
      %s77 = scalar_select %p74, %s75, %s76
      %p80 = pneg %p74
      %p81 = scmp.eq.s32.totalorder %s23, 1
      %p82 = por %p80, %p81
      %p83 = scmp.ne.s32.totalorder %s75, %s78
      %p84 = scmp.eq.s32.totalorder %s23, 0
      %p85 = por %p83, %p84
      %p86 = scmp.ne.s32.totalorder %s75, %s78
      %p87 = scmp.eq.s32.totalorder %s28, 1
      %p88 = por %p86, %p87
      %p89 = scmp.ne.s32.totalorder %s78, %s79
      %p90 = scmp.eq.s32.totalorder %s28, 0
      %p91 = por %p89, %p90
      %p92 = scmp.ne.s32.totalorder %s78, %s79
      %p93 = scmp.eq.s32.totalorder %s29, 1
      %p94 = por %p92, %p93
      %p96 = scmp.ne.s32.totalorder %s79, %s95
      %p97 = scmp.eq.s32.totalorder %s29, 0
      %p98 = por %p96, %p97
      %s99 = ssub.s32 %s23, %s30
      %p100 = scmp.eq.s32.totalorder %s99, 0
      %s102 = sadd.s32 %s101, 1
      %s103 = scalar_select %p100, %s101, %s102
      %p106 = pneg %p100
      %p107 = scmp.eq.s32.totalorder %s23, 1
      %p108 = por %p106, %p107
      %p109 = scmp.ne.s32.totalorder %s101, %s104
      %p110 = scmp.eq.s32.totalorder %s23, 0
      %p111 = por %p109, %p110
      %p112 = scmp.ne.s32.totalorder %s101, %s104
      %p113 = scmp.eq.s32.totalorder %s28, 1
      %p114 = por %p112, %p113
      %p115 = scmp.ne.s32.totalorder %s104, %s105
      %p116 = scmp.eq.s32.totalorder %s28, 0
      %p117 = por %p115, %p116
      %p118 = scmp.ne.s32.totalorder %s104, %s105
      %p119 = scmp.eq.s32.totalorder %s29, 1
      %p120 = por %p118, %p119
      %p122 = scmp.ne.s32.totalorder %s105, %s121
      %p123 = scmp.eq.s32.totalorder %s29, 0
      %p124 = por %p122, %p123
      %s125 = ssub.s32 %s23, %s30
      %p126 = scmp.eq.s32.totalorder %s125, 0
      %s128 = sadd.s32 %s127, 1
      %s129 = scalar_select %p126, %s127, %s128
      %p132 = pneg %p126
      %p133 = scmp.eq.s32.totalorder %s23, 1
      %p134 = por %p132, %p133
      %p135 = scmp.ne.s32.totalorder %s127, %s130
      %p136 = scmp.eq.s32.totalorder %s23, 0
      %p137 = por %p135, %p136
      %p138 = scmp.ne.s32.totalorder %s127, %s130
      %p139 = scmp.eq.s32.totalorder %s28, 1
      %p140 = por %p138, %p139
      %p141 = scmp.ne.s32.totalorder %s130, %s131
      %p142 = scmp.eq.s32.totalorder %s28, 0
      %p143 = por %p141, %p142
      %p144 = scmp.ne.s32.totalorder %s130, %s131
      %p145 = scmp.eq.s32.totalorder %s29, 1
      %p146 = por %p144, %p145
      %p148 = scmp.ne.s32.totalorder %s131, %s147
      %p149 = scmp.eq.s32.totalorder %s29, 0
      %p150 = por %p148, %p149
      %s151 = ssub.s32 %s23, %s30
      %p152 = scmp.eq.s32.totalorder %s151, 0
      %s154 = sadd.s32 %s153, 1
      %s155 = scalar_select %p152, %s153, %s154
      %p158 = pneg %p152
      %p159 = scmp.eq.s32.totalorder %s23, 1
      %p160 = por %p158, %p159
      %p161 = scmp.ne.s32.totalorder %s153, %s156
      %p162 = scmp.eq.s32.totalorder %s23, 0
      %p163 = por %p161, %p162
      %p164 = scmp.ne.s32.totalorder %s153, %s156
      %p165 = scmp.eq.s32.totalorder %s28, 1
      %p166 = por %p164, %p165
      %p167 = scmp.ne.s32.totalorder %s156, %s157
      %p168 = scmp.eq.s32.totalorder %s28, 0
      %p169 = por %p167, %p168
      %p170 = scmp.ne.s32.totalorder %s156, %s157
      %p171 = scmp.eq.s32.totalorder %s29, 1
      %p172 = por %p170, %p171
      %p174 = scmp.ne.s32.totalorder %s157, %s173
      %p175 = scmp.eq.s32.totalorder %s29, 0
      %p176 = por %p174, %p175
      %s177 = ssub.s32 %s23, %s30
      %p178 = scmp.eq.s32.totalorder %s177, 0
      %s180 = sadd.s32 %s179, 1
      %s181 = scalar_select %p178, %s179, %s180
      %p184 = pneg %p178
      %p185 = scmp.eq.s32.totalorder %s23, 1
      %p186 = por %p184, %p185
      %p187 = scmp.ne.s32.totalorder %s179, %s182
      %p188 = scmp.eq.s32.totalorder %s23, 0
      %p189 = por %p187, %p188
      %p190 = scmp.ne.s32.totalorder %s179, %s182
      %p191 = scmp.eq.s32.totalorder %s28, 1
      %p192 = por %p190, %p191
      %p193 = scmp.ne.s32.totalorder %s182, %s183
      %p194 = scmp.eq.s32.totalorder %s28, 0
      %p195 = por %p193, %p194
      %p196 = scmp.ne.s32.totalorder %s182, %s183
      %p197 = scmp.eq.s32.totalorder %s29, 1
      %p198 = por %p196, %p197
      %p200 = scmp.ne.s32.totalorder %s183, %s199
      %p201 = scmp.eq.s32.totalorder %s29, 0
      %p202 = por %p200, %p201
      %s203 = ssub.s32 %s23, %s30
      %p204 = scmp.eq.s32.totalorder %s203, 0
      %s206 = sadd.s32 %s205, 1
      %s207 = scalar_select %p204, %s205, %s206
      %p210 = pneg %p204
      %p211 = scmp.eq.s32.totalorder %s23, 1
      %p212 = por %p210, %p211
      %p213 = scmp.ne.s32.totalorder %s205, %s208
      %p214 = scmp.eq.s32.totalorder %s23, 0
      %p215 = por %p213, %p214
      %p216 = scmp.ne.s32.totalorder %s205, %s208
      %p217 = scmp.eq.s32.totalorder %s28, 1
      %p218 = por %p216, %p217
      %p219 = scmp.ne.s32.totalorder %s208, %s209
      %p220 = scmp.eq.s32.totalorder %s28, 0
      %p221 = por %p219, %p220
      %p222 = scmp.ne.s32.totalorder %s208, %s209
      %p223 = scmp.eq.s32.totalorder %s29, 1
      %p224 = por %p222, %p223
      %p226 = scmp.ne.s32.totalorder %s209, %s225
      %p227 = scmp.eq.s32.totalorder %s29, 0
      %p228 = por %p226, %p227
      %s229 = ssub.s32 %s23, %s30
      %p230 = scmp.eq.s32.totalorder %s229, 0
      %s232 = sadd.s32 %s231, 1
      %s233 = scalar_select %p230, %s231, %s232
      %p236 = pneg %p230
      %p237 = scmp.eq.s32.totalorder %s23, 1
      %p238 = por %p236, %p237
      %p239 = scmp.ne.s32.totalorder %s231, %s234
      %p240 = scmp.eq.s32.totalorder %s23, 0
      %p241 = por %p239, %p240
      %p242 = scmp.ne.s32.totalorder %s231, %s234
      %p243 = scmp.eq.s32.totalorder %s28, 1
      %p244 = por %p242, %p243
      %p245 = scmp.ne.s32.totalorder %s234, %s235
      %p246 = scmp.eq.s32.totalorder %s28, 0
      %p247 = por %p245, %p246
      %p248 = scmp.ne.s32.totalorder %s234, %s235
      %p249 = scmp.eq.s32.totalorder %s29, 1
      %p250 = por %p248, %p249
      %p252 = scmp.ne.s32.totalorder %s235, %s251
      %p253 = scmp.eq.s32.totalorder %s29, 0
      %p254 = por %p252, %p253
      %s255 = ssub.s32 %s23, %s30
      %p256 = scmp.eq.s32.totalorder %s255, 0
      %s258 = sadd.s32 %s257, 1
      %s259 = scalar_select %p256, %s257, %s258
      %p262 = pneg %p256
      %p263 = scmp.eq.s32.totalorder %s23, 1
      %p264 = por %p262, %p263
      %p265 = scmp.ne.s32.totalorder %s257, %s260
      %p266 = scmp.eq.s32.totalorder %s23, 0
      %p267 = por %p265, %p266
      %p268 = scmp.ne.s32.totalorder %s257, %s260
      %p269 = scmp.eq.s32.totalorder %s28, 1
      %p270 = por %p268, %p269
      %p271 = scmp.ne.s32.totalorder %s260, %s261
      %p272 = scmp.eq.s32.totalorder %s28, 0
      %p273 = por %p271, %p272
      %p274 = scmp.ne.s32.totalorder %s260, %s261
      %p275 = scmp.eq.s32.totalorder %s29, 1
      %p276 = por %p274, %p275
      %p278 = scmp.ne.s32.totalorder %s261, %s277
      %p279 = scmp.eq.s32.totalorder %s29, 0
      %p280 = por %p278, %p279
      %s281 = ssub.s32 %s23, %s30
      %p282 = scmp.eq.s32.totalorder %s281, 0
      %s284 = sadd.s32 %s283, 1
      %s285 = scalar_select %p282, %s283, %s284
      %p288 = pneg %p282
      %p289 = scmp.eq.s32.totalorder %s23, 1
      %p290 = por %p288, %p289
      %p291 = scmp.ne.s32.totalorder %s283, %s286
      %p292 = scmp.eq.s32.totalorder %s23, 0
      %p293 = por %p291, %p292
      %p294 = scmp.ne.s32.totalorder %s283, %s286
      %p295 = scmp.eq.s32.totalorder %s28, 1
      %p296 = por %p294, %p295
      %p297 = scmp.ne.s32.totalorder %s286, %s287
      %p298 = scmp.eq.s32.totalorder %s28, 0
      %p299 = por %p297, %p298
      %p300 = scmp.ne.s32.totalorder %s286, %s287
      %p301 = scmp.eq.s32.totalorder %s29, 1
      %p302 = por %p300, %p301
      %p304 = scmp.ne.s32.totalorder %s287, %s303
      %p305 = scmp.eq.s32.totalorder %s29, 0
      %p306 = por %p304, %p305
      %s307 = ssub.s32 %s23, %s30
      %p308 = scmp.eq.s32.totalorder %s307, 0
      %s310 = sadd.s32 %s309, 1
      %s311 = scalar_select %p308, %s309, %s310
      %p314 = pneg %p308
      %p315 = scmp.eq.s32.totalorder %s23, 1
      %p316 = por %p314, %p315
      %p317 = scmp.ne.s32.totalorder %s309, %s312
      %p318 = scmp.eq.s32.totalorder %s23, 0
      %p319 = por %p317, %p318
      %p320 = scmp.ne.s32.totalorder %s309, %s312
      %p321 = scmp.eq.s32.totalorder %s28, 1
      %p322 = por %p320, %p321
      %p323 = scmp.ne.s32.totalorder %s312, %s313
      %p324 = scmp.eq.s32.totalorder %s28, 0
      %p325 = por %p323, %p324
      %p326 = scmp.ne.s32.totalorder %s312, %s313
      %p327 = scmp.eq.s32.totalorder %s29, 1
      %p328 = por %p326, %p327
      %p330 = scmp.ne.s32.totalorder %s313, %s329
      %p331 = scmp.eq.s32.totalorder %s29, 0
      %p332 = por %p330, %p331
      %s333 = ssub.s32 %s23, %s30
      %p334 = scmp.eq.s32.totalorder %s333, 0
      %s336 = sadd.s32 %s335, 1
      %s337 = scalar_select %p334, %s335, %s336
      %p340 = pneg %p334
      %p341 = scmp.eq.s32.totalorder %s23, 1
      %p342 = por %p340, %p341
      %p343 = scmp.ne.s32.totalorder %s335, %s338
      %p344 = scmp.eq.s32.totalorder %s23, 0
      %p345 = por %p343, %p344
      %p346 = scmp.ne.s32.totalorder %s335, %s338
      %p347 = scmp.eq.s32.totalorder %s28, 1
      %p348 = por %p346, %p347
      %p349 = scmp.ne.s32.totalorder %s338, %s339
      %p350 = scmp.eq.s32.totalorder %s28, 0
      %p351 = por %p349, %p350
      %p352 = scmp.ne.s32.totalorder %s338, %s339
      %p353 = scmp.eq.s32.totalorder %s29, 1
      %p354 = por %p352, %p353
      %p356 = scmp.ne.s32.totalorder %s339, %s355
      %p357 = scmp.eq.s32.totalorder %s29, 0
      %p358 = por %p356, %p357
      %s359 = ssub.s32 %s23, %s30
      %p360 = scmp.eq.s32.totalorder %s359, 0
      %s362 = sadd.s32 %s361, 1
      %s363 = scalar_select %p360, %s361, %s362
      %p366 = pneg %p360
      %p367 = scmp.eq.s32.totalorder %s23, 1
      %p368 = por %p366, %p367
      %p369 = scmp.ne.s32.totalorder %s361, %s364
      %p370 = scmp.eq.s32.totalorder %s23, 0
      %p371 = por %p369, %p370
      %p372 = scmp.ne.s32.totalorder %s361, %s364
      %p373 = scmp.eq.s32.totalorder %s28, 1
      %p374 = por %p372, %p373
      %p375 = scmp.ne.s32.totalorder %s364, %s365
      %p376 = scmp.eq.s32.totalorder %s28, 0
      %p377 = por %p375, %p376
      %p378 = scmp.ne.s32.totalorder %s364, %s365
      %p379 = scmp.eq.s32.totalorder %s29, 1
      %p380 = por %p378, %p379
      %p382 = scmp.ne.s32.totalorder %s365, %s381
      %p383 = scmp.eq.s32.totalorder %s29, 0
      %p384 = por %p382, %p383
      %s386 = sadd.s32 %s385, 1
      %p389 = scmp.eq.s32.totalorder %s23, 1
      %p390 = scmp.ne.s32.totalorder %s385, %s387
      %p391 = scmp.eq.s32.totalorder %s23, 0
      %p392 = por %p390, %p391
      %p393 = scmp.ne.s32.totalorder %s385, %s387
      %p394 = scmp.eq.s32.totalorder %s28, 1
      %p395 = por %p393, %p394
      %p396 = scmp.ne.s32.totalorder %s387, %s388
      %p397 = scmp.eq.s32.totalorder %s28, 0
      %p398 = por %p396, %p397
      %p399 = scmp.ne.s32.totalorder %s387, %s388
      %p400 = scmp.eq.s32.totalorder %s29, 1
      %p401 = por %p399, %p400
      %p403 = scmp.ne.s32.totalorder %s388, %s402
      %p404 = scmp.eq.s32.totalorder %s29, 0
      %p405 = por %p403, %p404
      %s407 = sadd.s32 %s406, 1
      %p410 = scmp.eq.s32.totalorder %s23, 1
      %p411 = scmp.ne.s32.totalorder %s406, %s408
      %p412 = scmp.eq.s32.totalorder %s23, 0
      %p413 = por %p411, %p412
      %p414 = scmp.ne.s32.totalorder %s406, %s408
      %p415 = scmp.eq.s32.totalorder %s28, 1
      %p416 = por %p414, %p415
      %p417 = scmp.ne.s32.totalorder %s408, %s409
      %p418 = scmp.eq.s32.totalorder %s28, 0
      %p419 = por %p417, %p418
      %p420 = scmp.ne.s32.totalorder %s408, %s409
      %p421 = scmp.eq.s32.totalorder %s29, 1
      %p422 = por %p420, %p421
      %p424 = scmp.ne.s32.totalorder %s409, %s423
      %p425 = scmp.eq.s32.totalorder %s29, 0
      %p426 = por %p424, %p425
      %s428 = sadd.s32 %s427, 1
      %p431 = scmp.eq.s32.totalorder %s23, 1
      %p432 = scmp.ne.s32.totalorder %s427, %s429
      %p433 = scmp.eq.s32.totalorder %s23, 0
      %p434 = por %p432, %p433
      %p435 = scmp.ne.s32.totalorder %s427, %s429
      %p436 = scmp.eq.s32.totalorder %s28, 1
      %p437 = por %p435, %p436
      %p438 = scmp.ne.s32.totalorder %s429, %s430
      %p439 = scmp.eq.s32.totalorder %s28, 0
      %p440 = por %p438, %p439
      %p441 = scmp.ne.s32.totalorder %s429, %s430
      %p442 = scmp.eq.s32.totalorder %s29, 1
      %p443 = por %p441, %p442
      %p445 = scmp.ne.s32.totalorder %s430, %s444
      %p446 = scmp.eq.s32.totalorder %s29, 0
      %p447 = por %p445, %p446
      %p448 = scmp.le.s32.totalorder 1, %s23
      %p449 = scmp.lt.s32.totalorder %s23, 3
      %p450 = pnand %p448, %p449
      %p451 = pneg %p450
      // Predicated region
      $region9: #{tpu_custom_call.1} parent=5 // pred_check
        _
      $region10: #{tpu_custom_call.1} parent=5 // pred_check_branch
        %453 = sbr.rel (%p450) target = $region12
      $region11: #{tpu_custom_call.1} parent=5 // pred_region
        %s454 = ssub.s32 %s23, 1
        // Predicated region
        $region13: #{tpu_custom_call.1} parent=11 // pred_check
          %p455 = pneg %p44
        $region14: #{tpu_custom_call.1} parent=11 // pred_check_branch
          %457 = sbr.rel (%p455) target = $region16
        $region15: #{tpu_custom_call.1} parent=11 // pred_region
          _
        $region16: #{tpu_custom_call.1} parent=11 // pred_fallthru
          _
        // Predicated region
        $region17: #{tpu_custom_call.1} parent=11 // pred_check
          %p458 = pneg %p65
        $region18: #{tpu_custom_call.1} parent=11 // pred_check_branch
          %460 = sbr.rel (%p458) target = $region20
        $region19: #{tpu_custom_call.1} parent=11 // pred_region
          _
        $region20: #{tpu_custom_call.1} parent=11 // pred_fallthru
          _
        // Predicated region
        $region21: #{tpu_custom_call.1} parent=11 // pred_check
          %p461 = pneg %p398
        $region22: #{tpu_custom_call.1} parent=11 // pred_check_branch
          %463 = sbr.rel (%p461) target = $region24
        $region23: #{tpu_custom_call.1} parent=11 // pred_region
          _
        $region24: #{tpu_custom_call.1} parent=11 // pred_fallthru
          _
        // Predicated region
        $region25: #{tpu_custom_call.1} parent=11 // pred_check
          %p464 = pneg %p419
        $region26: #{tpu_custom_call.1} parent=11 // pred_check_branch
          %466 = sbr.rel (%p464) target = $region28
        $region27: #{tpu_custom_call.1} parent=11 // pred_region
          _
        $region28: #{tpu_custom_call.1} parent=11 // pred_fallthru
          _
      $region12: #{tpu_custom_call.1} parent=5 // pred_fallthru
        _
      %p467 = scmp.lt.s32.totalorder %s23, 2
      // Predicated region
      $region29: #{tpu_custom_call.1} parent=5 // pred_check
        %p468 = pneg %p467
      $region30: #{tpu_custom_call.1} parent=5 // pred_check_branch
        %470 = sbr.rel (%p468) target = $region32
      $region31: #{tpu_custom_call.1} parent=5 // pred_region
        // Predicated region
        $region33: #{tpu_custom_call.1} parent=31 // pred_check
          %p471 = pneg %p85
        $region34: #{tpu_custom_call.1} parent=31 // pred_check_branch
          %473 = sbr.rel (%p471) target = $region36
        $region35: #{tpu_custom_call.1} parent=31 // pred_region
          %p474 = scmp.lt.s32.totalorder %s23, 1
          %s475 = scalar_select %p474, %s23, 1
          %s476 = scalar_lea.vmem %s2, %s475
        $region36: #{tpu_custom_call.1} parent=31 // pred_fallthru
          _
        // Predicated region
        $region37: #{tpu_custom_call.1} parent=31 // pred_check
          %p477 = pneg %p111
        $region38: #{tpu_custom_call.1} parent=31 // pred_check_branch
          %479 = sbr.rel (%p477) target = $region40
        $region39: #{tpu_custom_call.1} parent=31 // pred_region
          %p480 = scmp.lt.s32.totalorder %s23, 1
          %s481 = scalar_select %p480, %s23, 1
          %s482 = scalar_lea.vmem %s3, %s481
        $region40: #{tpu_custom_call.1} parent=31 // pred_fallthru
          _
        // Predicated region
        $region41: #{tpu_custom_call.1} parent=31 // pred_check
          %p483 = pneg %p137
        $region42: #{tpu_custom_call.1} parent=31 // pred_check_branch
          %485 = sbr.rel (%p483) target = $region44
        $region43: #{tpu_custom_call.1} parent=31 // pred_region
          %p486 = scmp.lt.s32.totalorder %s23, 1
          %s487 = scalar_select %p486, %s23, 1
          %s488 = smul.addr %s487, 4
          %s489 = smul.addr %s488, 4
          %s490 = scalar_lea.vmem %s4, %s489
        $region44: #{tpu_custom_call.1} parent=31 // pred_fallthru
          _
        // Predicated region
        $region45: #{tpu_custom_call.1} parent=31 // pred_check
          %p491 = pneg %p163
        $region46: #{tpu_custom_call.1} parent=31 // pred_check_branch
          %493 = sbr.rel (%p491) target = $region48
        $region47: #{tpu_custom_call.1} parent=31 // pred_region
          %p494 = scmp.lt.s32.totalorder %s23, 1
          %s495 = scalar_select %p494, %s23, 1
          %s496 = scalar_lea.vmem %s5, %s495
        $region48: #{tpu_custom_call.1} parent=31 // pred_fallthru
          _
        // Predicated region
        $region49: #{tpu_custom_call.1} parent=31 // pred_check
          %p497 = pneg %p189
        $region50: #{tpu_custom_call.1} parent=31 // pred_check_branch
          %499 = sbr.rel (%p497) target = $region52
        $region51: #{tpu_custom_call.1} parent=31 // pred_region
          %p500 = scmp.lt.s32.totalorder %s23, 1
          %s501 = scalar_select %p500, %s23, 1
          %s502 = smul.addr %s501, 4
          %s503 = smul.addr %s502, 4
          %s504 = scalar_lea.vmem %s6, %s503
        $region52: #{tpu_custom_call.1} parent=31 // pred_fallthru
          _
        // Predicated region
        $region53: #{tpu_custom_call.1} parent=31 // pred_check
          %p505 = pneg %p215
        $region54: #{tpu_custom_call.1} parent=31 // pred_check_branch
          %507 = sbr.rel (%p505) target = $region56
        $region55: #{tpu_custom_call.1} parent=31 // pred_region
          %p508 = scmp.lt.s32.totalorder %s23, 1
          %s509 = scalar_select %p508, %s23, 1
          %s510 = scalar_lea.vmem %s7, %s509
        $region56: #{tpu_custom_call.1} parent=31 // pred_fallthru
          _
        // Predicated region
        $region57: #{tpu_custom_call.1} parent=31 // pred_check
          %p511 = pneg %p241
        $region58: #{tpu_custom_call.1} parent=31 // pred_check_branch
          %513 = sbr.rel (%p511) target = $region60
        $region59: #{tpu_custom_call.1} parent=31 // pred_region
          %p514 = scmp.lt.s32.totalorder %s23, 1
          %s515 = scalar_select %p514, %s23, 1
          %s516 = scalar_lea.vmem %s8, %s515
        $region60: #{tpu_custom_call.1} parent=31 // pred_fallthru
          _
        // Predicated region
        $region61: #{tpu_custom_call.1} parent=31 // pred_check
          %p517 = pneg %p267
        $region62: #{tpu_custom_call.1} parent=31 // pred_check_branch
          %519 = sbr.rel (%p517) target = $region64
        $region63: #{tpu_custom_call.1} parent=31 // pred_region
          %p520 = scmp.lt.s32.totalorder %s23, 1
          %s521 = scalar_select %p520, %s23, 1
          %s522 = scalar_lea.vmem %s9, %s521
        $region64: #{tpu_custom_call.1} parent=31 // pred_fallthru
          _
        // Predicated region
        $region65: #{tpu_custom_call.1} parent=31 // pred_check
          %p523 = pneg %p293
        $region66: #{tpu_custom_call.1} parent=31 // pred_check_branch
          %525 = sbr.rel (%p523) target = $region68
        $region67: #{tpu_custom_call.1} parent=31 // pred_region
          %p526 = scmp.lt.s32.totalorder %s23, 1
          %s527 = scalar_select %p526, %s23, 1
          %s528 = smul.addr %s527, 4
          %s529 = smul.addr %s528, 4
          %s530 = scalar_lea.vmem %s10, %s529
        $region68: #{tpu_custom_call.1} parent=31 // pred_fallthru
          _
        // Predicated region
        $region69: #{tpu_custom_call.1} parent=31 // pred_check
          %p531 = pneg %p319
        $region70: #{tpu_custom_call.1} parent=31 // pred_check_branch
          %533 = sbr.rel (%p531) target = $region72
        $region71: #{tpu_custom_call.1} parent=31 // pred_region
          %p534 = scmp.lt.s32.totalorder %s23, 1
          %s535 = scalar_select %p534, %s23, 1
          %s536 = scalar_lea.vmem %s11, %s535
        $region72: #{tpu_custom_call.1} parent=31 // pred_fallthru
          _
        // Predicated region
        $region73: #{tpu_custom_call.1} parent=31 // pred_check
          %p537 = pneg %p345
        $region74: #{tpu_custom_call.1} parent=31 // pred_check_branch
          %539 = sbr.rel (%p537) target = $region76
        $region75: #{tpu_custom_call.1} parent=31 // pred_region
          %p540 = scmp.lt.s32.totalorder %s23, 1
          %s541 = scalar_select %p540, %s23, 1
          %s542 = smul.addr %s541, 16
          %s543 = smul.addr %s542, 4
          %s544 = scalar_lea.vmem %s12, %s543
        $region76: #{tpu_custom_call.1} parent=31 // pred_fallthru
          _
        // Predicated region
        $region77: #{tpu_custom_call.1} parent=31 // pred_check
          %p545 = pneg %p371
        $region78: #{tpu_custom_call.1} parent=31 // pred_check_branch
          %547 = sbr.rel (%p545) target = $region80
        $region79: #{tpu_custom_call.1} parent=31 // pred_region
          %p548 = scmp.lt.s32.totalorder %s23, 1
          %s549 = scalar_select %p548, %s23, 1
          %s550 = scalar_lea.vmem %s13, %s549
        $region80: #{tpu_custom_call.1} parent=31 // pred_fallthru
          _
      $region32: #{tpu_custom_call.1} parent=5 // pred_fallthru
        _
      %p551 = scmp.le.s32.totalorder 1, %s23
      %p552 = scmp.lt.s32.totalorder %s23, 3
      %p553 = pnand %p551, %p552
      %p554 = pneg %p553
      // Predicated region
      $region81: #{tpu_custom_call.1} parent=5 // pred_check
        _
      $region82: #{tpu_custom_call.1} parent=5 // pred_check_branch
        %556 = sbr.rel (%p553) target = $region84
      $region83: #{tpu_custom_call.1} parent=5 // pred_region
        %s557 = ssub.s32 %s23, 1
        %p558 = pneg %p44
        %p559 = pneg %p41
        %p560 = pneg %p65
        %p561 = pneg %p62
        %p562 = scmp.lt.s32.totalorder %s28, 1
        %s563 = scalar_select %p562, %s28, 1
        %s564 = scalar_lea.vmem %s2, %s563
        %p565 = pneg %p91
        %p566 = pneg %p88
        %p567 = scmp.lt.s32.totalorder %s28, 1
        %s568 = scalar_select %p567, %s28, 1
        %s569 = scalar_lea.vmem %s3, %s568
        %p570 = pneg %p117
        %p571 = pneg %p114
        %p572 = scmp.lt.s32.totalorder %s28, 1
        %s573 = scalar_select %p572, %s28, 1
        %s574 = smul.addr %s573, 4
        %s575 = smul.addr %s574, 4
        %s576 = scalar_lea.vmem %s4, %s575
        %p577 = pneg %p143
        %p578 = pneg %p140
        %p579 = scmp.lt.s32.totalorder %s28, 1
        %s580 = scalar_select %p579, %s28, 1
        %s581 = scalar_lea.vmem %s5, %s580
        %p582 = pneg %p169
        %p583 = pneg %p166
        %p584 = scmp.lt.s32.totalorder %s28, 1
        %s585 = scalar_select %p584, %s28, 1
        %s586 = smul.addr %s585, 4
        %s587 = smul.addr %s586, 4
        %s588 = scalar_lea.vmem %s6, %s587
        %p589 = pneg %p195
        %p590 = pneg %p192
        %p591 = scmp.lt.s32.totalorder %s28, 1
        %s592 = scalar_select %p591, %s28, 1
        %s593 = scalar_lea.vmem %s7, %s592
        %p594 = pneg %p221
        %p595 = pneg %p218
        %p596 = scmp.lt.s32.totalorder %s28, 1
        %s597 = scalar_select %p596, %s28, 1
        %s598 = scalar_lea.vmem %s8, %s597
        %p599 = pneg %p247
        %p600 = pneg %p244
        %p601 = scmp.lt.s32.totalorder %s28, 1
        %s602 = scalar_select %p601, %s28, 1
        %s603 = scalar_lea.vmem %s9, %s602
        %p604 = pneg %p273
        %p605 = pneg %p270
        %p606 = scmp.lt.s32.totalorder %s28, 1
        %s607 = scalar_select %p606, %s28, 1
        %s608 = smul.addr %s607, 4
        %s609 = smul.addr %s608, 4
        %s610 = scalar_lea.vmem %s10, %s609
        %p611 = pneg %p299
        %p612 = pneg %p296
        %p613 = scmp.lt.s32.totalorder %s28, 1
        %s614 = scalar_select %p613, %s28, 1
        %s615 = scalar_lea.vmem %s11, %s614
        %p616 = pneg %p325
        %p617 = pneg %p322
        %p618 = scmp.lt.s32.totalorder %s28, 1
        %s619 = scalar_select %p618, %s28, 1
        %s620 = smul.addr %s619, 16
        %s621 = smul.addr %s620, 4
        %s622 = scalar_lea.vmem %s12, %s621
        %p623 = pneg %p351
        %p624 = pneg %p348
        %p625 = scmp.lt.s32.totalorder %s28, 1
        %s626 = scalar_select %p625, %s28, 1
        %s627 = scalar_lea.vmem %s13, %s626
        %p628 = pneg %p377
        %p629 = pneg %p374
        %p630 = pneg %p398
        %p631 = pneg %p395
        %p632 = pneg %p419
        %p633 = pneg %p416
        %p634 = pneg %p440
        %p635 = pneg %p437
        %p636 = scmp.lt.s32.totalorder %s28, 1
        %s637 = scalar_select %p636, %s28, 1
        %s638 = scalar_lea.vmem %s2, %s637
        %p639 = scmp.lt.s32.totalorder %s28, 1
        %s640 = scalar_select %p639, %s28, 1
        %s641 = scalar_lea.vmem %s3, %s640
        %p642 = scmp.lt.s32.totalorder %s28, 1
        %s643 = scalar_select %p642, %s28, 1
        %s644 = smul.addr %s643, 4
        %s645 = smul.addr %s644, 4
        %s646 = scalar_lea.vmem %s4, %s645
        %p647 = scmp.lt.s32.totalorder %s28, 1
        %s648 = scalar_select %p647, %s28, 1
        %s649 = scalar_lea.vmem %s5, %s648
        %p650 = scmp.lt.s32.totalorder %s28, 1
        %s651 = scalar_select %p650, %s28, 1
        %s652 = smul.addr %s651, 4
        %s653 = smul.addr %s652, 4
        %s654 = scalar_lea.vmem %s6, %s653
        %p655 = scmp.lt.s32.totalorder %s28, 1
        %s656 = scalar_select %p655, %s28, 1
        %s657 = scalar_lea.vmem %s7, %s656
        %p658 = scmp.lt.s32.totalorder %s28, 1
        %s659 = scalar_select %p658, %s28, 1
        %s660 = scalar_lea.vmem %s8, %s659
        %p661 = scmp.lt.s32.totalorder %s28, 1
        %s662 = scalar_select %p661, %s28, 1
        %s663 = scalar_lea.vmem %s9, %s662
        %p664 = scmp.lt.s32.totalorder %s28, 1
        %s665 = scalar_select %p664, %s28, 1
        %s666 = smul.addr %s665, 4
        %s667 = smul.addr %s666, 4
        %s668 = scalar_lea.vmem %s10, %s667
        %p669 = scmp.lt.s32.totalorder %s28, 1
        %s670 = scalar_select %p669, %s28, 1
        %s671 = scalar_lea.vmem %s11, %s670
        %p672 = scmp.lt.s32.totalorder %s28, 1
        %s673 = scalar_select %p672, %s28, 1
        %s674 = smul.addr %s673, 16
        %s675 = smul.addr %s674, 4
        %s676 = scalar_lea.vmem %s12, %s675
        %p677 = scmp.lt.s32.totalorder %s28, 1
        %s678 = scalar_select %p677, %s28, 1
        %s679 = scalar_lea.vmem %s13, %s678
        %p681 = scmp.eq.s32.totalorder %s28, 0
        // Predicated region
        $region85: #{tpu_custom_call.1} parent=83 // pred_check
          %p682 = pneg %p681
        $region86: #{tpu_custom_call.1} parent=83 // pred_check_branch
          %684 = sbr.rel (%p682) target = $region88
        $region87: #{tpu_custom_call.1} parent=83 // pred_region
          %v685 = vld [vmem:[%s0] sm:$0xff]
          %v686 = vld [vmem:[%s0 + $0x8] sm:$0xff]
          %vm687 = vcmask 261120
          %688 = vst.msk [vmem:[#allocation2] sm:$0xff] %vm687, %v685
          %689 = vst.msk [vmem:[#allocation2 + $0x8] sm:$0xff] %vm687, %v686
        $region88: #{tpu_custom_call.1} parent=83 // pred_fallthru
          _
        %v690 = vld [vmem:[#allocation2] sm:$0xff]
        %v691 = vld [vmem:[#allocation2 + $0x8] sm:$0xff]
        %v692 = vld [vmem:[%s638] sm:$0x1]
        %v693 = vld [vmem:[%s641] sm:$0x1]
        %vm694 = vcmask 261120
        %v695 = vsel %vm694, %v690, 0.0
        %696 = vadd.xlane.f32.xlu0 %v695
        %v697 = vpop.xlane.xlu0 %696
        %v698 = vsel %vm694, %v691, 0.0
        %699 = vadd.xlane.f32.xlu0 %v698
        %v700 = vpop.xlane.xlu0 %699
        %v701 = vrcp.pop 32.0
        %v702 = vmul.f32 %v697, %v701
        %v703 = vmul.f32 %v700, %v701
        %v704 = vsub.f32 %v690, %v702
        %v705 = vsub.f32 %v691, %v703
        %v706 = vmul.f32 %v704, %v704
        %v707 = vmul.f32 %v705, %v705
        %v708 = vsel %vm694, %v706, 0.0
        %709 = vadd.xlane.f32.xlu0 %v708
        %v710 = vpop.xlane.xlu0 %709
        %v711 = vsel %vm694, %v707, 0.0
        %712 = vadd.xlane.f32.xlu0 %v711
        %v713 = vpop.xlane.xlu0 %712
        %v714 = vmul.f32 %v710, %v701
        %v715 = vmul.f32 %v713, %v701
        %v716 = vadd.f32 %v714, 1e-05
        %v717 = vadd.f32 %v715, 1e-05
        %v718 = vrsqrt.pop %v716
        %v719 = vrsqrt.pop %v717
        %v720 = vmul.f32 %v704, %v718
        %v721 = vmul.f32 %v705, %v719
        %v723 = vlaneseq
        %v724 = vshrl.u32 %v723, 7
        %v725 = vsub.s32 0, %v724
        %v726 = vrot.slane %v692, %v725
        %v728 = vmul.f32 %v720, %v726
        %v729 = vmul.f32 %v721, %v726
        %v731 = vlaneseq
        %v732 = vshrl.u32 %v731, 7
        %v733 = vsub.s32 0, %v732
        %v734 = vrot.slane %v693, %v733
        %v736 = vadd.f32 %v728, %v734
        %v737 = vadd.f32 %v729, %v734
        %v738 = vpack.c.bf16 %v737, %v736
        %v739 = vld [vmem:[%s646] sm:$0xf]
        %v740 = vld [vmem:[%s646 + $0x4] sm:$0xf]
        %v741 = vld [vmem:[%s646 + $0x8] sm:$0xf]
        %v742 = vld [vmem:[%s646 + $0xc] sm:$0xf]
        %v743 = vld [vmem:[%s649] sm:$0x1]
        %v745 = vlaneseq
        %v746 = vshrl.u32 %v745, 7
        %v747 = vsub.s32 0, %v746
        %v748 = vrot.slane %v743, %v747
        %v754 = vunpack.c.l.b16 %v739
        %v755 = vunpack.c.l.b16 %v740
        %v756 = vunpack.c.l.b16 %v741
        %v757 = vunpack.c.l.b16 %v742
        %v758 = vpack.c.b16 %v755, %v754
        %v759 = vpack.c.b16 %v757, %v756
        %v763 = vsel %vm694, %v738, 0
        %765 = vmatprep.subr.bf16.mxu0 0
        %766 = vmatpush1.bf16.msra.mxu0 %v758
        %767 = vmatprep.subr.bf16.mxu0 0
        %768 = vmatpush1.bf16.msra.mxu0 %v759
        %769 = vmatprep.subr.bf16.mxu0 0
        %770 = vmatpush1.bf16.msra.mxu0 0
        %771 = vmatprep.subr.bf16.mxu0 0
        %772 = vmatpush1.bf16.msra.mxu0 0
        %773 = vmatprep.subr.bf16.mxu0 0
        %774 = vmatpush1.bf16.msra.mxu0 0
        %775 = vmatprep.subr.bf16.mxu0 0
        %776 = vmatpush1.bf16.msra.mxu0 0
        %777 = vmatprep.subr.bf16.mxu0 0
        %778 = vmatpush1.bf16.msra.mxu0 0
        %779 = vmatprep.subr.bf16.mxu0 0
        %780 = vmatpush1.bf16.msra.mxu0 0
        %781 = vmatprep.subr.bf16.mxu0 0
        %782 = vmatpush1.bf16.msra.mxu0 0
        %783 = vmatprep.subr.bf16.mxu0 0
        %784 = vmatpush1.bf16.msra.mxu0 0
        %785 = vmatprep.subr.bf16.mxu0 0
        %786 = vmatpush1.bf16.msra.mxu0 0
        %787 = vmatprep.subr.bf16.mxu0 0
        %788 = vmatpush1.bf16.msra.mxu0 0
        %789 = vmatprep.subr.bf16.mxu0 0
        %790 = vmatpush1.bf16.msra.mxu0 0
        %791 = vmatprep.subr.bf16.mxu0 0
        %792 = vmatpush1.bf16.msra.mxu0 0
        %793 = vmatprep.subr.bf16.mxu0 0
        %794 = vmatpush1.bf16.msra.mxu0 0
        %795 = vmatprep.subr.bf16.mxu0 0
        %796 = vmatpush1.bf16.msra.mxu0 0
        %797 = vmatprep.mubr.bf16.mxu0 0
        %798 = vmatmul.mubr.bf16.gmra.mrb[0].mxu0 %v763
        %v799 = vpop.f32.mrb[0].mxu0
        %v800 = vadd.f32 %v748, %v799
        %v801 = vpop.f32.mrb[0].mxu0
        %v802 = vpop.f32.mrb[0].mxu0
        %v803 = vadd.f32 %v748, %v802
        %v804 = vpop.f32.mrb[0].mxu0
        %805 = vdwg.mxu0
        %v806 = vmul.f32 %v800, 0.25
        %v807 = vmul.f32 %v803, 0.25
        %810 = vrot.lane.b32.xlu0 %v806, 112
        %v811 = vpop.permute.xlu0 %810
        %812 = vrot.lane.b32.xlu0 %v807, 112
        %v813 = vpop.permute.xlu0 %812
        %v816 = vcombine.high %v806, 0.0
        %v818 = vunpack.c.l.s4 1983009808
        %v819 = vunpack.c.0.s8 %v818
        %v820 = vlaneseq
        %v821 = vshrl.u32 %v820, 7
        %v822 = vsub.s32 %v819, %v821
        %v823 = vrot.slane %v806, %v822
        %v825 = vunpack.c.l.s4 1983009808
        %v826 = vunpack.c.0.s8 %v825
        %v827 = vlaneseq
        %v828 = vshrl.u32 %v827, 7
        %v829 = vsub.s32 %v826, %v828
        %v830 = vrot.slane %v816, %v829
        %v831 = vcombine.high %v811, 0.0
        %v833 = vunpack.c.l.s4 1983009808
        %v834 = vunpack.c.0.s8 %v833
        %v835 = vlaneseq
        %v836 = vshrl.u32 %v835, 7
        %v837 = vsub.s32 %v834, %v836
        %v838 = vrot.slane %v811, %v837
        %v840 = vunpack.c.l.s4 1983009808
        %v841 = vunpack.c.0.s8 %v840
        %v842 = vlaneseq
        %v843 = vshrl.u32 %v842, 7
        %v844 = vsub.s32 %v841, %v843
        %v845 = vrot.slane %v831, %v844
        %v846 = vcombine.low %v823, %v838
        %v847 = vcombine.high %v823, %v838
        %v849 = vunpack.c.l.s4 1934713408
        %v850 = vunpack.c.0.s8 %v849
        %v851 = vlaneseq
        %v852 = vshrl.u32 %v851, 7
        %v853 = vsub.s32 %v850, %v852
        %v854 = vrot.slane %v846, %v853
        %v856 = vunpack.c.l.s4 1934713408
        %v857 = vunpack.c.0.s8 %v856
        %v858 = vlaneseq
        %v859 = vshrl.u32 %v858, 7
        %v860 = vsub.s32 %v857, %v859
        %v861 = vrot.slane %v847, %v860
        %v862 = vcombine.low %v830, %v845
        %v863 = vcombine.high %v830, %v845
        %v865 = vunpack.c.l.s4 1934713408
        %v866 = vunpack.c.0.s8 %v865
        %v867 = vlaneseq
        %v868 = vshrl.u32 %v867, 7
        %v869 = vsub.s32 %v866, %v868
        %v870 = vrot.slane %v862, %v869
        %v872 = vunpack.c.l.s4 1934713408
        %v873 = vunpack.c.0.s8 %v872
        %v874 = vlaneseq
        %v875 = vshrl.u32 %v874, 7
        %v876 = vsub.s32 %v873, %v875
        %v877 = vrot.slane %v863, %v876
        %v878 = vcombine.high %v854, 0.0
        %v879 = vcombine.high %v861, 0.0
        %v880 = vcombine.high %v870, 0.0
        %v881 = vcombine.high %v877, 0.0
        %v882 = vcombine.high %v807, 0.0
        %v884 = vunpack.c.l.s4 1983009808
        %v885 = vunpack.c.0.s8 %v884
        %v886 = vlaneseq
        %v887 = vshrl.u32 %v886, 7
        %v888 = vsub.s32 %v885, %v887
        %v889 = vrot.slane %v807, %v888
        %v891 = vunpack.c.l.s4 1983009808
        %v892 = vunpack.c.0.s8 %v891
        %v893 = vlaneseq
        %v894 = vshrl.u32 %v893, 7
        %v895 = vsub.s32 %v892, %v894
        %v896 = vrot.slane %v882, %v895
        %v897 = vcombine.high %v813, 0.0
        %v899 = vunpack.c.l.s4 1983009808
        %v900 = vunpack.c.0.s8 %v899
        %v901 = vlaneseq
        %v902 = vshrl.u32 %v901, 7
        %v903 = vsub.s32 %v900, %v902
        %v904 = vrot.slane %v813, %v903
        %v906 = vunpack.c.l.s4 1983009808
        %v907 = vunpack.c.0.s8 %v906
        %v908 = vlaneseq
        %v909 = vshrl.u32 %v908, 7
        %v910 = vsub.s32 %v907, %v909
        %v911 = vrot.slane %v897, %v910
        %v912 = vcombine.low %v889, %v904
        %v913 = vcombine.high %v889, %v904
        %v915 = vunpack.c.l.s4 1934713408
        %v916 = vunpack.c.0.s8 %v915
        %v917 = vlaneseq
        %v918 = vshrl.u32 %v917, 7
        %v919 = vsub.s32 %v916, %v918
        %v920 = vrot.slane %v912, %v919
        %v922 = vunpack.c.l.s4 1934713408
        %v923 = vunpack.c.0.s8 %v922
        %v924 = vlaneseq
        %v925 = vshrl.u32 %v924, 7
        %v926 = vsub.s32 %v923, %v925
        %v927 = vrot.slane %v913, %v926
        %v928 = vcombine.low %v896, %v911
        %v929 = vcombine.high %v896, %v911
        %v931 = vunpack.c.l.s4 1934713408
        %v932 = vunpack.c.0.s8 %v931
        %v933 = vlaneseq
        %v934 = vshrl.u32 %v933, 7
        %v935 = vsub.s32 %v932, %v934
        %v936 = vrot.slane %v928, %v935
        %v938 = vunpack.c.l.s4 1934713408
        %v939 = vunpack.c.0.s8 %v938
        %v940 = vlaneseq
        %v941 = vshrl.u32 %v940, 7
        %v942 = vsub.s32 %v939, %v941
        %v943 = vrot.slane %v929, %v942
        %v944 = vcombine.high %v920, 0.0
        %v945 = vcombine.high %v927, 0.0
        %v946 = vcombine.high %v936, 0.0
        %v947 = vcombine.high %v943, 0.0
        %950 = vrot.lane.b32.xlu0 %v800, 112
        %v951 = vpop.permute.xlu0 %950
        %952 = vrot.lane.b32.xlu0 %v803, 112
        %v953 = vpop.permute.xlu0 %952
        %954 = vrot.lane.b32.xlu0 %v800, 96
        %v955 = vpop.permute.xlu0 %954
        %956 = vrot.lane.b32.xlu0 %v803, 96
        %v957 = vpop.permute.xlu0 %956
        %958 = vrot.lane.b32.xlu0 %v951, 96
        %v959 = vpop.permute.xlu0 %958
        %960 = vrot.lane.b32.xlu0 %v953, 96
        %v961 = vpop.permute.xlu0 %960
        %v966 = vcombine.high %v955, 0.0
        %v968 = vunpack.c.l.s4 1983009808
        %v969 = vunpack.c.0.s8 %v968
        %v970 = vlaneseq
        %v971 = vshrl.u32 %v970, 7
        %v972 = vsub.s32 %v969, %v971
        %v973 = vrot.slane %v955, %v972
        %v975 = vunpack.c.l.s4 1983009808
        %v976 = vunpack.c.0.s8 %v975
        %v977 = vlaneseq
        %v978 = vshrl.u32 %v977, 7
        %v979 = vsub.s32 %v976, %v978
        %v980 = vrot.slane %v966, %v979
        %v981 = vcombine.high %v959, 0.0
        %v983 = vunpack.c.l.s4 1983009808
        %v984 = vunpack.c.0.s8 %v983
        %v985 = vlaneseq
        %v986 = vshrl.u32 %v985, 7
        %v987 = vsub.s32 %v984, %v986
        %v988 = vrot.slane %v959, %v987
        %v990 = vunpack.c.l.s4 1983009808
        %v991 = vunpack.c.0.s8 %v990
        %v992 = vlaneseq
        %v993 = vshrl.u32 %v992, 7
        %v994 = vsub.s32 %v991, %v993
        %v995 = vrot.slane %v981, %v994
        %v996 = vcombine.low %v973, %v988
        %v997 = vcombine.high %v973, %v988
        %v999 = vunpack.c.l.s4 1934713408
        %v1000 = vunpack.c.0.s8 %v999
        %v1001 = vlaneseq
        %v1002 = vshrl.u32 %v1001, 7
        %v1003 = vsub.s32 %v1000, %v1002
        %v1004 = vrot.slane %v996, %v1003
        %v1006 = vunpack.c.l.s4 1934713408
        %v1007 = vunpack.c.0.s8 %v1006
        %v1008 = vlaneseq
        %v1009 = vshrl.u32 %v1008, 7
        %v1010 = vsub.s32 %v1007, %v1009
        %v1011 = vrot.slane %v997, %v1010
        %v1012 = vcombine.low %v980, %v995
        %v1013 = vcombine.high %v980, %v995
        %v1015 = vunpack.c.l.s4 1934713408
        %v1016 = vunpack.c.0.s8 %v1015
        %v1017 = vlaneseq
        %v1018 = vshrl.u32 %v1017, 7
        %v1019 = vsub.s32 %v1016, %v1018
        %v1020 = vrot.slane %v1012, %v1019
        %v1022 = vunpack.c.l.s4 1934713408
        %v1023 = vunpack.c.0.s8 %v1022
        %v1024 = vlaneseq
        %v1025 = vshrl.u32 %v1024, 7
        %v1026 = vsub.s32 %v1023, %v1025
        %v1027 = vrot.slane %v1013, %v1026
        %v1028 = vcombine.high %v1004, 0.0
        %v1029 = vcombine.high %v1011, 0.0
        %v1030 = vcombine.high %v1020, 0.0
        %v1031 = vcombine.high %v1027, 0.0
        %v1032 = vcombine.high %v957, 0.0
        %v1034 = vunpack.c.l.s4 1983009808
        %v1035 = vunpack.c.0.s8 %v1034
        %v1036 = vlaneseq
        %v1037 = vshrl.u32 %v1036, 7
        %v1038 = vsub.s32 %v1035, %v1037
        %v1039 = vrot.slane %v957, %v1038
        %v1041 = vunpack.c.l.s4 1983009808
        %v1042 = vunpack.c.0.s8 %v1041
        %v1043 = vlaneseq
        %v1044 = vshrl.u32 %v1043, 7
        %v1045 = vsub.s32 %v1042, %v1044
        %v1046 = vrot.slane %v1032, %v1045
        %v1047 = vcombine.high %v961, 0.0
        %v1049 = vunpack.c.l.s4 1983009808
        %v1050 = vunpack.c.0.s8 %v1049
        %v1051 = vlaneseq
        %v1052 = vshrl.u32 %v1051, 7
        %v1053 = vsub.s32 %v1050, %v1052
        %v1054 = vrot.slane %v961, %v1053
        %v1056 = vunpack.c.l.s4 1983009808
        %v1057 = vunpack.c.0.s8 %v1056
        %v1058 = vlaneseq
        %v1059 = vshrl.u32 %v1058, 7
        %v1060 = vsub.s32 %v1057, %v1059
        %v1061 = vrot.slane %v1047, %v1060
        %v1062 = vcombine.low %v1039, %v1054
        %v1063 = vcombine.high %v1039, %v1054
        %v1065 = vunpack.c.l.s4 1934713408
        %v1066 = vunpack.c.0.s8 %v1065
        %v1067 = vlaneseq
        %v1068 = vshrl.u32 %v1067, 7
        %v1069 = vsub.s32 %v1066, %v1068
        %v1070 = vrot.slane %v1062, %v1069
        %v1072 = vunpack.c.l.s4 1934713408
        %v1073 = vunpack.c.0.s8 %v1072
        %v1074 = vlaneseq
        %v1075 = vshrl.u32 %v1074, 7
        %v1076 = vsub.s32 %v1073, %v1075
        %v1077 = vrot.slane %v1063, %v1076
        %v1078 = vcombine.low %v1046, %v1061
        %v1079 = vcombine.high %v1046, %v1061
        %v1081 = vunpack.c.l.s4 1934713408
        %v1082 = vunpack.c.0.s8 %v1081
        %v1083 = vlaneseq
        %v1084 = vshrl.u32 %v1083, 7
        %v1085 = vsub.s32 %v1082, %v1084
        %v1086 = vrot.slane %v1078, %v1085
        %v1088 = vunpack.c.l.s4 1934713408
        %v1089 = vunpack.c.0.s8 %v1088
        %v1090 = vlaneseq
        %v1091 = vshrl.u32 %v1090, 7
        %v1092 = vsub.s32 %v1089, %v1091
        %v1093 = vrot.slane %v1079, %v1092
        %v1094 = vcombine.high %v1070, 0.0
        %v1095 = vcombine.high %v1077, 0.0
        %v1096 = vcombine.high %v1086, 0.0
        %v1097 = vcombine.high %v1093, 0.0
        %1098 = vrot.lane.b32.xlu0 %v800, 64
        %v1099 = vpop.permute.xlu0 %1098
        %1100 = vrot.lane.b32.xlu0 %v803, 64
        %v1101 = vpop.permute.xlu0 %1100
        %1102 = vrot.lane.b32.xlu0 %v951, 64
        %v1103 = vpop.permute.xlu0 %1102
        %1104 = vrot.lane.b32.xlu0 %v953, 64
        %v1105 = vpop.permute.xlu0 %1104
        %v1110 = vcombine.high %v1099, 0.0
        %v1112 = vunpack.c.l.s4 1983009808
        %v1113 = vunpack.c.0.s8 %v1112
        %v1114 = vlaneseq
        %v1115 = vshrl.u32 %v1114, 7
        %v1116 = vsub.s32 %v1113, %v1115
        %v1117 = vrot.slane %v1099, %v1116
        %v1119 = vunpack.c.l.s4 1983009808
        %v1120 = vunpack.c.0.s8 %v1119
        %v1121 = vlaneseq
        %v1122 = vshrl.u32 %v1121, 7
        %v1123 = vsub.s32 %v1120, %v1122
        %v1124 = vrot.slane %v1110, %v1123
        %v1125 = vcombine.high %v1103, 0.0
        %v1127 = vunpack.c.l.s4 1983009808
        %v1128 = vunpack.c.0.s8 %v1127
        %v1129 = vlaneseq
        %v1130 = vshrl.u32 %v1129, 7
        %v1131 = vsub.s32 %v1128, %v1130
        %v1132 = vrot.slane %v1103, %v1131
        %v1134 = vunpack.c.l.s4 1983009808
        %v1135 = vunpack.c.0.s8 %v1134
        %v1136 = vlaneseq
        %v1137 = vshrl.u32 %v1136, 7
        %v1138 = vsub.s32 %v1135, %v1137
        %v1139 = vrot.slane %v1125, %v1138
        %v1140 = vcombine.low %v1117, %v1132
        %v1141 = vcombine.high %v1117, %v1132
        %v1143 = vunpack.c.l.s4 1934713408
        %v1144 = vunpack.c.0.s8 %v1143
        %v1145 = vlaneseq
        %v1146 = vshrl.u32 %v1145, 7
        %v1147 = vsub.s32 %v1144, %v1146
        %v1148 = vrot.slane %v1140, %v1147
        %v1150 = vunpack.c.l.s4 1934713408
        %v1151 = vunpack.c.0.s8 %v1150
        %v1152 = vlaneseq
        %v1153 = vshrl.u32 %v1152, 7
        %v1154 = vsub.s32 %v1151, %v1153
        %v1155 = vrot.slane %v1141, %v1154
        %v1156 = vcombine.low %v1124, %v1139
        %v1157 = vcombine.high %v1124, %v1139
        %v1159 = vunpack.c.l.s4 1934713408
        %v1160 = vunpack.c.0.s8 %v1159
        %v1161 = vlaneseq
        %v1162 = vshrl.u32 %v1161, 7
        %v1163 = vsub.s32 %v1160, %v1162
        %v1164 = vrot.slane %v1156, %v1163
        %v1166 = vunpack.c.l.s4 1934713408
        %v1167 = vunpack.c.0.s8 %v1166
        %v1168 = vlaneseq
        %v1169 = vshrl.u32 %v1168, 7
        %v1170 = vsub.s32 %v1167, %v1169
        %v1171 = vrot.slane %v1157, %v1170
        %v1172 = vcombine.high %v1148, 0.0
        %v1173 = vcombine.high %v1155, 0.0
        %v1174 = vcombine.high %v1164, 0.0
        %v1175 = vcombine.high %v1171, 0.0
        %v1176 = vcombine.high %v1101, 0.0
        %v1178 = vunpack.c.l.s4 1983009808
        %v1179 = vunpack.c.0.s8 %v1178
        %v1180 = vlaneseq
        %v1181 = vshrl.u32 %v1180, 7
        %v1182 = vsub.s32 %v1179, %v1181
        %v1183 = vrot.slane %v1101, %v1182
        %v1185 = vunpack.c.l.s4 1983009808
        %v1186 = vunpack.c.0.s8 %v1185
        %v1187 = vlaneseq
        %v1188 = vshrl.u32 %v1187, 7
        %v1189 = vsub.s32 %v1186, %v1188
        %v1190 = vrot.slane %v1176, %v1189
        %v1191 = vcombine.high %v1105, 0.0
        %v1193 = vunpack.c.l.s4 1983009808
        %v1194 = vunpack.c.0.s8 %v1193
        %v1195 = vlaneseq
        %v1196 = vshrl.u32 %v1195, 7
        %v1197 = vsub.s32 %v1194, %v1196
        %v1198 = vrot.slane %v1105, %v1197
        %v1200 = vunpack.c.l.s4 1983009808
        %v1201 = vunpack.c.0.s8 %v1200
        %v1202 = vlaneseq
        %v1203 = vshrl.u32 %v1202, 7
        %v1204 = vsub.s32 %v1201, %v1203
        %v1205 = vrot.slane %v1191, %v1204
        %v1206 = vcombine.low %v1183, %v1198
        %v1207 = vcombine.high %v1183, %v1198
        %v1209 = vunpack.c.l.s4 1934713408
        %v1210 = vunpack.c.0.s8 %v1209
        %v1211 = vlaneseq
        %v1212 = vshrl.u32 %v1211, 7
        %v1213 = vsub.s32 %v1210, %v1212
        %v1214 = vrot.slane %v1206, %v1213
        %v1216 = vunpack.c.l.s4 1934713408
        %v1217 = vunpack.c.0.s8 %v1216
        %v1218 = vlaneseq
        %v1219 = vshrl.u32 %v1218, 7
        %v1220 = vsub.s32 %v1217, %v1219
        %v1221 = vrot.slane %v1207, %v1220
        %v1222 = vcombine.low %v1190, %v1205
        %v1223 = vcombine.high %v1190, %v1205
        %v1225 = vunpack.c.l.s4 1934713408
        %v1226 = vunpack.c.0.s8 %v1225
        %v1227 = vlaneseq
        %v1228 = vshrl.u32 %v1227, 7
        %v1229 = vsub.s32 %v1226, %v1228
        %v1230 = vrot.slane %v1222, %v1229
        %v1232 = vunpack.c.l.s4 1934713408
        %v1233 = vunpack.c.0.s8 %v1232
        %v1234 = vlaneseq
        %v1235 = vshrl.u32 %v1234, 7
        %v1236 = vsub.s32 %v1233, %v1235
        %v1237 = vrot.slane %v1223, %v1236
        %v1238 = vcombine.high %v1214, 0.0
        %v1239 = vcombine.high %v1221, 0.0
        %v1240 = vcombine.high %v1230, 0.0
        %v1241 = vcombine.high %v1237, 0.0
        %v1242 = vld [vmem:[%s1] sm:$0xff]
        %v1243 = vcombine.low %v854, %v861
        %v1245 = vunpack.c.l.s4 1983009808
        %v1246 = vunpack.c.0.s8 %v1245
        %v1247 = vlaneseq
        %v1248 = vshrl.u32 %v1247, 7
        %v1249 = vsub.s32 %v1246, %v1248
        %v1250 = vrot.slane %v1243, %v1249
        %v1251 = vcombine.low %v878, %v879
        %v1253 = vunpack.c.l.s4 1983009808
        %v1254 = vunpack.c.0.s8 %v1253
        %v1255 = vlaneseq
        %v1256 = vshrl.u32 %v1255, 7
        %v1257 = vsub.s32 %v1254, %v1256
        %v1258 = vrot.slane %v1251, %v1257
        %v1259 = vcombine.low %v870, %v877
        %v1261 = vunpack.c.l.s4 1983009808
        %v1262 = vunpack.c.0.s8 %v1261
        %v1263 = vlaneseq
        %v1264 = vshrl.u32 %v1263, 7
        %v1265 = vsub.s32 %v1262, %v1264
        %v1266 = vrot.slane %v1259, %v1265
        %v1267 = vcombine.low %v880, %v881
        %v1269 = vunpack.c.l.s4 1983009808
        %v1270 = vunpack.c.0.s8 %v1269
        %v1271 = vlaneseq
        %v1272 = vshrl.u32 %v1271, 7
        %v1273 = vsub.s32 %v1270, %v1272
        %v1274 = vrot.slane %v1267, %v1273
        %v1275 = vcombine.low %v1250, %v1258
        %v1277 = vunpack.c.l.s4 1934713408
        %v1278 = vunpack.c.0.s8 %v1277
        %v1279 = vlaneseq
        %v1280 = vshrl.u32 %v1279, 7
        %v1281 = vsub.s32 %v1278, %v1280
        %v1282 = vrot.slane %v1275, %v1281
        %v1283 = vcombine.low %v1266, %v1274
        %v1285 = vunpack.c.l.s4 1934713408
        %v1286 = vunpack.c.0.s8 %v1285
        %v1287 = vlaneseq
        %v1288 = vshrl.u32 %v1287, 7
        %v1289 = vsub.s32 %v1286, %v1288
        %v1290 = vrot.slane %v1283, %v1289
        %v1291 = vcombine.low %v1282, %v1290
        %v1292 = vcombine.high %v1282, %v1290
        %1293 = vxpose.xlu0.b32.start [1/16] %v1004, 128
        %1294 = vxpose.xlu0.b32.cont [2/16] 0.0, 128
        %1295 = vxpose.xlu0.b32.cont [3/16] 0.0, 128
        %1296 = vxpose.xlu0.b32.cont [4/16] 0.0, 128
        %1297 = vxpose.xlu0.b32.cont [5/16] 0.0, 128
        %1298 = vxpose.xlu0.b32.cont [6/16] 0.0, 128
        %1299 = vxpose.xlu0.b32.cont [7/16] 0.0, 128
        %1300 = vxpose.xlu0.b32.cont [8/16] 0.0, 128
        %1301 = vxpose.xlu0.b32.cont [9/16] 0.0, 128
        %1302 = vxpose.xlu0.b32.cont [10/16] 0.0, 128
        %1303 = vxpose.xlu0.b32.cont [11/16] 0.0, 128
        %1304 = vxpose.xlu0.b32.cont [12/16] 0.0, 128
        %1305 = vxpose.xlu0.b32.cont [13/16] 0.0, 128
        %1306 = vxpose.xlu0.b32.cont [14/16] 0.0, 128
        %1307 = vxpose.xlu0.b32.cont [15/16] 0.0, 128
        %1308 = vxpose.xlu0.b32.end [16/16] 0.0, 128
        %v1309 = vpop.trf.xlu0
        %v1310 = vpop.trf.xlu0
        %v1311 = vpop.trf.xlu0
        %v1312 = vpop.trf.xlu0
        %v1313 = vpop.trf.xlu0
        %v1314 = vpop.trf.xlu0
        %v1315 = vpop.trf.xlu0
        %v1316 = vpop.trf.xlu0
        %v1317 = vpop.trf.xlu0
        %v1318 = vpop.trf.xlu0
        %v1319 = vpop.trf.xlu0
        %v1320 = vpop.trf.xlu0
        %v1321 = vpop.trf.xlu0
        %v1322 = vpop.trf.xlu0
        %v1323 = vpop.trf.xlu0
        %v1324 = vpop.trf.xlu0
        %1325 = vxpose.xlu0.b32.start [1/16] %v1028, 128
        %1326 = vxpose.xlu0.b32.cont [2/16] 0.0, 128
        %1327 = vxpose.xlu0.b32.cont [3/16] 0.0, 128
        %1328 = vxpose.xlu0.b32.cont [4/16] 0.0, 128
        %1329 = vxpose.xlu0.b32.cont [5/16] 0.0, 128
        %1330 = vxpose.xlu0.b32.cont [6/16] 0.0, 128
        %1331 = vxpose.xlu0.b32.cont [7/16] 0.0, 128
        %1332 = vxpose.xlu0.b32.cont [8/16] 0.0, 128
        %1333 = vxpose.xlu0.b32.cont [9/16] 0.0, 128
        %1334 = vxpose.xlu0.b32.cont [10/16] 0.0, 128
        %1335 = vxpose.xlu0.b32.cont [11/16] 0.0, 128
        %1336 = vxpose.xlu0.b32.cont [12/16] 0.0, 128
        %1337 = vxpose.xlu0.b32.cont [13/16] 0.0, 128
        %1338 = vxpose.xlu0.b32.cont [14/16] 0.0, 128
        %1339 = vxpose.xlu0.b32.cont [15/16] 0.0, 128
        %1340 = vxpose.xlu0.b32.end [16/16] 0.0, 128
        %v1341 = vpop.trf.xlu0
        %v1342 = vpop.trf.xlu0
        %v1343 = vpop.trf.xlu0
        %v1344 = vpop.trf.xlu0
        %v1345 = vpop.trf.xlu0
        %v1346 = vpop.trf.xlu0
        %v1347 = vpop.trf.xlu0
        %v1348 = vpop.trf.xlu0
        %v1349 = vpop.trf.xlu0
        %v1350 = vpop.trf.xlu0
        %v1351 = vpop.trf.xlu0
        %v1352 = vpop.trf.xlu0
        %v1353 = vpop.trf.xlu0
        %v1354 = vpop.trf.xlu0
        %v1355 = vpop.trf.xlu0
        %v1356 = vpop.trf.xlu0
        %1357 = vxpose.xlu0.b32.start [1/16] %v1011, 128
        %1358 = vxpose.xlu0.b32.cont [2/16] 0.0, 128
        %1359 = vxpose.xlu0.b32.cont [3/16] 0.0, 128
        %1360 = vxpose.xlu0.b32.cont [4/16] 0.0, 128
        %1361 = vxpose.xlu0.b32.cont [5/16] 0.0, 128
        %1362 = vxpose.xlu0.b32.cont [6/16] 0.0, 128
        %1363 = vxpose.xlu0.b32.cont [7/16] 0.0, 128
        %1364 = vxpose.xlu0.b32.cont [8/16] 0.0, 128
        %1365 = vxpose.xlu0.b32.cont [9/16] 0.0, 128
        %1366 = vxpose.xlu0.b32.cont [10/16] 0.0, 128
        %1367 = vxpose.xlu0.b32.cont [11/16] 0.0, 128
        %1368 = vxpose.xlu0.b32.cont [12/16] 0.0, 128
        %1369 = vxpose.xlu0.b32.cont [13/16] 0.0, 128
        %1370 = vxpose.xlu0.b32.cont [14/16] 0.0, 128
        %1371 = vxpose.xlu0.b32.cont [15/16] 0.0, 128
        %1372 = vxpose.xlu0.b32.end [16/16] 0.0, 128
        %v1373 = vpop.trf.xlu0
        %v1374 = vpop.trf.xlu0
        %v1375 = vpop.trf.xlu0
        %v1376 = vpop.trf.xlu0
        %v1377 = vpop.trf.xlu0
        %v1378 = vpop.trf.xlu0
        %v1379 = vpop.trf.xlu0
        %v1380 = vpop.trf.xlu0
        %v1381 = vpop.trf.xlu0
        %v1382 = vpop.trf.xlu0
        %v1383 = vpop.trf.xlu0
        %v1384 = vpop.trf.xlu0
        %v1385 = vpop.trf.xlu0
        %v1386 = vpop.trf.xlu0
        %v1387 = vpop.trf.xlu0
        %v1388 = vpop.trf.xlu0
        %1389 = vxpose.xlu0.b32.start [1/16] %v1029, 128
        %1390 = vxpose.xlu0.b32.cont [2/16] 0.0, 128
        %1391 = vxpose.xlu0.b32.cont [3/16] 0.0, 128
        %1392 = vxpose.xlu0.b32.cont [4/16] 0.0, 128
        %1393 = vxpose.xlu0.b32.cont [5/16] 0.0, 128
        %1394 = vxpose.xlu0.b32.cont [6/16] 0.0, 128
        %1395 = vxpose.xlu0.b32.cont [7/16] 0.0, 128
        %1396 = vxpose.xlu0.b32.cont [8/16] 0.0, 128
        %1397 = vxpose.xlu0.b32.cont [9/16] 0.0, 128
        %1398 = vxpose.xlu0.b32.cont [10/16] 0.0, 128
        %1399 = vxpose.xlu0.b32.cont [11/16] 0.0, 128
        %1400 = vxpose.xlu0.b32.cont [12/16] 0.0, 128
        %1401 = vxpose.xlu0.b32.cont [13/16] 0.0, 128
        %1402 = vxpose.xlu0.b32.cont [14/16] 0.0, 128
        %1403 = vxpose.xlu0.b32.cont [15/16] 0.0, 128
        %1404 = vxpose.xlu0.b32.end [16/16] 0.0, 128
        %v1405 = vpop.trf.xlu0
        %v1406 = vpop.trf.xlu0
        %v1407 = vpop.trf.xlu0
        %v1408 = vpop.trf.xlu0
        %v1409 = vpop.trf.xlu0
        %v1410 = vpop.trf.xlu0
        %v1411 = vpop.trf.xlu0
        %v1412 = vpop.trf.xlu0
        %v1413 = vpop.trf.xlu0
        %v1414 = vpop.trf.xlu0
        %v1415 = vpop.trf.xlu0
        %v1416 = vpop.trf.xlu0
        %v1417 = vpop.trf.xlu0
        %v1418 = vpop.trf.xlu0
        %v1419 = vpop.trf.xlu0
        %v1420 = vpop.trf.xlu0
        %1421 = vxpose.xlu0.b32.start [1/16] %v1020, 128
        %1422 = vxpose.xlu0.b32.cont [2/16] 0.0, 128
        %1423 = vxpose.xlu0.b32.cont [3/16] 0.0, 128
        %1424 = vxpose.xlu0.b32.cont [4/16] 0.0, 128
        %1425 = vxpose.xlu0.b32.cont [5/16] 0.0, 128
        %1426 = vxpose.xlu0.b32.cont [6/16] 0.0, 128
        %1427 = vxpose.xlu0.b32.cont [7/16] 0.0, 128
        %1428 = vxpose.xlu0.b32.cont [8/16] 0.0, 128
        %1429 = vxpose.xlu0.b32.cont [9/16] 0.0, 128
        %1430 = vxpose.xlu0.b32.cont [10/16] 0.0, 128
        %1431 = vxpose.xlu0.b32.cont [11/16] 0.0, 128
        %1432 = vxpose.xlu0.b32.cont [12/16] 0.0, 128
        %1433 = vxpose.xlu0.b32.cont [13/16] 0.0, 128
        %1434 = vxpose.xlu0.b32.cont [14/16] 0.0, 128
        %1435 = vxpose.xlu0.b32.cont [15/16] 0.0, 128
        %1436 = vxpose.xlu0.b32.end [16/16] 0.0, 128
        %v1437 = vpop.trf.xlu0
        %v1438 = vpop.trf.xlu0
        %v1439 = vpop.trf.xlu0
        %v1440 = vpop.trf.xlu0
        %v1441 = vpop.trf.xlu0
        %v1442 = vpop.trf.xlu0
        %v1443 = vpop.trf.xlu0
        %v1444 = vpop.trf.xlu0
        %v1445 = vpop.trf.xlu0
        %v1446 = vpop.trf.xlu0
        %v1447 = vpop.trf.xlu0
        %v1448 = vpop.trf.xlu0
        %v1449 = vpop.trf.xlu0
        %v1450 = vpop.trf.xlu0
        %v1451 = vpop.trf.xlu0
        %v1452 = vpop.trf.xlu0
        %1453 = vxpose.xlu0.b32.start [1/16] %v1030, 128
        %1454 = vxpose.xlu0.b32.cont [2/16] 0.0, 128
        %1455 = vxpose.xlu0.b32.cont [3/16] 0.0, 128
        %1456 = vxpose.xlu0.b32.cont [4/16] 0.0, 128
        %1457 = vxpose.xlu0.b32.cont [5/16] 0.0, 128
        %1458 = vxpose.xlu0.b32.cont [6/16] 0.0, 128
        %1459 = vxpose.xlu0.b32.cont [7/16] 0.0, 128
        %1460 = vxpose.xlu0.b32.cont [8/16] 0.0, 128
        %1461 = vxpose.xlu0.b32.cont [9/16] 0.0, 128
        %1462 = vxpose.xlu0.b32.cont [10/16] 0.0, 128
        %1463 = vxpose.xlu0.b32.cont [11/16] 0.0, 128
        %1464 = vxpose.xlu0.b32.cont [12/16] 0.0, 128
        %1465 = vxpose.xlu0.b32.cont [13/16] 0.0, 128
        %1466 = vxpose.xlu0.b32.cont [14/16] 0.0, 128
        %1467 = vxpose.xlu0.b32.cont [15/16] 0.0, 128
        %1468 = vxpose.xlu0.b32.end [16/16] 0.0, 128
        %v1469 = vpop.trf.xlu0
        %v1470 = vpop.trf.xlu0
        %v1471 = vpop.trf.xlu0
        %v1472 = vpop.trf.xlu0
        %v1473 = vpop.trf.xlu0
        %v1474 = vpop.trf.xlu0
        %v1475 = vpop.trf.xlu0
        %v1476 = vpop.trf.xlu0
        %v1477 = vpop.trf.xlu0
        %v1478 = vpop.trf.xlu0
        %v1479 = vpop.trf.xlu0
        %v1480 = vpop.trf.xlu0
        %v1481 = vpop.trf.xlu0
        %v1482 = vpop.trf.xlu0
        %v1483 = vpop.trf.xlu0
        %v1484 = vpop.trf.xlu0
        %1485 = vxpose.xlu0.b32.start [1/16] %v1027, 128
        %1486 = vxpose.xlu0.b32.cont [2/16] 0.0, 128
        %1487 = vxpose.xlu0.b32.cont [3/16] 0.0, 128
        %1488 = vxpose.xlu0.b32.cont [4/16] 0.0, 128
        %1489 = vxpose.xlu0.b32.cont [5/16] 0.0, 128
        %1490 = vxpose.xlu0.b32.cont [6/16] 0.0, 128
        %1491 = vxpose.xlu0.b32.cont [7/16] 0.0, 128
        %1492 = vxpose.xlu0.b32.cont [8/16] 0.0, 128
        %1493 = vxpose.xlu0.b32.cont [9/16] 0.0, 128
        %1494 = vxpose.xlu0.b32.cont [10/16] 0.0, 128
        %1495 = vxpose.xlu0.b32.cont [11/16] 0.0, 128
        %1496 = vxpose.xlu0.b32.cont [12/16] 0.0, 128
        %1497 = vxpose.xlu0.b32.cont [13/16] 0.0, 128
        %1498 = vxpose.xlu0.b32.cont [14/16] 0.0, 128
        %1499 = vxpose.xlu0.b32.cont [15/16] 0.0, 128
        %1500 = vxpose.xlu0.b32.end [16/16] 0.0, 128
        %v1501 = vpop.trf.xlu0
        %v1502 = vpop.trf.xlu0
        %v1503 = vpop.trf.xlu0
        %v1504 = vpop.trf.xlu0
        %v1505 = vpop.trf.xlu0
        %v1506 = vpop.trf.xlu0
        %v1507 = vpop.trf.xlu0
        %v1508 = vpop.trf.xlu0
        %v1509 = vpop.trf.xlu0
        %v1510 = vpop.trf.xlu0
        %v1511 = vpop.trf.xlu0
        %v1512 = vpop.trf.xlu0
        %v1513 = vpop.trf.xlu0
        %v1514 = vpop.trf.xlu0
        %v1515 = vpop.trf.xlu0
        %v1516 = vpop.trf.xlu0
        %1517 = vxpose.xlu0.b32.start [1/16] %v1031, 128
        %1518 = vxpose.xlu0.b32.cont [2/16] 0.0, 128
        %1519 = vxpose.xlu0.b32.cont [3/16] 0.0, 128
        %1520 = vxpose.xlu0.b32.cont [4/16] 0.0, 128
        %1521 = vxpose.xlu0.b32.cont [5/16] 0.0, 128
        %1522 = vxpose.xlu0.b32.cont [6/16] 0.0, 128
        %1523 = vxpose.xlu0.b32.cont [7/16] 0.0, 128
        %1524 = vxpose.xlu0.b32.cont [8/16] 0.0, 128
        %1525 = vxpose.xlu0.b32.cont [9/16] 0.0, 128
        %1526 = vxpose.xlu0.b32.cont [10/16] 0.0, 128
        %1527 = vxpose.xlu0.b32.cont [11/16] 0.0, 128
        %1528 = vxpose.xlu0.b32.cont [12/16] 0.0, 128
        %1529 = vxpose.xlu0.b32.cont [13/16] 0.0, 128
        %1530 = vxpose.xlu0.b32.cont [14/16] 0.0, 128
        %1531 = vxpose.xlu0.b32.cont [15/16] 0.0, 128
        %1532 = vxpose.xlu0.b32.end [16/16] 0.0, 128
        %v1533 = vpop.trf.xlu0
        %v1534 = vpop.trf.xlu0
        %v1535 = vpop.trf.xlu0
        %v1536 = vpop.trf.xlu0
        %v1537 = vpop.trf.xlu0
        %v1538 = vpop.trf.xlu0
        %v1539 = vpop.trf.xlu0
        %v1540 = vpop.trf.xlu0
        %v1541 = vpop.trf.xlu0
        %v1542 = vpop.trf.xlu0
        %v1543 = vpop.trf.xlu0
        %v1544 = vpop.trf.xlu0
        %v1545 = vpop.trf.xlu0
        %v1546 = vpop.trf.xlu0
        %v1547 = vpop.trf.xlu0
        %v1548 = vpop.trf.xlu0
        %v1549 = vcombine.low %v1309, %v1373
        %v1550 = vcombine.high %v1309, %v1373
        %v1552 = vunpack.c.l.s4 1983009808
        %v1553 = vunpack.c.0.s8 %v1552
        %v1554 = vlaneseq
        %v1555 = vshrl.u32 %v1554, 7
        %v1556 = vsub.s32 %v1553, %v1555
        %v1557 = vrot.slane %v1549, %v1556
        %v1559 = vunpack.c.l.s4 1983009808
        %v1560 = vunpack.c.0.s8 %v1559
        %v1561 = vlaneseq
        %v1562 = vshrl.u32 %v1561, 7
        %v1563 = vsub.s32 %v1560, %v1562
        %v1564 = vrot.slane %v1550, %v1563
        %v1565 = vcombine.low %v1341, %v1405
        %v1566 = vcombine.high %v1341, %v1405
        %v1568 = vunpack.c.l.s4 1983009808
        %v1569 = vunpack.c.0.s8 %v1568
        %v1570 = vlaneseq
        %v1571 = vshrl.u32 %v1570, 7
        %v1572 = vsub.s32 %v1569, %v1571
        %v1573 = vrot.slane %v1565, %v1572
        %v1575 = vunpack.c.l.s4 1983009808
        %v1576 = vunpack.c.0.s8 %v1575
        %v1577 = vlaneseq
        %v1578 = vshrl.u32 %v1577, 7
        %v1579 = vsub.s32 %v1576, %v1578
        %v1580 = vrot.slane %v1566, %v1579
        %v1581 = vcombine.low %v1437, %v1501
        %v1582 = vcombine.high %v1437, %v1501
        %v1584 = vunpack.c.l.s4 1983009808
        %v1585 = vunpack.c.0.s8 %v1584
        %v1586 = vlaneseq
        %v1587 = vshrl.u32 %v1586, 7
        %v1588 = vsub.s32 %v1585, %v1587
        %v1589 = vrot.slane %v1581, %v1588
        %v1591 = vunpack.c.l.s4 1983009808
        %v1592 = vunpack.c.0.s8 %v1591
        %v1593 = vlaneseq
        %v1594 = vshrl.u32 %v1593, 7
        %v1595 = vsub.s32 %v1592, %v1594
        %v1596 = vrot.slane %v1582, %v1595
        %v1597 = vcombine.low %v1469, %v1533
        %v1598 = vcombine.high %v1469, %v1533
        %v1600 = vunpack.c.l.s4 1983009808
        %v1601 = vunpack.c.0.s8 %v1600
        %v1602 = vlaneseq
        %v1603 = vshrl.u32 %v1602, 7
        %v1604 = vsub.s32 %v1601, %v1603
        %v1605 = vrot.slane %v1597, %v1604
        %v1607 = vunpack.c.l.s4 1983009808
        %v1608 = vunpack.c.0.s8 %v1607
        %v1609 = vlaneseq
        %v1610 = vshrl.u32 %v1609, 7
        %v1611 = vsub.s32 %v1608, %v1610
        %v1612 = vrot.slane %v1598, %v1611
        %v1613 = vcombine.low %v1557, %v1573
        %v1614 = vcombine.high %v1557, %v1573
        %v1616 = vunpack.c.l.s4 1934713408
        %v1617 = vunpack.c.0.s8 %v1616
        %v1618 = vlaneseq
        %v1619 = vshrl.u32 %v1618, 7
        %v1620 = vsub.s32 %v1617, %v1619
        %v1621 = vrot.slane %v1613, %v1620
        %v1623 = vunpack.c.l.s4 1934713408
        %v1624 = vunpack.c.0.s8 %v1623
        %v1625 = vlaneseq
        %v1626 = vshrl.u32 %v1625, 7
        %v1627 = vsub.s32 %v1624, %v1626
        %v1628 = vrot.slane %v1614, %v1627
        %v1629 = vcombine.low %v1564, %v1580
        %v1630 = vcombine.high %v1564, %v1580
        %v1632 = vunpack.c.l.s4 1934713408
        %v1633 = vunpack.c.0.s8 %v1632
        %v1634 = vlaneseq
        %v1635 = vshrl.u32 %v1634, 7
        %v1636 = vsub.s32 %v1633, %v1635
        %v1637 = vrot.slane %v1629, %v1636
        %v1639 = vunpack.c.l.s4 1934713408
        %v1640 = vunpack.c.0.s8 %v1639
        %v1641 = vlaneseq
        %v1642 = vshrl.u32 %v1641, 7
        %v1643 = vsub.s32 %v1640, %v1642
        %v1644 = vrot.slane %v1630, %v1643
        %v1645 = vcombine.low %v1589, %v1605
        %v1646 = vcombine.high %v1589, %v1605
        %v1648 = vunpack.c.l.s4 1934713408
        %v1649 = vunpack.c.0.s8 %v1648
        %v1650 = vlaneseq
        %v1651 = vshrl.u32 %v1650, 7
        %v1652 = vsub.s32 %v1649, %v1651
        %v1653 = vrot.slane %v1645, %v1652
        %v1655 = vunpack.c.l.s4 1934713408
        %v1656 = vunpack.c.0.s8 %v1655
        %v1657 = vlaneseq
        %v1658 = vshrl.u32 %v1657, 7
        %v1659 = vsub.s32 %v1656, %v1658
        %v1660 = vrot.slane %v1646, %v1659
        %v1661 = vcombine.low %v1596, %v1612
        %v1662 = vcombine.high %v1596, %v1612
        %v1664 = vunpack.c.l.s4 1934713408
        %v1665 = vunpack.c.0.s8 %v1664
        %v1666 = vlaneseq
        %v1667 = vshrl.u32 %v1666, 7
        %v1668 = vsub.s32 %v1665, %v1667
        %v1669 = vrot.slane %v1661, %v1668
        %v1671 = vunpack.c.l.s4 1934713408
        %v1672 = vunpack.c.0.s8 %v1671
        %v1673 = vlaneseq
        %v1674 = vshrl.u32 %v1673, 7
        %v1675 = vsub.s32 %v1672, %v1674
        %v1676 = vrot.slane %v1662, %v1675
        %v1677 = vcombine.low %v1621, %v1653
        %v1678 = vcombine.high %v1621, %v1653
        %v1679 = vcombine.low %v1628, %v1660
        %v1680 = vcombine.high %v1628, %v1660
        %v1681 = vcombine.low %v1637, %v1669
        %v1682 = vcombine.high %v1637, %v1669
        %v1683 = vcombine.low %v1644, %v1676
        %v1684 = vcombine.high %v1644, %v1676
        %v1685 = vcombine.low %v1310, %v1374
        %v1686 = vcombine.high %v1310, %v1374
        %v1688 = vunpack.c.l.s4 1983009808
        %v1689 = vunpack.c.0.s8 %v1688
        %v1690 = vlaneseq
        %v1691 = vshrl.u32 %v1690, 7
        %v1692 = vsub.s32 %v1689, %v1691
        %v1693 = vrot.slane %v1685, %v1692
        %v1695 = vunpack.c.l.s4 1983009808
        %v1696 = vunpack.c.0.s8 %v1695
        %v1697 = vlaneseq
        %v1698 = vshrl.u32 %v1697, 7
        %v1699 = vsub.s32 %v1696, %v1698
        %v1700 = vrot.slane %v1686, %v1699
        %v1701 = vcombine.low %v1342, %v1406
        %v1702 = vcombine.high %v1342, %v1406
        %v1704 = vunpack.c.l.s4 1983009808
        %v1705 = vunpack.c.0.s8 %v1704
        %v1706 = vlaneseq
        %v1707 = vshrl.u32 %v1706, 7
        %v1708 = vsub.s32 %v1705, %v1707
        %v1709 = vrot.slane %v1701, %v1708
        %v1711 = vunpack.c.l.s4 1983009808
        %v1712 = vunpack.c.0.s8 %v1711
        %v1713 = vlaneseq
        %v1714 = vshrl.u32 %v1713, 7
        %v1715 = vsub.s32 %v1712, %v1714
        %v1716 = vrot.slane %v1702, %v1715
        %v1717 = vcombine.low %v1438, %v1502
        %v1718 = vcombine.high %v1438, %v1502
        %v1720 = vunpack.c.l.s4 1983009808
        %v1721 = vunpack.c.0.s8 %v1720
        %v1722 = vlaneseq
        %v1723 = vshrl.u32 %v1722, 7
        %v1724 = vsub.s32 %v1721, %v1723
        %v1725 = vrot.slane %v1717, %v1724
        %v1727 = vunpack.c.l.s4 1983009808
        %v1728 = vunpack.c.0.s8 %v1727
        %v1729 = vlaneseq
        %v1730 = vshrl.u32 %v1729, 7
        %v1731 = vsub.s32 %v1728, %v1730
        %v1732 = vrot.slane %v1718, %v1731
        %v1733 = vcombine.low %v1470, %v1534
        %v1734 = vcombine.high %v1470, %v1534
        %v1736 = vunpack.c.l.s4 1983009808
        %v1737 = vunpack.c.0.s8 %v1736
        %v1738 = vlaneseq
        %v1739 = vshrl.u32 %v1738, 7
        %v1740 = vsub.s32 %v1737, %v1739
        %v1741 = vrot.slane %v1733, %v1740
        %v1743 = vunpack.c.l.s4 1983009808
        %v1744 = vunpack.c.0.s8 %v1743
        %v1745 = vlaneseq
        %v1746 = vshrl.u32 %v1745, 7
        %v1747 = vsub.s32 %v1744, %v1746
        %v1748 = vrot.slane %v1734, %v1747
        %v1749 = vcombine.low %v1693, %v1709
        %v1750 = vcombine.high %v1693, %v1709
        %v1752 = vunpack.c.l.s4 1934713408
        %v1753 = vunpack.c.0.s8 %v1752
        %v1754 = vlaneseq
        %v1755 = vshrl.u32 %v1754, 7
        %v1756 = vsub.s32 %v1753, %v1755
        %v1757 = vrot.slane %v1749, %v1756
        %v1759 = vunpack.c.l.s4 1934713408
        %v1760 = vunpack.c.0.s8 %v1759
        %v1761 = vlaneseq
        %v1762 = vshrl.u32 %v1761, 7
        %v1763 = vsub.s32 %v1760, %v1762
        %v1764 = vrot.slane %v1750, %v1763
        %v1765 = vcombine.low %v1700, %v1716
        %v1766 = vcombine.high %v1700, %v1716
        %v1768 = vunpack.c.l.s4 1934713408
        %v1769 = vunpack.c.0.s8 %v1768
        %v1770 = vlaneseq
        %v1771 = vshrl.u32 %v1770, 7
        %v1772 = vsub.s32 %v1769, %v1771
        %v1773 = vrot.slane %v1765, %v1772
        %v1775 = vunpack.c.l.s4 1934713408
        %v1776 = vunpack.c.0.s8 %v1775
        %v1777 = vlaneseq
        %v1778 = vshrl.u32 %v1777, 7
        %v1779 = vsub.s32 %v1776, %v1778
        %v1780 = vrot.slane %v1766, %v1779
        %v1781 = vcombine.low %v1725, %v1741
        %v1782 = vcombine.high %v1725, %v1741
        %v1784 = vunpack.c.l.s4 1934713408
        %v1785 = vunpack.c.0.s8 %v1784
        %v1786 = vlaneseq
        %v1787 = vshrl.u32 %v1786, 7
        %v1788 = vsub.s32 %v1785, %v1787
        %v1789 = vrot.slane %v1781, %v1788
        %v1791 = vunpack.c.l.s4 1934713408
        %v1792 = vunpack.c.0.s8 %v1791
        %v1793 = vlaneseq
        %v1794 = vshrl.u32 %v1793, 7
        %v1795 = vsub.s32 %v1792, %v1794
        %v1796 = vrot.slane %v1782, %v1795
        %v1797 = vcombine.low %v1732, %v1748
        %v1798 = vcombine.high %v1732, %v1748
        %v1800 = vunpack.c.l.s4 1934713408
        %v1801 = vunpack.c.0.s8 %v1800
        %v1802 = vlaneseq
        %v1803 = vshrl.u32 %v1802, 7
        %v1804 = vsub.s32 %v1801, %v1803
        %v1805 = vrot.slane %v1797, %v1804
        %v1807 = vunpack.c.l.s4 1934713408
        %v1808 = vunpack.c.0.s8 %v1807
        %v1809 = vlaneseq
        %v1810 = vshrl.u32 %v1809, 7
        %v1811 = vsub.s32 %v1808, %v1810
        %v1812 = vrot.slane %v1798, %v1811
        %v1813 = vcombine.low %v1757, %v1789
        %v1814 = vcombine.high %v1757, %v1789
        %v1815 = vcombine.low %v1764, %v1796
        %v1816 = vcombine.high %v1764, %v1796
        %v1817 = vcombine.low %v1773, %v1805
        %v1818 = vcombine.high %v1773, %v1805
        %v1819 = vcombine.low %v1780, %v1812
        %v1820 = vcombine.high %v1780, %v1812
        %1821 = vxpose.xlu0.b32.start [1/16] %v1677, 128
        %1822 = vxpose.xlu0.b32.cont [2/16] 0.0, 128
        %1823 = vxpose.xlu0.b32.cont [3/16] 0.0, 128
        %1824 = vxpose.xlu0.b32.cont [4/16] 0.0, 128
        %1825 = vxpose.xlu0.b32.cont [5/16] 0.0, 128
        %1826 = vxpose.xlu0.b32.cont [6/16] 0.0, 128
        %1827 = vxpose.xlu0.b32.cont [7/16] 0.0, 128
        %1828 = vxpose.xlu0.b32.cont [8/16] 0.0, 128
        %1829 = vxpose.xlu0.b32.cont [9/16] 0.0, 128
        %1830 = vxpose.xlu0.b32.cont [10/16] 0.0, 128
        %1831 = vxpose.xlu0.b32.cont [11/16] 0.0, 128
        %1832 = vxpose.xlu0.b32.cont [12/16] 0.0, 128
        %1833 = vxpose.xlu0.b32.cont [13/16] 0.0, 128
        %1834 = vxpose.xlu0.b32.cont [14/16] 0.0, 128
        %1835 = vxpose.xlu0.b32.cont [15/16] 0.0, 128
        %1836 = vxpose.xlu0.b32.end [16/16] 0.0, 128
        %v1837 = vpop.trf.xlu0
        %v1838 = vpop.trf.xlu0
        %v1839 = vpop.trf.xlu0
        %v1840 = vpop.trf.xlu0
        %v1841 = vpop.trf.xlu0
        %v1842 = vpop.trf.xlu0
        %v1843 = vpop.trf.xlu0
        %v1844 = vpop.trf.xlu0
        %v1845 = vpop.trf.xlu0
        %v1846 = vpop.trf.xlu0
        %v1847 = vpop.trf.xlu0
        %v1848 = vpop.trf.xlu0
        %v1849 = vpop.trf.xlu0
        %v1850 = vpop.trf.xlu0
        %v1851 = vpop.trf.xlu0
        %v1852 = vpop.trf.xlu0
        %1853 = vxpose.xlu0.b32.start [1/16] %v1678, 128
        %1854 = vxpose.xlu0.b32.cont [2/16] 0.0, 128
        %1855 = vxpose.xlu0.b32.cont [3/16] 0.0, 128
        %1856 = vxpose.xlu0.b32.cont [4/16] 0.0, 128
        %1857 = vxpose.xlu0.b32.cont [5/16] 0.0, 128
        %1858 = vxpose.xlu0.b32.cont [6/16] 0.0, 128
        %1859 = vxpose.xlu0.b32.cont [7/16] 0.0, 128
        %1860 = vxpose.xlu0.b32.cont [8/16] 0.0, 128
        %1861 = vxpose.xlu0.b32.cont [9/16] 0.0, 128
        %1862 = vxpose.xlu0.b32.cont [10/16] 0.0, 128
        %1863 = vxpose.xlu0.b32.cont [11/16] 0.0, 128
        %1864 = vxpose.xlu0.b32.cont [12/16] 0.0, 128
        %1865 = vxpose.xlu0.b32.cont [13/16] 0.0, 128
        %1866 = vxpose.xlu0.b32.cont [14/16] 0.0, 128
        %1867 = vxpose.xlu0.b32.cont [15/16] 0.0, 128
        %1868 = vxpose.xlu0.b32.end [16/16] 0.0, 128
        %v1869 = vpop.trf.xlu0
        %v1870 = vpop.trf.xlu0
        %v1871 = vpop.trf.xlu0
        %v1872 = vpop.trf.xlu0
        %v1873 = vpop.trf.xlu0
        %v1874 = vpop.trf.xlu0
        %v1875 = vpop.trf.xlu0
        %v1876 = vpop.trf.xlu0
        %v1877 = vpop.trf.xlu0
        %v1878 = vpop.trf.xlu0
        %v1879 = vpop.trf.xlu0
        %v1880 = vpop.trf.xlu0
        %v1881 = vpop.trf.xlu0
        %v1882 = vpop.trf.xlu0
        %v1883 = vpop.trf.xlu0
        %v1884 = vpop.trf.xlu0
        %1885 = vxpose.xlu0.b32.start [1/16] %v1679, 128
        %1886 = vxpose.xlu0.b32.cont [2/16] 0.0, 128
        %1887 = vxpose.xlu0.b32.cont [3/16] 0.0, 128
        %1888 = vxpose.xlu0.b32.cont [4/16] 0.0, 128
        %1889 = vxpose.xlu0.b32.cont [5/16] 0.0, 128
        %1890 = vxpose.xlu0.b32.cont [6/16] 0.0, 128
        %1891 = vxpose.xlu0.b32.cont [7/16] 0.0, 128
        %1892 = vxpose.xlu0.b32.cont [8/16] 0.0, 128
        %1893 = vxpose.xlu0.b32.cont [9/16] 0.0, 128
        %1894 = vxpose.xlu0.b32.cont [10/16] 0.0, 128
        %1895 = vxpose.xlu0.b32.cont [11/16] 0.0, 128
        %1896 = vxpose.xlu0.b32.cont [12/16] 0.0, 128
        %1897 = vxpose.xlu0.b32.cont [13/16] 0.0, 128
        %1898 = vxpose.xlu0.b32.cont [14/16] 0.0, 128
        %1899 = vxpose.xlu0.b32.cont [15/16] 0.0, 128
        %1900 = vxpose.xlu0.b32.end [16/16] 0.0, 128
        %v1901 = vpop.trf.xlu0
        %v1902 = vpop.trf.xlu0
        %v1903 = vpop.trf.xlu0
        %v1904 = vpop.trf.xlu0
        %v1905 = vpop.trf.xlu0
        %v1906 = vpop.trf.xlu0
        %v1907 = vpop.trf.xlu0
        %v1908 = vpop.trf.xlu0
        %v1909 = vpop.trf.xlu0
        %v1910 = vpop.trf.xlu0
        %v1911 = vpop.trf.xlu0
        %v1912 = vpop.trf.xlu0
        %v1913 = vpop.trf.xlu0
        %v1914 = vpop.trf.xlu0
        %v1915 = vpop.trf.xlu0
        %v1916 = vpop.trf.xlu0
        %1917 = vxpose.xlu0.b32.start [1/16] %v1680, 128
        %1918 = vxpose.xlu0.b32.cont [2/16] 0.0, 128
        %1919 = vxpose.xlu0.b32.cont [3/16] 0.0, 128
        %1920 = vxpose.xlu0.b32.cont [4/16] 0.0, 128
        %1921 = vxpose.xlu0.b32.cont [5/16] 0.0, 128
        %1922 = vxpose.xlu0.b32.cont [6/16] 0.0, 128
        %1923 = vxpose.xlu0.b32.cont [7/16] 0.0, 128
        %1924 = vxpose.xlu0.b32.cont [8/16] 0.0, 128
        %1925 = vxpose.xlu0.b32.cont [9/16] 0.0, 128
        %1926 = vxpose.xlu0.b32.cont [10/16] 0.0, 128
        %1927 = vxpose.xlu0.b32.cont [11/16] 0.0, 128
        %1928 = vxpose.xlu0.b32.cont [12/16] 0.0, 128
        %1929 = vxpose.xlu0.b32.cont [13/16] 0.0, 128
        %1930 = vxpose.xlu0.b32.cont [14/16] 0.0, 128
        %1931 = vxpose.xlu0.b32.cont [15/16] 0.0, 128
        %1932 = vxpose.xlu0.b32.end [16/16] 0.0, 128
        %v1933 = vpop.trf.xlu0
        %v1934 = vpop.trf.xlu0
        %v1935 = vpop.trf.xlu0
        %v1936 = vpop.trf.xlu0
        %v1937 = vpop.trf.xlu0
        %v1938 = vpop.trf.xlu0
        %v1939 = vpop.trf.xlu0
        %v1940 = vpop.trf.xlu0
        %v1941 = vpop.trf.xlu0
        %v1942 = vpop.trf.xlu0
        %v1943 = vpop.trf.xlu0
        %v1944 = vpop.trf.xlu0
        %v1945 = vpop.trf.xlu0
        %v1946 = vpop.trf.xlu0
        %v1947 = vpop.trf.xlu0
        %v1948 = vpop.trf.xlu0
        %1949 = vxpose.xlu0.b32.start [1/16] %v1681, 128
        %1950 = vxpose.xlu0.b32.cont [2/16] 0.0, 128
        %1951 = vxpose.xlu0.b32.cont [3/16] 0.0, 128
        %1952 = vxpose.xlu0.b32.cont [4/16] 0.0, 128
        %1953 = vxpose.xlu0.b32.cont [5/16] 0.0, 128
        %1954 = vxpose.xlu0.b32.cont [6/16] 0.0, 128
        %1955 = vxpose.xlu0.b32.cont [7/16] 0.0, 128
        %1956 = vxpose.xlu0.b32.cont [8/16] 0.0, 128
        %1957 = vxpose.xlu0.b32.cont [9/16] 0.0, 128
        %1958 = vxpose.xlu0.b32.cont [10/16] 0.0, 128
        %1959 = vxpose.xlu0.b32.cont [11/16] 0.0, 128
        %1960 = vxpose.xlu0.b32.cont [12/16] 0.0, 128
        %1961 = vxpose.xlu0.b32.cont [13/16] 0.0, 128
        %1962 = vxpose.xlu0.b32.cont [14/16] 0.0, 128
        %1963 = vxpose.xlu0.b32.cont [15/16] 0.0, 128
        %1964 = vxpose.xlu0.b32.end [16/16] 0.0, 128
        %v1965 = vpop.trf.xlu0
        %v1966 = vpop.trf.xlu0
        %v1967 = vpop.trf.xlu0
        %v1968 = vpop.trf.xlu0
        %v1969 = vpop.trf.xlu0
        %v1970 = vpop.trf.xlu0
        %v1971 = vpop.trf.xlu0
        %v1972 = vpop.trf.xlu0
        %v1973 = vpop.trf.xlu0
        %v1974 = vpop.trf.xlu0
        %v1975 = vpop.trf.xlu0
        %v1976 = vpop.trf.xlu0
        %v1977 = vpop.trf.xlu0
        %v1978 = vpop.trf.xlu0
        %v1979 = vpop.trf.xlu0
        %v1980 = vpop.trf.xlu0
        %1981 = vxpose.xlu0.b32.start [1/16] %v1682, 128
        %1982 = vxpose.xlu0.b32.cont [2/16] 0.0, 128
        %1983 = vxpose.xlu0.b32.cont [3/16] 0.0, 128
        %1984 = vxpose.xlu0.b32.cont [4/16] 0.0, 128
        %1985 = vxpose.xlu0.b32.cont [5/16] 0.0, 128
        %1986 = vxpose.xlu0.b32.cont [6/16] 0.0, 128
        %1987 = vxpose.xlu0.b32.cont [7/16] 0.0, 128
        %1988 = vxpose.xlu0.b32.cont [8/16] 0.0, 128
        %1989 = vxpose.xlu0.b32.cont [9/16] 0.0, 128
        %1990 = vxpose.xlu0.b32.cont [10/16] 0.0, 128
        %1991 = vxpose.xlu0.b32.cont [11/16] 0.0, 128
        %1992 = vxpose.xlu0.b32.cont [12/16] 0.0, 128
        %1993 = vxpose.xlu0.b32.cont [13/16] 0.0, 128
        %1994 = vxpose.xlu0.b32.cont [14/16] 0.0, 128
        %1995 = vxpose.xlu0.b32.cont [15/16] 0.0, 128
        %1996 = vxpose.xlu0.b32.end [16/16] 0.0, 128
        %v1997 = vpop.trf.xlu0
        %v1998 = vpop.trf.xlu0
        %v1999 = vpop.trf.xlu0
        %v2000 = vpop.trf.xlu0
        %v2001 = vpop.trf.xlu0
        %v2002 = vpop.trf.xlu0
        %v2003 = vpop.trf.xlu0
        %v2004 = vpop.trf.xlu0
        %v2005 = vpop.trf.xlu0
        %v2006 = vpop.trf.xlu0
        %v2007 = vpop.trf.xlu0
        %v2008 = vpop.trf.xlu0
        %v2009 = vpop.trf.xlu0
        %v2010 = vpop.trf.xlu0
        %v2011 = vpop.trf.xlu0
        %v2012 = vpop.trf.xlu0
        %2013 = vxpose.xlu0.b32.start [1/16] %v1683, 128
        %2014 = vxpose.xlu0.b32.cont [2/16] 0.0, 128
        %2015 = vxpose.xlu0.b32.cont [3/16] 0.0, 128
        %2016 = vxpose.xlu0.b32.cont [4/16] 0.0, 128
        %2017 = vxpose.xlu0.b32.cont [5/16] 0.0, 128
        %2018 = vxpose.xlu0.b32.cont [6/16] 0.0, 128
        %2019 = vxpose.xlu0.b32.cont [7/16] 0.0, 128
        %2020 = vxpose.xlu0.b32.cont [8/16] 0.0, 128
        %2021 = vxpose.xlu0.b32.cont [9/16] 0.0, 128
        %2022 = vxpose.xlu0.b32.cont [10/16] 0.0, 128
        %2023 = vxpose.xlu0.b32.cont [11/16] 0.0, 128
        %2024 = vxpose.xlu0.b32.cont [12/16] 0.0, 128
        %2025 = vxpose.xlu0.b32.cont [13/16] 0.0, 128
        %2026 = vxpose.xlu0.b32.cont [14/16] 0.0, 128
        %2027 = vxpose.xlu0.b32.cont [15/16] 0.0, 128
        %2028 = vxpose.xlu0.b32.end [16/16] 0.0, 128
        %v2029 = vpop.trf.xlu0
        %v2030 = vpop.trf.xlu0
        %v2031 = vpop.trf.xlu0
        %v2032 = vpop.trf.xlu0
        %v2033 = vpop.trf.xlu0
        %v2034 = vpop.trf.xlu0
        %v2035 = vpop.trf.xlu0
        %v2036 = vpop.trf.xlu0
        %v2037 = vpop.trf.xlu0
        %v2038 = vpop.trf.xlu0
        %v2039 = vpop.trf.xlu0
        %v2040 = vpop.trf.xlu0
        %v2041 = vpop.trf.xlu0
        %v2042 = vpop.trf.xlu0
        %v2043 = vpop.trf.xlu0
        %v2044 = vpop.trf.xlu0
        %2045 = vxpose.xlu0.b32.start [1/16] %v1684, 128
        %2046 = vxpose.xlu0.b32.cont [2/16] 0.0, 128
        %2047 = vxpose.xlu0.b32.cont [3/16] 0.0, 128
        %2048 = vxpose.xlu0.b32.cont [4/16] 0.0, 128
        %2049 = vxpose.xlu0.b32.cont [5/16] 0.0, 128
        %2050 = vxpose.xlu0.b32.cont [6/16] 0.0, 128
        %2051 = vxpose.xlu0.b32.cont [7/16] 0.0, 128
        %2052 = vxpose.xlu0.b32.cont [8/16] 0.0, 128
        %2053 = vxpose.xlu0.b32.cont [9/16] 0.0, 128
        %2054 = vxpose.xlu0.b32.cont [10/16] 0.0, 128
        %2055 = vxpose.xlu0.b32.cont [11/16] 0.0, 128
        %2056 = vxpose.xlu0.b32.cont [12/16] 0.0, 128
        %2057 = vxpose.xlu0.b32.cont [13/16] 0.0, 128
        %2058 = vxpose.xlu0.b32.cont [14/16] 0.0, 128
        %2059 = vxpose.xlu0.b32.cont [15/16] 0.0, 128
        %2060 = vxpose.xlu0.b32.end [16/16] 0.0, 128
        %v2061 = vpop.trf.xlu0
        %v2062 = vpop.trf.xlu0
        %v2063 = vpop.trf.xlu0
        %v2064 = vpop.trf.xlu0
        %v2065 = vpop.trf.xlu0
        %v2066 = vpop.trf.xlu0
        %v2067 = vpop.trf.xlu0
        %v2068 = vpop.trf.xlu0
        %v2069 = vpop.trf.xlu0
        %v2070 = vpop.trf.xlu0
        %v2071 = vpop.trf.xlu0
        %v2072 = vpop.trf.xlu0
        %v2073 = vpop.trf.xlu0
        %v2074 = vpop.trf.xlu0
        %v2075 = vpop.trf.xlu0
        %v2076 = vpop.trf.xlu0
        %2077 = vxpose.xlu0.b32.start [1/16] %v1813, 128
        %2078 = vxpose.xlu0.b32.cont [2/16] 0.0, 128
        %2079 = vxpose.xlu0.b32.cont [3/16] 0.0, 128
        %2080 = vxpose.xlu0.b32.cont [4/16] 0.0, 128
        %2081 = vxpose.xlu0.b32.cont [5/16] 0.0, 128
        %2082 = vxpose.xlu0.b32.cont [6/16] 0.0, 128
        %2083 = vxpose.xlu0.b32.cont [7/16] 0.0, 128
        %2084 = vxpose.xlu0.b32.cont [8/16] 0.0, 128
        %2085 = vxpose.xlu0.b32.cont [9/16] 0.0, 128
        %2086 = vxpose.xlu0.b32.cont [10/16] 0.0, 128
        %2087 = vxpose.xlu0.b32.cont [11/16] 0.0, 128
        %2088 = vxpose.xlu0.b32.cont [12/16] 0.0, 128
        %2089 = vxpose.xlu0.b32.cont [13/16] 0.0, 128
        %2090 = vxpose.xlu0.b32.cont [14/16] 0.0, 128
        %2091 = vxpose.xlu0.b32.cont [15/16] 0.0, 128
        %2092 = vxpose.xlu0.b32.end [16/16] 0.0, 128
        %v2093 = vpop.trf.xlu0
        %v2094 = vpop.trf.xlu0
        %v2095 = vpop.trf.xlu0
        %v2096 = vpop.trf.xlu0
        %v2097 = vpop.trf.xlu0
        %v2098 = vpop.trf.xlu0
        %v2099 = vpop.trf.xlu0
        %v2100 = vpop.trf.xlu0
        %v2101 = vpop.trf.xlu0
        %v2102 = vpop.trf.xlu0
        %v2103 = vpop.trf.xlu0
        %v2104 = vpop.trf.xlu0
        %v2105 = vpop.trf.xlu0
        %v2106 = vpop.trf.xlu0
        %v2107 = vpop.trf.xlu0
        %v2108 = vpop.trf.xlu0
        %2109 = vxpose.xlu0.b32.start [1/16] %v1814, 128
        %2110 = vxpose.xlu0.b32.cont [2/16] 0.0, 128
        %2111 = vxpose.xlu0.b32.cont [3/16] 0.0, 128
        %2112 = vxpose.xlu0.b32.cont [4/16] 0.0, 128
        %2113 = vxpose.xlu0.b32.cont [5/16] 0.0, 128
        %2114 = vxpose.xlu0.b32.cont [6/16] 0.0, 128
        %2115 = vxpose.xlu0.b32.cont [7/16] 0.0, 128
        %2116 = vxpose.xlu0.b32.cont [8/16] 0.0, 128
        %2117 = vxpose.xlu0.b32.cont [9/16] 0.0, 128
        %2118 = vxpose.xlu0.b32.cont [10/16] 0.0, 128
        %2119 = vxpose.xlu0.b32.cont [11/16] 0.0, 128
        %2120 = vxpose.xlu0.b32.cont [12/16] 0.0, 128
        %2121 = vxpose.xlu0.b32.cont [13/16] 0.0, 128
        %2122 = vxpose.xlu0.b32.cont [14/16] 0.0, 128
        %2123 = vxpose.xlu0.b32.cont [15/16] 0.0, 128
        %2124 = vxpose.xlu0.b32.end [16/16] 0.0, 128
        %v2125 = vpop.trf.xlu0
        %v2126 = vpop.trf.xlu0
        %v2127 = vpop.trf.xlu0
        %v2128 = vpop.trf.xlu0
        %v2129 = vpop.trf.xlu0
        %v2130 = vpop.trf.xlu0
        %v2131 = vpop.trf.xlu0
        %v2132 = vpop.trf.xlu0
        %v2133 = vpop.trf.xlu0
        %v2134 = vpop.trf.xlu0
        %v2135 = vpop.trf.xlu0
        %v2136 = vpop.trf.xlu0
        %v2137 = vpop.trf.xlu0
        %v2138 = vpop.trf.xlu0
        %v2139 = vpop.trf.xlu0
        %v2140 = vpop.trf.xlu0
        %2141 = vxpose.xlu0.b32.start [1/16] %v1815, 128
        %2142 = vxpose.xlu0.b32.cont [2/16] 0.0, 128
        %2143 = vxpose.xlu0.b32.cont [3/16] 0.0, 128
        %2144 = vxpose.xlu0.b32.cont [4/16] 0.0, 128
        %2145 = vxpose.xlu0.b32.cont [5/16] 0.0, 128
        %2146 = vxpose.xlu0.b32.cont [6/16] 0.0, 128
        %2147 = vxpose.xlu0.b32.cont [7/16] 0.0, 128
        %2148 = vxpose.xlu0.b32.cont [8/16] 0.0, 128
        %2149 = vxpose.xlu0.b32.cont [9/16] 0.0, 128
        %2150 = vxpose.xlu0.b32.cont [10/16] 0.0, 128
        %2151 = vxpose.xlu0.b32.cont [11/16] 0.0, 128
        %2152 = vxpose.xlu0.b32.cont [12/16] 0.0, 128
        %2153 = vxpose.xlu0.b32.cont [13/16] 0.0, 128
        %2154 = vxpose.xlu0.b32.cont [14/16] 0.0, 128
        %2155 = vxpose.xlu0.b32.cont [15/16] 0.0, 128
        %2156 = vxpose.xlu0.b32.end [16/16] 0.0, 128
        %v2157 = vpop.trf.xlu0
        %v2158 = vpop.trf.xlu0
        %v2159 = vpop.trf.xlu0
        %v2160 = vpop.trf.xlu0
        %v2161 = vpop.trf.xlu0
        %v2162 = vpop.trf.xlu0
        %v2163 = vpop.trf.xlu0
        %v2164 = vpop.trf.xlu0
        %v2165 = vpop.trf.xlu0
        %v2166 = vpop.trf.xlu0
        %v2167 = vpop.trf.xlu0
        %v2168 = vpop.trf.xlu0
        %v2169 = vpop.trf.xlu0
        %v2170 = vpop.trf.xlu0
        %v2171 = vpop.trf.xlu0
        %v2172 = vpop.trf.xlu0
        %2173 = vxpose.xlu0.b32.start [1/16] %v1816, 128
        %2174 = vxpose.xlu0.b32.cont [2/16] 0.0, 128
        %2175 = vxpose.xlu0.b32.cont [3/16] 0.0, 128
        %2176 = vxpose.xlu0.b32.cont [4/16] 0.0, 128
        %2177 = vxpose.xlu0.b32.cont [5/16] 0.0, 128
        %2178 = vxpose.xlu0.b32.cont [6/16] 0.0, 128
        %2179 = vxpose.xlu0.b32.cont [7/16] 0.0, 128
        %2180 = vxpose.xlu0.b32.cont [8/16] 0.0, 128
        %2181 = vxpose.xlu0.b32.cont [9/16] 0.0, 128
        %2182 = vxpose.xlu0.b32.cont [10/16] 0.0, 128
        %2183 = vxpose.xlu0.b32.cont [11/16] 0.0, 128
        %2184 = vxpose.xlu0.b32.cont [12/16] 0.0, 128
        %2185 = vxpose.xlu0.b32.cont [13/16] 0.0, 128
        %2186 = vxpose.xlu0.b32.cont [14/16] 0.0, 128
        %2187 = vxpose.xlu0.b32.cont [15/16] 0.0, 128
        %2188 = vxpose.xlu0.b32.end [16/16] 0.0, 128
        %v2189 = vpop.trf.xlu0
        %v2190 = vpop.trf.xlu0
        %v2191 = vpop.trf.xlu0
        %v2192 = vpop.trf.xlu0
        %v2193 = vpop.trf.xlu0
        %v2194 = vpop.trf.xlu0
        %v2195 = vpop.trf.xlu0
        %v2196 = vpop.trf.xlu0
        %v2197 = vpop.trf.xlu0
        %v2198 = vpop.trf.xlu0
        %v2199 = vpop.trf.xlu0
        %v2200 = vpop.trf.xlu0
        %v2201 = vpop.trf.xlu0
        %v2202 = vpop.trf.xlu0
        %v2203 = vpop.trf.xlu0
        %v2204 = vpop.trf.xlu0
        %2205 = vxpose.xlu0.b32.start [1/16] %v1817, 128
        %2206 = vxpose.xlu0.b32.cont [2/16] 0.0, 128
        %2207 = vxpose.xlu0.b32.cont [3/16] 0.0, 128
        %2208 = vxpose.xlu0.b32.cont [4/16] 0.0, 128
        %2209 = vxpose.xlu0.b32.cont [5/16] 0.0, 128
        %2210 = vxpose.xlu0.b32.cont [6/16] 0.0, 128
        %2211 = vxpose.xlu0.b32.cont [7/16] 0.0, 128
        %2212 = vxpose.xlu0.b32.cont [8/16] 0.0, 128
        %2213 = vxpose.xlu0.b32.cont [9/16] 0.0, 128
        %2214 = vxpose.xlu0.b32.cont [10/16] 0.0, 128
        %2215 = vxpose.xlu0.b32.cont [11/16] 0.0, 128
        %2216 = vxpose.xlu0.b32.cont [12/16] 0.0, 128
        %2217 = vxpose.xlu0.b32.cont [13/16] 0.0, 128
        %2218 = vxpose.xlu0.b32.cont [14/16] 0.0, 128
        %2219 = vxpose.xlu0.b32.cont [15/16] 0.0, 128
        %2220 = vxpose.xlu0.b32.end [16/16] 0.0, 128
        %v2221 = vpop.trf.xlu0
        %v2222 = vpop.trf.xlu0
        %v2223 = vpop.trf.xlu0
        %v2224 = vpop.trf.xlu0
        %v2225 = vpop.trf.xlu0
        %v2226 = vpop.trf.xlu0
        %v2227 = vpop.trf.xlu0
        %v2228 = vpop.trf.xlu0
        %v2229 = vpop.trf.xlu0
        %v2230 = vpop.trf.xlu0
        %v2231 = vpop.trf.xlu0
        %v2232 = vpop.trf.xlu0
        %v2233 = vpop.trf.xlu0
        %v2234 = vpop.trf.xlu0
        %v2235 = vpop.trf.xlu0
        %v2236 = vpop.trf.xlu0
        %2237 = vxpose.xlu0.b32.start [1/16] %v1818, 128
        %2238 = vxpose.xlu0.b32.cont [2/16] 0.0, 128
        %2239 = vxpose.xlu0.b32.cont [3/16] 0.0, 128
        %2240 = vxpose.xlu0.b32.cont [4/16] 0.0, 128
        %2241 = vxpose.xlu0.b32.cont [5/16] 0.0, 128
        %2242 = vxpose.xlu0.b32.cont [6/16] 0.0, 128
        %2243 = vxpose.xlu0.b32.cont [7/16] 0.0, 128
        %2244 = vxpose.xlu0.b32.cont [8/16] 0.0, 128
        %2245 = vxpose.xlu0.b32.cont [9/16] 0.0, 128
        %2246 = vxpose.xlu0.b32.cont [10/16] 0.0, 128
        %2247 = vxpose.xlu0.b32.cont [11/16] 0.0, 128
        %2248 = vxpose.xlu0.b32.cont [12/16] 0.0, 128
        %2249 = vxpose.xlu0.b32.cont [13/16] 0.0, 128
        %2250 = vxpose.xlu0.b32.cont [14/16] 0.0, 128
        %2251 = vxpose.xlu0.b32.cont [15/16] 0.0, 128
        %2252 = vxpose.xlu0.b32.end [16/16] 0.0, 128
        %v2253 = vpop.trf.xlu0
        %v2254 = vpop.trf.xlu0
        %v2255 = vpop.trf.xlu0
        %v2256 = vpop.trf.xlu0
        %v2257 = vpop.trf.xlu0
        %v2258 = vpop.trf.xlu0
        %v2259 = vpop.trf.xlu0
        %v2260 = vpop.trf.xlu0
        %v2261 = vpop.trf.xlu0
        %v2262 = vpop.trf.xlu0
        %v2263 = vpop.trf.xlu0
        %v2264 = vpop.trf.xlu0
        %v2265 = vpop.trf.xlu0
        %v2266 = vpop.trf.xlu0
        %v2267 = vpop.trf.xlu0
        %v2268 = vpop.trf.xlu0
        %2269 = vxpose.xlu0.b32.start [1/16] %v1819, 128
        %2270 = vxpose.xlu0.b32.cont [2/16] 0.0, 128
        %2271 = vxpose.xlu0.b32.cont [3/16] 0.0, 128
        %2272 = vxpose.xlu0.b32.cont [4/16] 0.0, 128
        %2273 = vxpose.xlu0.b32.cont [5/16] 0.0, 128
        %2274 = vxpose.xlu0.b32.cont [6/16] 0.0, 128
        %2275 = vxpose.xlu0.b32.cont [7/16] 0.0, 128
        %2276 = vxpose.xlu0.b32.cont [8/16] 0.0, 128
        %2277 = vxpose.xlu0.b32.cont [9/16] 0.0, 128
        %2278 = vxpose.xlu0.b32.cont [10/16] 0.0, 128
        %2279 = vxpose.xlu0.b32.cont [11/16] 0.0, 128
        %2280 = vxpose.xlu0.b32.cont [12/16] 0.0, 128
        %2281 = vxpose.xlu0.b32.cont [13/16] 0.0, 128
        %2282 = vxpose.xlu0.b32.cont [14/16] 0.0, 128
        %2283 = vxpose.xlu0.b32.cont [15/16] 0.0, 128
        %2284 = vxpose.xlu0.b32.end [16/16] 0.0, 128
        %v2285 = vpop.trf.xlu0
        %v2286 = vpop.trf.xlu0
        %v2287 = vpop.trf.xlu0
        %v2288 = vpop.trf.xlu0
        %v2289 = vpop.trf.xlu0
        %v2290 = vpop.trf.xlu0
        %v2291 = vpop.trf.xlu0
        %v2292 = vpop.trf.xlu0
        %v2293 = vpop.trf.xlu0
        %v2294 = vpop.trf.xlu0
        %v2295 = vpop.trf.xlu0
        %v2296 = vpop.trf.xlu0
        %v2297 = vpop.trf.xlu0
        %v2298 = vpop.trf.xlu0
        %v2299 = vpop.trf.xlu0
        %v2300 = vpop.trf.xlu0
        %2301 = vxpose.xlu0.b32.start [1/16] %v1820, 128
        %2302 = vxpose.xlu0.b32.cont [2/16] 0.0, 128
        %2303 = vxpose.xlu0.b32.cont [3/16] 0.0, 128
        %2304 = vxpose.xlu0.b32.cont [4/16] 0.0, 128
        %2305 = vxpose.xlu0.b32.cont [5/16] 0.0, 128
        %2306 = vxpose.xlu0.b32.cont [6/16] 0.0, 128
        %2307 = vxpose.xlu0.b32.cont [7/16] 0.0, 128
        %2308 = vxpose.xlu0.b32.cont [8/16] 0.0, 128
        %2309 = vxpose.xlu0.b32.cont [9/16] 0.0, 128
        %2310 = vxpose.xlu0.b32.cont [10/16] 0.0, 128
        %2311 = vxpose.xlu0.b32.cont [11/16] 0.0, 128
        %2312 = vxpose.xlu0.b32.cont [12/16] 0.0, 128
        %2313 = vxpose.xlu0.b32.cont [13/16] 0.0, 128
        %2314 = vxpose.xlu0.b32.cont [14/16] 0.0, 128
        %2315 = vxpose.xlu0.b32.cont [15/16] 0.0, 128
        %2316 = vxpose.xlu0.b32.end [16/16] 0.0, 128
        %v2317 = vpop.trf.xlu0
        %v2318 = vpop.trf.xlu0
        %v2319 = vpop.trf.xlu0
        %v2320 = vpop.trf.xlu0
        %v2321 = vpop.trf.xlu0
        %v2322 = vpop.trf.xlu0
        %v2323 = vpop.trf.xlu0
        %v2324 = vpop.trf.xlu0
        %v2325 = vpop.trf.xlu0
        %v2326 = vpop.trf.xlu0
        %v2327 = vpop.trf.xlu0
        %v2328 = vpop.trf.xlu0
        %v2329 = vpop.trf.xlu0
        %v2330 = vpop.trf.xlu0
        %v2331 = vpop.trf.xlu0
        %v2332 = vpop.trf.xlu0
        %v2333 = vcombine.low %v1837, %v1901
        %v2335 = vunpack.c.l.s4 1983009808
        %v2336 = vunpack.c.0.s8 %v2335
        %v2337 = vlaneseq
        %v2338 = vshrl.u32 %v2337, 7
        %v2339 = vsub.s32 %v2336, %v2338
        %v2340 = vrot.slane %v2333, %v2339
        %v2341 = vcombine.low %v1869, %v1933
        %v2343 = vunpack.c.l.s4 1983009808
        %v2344 = vunpack.c.0.s8 %v2343
        %v2345 = vlaneseq
        %v2346 = vshrl.u32 %v2345, 7
        %v2347 = vsub.s32 %v2344, %v2346
        %v2348 = vrot.slane %v2341, %v2347
        %v2349 = vcombine.low %v1965, %v2029
        %v2351 = vunpack.c.l.s4 1983009808
        %v2352 = vunpack.c.0.s8 %v2351
        %v2353 = vlaneseq
        %v2354 = vshrl.u32 %v2353, 7
        %v2355 = vsub.s32 %v2352, %v2354
        %v2356 = vrot.slane %v2349, %v2355
        %v2357 = vcombine.low %v1997, %v2061
        %v2359 = vunpack.c.l.s4 1983009808
        %v2360 = vunpack.c.0.s8 %v2359
        %v2361 = vlaneseq
        %v2362 = vshrl.u32 %v2361, 7
        %v2363 = vsub.s32 %v2360, %v2362
        %v2364 = vrot.slane %v2357, %v2363
        %v2365 = vcombine.low %v2340, %v2348
        %v2367 = vunpack.c.l.s4 1934713408
        %v2368 = vunpack.c.0.s8 %v2367
        %v2369 = vlaneseq
        %v2370 = vshrl.u32 %v2369, 7
        %v2371 = vsub.s32 %v2368, %v2370
        %v2372 = vrot.slane %v2365, %v2371
        %v2373 = vcombine.low %v2356, %v2364
        %v2375 = vunpack.c.l.s4 1934713408
        %v2376 = vunpack.c.0.s8 %v2375
        %v2377 = vlaneseq
        %v2378 = vshrl.u32 %v2377, 7
        %v2379 = vsub.s32 %v2376, %v2378
        %v2380 = vrot.slane %v2373, %v2379
        %v2381 = vcombine.low %v2372, %v2380
        %v2382 = vcombine.high %v2372, %v2380
        %v2383 = vcombine.low %v2093, %v2157
        %v2385 = vunpack.c.l.s4 1983009808
        %v2386 = vunpack.c.0.s8 %v2385
        %v2387 = vlaneseq
        %v2388 = vshrl.u32 %v2387, 7
        %v2389 = vsub.s32 %v2386, %v2388
        %v2390 = vrot.slane %v2383, %v2389
        %v2391 = vcombine.low %v2125, %v2189
        %v2393 = vunpack.c.l.s4 1983009808
        %v2394 = vunpack.c.0.s8 %v2393
        %v2395 = vlaneseq
        %v2396 = vshrl.u32 %v2395, 7
        %v2397 = vsub.s32 %v2394, %v2396
        %v2398 = vrot.slane %v2391, %v2397
        %v2399 = vcombine.low %v2221, %v2285
        %v2401 = vunpack.c.l.s4 1983009808
        %v2402 = vunpack.c.0.s8 %v2401
        %v2403 = vlaneseq
        %v2404 = vshrl.u32 %v2403, 7
        %v2405 = vsub.s32 %v2402, %v2404
        %v2406 = vrot.slane %v2399, %v2405
        %v2407 = vcombine.low %v2253, %v2317
        %v2409 = vunpack.c.l.s4 1983009808
        %v2410 = vunpack.c.0.s8 %v2409
        %v2411 = vlaneseq
        %v2412 = vshrl.u32 %v2411, 7
        %v2413 = vsub.s32 %v2410, %v2412
        %v2414 = vrot.slane %v2407, %v2413
        %v2415 = vcombine.low %v2390, %v2398
        %v2417 = vunpack.c.l.s4 1934713408
        %v2418 = vunpack.c.0.s8 %v2417
        %v2419 = vlaneseq
        %v2420 = vshrl.u32 %v2419, 7
        %v2421 = vsub.s32 %v2418, %v2420
        %v2422 = vrot.slane %v2415, %v2421
        %v2423 = vcombine.low %v2406, %v2414
        %v2425 = vunpack.c.l.s4 1934713408
        %v2426 = vunpack.c.0.s8 %v2425
        %v2427 = vlaneseq
        %v2428 = vshrl.u32 %v2427, 7
        %v2429 = vsub.s32 %v2426, %v2428
        %v2430 = vrot.slane %v2423, %v2429
        %v2431 = vcombine.low %v2422, %v2430
        %v2432 = vcombine.high %v2422, %v2430
        %vm2433 = vcmask 130048
        %v2435 = vsel %vm2433, %v1291, 0
        %2437 = vmatprep.subr.mxu0 0.0
        %2438 = vmatpush1.msra.mxu0 %v2381
        %2439 = vmatprep.subr.mxu0 0.0
        %2440 = vmatpush1.msra.mxu0 %v2431
        %2441 = vmatprep.subr.mxu0 0.0
        %2442 = vmatpush1.msra.mxu0 0.0
        %2443 = vmatprep.subr.mxu0 0.0
        %2444 = vmatpush1.msra.mxu0 0.0
        %2445 = vmatprep.subr.mxu0 0.0
        %2446 = vmatpush1.msra.mxu0 0.0
        %2447 = vmatprep.subr.mxu0 0.0
        %2448 = vmatpush1.msra.mxu0 0.0
        %2449 = vmatprep.subr.mxu0 0.0
        %2450 = vmatpush1.msra.mxu0 0.0
        %2451 = vmatprep.subr.mxu0 0.0
        %2452 = vmatpush1.msra.mxu0 0.0
        %2453 = vmatprep.subr.mxu0 0.0
        %2454 = vmatpush1.msra.mxu0 0.0
        %2455 = vmatprep.subr.mxu0 0.0
        %2456 = vmatpush1.msra.mxu0 0.0
        %2457 = vmatprep.subr.mxu0 0.0
        %2458 = vmatpush1.msra.mxu0 0.0
        %2459 = vmatprep.subr.mxu0 0.0
        %2460 = vmatpush1.msra.mxu0 0.0
        %2461 = vmatprep.subr.mxu0 0.0
        %2462 = vmatpush1.msra.mxu0 0.0
        %2463 = vmatprep.subr.mxu0 0.0
        %2464 = vmatpush1.msra.mxu0 0.0
        %2465 = vmatprep.subr.mxu0 0.0
        %2466 = vmatpush1.msra.mxu0 0.0
        %2467 = vmatprep.subr.mxu0 0.0
        %2468 = vmatpush1.msra.mxu0 0.0
        %2469 = vmatprep.subr.mxu0 0.0
        %2470 = vmatpush1.msra.mxu0 0.0
        %2471 = vmatprep.subr.mxu0 0.0
        %2472 = vmatpush1.msra.mxu0 0.0
        %2473 = vmatprep.subr.mxu0 0.0
        %2474 = vmatpush1.msra.mxu0 0.0
        %2475 = vmatprep.subr.mxu0 0.0
        %2476 = vmatpush1.msra.mxu0 0.0
        %2477 = vmatprep.subr.mxu0 0.0
        %2478 = vmatpush1.msra.mxu0 0.0
        %2479 = vmatprep.subr.mxu0 0.0
        %2480 = vmatpush1.msra.mxu0 0.0
        %2481 = vmatprep.subr.mxu0 0.0
        %2482 = vmatpush1.msra.mxu0 0.0
        %2483 = vmatprep.subr.mxu0 0.0
        %2484 = vmatpush1.msra.mxu0 0.0
        %2485 = vmatprep.subr.mxu0 0.0
        %2486 = vmatpush1.msra.mxu0 0.0
        %2487 = vmatprep.subr.mxu0 0.0
        %2488 = vmatpush1.msra.mxu0 0.0
        %2489 = vmatprep.subr.mxu0 0.0
        %2490 = vmatpush1.msra.mxu0 0.0
        %2491 = vmatprep.subr.mxu0 0.0
        %2492 = vmatpush1.msra.mxu0 0.0
        %2493 = vmatprep.subr.mxu0 0.0
        %2494 = vmatpush1.msra.mxu0 0.0
        %2495 = vmatprep.subr.mxu0 0.0
        %2496 = vmatpush1.msra.mxu0 0.0
        %2497 = vmatprep.subr.mxu0 0.0
        %2498 = vmatpush1.msra.mxu0 0.0
        %2499 = vmatprep.subr.mxu0 0.0
        %2500 = vmatpush1.msra.mxu0 0.0
        %2501 = vmatprep.mubr.f32.mxu0 0.0
        %2502 = vmatmul.mubr.f32.gmra.mrb[0].mxu0 %v2435
        %v2503 = vpop.f32.mrb[0].mxu0
        %v2504 = vadd.f32 %v1242, %v2503
        %v2505 = vpop.f32.mrb[0].mxu0
        %2506 = vdwg.mxu0
        %v2508 = vsel %vm2433, %v1292, 0
        %2510 = vmatprep.subr.mxu0 0.0
        %2511 = vmatpush1.msra.mxu0 %v2382
        %2512 = vmatprep.subr.mxu0 0.0
        %2513 = vmatpush1.msra.mxu0 %v2432
        %2514 = vmatprep.subr.mxu0 0.0
        %2515 = vmatpush1.msra.mxu0 0.0
        %2516 = vmatprep.subr.mxu0 0.0
        %2517 = vmatpush1.msra.mxu0 0.0
        %2518 = vmatprep.subr.mxu0 0.0
        %2519 = vmatpush1.msra.mxu0 0.0
        %2520 = vmatprep.subr.mxu0 0.0
        %2521 = vmatpush1.msra.mxu0 0.0
        %2522 = vmatprep.subr.mxu0 0.0
        %2523 = vmatpush1.msra.mxu0 0.0
        %2524 = vmatprep.subr.mxu0 0.0
        %2525 = vmatpush1.msra.mxu0 0.0
        %2526 = vmatprep.subr.mxu0 0.0
        %2527 = vmatpush1.msra.mxu0 0.0
        %2528 = vmatprep.subr.mxu0 0.0
        %2529 = vmatpush1.msra.mxu0 0.0
        %2530 = vmatprep.subr.mxu0 0.0
        %2531 = vmatpush1.msra.mxu0 0.0
        %2532 = vmatprep.subr.mxu0 0.0
        %2533 = vmatpush1.msra.mxu0 0.0
        %2534 = vmatprep.subr.mxu0 0.0
        %2535 = vmatpush1.msra.mxu0 0.0
        %2536 = vmatprep.subr.mxu0 0.0
        %2537 = vmatpush1.msra.mxu0 0.0
        %2538 = vmatprep.subr.mxu0 0.0
        %2539 = vmatpush1.msra.mxu0 0.0
        %2540 = vmatprep.subr.mxu0 0.0
        %2541 = vmatpush1.msra.mxu0 0.0
        %2542 = vmatprep.subr.mxu0 0.0
        %2543 = vmatpush1.msra.mxu0 0.0
        %2544 = vmatprep.subr.mxu0 0.0
        %2545 = vmatpush1.msra.mxu0 0.0
        %2546 = vmatprep.subr.mxu0 0.0
        %2547 = vmatpush1.msra.mxu0 0.0
        %2548 = vmatprep.subr.mxu0 0.0
        %2549 = vmatpush1.msra.mxu0 0.0
        %2550 = vmatprep.subr.mxu0 0.0
        %2551 = vmatpush1.msra.mxu0 0.0
        %2552 = vmatprep.subr.mxu0 0.0
        %2553 = vmatpush1.msra.mxu0 0.0
        %2554 = vmatprep.subr.mxu0 0.0
        %2555 = vmatpush1.msra.mxu0 0.0
        %2556 = vmatprep.subr.mxu0 0.0
        %2557 = vmatpush1.msra.mxu0 0.0
        %2558 = vmatprep.subr.mxu0 0.0
        %2559 = vmatpush1.msra.mxu0 0.0
        %2560 = vmatprep.subr.mxu0 0.0
        %2561 = vmatpush1.msra.mxu0 0.0
        %2562 = vmatprep.subr.mxu0 0.0
        %2563 = vmatpush1.msra.mxu0 0.0
        %2564 = vmatprep.subr.mxu0 0.0
        %2565 = vmatpush1.msra.mxu0 0.0
        %2566 = vmatprep.subr.mxu0 0.0
        %2567 = vmatpush1.msra.mxu0 0.0
        %2568 = vmatprep.subr.mxu0 0.0
        %2569 = vmatpush1.msra.mxu0 0.0
        %2570 = vmatprep.subr.mxu0 0.0
        %2571 = vmatpush1.msra.mxu0 0.0
        %2572 = vmatprep.subr.mxu0 0.0
        %2573 = vmatpush1.msra.mxu0 0.0
        %2574 = vmatprep.mubr.f32.mxu0 0.0
        %2575 = vmatmul.mubr.f32.gmra.mrb[0].mxu0 %v2508
        %v2576 = vpop.f32.mrb[0].mxu0
        %v2577 = vadd.f32 %v1242, %v2576
        %v2578 = vpop.f32.mrb[0].mxu0
        %2579 = vdwg.mxu0
        %vm2580 = vcmask 64512
        %v2581 = vsel %vm2580, %v2504, -inf
        %2582 = vmax.xlane.f32.xlu0 %v2581
        %v2583 = vpop.xlane.xlu0 %2582
        %v2584 = vsel %vm2580, %v2577, -inf
        %2585 = vmax.xlane.f32.xlu0 %v2584
        %v2586 = vpop.xlane.xlu0 %2585
        %v2587 = vsub.f32 %v2504, %v2583
        %v2588 = vsub.f32 %v2577, %v2586
        %v2589 = vmul.f32 %v2587, 1.442695
        %v2590 = vpow.pop %v2589
        %v2591 = vmul.f32 %v2588, 1.442695
        %v2592 = vpow.pop %v2591
        %v2593 = vsel %vm2580, %v2590, 0.0
        %2594 = vadd.xlane.f32.xlu0 %v2593
        %v2595 = vpop.xlane.xlu0 %2594
        %v2596 = vsel %vm2580, %v2592, 0.0
        %2597 = vadd.xlane.f32.xlu0 %v2596
        %v2598 = vpop.xlane.xlu0 %2597
        %v2599 = vrcp.pop %v2595
        %v2600 = vmul.f32 %v2590, %v2599
        %v2601 = vrcp.pop %v2598
        %v2602 = vmul.f32 %v2592, %v2601
        %2603 = vxpose.xlu0.b32.start [1/16] %v1148, 128
        %2604 = vxpose.xlu0.b32.cont [2/16] 0.0, 128
        %2605 = vxpose.xlu0.b32.cont [3/16] 0.0, 128
        %2606 = vxpose.xlu0.b32.cont [4/16] 0.0, 128
        %2607 = vxpose.xlu0.b32.cont [5/16] 0.0, 128
        %2608 = vxpose.xlu0.b32.cont [6/16] 0.0, 128
        %2609 = vxpose.xlu0.b32.cont [7/16] 0.0, 128
        %2610 = vxpose.xlu0.b32.cont [8/16] 0.0, 128
        %2611 = vxpose.xlu0.b32.cont [9/16] 0.0, 128
        %2612 = vxpose.xlu0.b32.cont [10/16] 0.0, 128
        %2613 = vxpose.xlu0.b32.cont [11/16] 0.0, 128
        %2614 = vxpose.xlu0.b32.cont [12/16] 0.0, 128
        %2615 = vxpose.xlu0.b32.cont [13/16] 0.0, 128
        %2616 = vxpose.xlu0.b32.cont [14/16] 0.0, 128
        %2617 = vxpose.xlu0.b32.cont [15/16] 0.0, 128
        %2618 = vxpose.xlu0.b32.end [16/16] 0.0, 128
        %v2619 = vpop.trf.xlu0
        %v2620 = vpop.trf.xlu0
        %v2621 = vpop.trf.xlu0
        %v2622 = vpop.trf.xlu0
        %v2623 = vpop.trf.xlu0
        %v2624 = vpop.trf.xlu0
        %v2625 = vpop.trf.xlu0
        %v2626 = vpop.trf.xlu0
        %v2627 = vpop.trf.xlu0
        %v2628 = vpop.trf.xlu0
        %v2629 = vpop.trf.xlu0
        %v2630 = vpop.trf.xlu0
        %v2631 = vpop.trf.xlu0
        %v2632 = vpop.trf.xlu0
        %v2633 = vpop.trf.xlu0
        %v2634 = vpop.trf.xlu0
        %2635 = vxpose.xlu0.b32.start [1/16] %v1172, 128
        %2636 = vxpose.xlu0.b32.cont [2/16] 0.0, 128
        %2637 = vxpose.xlu0.b32.cont [3/16] 0.0, 128
        %2638 = vxpose.xlu0.b32.cont [4/16] 0.0, 128
        %2639 = vxpose.xlu0.b32.cont [5/16] 0.0, 128
        %2640 = vxpose.xlu0.b32.cont [6/16] 0.0, 128
        %2641 = vxpose.xlu0.b32.cont [7/16] 0.0, 128
        %2642 = vxpose.xlu0.b32.cont [8/16] 0.0, 128
        %2643 = vxpose.xlu0.b32.cont [9/16] 0.0, 128
        %2644 = vxpose.xlu0.b32.cont [10/16] 0.0, 128
        %2645 = vxpose.xlu0.b32.cont [11/16] 0.0, 128
        %2646 = vxpose.xlu0.b32.cont [12/16] 0.0, 128
        %2647 = vxpose.xlu0.b32.cont [13/16] 0.0, 128
        %2648 = vxpose.xlu0.b32.cont [14/16] 0.0, 128
        %2649 = vxpose.xlu0.b32.cont [15/16] 0.0, 128
        %2650 = vxpose.xlu0.b32.end [16/16] 0.0, 128
        %v2651 = vpop.trf.xlu0
        %v2652 = vpop.trf.xlu0
        %v2653 = vpop.trf.xlu0
        %v2654 = vpop.trf.xlu0
        %v2655 = vpop.trf.xlu0
        %v2656 = vpop.trf.xlu0
        %v2657 = vpop.trf.xlu0
        %v2658 = vpop.trf.xlu0
        %v2659 = vpop.trf.xlu0
        %v2660 = vpop.trf.xlu0
        %v2661 = vpop.trf.xlu0
        %v2662 = vpop.trf.xlu0
        %v2663 = vpop.trf.xlu0
        %v2664 = vpop.trf.xlu0
        %v2665 = vpop.trf.xlu0
        %v2666 = vpop.trf.xlu0
        %2667 = vxpose.xlu0.b32.start [1/16] %v1155, 128
        %2668 = vxpose.xlu0.b32.cont [2/16] 0.0, 128
        %2669 = vxpose.xlu0.b32.cont [3/16] 0.0, 128
        %2670 = vxpose.xlu0.b32.cont [4/16] 0.0, 128
        %2671 = vxpose.xlu0.b32.cont [5/16] 0.0, 128
        %2672 = vxpose.xlu0.b32.cont [6/16] 0.0, 128
        %2673 = vxpose.xlu0.b32.cont [7/16] 0.0, 128
        %2674 = vxpose.xlu0.b32.cont [8/16] 0.0, 128
        %2675 = vxpose.xlu0.b32.cont [9/16] 0.0, 128
        %2676 = vxpose.xlu0.b32.cont [10/16] 0.0, 128
        %2677 = vxpose.xlu0.b32.cont [11/16] 0.0, 128
        %2678 = vxpose.xlu0.b32.cont [12/16] 0.0, 128
        %2679 = vxpose.xlu0.b32.cont [13/16] 0.0, 128
        %2680 = vxpose.xlu0.b32.cont [14/16] 0.0, 128
        %2681 = vxpose.xlu0.b32.cont [15/16] 0.0, 128
        %2682 = vxpose.xlu0.b32.end [16/16] 0.0, 128
        %v2683 = vpop.trf.xlu0
        %v2684 = vpop.trf.xlu0
        %v2685 = vpop.trf.xlu0
        %v2686 = vpop.trf.xlu0
        %v2687 = vpop.trf.xlu0
        %v2688 = vpop.trf.xlu0
        %v2689 = vpop.trf.xlu0
        %v2690 = vpop.trf.xlu0
        %v2691 = vpop.trf.xlu0
        %v2692 = vpop.trf.xlu0
        %v2693 = vpop.trf.xlu0
        %v2694 = vpop.trf.xlu0
        %v2695 = vpop.trf.xlu0
        %v2696 = vpop.trf.xlu0
        %v2697 = vpop.trf.xlu0
        %v2698 = vpop.trf.xlu0
        %2699 = vxpose.xlu0.b32.start [1/16] %v1173, 128
        %2700 = vxpose.xlu0.b32.cont [2/16] 0.0, 128
        %2701 = vxpose.xlu0.b32.cont [3/16] 0.0, 128
        %2702 = vxpose.xlu0.b32.cont [4/16] 0.0, 128
        %2703 = vxpose.xlu0.b32.cont [5/16] 0.0, 128
        %2704 = vxpose.xlu0.b32.cont [6/16] 0.0, 128
        %2705 = vxpose.xlu0.b32.cont [7/16] 0.0, 128
        %2706 = vxpose.xlu0.b32.cont [8/16] 0.0, 128
        %2707 = vxpose.xlu0.b32.cont [9/16] 0.0, 128
        %2708 = vxpose.xlu0.b32.cont [10/16] 0.0, 128
        %2709 = vxpose.xlu0.b32.cont [11/16] 0.0, 128
        %2710 = vxpose.xlu0.b32.cont [12/16] 0.0, 128
        %2711 = vxpose.xlu0.b32.cont [13/16] 0.0, 128
        %2712 = vxpose.xlu0.b32.cont [14/16] 0.0, 128
        %2713 = vxpose.xlu0.b32.cont [15/16] 0.0, 128
        %2714 = vxpose.xlu0.b32.end [16/16] 0.0, 128
        %v2715 = vpop.trf.xlu0
        %v2716 = vpop.trf.xlu0
        %v2717 = vpop.trf.xlu0
        %v2718 = vpop.trf.xlu0
        %v2719 = vpop.trf.xlu0
        %v2720 = vpop.trf.xlu0
        %v2721 = vpop.trf.xlu0
        %v2722 = vpop.trf.xlu0
        %v2723 = vpop.trf.xlu0
        %v2724 = vpop.trf.xlu0
        %v2725 = vpop.trf.xlu0
        %v2726 = vpop.trf.xlu0
        %v2727 = vpop.trf.xlu0
        %v2728 = vpop.trf.xlu0
        %v2729 = vpop.trf.xlu0
        %v2730 = vpop.trf.xlu0
        %2731 = vxpose.xlu0.b32.start [1/16] %v1164, 128
        %2732 = vxpose.xlu0.b32.cont [2/16] 0.0, 128
        %2733 = vxpose.xlu0.b32.cont [3/16] 0.0, 128
        %2734 = vxpose.xlu0.b32.cont [4/16] 0.0, 128
        %2735 = vxpose.xlu0.b32.cont [5/16] 0.0, 128
        %2736 = vxpose.xlu0.b32.cont [6/16] 0.0, 128
        %2737 = vxpose.xlu0.b32.cont [7/16] 0.0, 128
        %2738 = vxpose.xlu0.b32.cont [8/16] 0.0, 128
        %2739 = vxpose.xlu0.b32.cont [9/16] 0.0, 128
        %2740 = vxpose.xlu0.b32.cont [10/16] 0.0, 128
        %2741 = vxpose.xlu0.b32.cont [11/16] 0.0, 128
        %2742 = vxpose.xlu0.b32.cont [12/16] 0.0, 128
        %2743 = vxpose.xlu0.b32.cont [13/16] 0.0, 128
        %2744 = vxpose.xlu0.b32.cont [14/16] 0.0, 128
        %2745 = vxpose.xlu0.b32.cont [15/16] 0.0, 128
        %2746 = vxpose.xlu0.b32.end [16/16] 0.0, 128
        %v2747 = vpop.trf.xlu0
        %v2748 = vpop.trf.xlu0
        %v2749 = vpop.trf.xlu0
        %v2750 = vpop.trf.xlu0
        %v2751 = vpop.trf.xlu0
        %v2752 = vpop.trf.xlu0
        %v2753 = vpop.trf.xlu0
        %v2754 = vpop.trf.xlu0
        %v2755 = vpop.trf.xlu0
        %v2756 = vpop.trf.xlu0
        %v2757 = vpop.trf.xlu0
        %v2758 = vpop.trf.xlu0
        %v2759 = vpop.trf.xlu0
        %v2760 = vpop.trf.xlu0
        %v2761 = vpop.trf.xlu0
        %v2762 = vpop.trf.xlu0
        %2763 = vxpose.xlu0.b32.start [1/16] %v1174, 128
        %2764 = vxpose.xlu0.b32.cont [2/16] 0.0, 128
        %2765 = vxpose.xlu0.b32.cont [3/16] 0.0, 128
        %2766 = vxpose.xlu0.b32.cont [4/16] 0.0, 128
        %2767 = vxpose.xlu0.b32.cont [5/16] 0.0, 128
        %2768 = vxpose.xlu0.b32.cont [6/16] 0.0, 128
        %2769 = vxpose.xlu0.b32.cont [7/16] 0.0, 128
        %2770 = vxpose.xlu0.b32.cont [8/16] 0.0, 128
        %2771 = vxpose.xlu0.b32.cont [9/16] 0.0, 128
        %2772 = vxpose.xlu0.b32.cont [10/16] 0.0, 128
        %2773 = vxpose.xlu0.b32.cont [11/16] 0.0, 128
        %2774 = vxpose.xlu0.b32.cont [12/16] 0.0, 128
        %2775 = vxpose.xlu0.b32.cont [13/16] 0.0, 128
        %2776 = vxpose.xlu0.b32.cont [14/16] 0.0, 128
        %2777 = vxpose.xlu0.b32.cont [15/16] 0.0, 128
        %2778 = vxpose.xlu0.b32.end [16/16] 0.0, 128
        %v2779 = vpop.trf.xlu0
        %v2780 = vpop.trf.xlu0
        %v2781 = vpop.trf.xlu0
        %v2782 = vpop.trf.xlu0
        %v2783 = vpop.trf.xlu0
        %v2784 = vpop.trf.xlu0
        %v2785 = vpop.trf.xlu0
        %v2786 = vpop.trf.xlu0
        %v2787 = vpop.trf.xlu0
        %v2788 = vpop.trf.xlu0
        %v2789 = vpop.trf.xlu0
        %v2790 = vpop.trf.xlu0
        %v2791 = vpop.trf.xlu0
        %v2792 = vpop.trf.xlu0
        %v2793 = vpop.trf.xlu0
        %v2794 = vpop.trf.xlu0
        %2795 = vxpose.xlu0.b32.start [1/16] %v1171, 128
        %2796 = vxpose.xlu0.b32.cont [2/16] 0.0, 128
        %2797 = vxpose.xlu0.b32.cont [3/16] 0.0, 128
        %2798 = vxpose.xlu0.b32.cont [4/16] 0.0, 128
        %2799 = vxpose.xlu0.b32.cont [5/16] 0.0, 128
        %2800 = vxpose.xlu0.b32.cont [6/16] 0.0, 128
        %2801 = vxpose.xlu0.b32.cont [7/16] 0.0, 128
        %2802 = vxpose.xlu0.b32.cont [8/16] 0.0, 128
        %2803 = vxpose.xlu0.b32.cont [9/16] 0.0, 128
        %2804 = vxpose.xlu0.b32.cont [10/16] 0.0, 128
        %2805 = vxpose.xlu0.b32.cont [11/16] 0.0, 128
        %2806 = vxpose.xlu0.b32.cont [12/16] 0.0, 128
        %2807 = vxpose.xlu0.b32.cont [13/16] 0.0, 128
        %2808 = vxpose.xlu0.b32.cont [14/16] 0.0, 128
        %2809 = vxpose.xlu0.b32.cont [15/16] 0.0, 128
        %2810 = vxpose.xlu0.b32.end [16/16] 0.0, 128
        %v2811 = vpop.trf.xlu0
        %v2812 = vpop.trf.xlu0
        %v2813 = vpop.trf.xlu0
        %v2814 = vpop.trf.xlu0
        %v2815 = vpop.trf.xlu0
        %v2816 = vpop.trf.xlu0
        %v2817 = vpop.trf.xlu0
        %v2818 = vpop.trf.xlu0
        %v2819 = vpop.trf.xlu0
        %v2820 = vpop.trf.xlu0
        %v2821 = vpop.trf.xlu0
        %v2822 = vpop.trf.xlu0
        %v2823 = vpop.trf.xlu0
        %v2824 = vpop.trf.xlu0
        %v2825 = vpop.trf.xlu0
        %v2826 = vpop.trf.xlu0
        %2827 = vxpose.xlu0.b32.start [1/16] %v1175, 128
        %2828 = vxpose.xlu0.b32.cont [2/16] 0.0, 128
        %2829 = vxpose.xlu0.b32.cont [3/16] 0.0, 128
        %2830 = vxpose.xlu0.b32.cont [4/16] 0.0, 128
        %2831 = vxpose.xlu0.b32.cont [5/16] 0.0, 128
        %2832 = vxpose.xlu0.b32.cont [6/16] 0.0, 128
        %2833 = vxpose.xlu0.b32.cont [7/16] 0.0, 128
        %2834 = vxpose.xlu0.b32.cont [8/16] 0.0, 128
        %2835 = vxpose.xlu0.b32.cont [9/16] 0.0, 128
        %2836 = vxpose.xlu0.b32.cont [10/16] 0.0, 128
        %2837 = vxpose.xlu0.b32.cont [11/16] 0.0, 128
        %2838 = vxpose.xlu0.b32.cont [12/16] 0.0, 128
        %2839 = vxpose.xlu0.b32.cont [13/16] 0.0, 128
        %2840 = vxpose.xlu0.b32.cont [14/16] 0.0, 128
        %2841 = vxpose.xlu0.b32.cont [15/16] 0.0, 128
        %2842 = vxpose.xlu0.b32.end [16/16] 0.0, 128
        %v2843 = vpop.trf.xlu0
        %v2844 = vpop.trf.xlu0
        %v2845 = vpop.trf.xlu0
        %v2846 = vpop.trf.xlu0
        %v2847 = vpop.trf.xlu0
        %v2848 = vpop.trf.xlu0
        %v2849 = vpop.trf.xlu0
        %v2850 = vpop.trf.xlu0
        %v2851 = vpop.trf.xlu0
        %v2852 = vpop.trf.xlu0
        %v2853 = vpop.trf.xlu0
        %v2854 = vpop.trf.xlu0
        %v2855 = vpop.trf.xlu0
        %v2856 = vpop.trf.xlu0
        %v2857 = vpop.trf.xlu0
        %v2858 = vpop.trf.xlu0
        %v2859 = vcombine.low %v2619, %v2683
        %v2860 = vcombine.high %v2619, %v2683
        %v2862 = vunpack.c.l.s4 1983009808
        %v2863 = vunpack.c.0.s8 %v2862
        %v2864 = vlaneseq
        %v2865 = vshrl.u32 %v2864, 7
        %v2866 = vsub.s32 %v2863, %v2865
        %v2867 = vrot.slane %v2859, %v2866
        %v2869 = vunpack.c.l.s4 1983009808
        %v2870 = vunpack.c.0.s8 %v2869
        %v2871 = vlaneseq
        %v2872 = vshrl.u32 %v2871, 7
        %v2873 = vsub.s32 %v2870, %v2872
        %v2874 = vrot.slane %v2860, %v2873
        %v2875 = vcombine.low %v2651, %v2715
        %v2876 = vcombine.high %v2651, %v2715
        %v2878 = vunpack.c.l.s4 1983009808
        %v2879 = vunpack.c.0.s8 %v2878
        %v2880 = vlaneseq
        %v2881 = vshrl.u32 %v2880, 7
        %v2882 = vsub.s32 %v2879, %v2881
        %v2883 = vrot.slane %v2875, %v2882
        %v2885 = vunpack.c.l.s4 1983009808
        %v2886 = vunpack.c.0.s8 %v2885
        %v2887 = vlaneseq
        %v2888 = vshrl.u32 %v2887, 7
        %v2889 = vsub.s32 %v2886, %v2888
        %v2890 = vrot.slane %v2876, %v2889
        %v2891 = vcombine.low %v2747, %v2811
        %v2892 = vcombine.high %v2747, %v2811
        %v2894 = vunpack.c.l.s4 1983009808
        %v2895 = vunpack.c.0.s8 %v2894
        %v2896 = vlaneseq
        %v2897 = vshrl.u32 %v2896, 7
        %v2898 = vsub.s32 %v2895, %v2897
        %v2899 = vrot.slane %v2891, %v2898
        %v2901 = vunpack.c.l.s4 1983009808
        %v2902 = vunpack.c.0.s8 %v2901
        %v2903 = vlaneseq
        %v2904 = vshrl.u32 %v2903, 7
        %v2905 = vsub.s32 %v2902, %v2904
        %v2906 = vrot.slane %v2892, %v2905
        %v2907 = vcombine.low %v2779, %v2843
        %v2908 = vcombine.high %v2779, %v2843
        %v2910 = vunpack.c.l.s4 1983009808
        %v2911 = vunpack.c.0.s8 %v2910
        %v2912 = vlaneseq
        %v2913 = vshrl.u32 %v2912, 7
        %v2914 = vsub.s32 %v2911, %v2913
        %v2915 = vrot.slane %v2907, %v2914
        %v2917 = vunpack.c.l.s4 1983009808
        %v2918 = vunpack.c.0.s8 %v2917
        %v2919 = vlaneseq
        %v2920 = vshrl.u32 %v2919, 7
        %v2921 = vsub.s32 %v2918, %v2920
        %v2922 = vrot.slane %v2908, %v2921
        %v2923 = vcombine.low %v2867, %v2883
        %v2924 = vcombine.high %v2867, %v2883
        %v2926 = vunpack.c.l.s4 1934713408
        %v2927 = vunpack.c.0.s8 %v2926
        %v2928 = vlaneseq
        %v2929 = vshrl.u32 %v2928, 7
        %v2930 = vsub.s32 %v2927, %v2929
        %v2931 = vrot.slane %v2923, %v2930
        %v2933 = vunpack.c.l.s4 1934713408
        %v2934 = vunpack.c.0.s8 %v2933
        %v2935 = vlaneseq
        %v2936 = vshrl.u32 %v2935, 7
        %v2937 = vsub.s32 %v2934, %v2936
        %v2938 = vrot.slane %v2924, %v2937
        %v2939 = vcombine.low %v2874, %v2890
        %v2940 = vcombine.high %v2874, %v2890
        %v2942 = vunpack.c.l.s4 1934713408
        %v2943 = vunpack.c.0.s8 %v2942
        %v2944 = vlaneseq
        %v2945 = vshrl.u32 %v2944, 7
        %v2946 = vsub.s32 %v2943, %v2945
        %v2947 = vrot.slane %v2939, %v2946
        %v2949 = vunpack.c.l.s4 1934713408
        %v2950 = vunpack.c.0.s8 %v2949
        %v2951 = vlaneseq
        %v2952 = vshrl.u32 %v2951, 7
        %v2953 = vsub.s32 %v2950, %v2952
        %v2954 = vrot.slane %v2940, %v2953
        %v2955 = vcombine.low %v2899, %v2915
        %v2956 = vcombine.high %v2899, %v2915
        %v2958 = vunpack.c.l.s4 1934713408
        %v2959 = vunpack.c.0.s8 %v2958
        %v2960 = vlaneseq
        %v2961 = vshrl.u32 %v2960, 7
        %v2962 = vsub.s32 %v2959, %v2961
        %v2963 = vrot.slane %v2955, %v2962
        %v2965 = vunpack.c.l.s4 1934713408
        %v2966 = vunpack.c.0.s8 %v2965
        %v2967 = vlaneseq
        %v2968 = vshrl.u32 %v2967, 7
        %v2969 = vsub.s32 %v2966, %v2968
        %v2970 = vrot.slane %v2956, %v2969
        %v2971 = vcombine.low %v2906, %v2922
        %v2972 = vcombine.high %v2906, %v2922
        %v2974 = vunpack.c.l.s4 1934713408
        %v2975 = vunpack.c.0.s8 %v2974
        %v2976 = vlaneseq
        %v2977 = vshrl.u32 %v2976, 7
        %v2978 = vsub.s32 %v2975, %v2977
        %v2979 = vrot.slane %v2971, %v2978
        %v2981 = vunpack.c.l.s4 1934713408
        %v2982 = vunpack.c.0.s8 %v2981
        %v2983 = vlaneseq
        %v2984 = vshrl.u32 %v2983, 7
        %v2985 = vsub.s32 %v2982, %v2984
        %v2986 = vrot.slane %v2972, %v2985
        %v2987 = vcombine.low %v2931, %v2963
        %v2988 = vcombine.high %v2931, %v2963
        %v2989 = vcombine.low %v2938, %v2970
        %v2990 = vcombine.high %v2938, %v2970
        %v2991 = vcombine.low %v2947, %v2979
        %v2992 = vcombine.high %v2947, %v2979
        %v2993 = vcombine.low %v2954, %v2986
        %v2994 = vcombine.high %v2954, %v2986
        %v2995 = vcombine.low %v2620, %v2684
        %v2996 = vcombine.high %v2620, %v2684
        %v2998 = vunpack.c.l.s4 1983009808
        %v2999 = vunpack.c.0.s8 %v2998
        %v3000 = vlaneseq
        %v3001 = vshrl.u32 %v3000, 7
        %v3002 = vsub.s32 %v2999, %v3001
        %v3003 = vrot.slane %v2995, %v3002
        %v3005 = vunpack.c.l.s4 1983009808
        %v3006 = vunpack.c.0.s8 %v3005
        %v3007 = vlaneseq
        %v3008 = vshrl.u32 %v3007, 7
        %v3009 = vsub.s32 %v3006, %v3008
        %v3010 = vrot.slane %v2996, %v3009
        %v3011 = vcombine.low %v2652, %v2716
        %v3012 = vcombine.high %v2652, %v2716
        %v3014 = vunpack.c.l.s4 1983009808
        %v3015 = vunpack.c.0.s8 %v3014
        %v3016 = vlaneseq
        %v3017 = vshrl.u32 %v3016, 7
        %v3018 = vsub.s32 %v3015, %v3017
        %v3019 = vrot.slane %v3011, %v3018
        %v3021 = vunpack.c.l.s4 1983009808
        %v3022 = vunpack.c.0.s8 %v3021
        %v3023 = vlaneseq
        %v3024 = vshrl.u32 %v3023, 7
        %v3025 = vsub.s32 %v3022, %v3024
        %v3026 = vrot.slane %v3012, %v3025
        %v3027 = vcombine.low %v2748, %v2812
        %v3028 = vcombine.high %v2748, %v2812
        %v3030 = vunpack.c.l.s4 1983009808
        %v3031 = vunpack.c.0.s8 %v3030
        %v3032 = vlaneseq
        %v3033 = vshrl.u32 %v3032, 7
        %v3034 = vsub.s32 %v3031, %v3033
        %v3035 = vrot.slane %v3027, %v3034
        %v3037 = vunpack.c.l.s4 1983009808
        %v3038 = vunpack.c.0.s8 %v3037
        %v3039 = vlaneseq
        %v3040 = vshrl.u32 %v3039, 7
        %v3041 = vsub.s32 %v3038, %v3040
        %v3042 = vrot.slane %v3028, %v3041
        %v3043 = vcombine.low %v2780, %v2844
        %v3044 = vcombine.high %v2780, %v2844
        %v3046 = vunpack.c.l.s4 1983009808
        %v3047 = vunpack.c.0.s8 %v3046
        %v3048 = vlaneseq
        %v3049 = vshrl.u32 %v3048, 7
        %v3050 = vsub.s32 %v3047, %v3049
        %v3051 = vrot.slane %v3043, %v3050
        %v3053 = vunpack.c.l.s4 1983009808
        %v3054 = vunpack.c.0.s8 %v3053
        %v3055 = vlaneseq
        %v3056 = vshrl.u32 %v3055, 7
        %v3057 = vsub.s32 %v3054, %v3056
        %v3058 = vrot.slane %v3044, %v3057
        %v3059 = vcombine.low %v3003, %v3019
        %v3060 = vcombine.high %v3003, %v3019
        %v3062 = vunpack.c.l.s4 1934713408
        %v3063 = vunpack.c.0.s8 %v3062
        %v3064 = vlaneseq
        %v3065 = vshrl.u32 %v3064, 7
        %v3066 = vsub.s32 %v3063, %v3065
        %v3067 = vrot.slane %v3059, %v3066
        %v3069 = vunpack.c.l.s4 1934713408
        %v3070 = vunpack.c.0.s8 %v3069
        %v3071 = vlaneseq
        %v3072 = vshrl.u32 %v3071, 7
        %v3073 = vsub.s32 %v3070, %v3072
        %v3074 = vrot.slane %v3060, %v3073
        %v3075 = vcombine.low %v3010, %v3026
        %v3076 = vcombine.high %v3010, %v3026
        %v3078 = vunpack.c.l.s4 1934713408
        %v3079 = vunpack.c.0.s8 %v3078
        %v3080 = vlaneseq
        %v3081 = vshrl.u32 %v3080, 7
        %v3082 = vsub.s32 %v3079, %v3081
        %v3083 = vrot.slane %v3075, %v3082
        %v3085 = vunpack.c.l.s4 1934713408
        %v3086 = vunpack.c.0.s8 %v3085
        %v3087 = vlaneseq
        %v3088 = vshrl.u32 %v3087, 7
        %v3089 = vsub.s32 %v3086, %v3088
        %v3090 = vrot.slane %v3076, %v3089
        %v3091 = vcombine.low %v3035, %v3051
        %v3092 = vcombine.high %v3035, %v3051
        %v3094 = vunpack.c.l.s4 1934713408
        %v3095 = vunpack.c.0.s8 %v3094
        %v3096 = vlaneseq
        %v3097 = vshrl.u32 %v3096, 7
        %v3098 = vsub.s32 %v3095, %v3097
        %v3099 = vrot.slane %v3091, %v3098
        %v3101 = vunpack.c.l.s4 1934713408
        %v3102 = vunpack.c.0.s8 %v3101
        %v3103 = vlaneseq
        %v3104 = vshrl.u32 %v3103, 7
        %v3105 = vsub.s32 %v3102, %v3104
        %v3106 = vrot.slane %v3092, %v3105
        %v3107 = vcombine.low %v3042, %v3058
        %v3108 = vcombine.high %v3042, %v3058
        %v3110 = vunpack.c.l.s4 1934713408
        %v3111 = vunpack.c.0.s8 %v3110
        %v3112 = vlaneseq
        %v3113 = vshrl.u32 %v3112, 7
        %v3114 = vsub.s32 %v3111, %v3113
        %v3115 = vrot.slane %v3107, %v3114
        %v3117 = vunpack.c.l.s4 1934713408
        %v3118 = vunpack.c.0.s8 %v3117
        %v3119 = vlaneseq
        %v3120 = vshrl.u32 %v3119, 7
        %v3121 = vsub.s32 %v3118, %v3120
        %v3122 = vrot.slane %v3108, %v3121
        %v3123 = vcombine.low %v3067, %v3099
        %v3124 = vcombine.high %v3067, %v3099
        %v3125 = vcombine.low %v3074, %v3106
        %v3126 = vcombine.high %v3074, %v3106
        %v3127 = vcombine.low %v3083, %v3115
        %v3128 = vcombine.high %v3083, %v3115
        %v3129 = vcombine.low %v3090, %v3122
        %v3130 = vcombine.high %v3090, %v3122
        %3131 = vxpose.xlu0.b32.start [1/16] %v2987, 128
        %3132 = vxpose.xlu0.b32.cont [2/16] 0.0, 128
        %3133 = vxpose.xlu0.b32.cont [3/16] 0.0, 128
        %3134 = vxpose.xlu0.b32.cont [4/16] 0.0, 128
        %3135 = vxpose.xlu0.b32.cont [5/16] 0.0, 128
        %3136 = vxpose.xlu0.b32.cont [6/16] 0.0, 128
        %3137 = vxpose.xlu0.b32.cont [7/16] 0.0, 128
        %3138 = vxpose.xlu0.b32.cont [8/16] 0.0, 128
        %3139 = vxpose.xlu0.b32.cont [9/16] 0.0, 128
        %3140 = vxpose.xlu0.b32.cont [10/16] 0.0, 128
        %3141 = vxpose.xlu0.b32.cont [11/16] 0.0, 128
        %3142 = vxpose.xlu0.b32.cont [12/16] 0.0, 128
        %3143 = vxpose.xlu0.b32.cont [13/16] 0.0, 128
        %3144 = vxpose.xlu0.b32.cont [14/16] 0.0, 128
        %3145 = vxpose.xlu0.b32.cont [15/16] 0.0, 128
        %3146 = vxpose.xlu0.b32.end [16/16] 0.0, 128
        %v3147 = vpop.trf.xlu0
        %v3148 = vpop.trf.xlu0
        %v3149 = vpop.trf.xlu0
        %v3150 = vpop.trf.xlu0
        %v3151 = vpop.trf.xlu0
        %v3152 = vpop.trf.xlu0
        %v3153 = vpop.trf.xlu0
        %v3154 = vpop.trf.xlu0
        %v3155 = vpop.trf.xlu0
        %v3156 = vpop.trf.xlu0
        %v3157 = vpop.trf.xlu0
        %v3158 = vpop.trf.xlu0
        %v3159 = vpop.trf.xlu0
        %v3160 = vpop.trf.xlu0
        %v3161 = vpop.trf.xlu0
        %v3162 = vpop.trf.xlu0
        %3163 = vxpose.xlu0.b32.start [1/16] %v2988, 128
        %3164 = vxpose.xlu0.b32.cont [2/16] 0.0, 128
        %3165 = vxpose.xlu0.b32.cont [3/16] 0.0, 128
        %3166 = vxpose.xlu0.b32.cont [4/16] 0.0, 128
        %3167 = vxpose.xlu0.b32.cont [5/16] 0.0, 128
        %3168 = vxpose.xlu0.b32.cont [6/16] 0.0, 128
        %3169 = vxpose.xlu0.b32.cont [7/16] 0.0, 128
        %3170 = vxpose.xlu0.b32.cont [8/16] 0.0, 128
        %3171 = vxpose.xlu0.b32.cont [9/16] 0.0, 128
        %3172 = vxpose.xlu0.b32.cont [10/16] 0.0, 128
        %3173 = vxpose.xlu0.b32.cont [11/16] 0.0, 128
        %3174 = vxpose.xlu0.b32.cont [12/16] 0.0, 128
        %3175 = vxpose.xlu0.b32.cont [13/16] 0.0, 128
        %3176 = vxpose.xlu0.b32.cont [14/16] 0.0, 128
        %3177 = vxpose.xlu0.b32.cont [15/16] 0.0, 128
        %3178 = vxpose.xlu0.b32.end [16/16] 0.0, 128
        %v3179 = vpop.trf.xlu0
        %v3180 = vpop.trf.xlu0
        %v3181 = vpop.trf.xlu0
        %v3182 = vpop.trf.xlu0
        %v3183 = vpop.trf.xlu0
        %v3184 = vpop.trf.xlu0
        %v3185 = vpop.trf.xlu0
        %v3186 = vpop.trf.xlu0
        %v3187 = vpop.trf.xlu0
        %v3188 = vpop.trf.xlu0
        %v3189 = vpop.trf.xlu0
        %v3190 = vpop.trf.xlu0
        %v3191 = vpop.trf.xlu0
        %v3192 = vpop.trf.xlu0
        %v3193 = vpop.trf.xlu0
        %v3194 = vpop.trf.xlu0
        %3195 = vxpose.xlu0.b32.start [1/16] %v2989, 128
        %3196 = vxpose.xlu0.b32.cont [2/16] 0.0, 128
        %3197 = vxpose.xlu0.b32.cont [3/16] 0.0, 128
        %3198 = vxpose.xlu0.b32.cont [4/16] 0.0, 128
        %3199 = vxpose.xlu0.b32.cont [5/16] 0.0, 128
        %3200 = vxpose.xlu0.b32.cont [6/16] 0.0, 128
        %3201 = vxpose.xlu0.b32.cont [7/16] 0.0, 128
        %3202 = vxpose.xlu0.b32.cont [8/16] 0.0, 128
        %3203 = vxpose.xlu0.b32.cont [9/16] 0.0, 128
        %3204 = vxpose.xlu0.b32.cont [10/16] 0.0, 128
        %3205 = vxpose.xlu0.b32.cont [11/16] 0.0, 128
        %3206 = vxpose.xlu0.b32.cont [12/16] 0.0, 128
        %3207 = vxpose.xlu0.b32.cont [13/16] 0.0, 128
        %3208 = vxpose.xlu0.b32.cont [14/16] 0.0, 128
        %3209 = vxpose.xlu0.b32.cont [15/16] 0.0, 128
        %3210 = vxpose.xlu0.b32.end [16/16] 0.0, 128
        %v3211 = vpop.trf.xlu0
        %v3212 = vpop.trf.xlu0
        %v3213 = vpop.trf.xlu0
        %v3214 = vpop.trf.xlu0
        %v3215 = vpop.trf.xlu0
        %v3216 = vpop.trf.xlu0
        %v3217 = vpop.trf.xlu0
        %v3218 = vpop.trf.xlu0
        %v3219 = vpop.trf.xlu0
        %v3220 = vpop.trf.xlu0
        %v3221 = vpop.trf.xlu0
        %v3222 = vpop.trf.xlu0
        %v3223 = vpop.trf.xlu0
        %v3224 = vpop.trf.xlu0
        %v3225 = vpop.trf.xlu0
        %v3226 = vpop.trf.xlu0
        %3227 = vxpose.xlu0.b32.start [1/16] %v2990, 128
        %3228 = vxpose.xlu0.b32.cont [2/16] 0.0, 128
        %3229 = vxpose.xlu0.b32.cont [3/16] 0.0, 128
        %3230 = vxpose.xlu0.b32.cont [4/16] 0.0, 128
        %3231 = vxpose.xlu0.b32.cont [5/16] 0.0, 128
        %3232 = vxpose.xlu0.b32.cont [6/16] 0.0, 128
        %3233 = vxpose.xlu0.b32.cont [7/16] 0.0, 128
        %3234 = vxpose.xlu0.b32.cont [8/16] 0.0, 128
        %3235 = vxpose.xlu0.b32.cont [9/16] 0.0, 128
        %3236 = vxpose.xlu0.b32.cont [10/16] 0.0, 128
        %3237 = vxpose.xlu0.b32.cont [11/16] 0.0, 128
        %3238 = vxpose.xlu0.b32.cont [12/16] 0.0, 128
        %3239 = vxpose.xlu0.b32.cont [13/16] 0.0, 128
        %3240 = vxpose.xlu0.b32.cont [14/16] 0.0, 128
        %3241 = vxpose.xlu0.b32.cont [15/16] 0.0, 128
        %3242 = vxpose.xlu0.b32.end [16/16] 0.0, 128
        %v3243 = vpop.trf.xlu0
        %v3244 = vpop.trf.xlu0
        %v3245 = vpop.trf.xlu0
        %v3246 = vpop.trf.xlu0
        %v3247 = vpop.trf.xlu0
        %v3248 = vpop.trf.xlu0
        %v3249 = vpop.trf.xlu0
        %v3250 = vpop.trf.xlu0
        %v3251 = vpop.trf.xlu0
        %v3252 = vpop.trf.xlu0
        %v3253 = vpop.trf.xlu0
        %v3254 = vpop.trf.xlu0
        %v3255 = vpop.trf.xlu0
        %v3256 = vpop.trf.xlu0
        %v3257 = vpop.trf.xlu0
        %v3258 = vpop.trf.xlu0
        %3259 = vxpose.xlu0.b32.start [1/16] %v2991, 128
        %3260 = vxpose.xlu0.b32.cont [2/16] 0.0, 128
        %3261 = vxpose.xlu0.b32.cont [3/16] 0.0, 128
        %3262 = vxpose.xlu0.b32.cont [4/16] 0.0, 128
        %3263 = vxpose.xlu0.b32.cont [5/16] 0.0, 128
        %3264 = vxpose.xlu0.b32.cont [6/16] 0.0, 128
        %3265 = vxpose.xlu0.b32.cont [7/16] 0.0, 128
        %3266 = vxpose.xlu0.b32.cont [8/16] 0.0, 128
        %3267 = vxpose.xlu0.b32.cont [9/16] 0.0, 128
        %3268 = vxpose.xlu0.b32.cont [10/16] 0.0, 128
        %3269 = vxpose.xlu0.b32.cont [11/16] 0.0, 128
        %3270 = vxpose.xlu0.b32.cont [12/16] 0.0, 128
        %3271 = vxpose.xlu0.b32.cont [13/16] 0.0, 128
        %3272 = vxpose.xlu0.b32.cont [14/16] 0.0, 128
        %3273 = vxpose.xlu0.b32.cont [15/16] 0.0, 128
        %3274 = vxpose.xlu0.b32.end [16/16] 0.0, 128
        %v3275 = vpop.trf.xlu0
        %v3276 = vpop.trf.xlu0
        %v3277 = vpop.trf.xlu0
        %v3278 = vpop.trf.xlu0
        %v3279 = vpop.trf.xlu0
        %v3280 = vpop.trf.xlu0
        %v3281 = vpop.trf.xlu0
        %v3282 = vpop.trf.xlu0
        %v3283 = vpop.trf.xlu0
        %v3284 = vpop.trf.xlu0
        %v3285 = vpop.trf.xlu0
        %v3286 = vpop.trf.xlu0
        %v3287 = vpop.trf.xlu0
        %v3288 = vpop.trf.xlu0
        %v3289 = vpop.trf.xlu0
        %v3290 = vpop.trf.xlu0
        %3291 = vxpose.xlu0.b32.start [1/16] %v2992, 128
        %3292 = vxpose.xlu0.b32.cont [2/16] 0.0, 128
        %3293 = vxpose.xlu0.b32.cont [3/16] 0.0, 128
        %3294 = vxpose.xlu0.b32.cont [4/16] 0.0, 128
        %3295 = vxpose.xlu0.b32.cont [5/16] 0.0, 128
        %3296 = vxpose.xlu0.b32.cont [6/16] 0.0, 128
        %3297 = vxpose.xlu0.b32.cont [7/16] 0.0, 128
        %3298 = vxpose.xlu0.b32.cont [8/16] 0.0, 128
        %3299 = vxpose.xlu0.b32.cont [9/16] 0.0, 128
        %3300 = vxpose.xlu0.b32.cont [10/16] 0.0, 128
        %3301 = vxpose.xlu0.b32.cont [11/16] 0.0, 128
        %3302 = vxpose.xlu0.b32.cont [12/16] 0.0, 128
        %3303 = vxpose.xlu0.b32.cont [13/16] 0.0, 128
        %3304 = vxpose.xlu0.b32.cont [14/16] 0.0, 128
        %3305 = vxpose.xlu0.b32.cont [15/16] 0.0, 128
        %3306 = vxpose.xlu0.b32.end [16/16] 0.0, 128
        %v3307 = vpop.trf.xlu0
        %v3308 = vpop.trf.xlu0
        %v3309 = vpop.trf.xlu0
        %v3310 = vpop.trf.xlu0
        %v3311 = vpop.trf.xlu0
        %v3312 = vpop.trf.xlu0
        %v3313 = vpop.trf.xlu0
        %v3314 = vpop.trf.xlu0
        %v3315 = vpop.trf.xlu0
        %v3316 = vpop.trf.xlu0
        %v3317 = vpop.trf.xlu0
        %v3318 = vpop.trf.xlu0
        %v3319 = vpop.trf.xlu0
        %v3320 = vpop.trf.xlu0
        %v3321 = vpop.trf.xlu0
        %v3322 = vpop.trf.xlu0
        %3323 = vxpose.xlu0.b32.start [1/16] %v2993, 128
        %3324 = vxpose.xlu0.b32.cont [2/16] 0.0, 128
        %3325 = vxpose.xlu0.b32.cont [3/16] 0.0, 128
        %3326 = vxpose.xlu0.b32.cont [4/16] 0.0, 128
        %3327 = vxpose.xlu0.b32.cont [5/16] 0.0, 128
        %3328 = vxpose.xlu0.b32.cont [6/16] 0.0, 128
        %3329 = vxpose.xlu0.b32.cont [7/16] 0.0, 128
        %3330 = vxpose.xlu0.b32.cont [8/16] 0.0, 128
        %3331 = vxpose.xlu0.b32.cont [9/16] 0.0, 128
        %3332 = vxpose.xlu0.b32.cont [10/16] 0.0, 128
        %3333 = vxpose.xlu0.b32.cont [11/16] 0.0, 128
        %3334 = vxpose.xlu0.b32.cont [12/16] 0.0, 128
        %3335 = vxpose.xlu0.b32.cont [13/16] 0.0, 128
        %3336 = vxpose.xlu0.b32.cont [14/16] 0.0, 128
        %3337 = vxpose.xlu0.b32.cont [15/16] 0.0, 128
        %3338 = vxpose.xlu0.b32.end [16/16] 0.0, 128
        %v3339 = vpop.trf.xlu0
        %v3340 = vpop.trf.xlu0
        %v3341 = vpop.trf.xlu0
        %v3342 = vpop.trf.xlu0
        %v3343 = vpop.trf.xlu0
        %v3344 = vpop.trf.xlu0
        %v3345 = vpop.trf.xlu0
        %v3346 = vpop.trf.xlu0
        %v3347 = vpop.trf.xlu0
        %v3348 = vpop.trf.xlu0
        %v3349 = vpop.trf.xlu0
        %v3350 = vpop.trf.xlu0
        %v3351 = vpop.trf.xlu0
        %v3352 = vpop.trf.xlu0
        %v3353 = vpop.trf.xlu0
        %v3354 = vpop.trf.xlu0
        %3355 = vxpose.xlu0.b32.start [1/16] %v2994, 128
        %3356 = vxpose.xlu0.b32.cont [2/16] 0.0, 128
        %3357 = vxpose.xlu0.b32.cont [3/16] 0.0, 128
        %3358 = vxpose.xlu0.b32.cont [4/16] 0.0, 128
        %3359 = vxpose.xlu0.b32.cont [5/16] 0.0, 128
        %3360 = vxpose.xlu0.b32.cont [6/16] 0.0, 128
        %3361 = vxpose.xlu0.b32.cont [7/16] 0.0, 128
        %3362 = vxpose.xlu0.b32.cont [8/16] 0.0, 128
        %3363 = vxpose.xlu0.b32.cont [9/16] 0.0, 128
        %3364 = vxpose.xlu0.b32.cont [10/16] 0.0, 128
        %3365 = vxpose.xlu0.b32.cont [11/16] 0.0, 128
        %3366 = vxpose.xlu0.b32.cont [12/16] 0.0, 128
        %3367 = vxpose.xlu0.b32.cont [13/16] 0.0, 128
        %3368 = vxpose.xlu0.b32.cont [14/16] 0.0, 128
        %3369 = vxpose.xlu0.b32.cont [15/16] 0.0, 128
        %3370 = vxpose.xlu0.b32.end [16/16] 0.0, 128
        %v3371 = vpop.trf.xlu0
        %v3372 = vpop.trf.xlu0
        %v3373 = vpop.trf.xlu0
        %v3374 = vpop.trf.xlu0
        %v3375 = vpop.trf.xlu0
        %v3376 = vpop.trf.xlu0
        %v3377 = vpop.trf.xlu0
        %v3378 = vpop.trf.xlu0
        %v3379 = vpop.trf.xlu0
        %v3380 = vpop.trf.xlu0
        %v3381 = vpop.trf.xlu0
        %v3382 = vpop.trf.xlu0
        %v3383 = vpop.trf.xlu0
        %v3384 = vpop.trf.xlu0
        %v3385 = vpop.trf.xlu0
        %v3386 = vpop.trf.xlu0
        %3387 = vxpose.xlu0.b32.start [1/16] %v3123, 128
        %3388 = vxpose.xlu0.b32.cont [2/16] 0.0, 128
        %3389 = vxpose.xlu0.b32.cont [3/16] 0.0, 128
        %3390 = vxpose.xlu0.b32.cont [4/16] 0.0, 128
        %3391 = vxpose.xlu0.b32.cont [5/16] 0.0, 128
        %3392 = vxpose.xlu0.b32.cont [6/16] 0.0, 128
        %3393 = vxpose.xlu0.b32.cont [7/16] 0.0, 128
        %3394 = vxpose.xlu0.b32.cont [8/16] 0.0, 128
        %3395 = vxpose.xlu0.b32.cont [9/16] 0.0, 128
        %3396 = vxpose.xlu0.b32.cont [10/16] 0.0, 128
        %3397 = vxpose.xlu0.b32.cont [11/16] 0.0, 128
        %3398 = vxpose.xlu0.b32.cont [12/16] 0.0, 128
        %3399 = vxpose.xlu0.b32.cont [13/16] 0.0, 128
        %3400 = vxpose.xlu0.b32.cont [14/16] 0.0, 128
        %3401 = vxpose.xlu0.b32.cont [15/16] 0.0, 128
        %3402 = vxpose.xlu0.b32.end [16/16] 0.0, 128
        %v3403 = vpop.trf.xlu0
        %v3404 = vpop.trf.xlu0
        %v3405 = vpop.trf.xlu0
        %v3406 = vpop.trf.xlu0
        %v3407 = vpop.trf.xlu0
        %v3408 = vpop.trf.xlu0
        %v3409 = vpop.trf.xlu0
        %v3410 = vpop.trf.xlu0
        %v3411 = vpop.trf.xlu0
        %v3412 = vpop.trf.xlu0
        %v3413 = vpop.trf.xlu0
        %v3414 = vpop.trf.xlu0
        %v3415 = vpop.trf.xlu0
        %v3416 = vpop.trf.xlu0
        %v3417 = vpop.trf.xlu0
        %v3418 = vpop.trf.xlu0
        %3419 = vxpose.xlu0.b32.start [1/16] %v3124, 128
        %3420 = vxpose.xlu0.b32.cont [2/16] 0.0, 128
        %3421 = vxpose.xlu0.b32.cont [3/16] 0.0, 128
        %3422 = vxpose.xlu0.b32.cont [4/16] 0.0, 128
        %3423 = vxpose.xlu0.b32.cont [5/16] 0.0, 128
        %3424 = vxpose.xlu0.b32.cont [6/16] 0.0, 128
        %3425 = vxpose.xlu0.b32.cont [7/16] 0.0, 128
        %3426 = vxpose.xlu0.b32.cont [8/16] 0.0, 128
        %3427 = vxpose.xlu0.b32.cont [9/16] 0.0, 128
        %3428 = vxpose.xlu0.b32.cont [10/16] 0.0, 128
        %3429 = vxpose.xlu0.b32.cont [11/16] 0.0, 128
        %3430 = vxpose.xlu0.b32.cont [12/16] 0.0, 128
        %3431 = vxpose.xlu0.b32.cont [13/16] 0.0, 128
        %3432 = vxpose.xlu0.b32.cont [14/16] 0.0, 128
        %3433 = vxpose.xlu0.b32.cont [15/16] 0.0, 128
        %3434 = vxpose.xlu0.b32.end [16/16] 0.0, 128
        %v3435 = vpop.trf.xlu0
        %v3436 = vpop.trf.xlu0
        %v3437 = vpop.trf.xlu0
        %v3438 = vpop.trf.xlu0
        %v3439 = vpop.trf.xlu0
        %v3440 = vpop.trf.xlu0
        %v3441 = vpop.trf.xlu0
        %v3442 = vpop.trf.xlu0
        %v3443 = vpop.trf.xlu0
        %v3444 = vpop.trf.xlu0
        %v3445 = vpop.trf.xlu0
        %v3446 = vpop.trf.xlu0
        %v3447 = vpop.trf.xlu0
        %v3448 = vpop.trf.xlu0
        %v3449 = vpop.trf.xlu0
        %v3450 = vpop.trf.xlu0
        %3451 = vxpose.xlu0.b32.start [1/16] %v3125, 128
        %3452 = vxpose.xlu0.b32.cont [2/16] 0.0, 128
        %3453 = vxpose.xlu0.b32.cont [3/16] 0.0, 128
        %3454 = vxpose.xlu0.b32.cont [4/16] 0.0, 128
        %3455 = vxpose.xlu0.b32.cont [5/16] 0.0, 128
        %3456 = vxpose.xlu0.b32.cont [6/16] 0.0, 128
        %3457 = vxpose.xlu0.b32.cont [7/16] 0.0, 128
        %3458 = vxpose.xlu0.b32.cont [8/16] 0.0, 128
        %3459 = vxpose.xlu0.b32.cont [9/16] 0.0, 128
        %3460 = vxpose.xlu0.b32.cont [10/16] 0.0, 128
        %3461 = vxpose.xlu0.b32.cont [11/16] 0.0, 128
        %3462 = vxpose.xlu0.b32.cont [12/16] 0.0, 128
        %3463 = vxpose.xlu0.b32.cont [13/16] 0.0, 128
        %3464 = vxpose.xlu0.b32.cont [14/16] 0.0, 128
        %3465 = vxpose.xlu0.b32.cont [15/16] 0.0, 128
        %3466 = vxpose.xlu0.b32.end [16/16] 0.0, 128
        %v3467 = vpop.trf.xlu0
        %v3468 = vpop.trf.xlu0
        %v3469 = vpop.trf.xlu0
        %v3470 = vpop.trf.xlu0
        %v3471 = vpop.trf.xlu0
        %v3472 = vpop.trf.xlu0
        %v3473 = vpop.trf.xlu0
        %v3474 = vpop.trf.xlu0
        %v3475 = vpop.trf.xlu0
        %v3476 = vpop.trf.xlu0
        %v3477 = vpop.trf.xlu0
        %v3478 = vpop.trf.xlu0
        %v3479 = vpop.trf.xlu0
        %v3480 = vpop.trf.xlu0
        %v3481 = vpop.trf.xlu0
        %v3482 = vpop.trf.xlu0
        %3483 = vxpose.xlu0.b32.start [1/16] %v3126, 128
        %3484 = vxpose.xlu0.b32.cont [2/16] 0.0, 128
        %3485 = vxpose.xlu0.b32.cont [3/16] 0.0, 128
        %3486 = vxpose.xlu0.b32.cont [4/16] 0.0, 128
        %3487 = vxpose.xlu0.b32.cont [5/16] 0.0, 128
        %3488 = vxpose.xlu0.b32.cont [6/16] 0.0, 128
        %3489 = vxpose.xlu0.b32.cont [7/16] 0.0, 128
        %3490 = vxpose.xlu0.b32.cont [8/16] 0.0, 128
        %3491 = vxpose.xlu0.b32.cont [9/16] 0.0, 128
        %3492 = vxpose.xlu0.b32.cont [10/16] 0.0, 128
        %3493 = vxpose.xlu0.b32.cont [11/16] 0.0, 128
        %3494 = vxpose.xlu0.b32.cont [12/16] 0.0, 128
        %3495 = vxpose.xlu0.b32.cont [13/16] 0.0, 128
        %3496 = vxpose.xlu0.b32.cont [14/16] 0.0, 128
        %3497 = vxpose.xlu0.b32.cont [15/16] 0.0, 128
        %3498 = vxpose.xlu0.b32.end [16/16] 0.0, 128
        %v3499 = vpop.trf.xlu0
        %v3500 = vpop.trf.xlu0
        %v3501 = vpop.trf.xlu0
        %v3502 = vpop.trf.xlu0
        %v3503 = vpop.trf.xlu0
        %v3504 = vpop.trf.xlu0
        %v3505 = vpop.trf.xlu0
        %v3506 = vpop.trf.xlu0
        %v3507 = vpop.trf.xlu0
        %v3508 = vpop.trf.xlu0
        %v3509 = vpop.trf.xlu0
        %v3510 = vpop.trf.xlu0
        %v3511 = vpop.trf.xlu0
        %v3512 = vpop.trf.xlu0
        %v3513 = vpop.trf.xlu0
        %v3514 = vpop.trf.xlu0
        %3515 = vxpose.xlu0.b32.start [1/16] %v3127, 128
        %3516 = vxpose.xlu0.b32.cont [2/16] 0.0, 128
        %3517 = vxpose.xlu0.b32.cont [3/16] 0.0, 128
        %3518 = vxpose.xlu0.b32.cont [4/16] 0.0, 128
        %3519 = vxpose.xlu0.b32.cont [5/16] 0.0, 128
        %3520 = vxpose.xlu0.b32.cont [6/16] 0.0, 128
        %3521 = vxpose.xlu0.b32.cont [7/16] 0.0, 128
        %3522 = vxpose.xlu0.b32.cont [8/16] 0.0, 128
        %3523 = vxpose.xlu0.b32.cont [9/16] 0.0, 128
        %3524 = vxpose.xlu0.b32.cont [10/16] 0.0, 128
        %3525 = vxpose.xlu0.b32.cont [11/16] 0.0, 128
        %3526 = vxpose.xlu0.b32.cont [12/16] 0.0, 128
        %3527 = vxpose.xlu0.b32.cont [13/16] 0.0, 128
        %3528 = vxpose.xlu0.b32.cont [14/16] 0.0, 128
        %3529 = vxpose.xlu0.b32.cont [15/16] 0.0, 128
        %3530 = vxpose.xlu0.b32.end [16/16] 0.0, 128
        %v3531 = vpop.trf.xlu0
        %v3532 = vpop.trf.xlu0
        %v3533 = vpop.trf.xlu0
        %v3534 = vpop.trf.xlu0
        %v3535 = vpop.trf.xlu0
        %v3536 = vpop.trf.xlu0
        %v3537 = vpop.trf.xlu0
        %v3538 = vpop.trf.xlu0
        %v3539 = vpop.trf.xlu0
        %v3540 = vpop.trf.xlu0
        %v3541 = vpop.trf.xlu0
        %v3542 = vpop.trf.xlu0
        %v3543 = vpop.trf.xlu0
        %v3544 = vpop.trf.xlu0
        %v3545 = vpop.trf.xlu0
        %v3546 = vpop.trf.xlu0
        %3547 = vxpose.xlu0.b32.start [1/16] %v3128, 128
        %3548 = vxpose.xlu0.b32.cont [2/16] 0.0, 128
        %3549 = vxpose.xlu0.b32.cont [3/16] 0.0, 128
        %3550 = vxpose.xlu0.b32.cont [4/16] 0.0, 128
        %3551 = vxpose.xlu0.b32.cont [5/16] 0.0, 128
        %3552 = vxpose.xlu0.b32.cont [6/16] 0.0, 128
        %3553 = vxpose.xlu0.b32.cont [7/16] 0.0, 128
        %3554 = vxpose.xlu0.b32.cont [8/16] 0.0, 128
        %3555 = vxpose.xlu0.b32.cont [9/16] 0.0, 128
        %3556 = vxpose.xlu0.b32.cont [10/16] 0.0, 128
        %3557 = vxpose.xlu0.b32.cont [11/16] 0.0, 128
        %3558 = vxpose.xlu0.b32.cont [12/16] 0.0, 128
        %3559 = vxpose.xlu0.b32.cont [13/16] 0.0, 128
        %3560 = vxpose.xlu0.b32.cont [14/16] 0.0, 128
        %3561 = vxpose.xlu0.b32.cont [15/16] 0.0, 128
        %3562 = vxpose.xlu0.b32.end [16/16] 0.0, 128
        %v3563 = vpop.trf.xlu0
        %v3564 = vpop.trf.xlu0
        %v3565 = vpop.trf.xlu0
        %v3566 = vpop.trf.xlu0
        %v3567 = vpop.trf.xlu0
        %v3568 = vpop.trf.xlu0
        %v3569 = vpop.trf.xlu0
        %v3570 = vpop.trf.xlu0
        %v3571 = vpop.trf.xlu0
        %v3572 = vpop.trf.xlu0
        %v3573 = vpop.trf.xlu0
        %v3574 = vpop.trf.xlu0
        %v3575 = vpop.trf.xlu0
        %v3576 = vpop.trf.xlu0
        %v3577 = vpop.trf.xlu0
        %v3578 = vpop.trf.xlu0
        %3579 = vxpose.xlu0.b32.start [1/16] %v3129, 128
        %3580 = vxpose.xlu0.b32.cont [2/16] 0.0, 128
        %3581 = vxpose.xlu0.b32.cont [3/16] 0.0, 128
        %3582 = vxpose.xlu0.b32.cont [4/16] 0.0, 128
        %3583 = vxpose.xlu0.b32.cont [5/16] 0.0, 128
        %3584 = vxpose.xlu0.b32.cont [6/16] 0.0, 128
        %3585 = vxpose.xlu0.b32.cont [7/16] 0.0, 128
        %3586 = vxpose.xlu0.b32.cont [8/16] 0.0, 128
        %3587 = vxpose.xlu0.b32.cont [9/16] 0.0, 128
        %3588 = vxpose.xlu0.b32.cont [10/16] 0.0, 128
        %3589 = vxpose.xlu0.b32.cont [11/16] 0.0, 128
        %3590 = vxpose.xlu0.b32.cont [12/16] 0.0, 128
        %3591 = vxpose.xlu0.b32.cont [13/16] 0.0, 128
        %3592 = vxpose.xlu0.b32.cont [14/16] 0.0, 128
        %3593 = vxpose.xlu0.b32.cont [15/16] 0.0, 128
        %3594 = vxpose.xlu0.b32.end [16/16] 0.0, 128
        %v3595 = vpop.trf.xlu0
        %v3596 = vpop.trf.xlu0
        %v3597 = vpop.trf.xlu0
        %v3598 = vpop.trf.xlu0
        %v3599 = vpop.trf.xlu0
        %v3600 = vpop.trf.xlu0
        %v3601 = vpop.trf.xlu0
        %v3602 = vpop.trf.xlu0
        %v3603 = vpop.trf.xlu0
        %v3604 = vpop.trf.xlu0
        %v3605 = vpop.trf.xlu0
        %v3606 = vpop.trf.xlu0
        %v3607 = vpop.trf.xlu0
        %v3608 = vpop.trf.xlu0
        %v3609 = vpop.trf.xlu0
        %v3610 = vpop.trf.xlu0
        %3611 = vxpose.xlu0.b32.start [1/16] %v3130, 128
        %3612 = vxpose.xlu0.b32.cont [2/16] 0.0, 128
        %3613 = vxpose.xlu0.b32.cont [3/16] 0.0, 128
        %3614 = vxpose.xlu0.b32.cont [4/16] 0.0, 128
        %3615 = vxpose.xlu0.b32.cont [5/16] 0.0, 128
        %3616 = vxpose.xlu0.b32.cont [6/16] 0.0, 128
        %3617 = vxpose.xlu0.b32.cont [7/16] 0.0, 128
        %3618 = vxpose.xlu0.b32.cont [8/16] 0.0, 128
        %3619 = vxpose.xlu0.b32.cont [9/16] 0.0, 128
        %3620 = vxpose.xlu0.b32.cont [10/16] 0.0, 128
        %3621 = vxpose.xlu0.b32.cont [11/16] 0.0, 128
        %3622 = vxpose.xlu0.b32.cont [12/16] 0.0, 128
        %3623 = vxpose.xlu0.b32.cont [13/16] 0.0, 128
        %3624 = vxpose.xlu0.b32.cont [14/16] 0.0, 128
        %3625 = vxpose.xlu0.b32.cont [15/16] 0.0, 128
        %3626 = vxpose.xlu0.b32.end [16/16] 0.0, 128
        %v3627 = vpop.trf.xlu0
        %v3628 = vpop.trf.xlu0
        %v3629 = vpop.trf.xlu0
        %v3630 = vpop.trf.xlu0
        %v3631 = vpop.trf.xlu0
        %v3632 = vpop.trf.xlu0
        %v3633 = vpop.trf.xlu0
        %v3634 = vpop.trf.xlu0
        %v3635 = vpop.trf.xlu0
        %v3636 = vpop.trf.xlu0
        %v3637 = vpop.trf.xlu0
        %v3638 = vpop.trf.xlu0
        %v3639 = vpop.trf.xlu0
        %v3640 = vpop.trf.xlu0
        %v3641 = vpop.trf.xlu0
        %v3642 = vpop.trf.xlu0
        %v3643 = vcombine.low %v3147, %v3211
        %v3645 = vunpack.c.l.s4 1983009808
        %v3646 = vunpack.c.0.s8 %v3645
        %v3647 = vlaneseq
        %v3648 = vshrl.u32 %v3647, 7
        %v3649 = vsub.s32 %v3646, %v3648
        %v3650 = vrot.slane %v3643, %v3649
        %v3651 = vcombine.low %v3179, %v3243
        %v3653 = vunpack.c.l.s4 1983009808
        %v3654 = vunpack.c.0.s8 %v3653
        %v3655 = vlaneseq
        %v3656 = vshrl.u32 %v3655, 7
        %v3657 = vsub.s32 %v3654, %v3656
        %v3658 = vrot.slane %v3651, %v3657
        %v3659 = vcombine.low %v3275, %v3339
        %v3661 = vunpack.c.l.s4 1983009808
        %v3662 = vunpack.c.0.s8 %v3661
        %v3663 = vlaneseq
        %v3664 = vshrl.u32 %v3663, 7
        %v3665 = vsub.s32 %v3662, %v3664
        %v3666 = vrot.slane %v3659, %v3665
        %v3667 = vcombine.low %v3307, %v3371
        %v3669 = vunpack.c.l.s4 1983009808
        %v3670 = vunpack.c.0.s8 %v3669
        %v3671 = vlaneseq
        %v3672 = vshrl.u32 %v3671, 7
        %v3673 = vsub.s32 %v3670, %v3672
        %v3674 = vrot.slane %v3667, %v3673
        %v3675 = vcombine.low %v3650, %v3658
        %v3677 = vunpack.c.l.s4 1934713408
        %v3678 = vunpack.c.0.s8 %v3677
        %v3679 = vlaneseq
        %v3680 = vshrl.u32 %v3679, 7
        %v3681 = vsub.s32 %v3678, %v3680
        %v3682 = vrot.slane %v3675, %v3681
        %v3683 = vcombine.low %v3666, %v3674
        %v3685 = vunpack.c.l.s4 1934713408
        %v3686 = vunpack.c.0.s8 %v3685
        %v3687 = vlaneseq
        %v3688 = vshrl.u32 %v3687, 7
        %v3689 = vsub.s32 %v3686, %v3688
        %v3690 = vrot.slane %v3683, %v3689
        %v3691 = vcombine.low %v3682, %v3690
        %v3692 = vcombine.high %v3682, %v3690
        %v3693 = vcombine.low %v3403, %v3467
        %v3695 = vunpack.c.l.s4 1983009808
        %v3696 = vunpack.c.0.s8 %v3695
        %v3697 = vlaneseq
        %v3698 = vshrl.u32 %v3697, 7
        %v3699 = vsub.s32 %v3696, %v3698
        %v3700 = vrot.slane %v3693, %v3699
        %v3701 = vcombine.low %v3435, %v3499
        %v3703 = vunpack.c.l.s4 1983009808
        %v3704 = vunpack.c.0.s8 %v3703
        %v3705 = vlaneseq
        %v3706 = vshrl.u32 %v3705, 7
        %v3707 = vsub.s32 %v3704, %v3706
        %v3708 = vrot.slane %v3701, %v3707
        %v3709 = vcombine.low %v3531, %v3595
        %v3711 = vunpack.c.l.s4 1983009808
        %v3712 = vunpack.c.0.s8 %v3711
        %v3713 = vlaneseq
        %v3714 = vshrl.u32 %v3713, 7
        %v3715 = vsub.s32 %v3712, %v3714
        %v3716 = vrot.slane %v3709, %v3715
        %v3717 = vcombine.low %v3563, %v3627
        %v3719 = vunpack.c.l.s4 1983009808
        %v3720 = vunpack.c.0.s8 %v3719
        %v3721 = vlaneseq
        %v3722 = vshrl.u32 %v3721, 7
        %v3723 = vsub.s32 %v3720, %v3722
        %v3724 = vrot.slane %v3717, %v3723
        %v3725 = vcombine.low %v3700, %v3708
        %v3727 = vunpack.c.l.s4 1934713408
        %v3728 = vunpack.c.0.s8 %v3727
        %v3729 = vlaneseq
        %v3730 = vshrl.u32 %v3729, 7
        %v3731 = vsub.s32 %v3728, %v3730
        %v3732 = vrot.slane %v3725, %v3731
        %v3733 = vcombine.low %v3716, %v3724
        %v3735 = vunpack.c.l.s4 1934713408
        %v3736 = vunpack.c.0.s8 %v3735
        %v3737 = vlaneseq
        %v3738 = vshrl.u32 %v3737, 7
        %v3739 = vsub.s32 %v3736, %v3738
        %v3740 = vrot.slane %v3733, %v3739
        %v3741 = vcombine.low %v3732, %v3740
        %v3742 = vcombine.high %v3732, %v3740
        %v3744 = vsel %vm2580, %v3691, 0
        %v3747 = vsel %vm2580, %v3741, 0
        %v3750 = vsel %vm2580, %v2600, 0
        %3752 = vmatprep.subr.mxu0 0.0
        %3753 = vmatpush1.xpose.msra.mxu0 %v3750
        %3754 = vmatprep.subr.mxu0 0.0
        %3755 = vmatpush1.xpose.msra.mxu0 0.0
        %3756 = vmatprep.subr.mxu0 0.0
        %3757 = vmatpush1.xpose.msra.mxu0 0.0
        %3758 = vmatprep.subr.mxu0 0.0
        %3759 = vmatpush1.xpose.msra.mxu0 0.0
        %3760 = vmatprep.subr.mxu0 0.0
        %3761 = vmatpush1.xpose.msra.mxu0 0.0
        %3762 = vmatprep.subr.mxu0 0.0
        %3763 = vmatpush1.xpose.msra.mxu0 0.0
        %3764 = vmatprep.subr.mxu0 0.0
        %3765 = vmatpush1.xpose.msra.mxu0 0.0
        %3766 = vmatprep.subr.mxu0 0.0
        %3767 = vmatpush1.xpose.msra.mxu0 0.0
        %3768 = vmatprep.subr.mxu0 0.0
        %3769 = vmatpush1.xpose.msra.mxu0 0.0
        %3770 = vmatprep.subr.mxu0 0.0
        %3771 = vmatpush1.xpose.msra.mxu0 0.0
        %3772 = vmatprep.subr.mxu0 0.0
        %3773 = vmatpush1.xpose.msra.mxu0 0.0
        %3774 = vmatprep.subr.mxu0 0.0
        %3775 = vmatpush1.xpose.msra.mxu0 0.0
        %3776 = vmatprep.subr.mxu0 0.0
        %3777 = vmatpush1.xpose.msra.mxu0 0.0
        %3778 = vmatprep.subr.mxu0 0.0
        %3779 = vmatpush1.xpose.msra.mxu0 0.0
        %3780 = vmatprep.subr.mxu0 0.0
        %3781 = vmatpush1.xpose.msra.mxu0 0.0
        %3782 = vmatprep.subr.mxu0 0.0
        %3783 = vmatpush1.xpose.msra.mxu0 0.0
        %3784 = vmatprep.subr.mxu0 0.0
        %3785 = vmatpush1.xpose.msra.mxu0 0.0
        %3786 = vmatprep.subr.mxu0 0.0
        %3787 = vmatpush1.xpose.msra.mxu0 0.0
        %3788 = vmatprep.subr.mxu0 0.0
        %3789 = vmatpush1.xpose.msra.mxu0 0.0
        %3790 = vmatprep.subr.mxu0 0.0
        %3791 = vmatpush1.xpose.msra.mxu0 0.0
        %3792 = vmatprep.subr.mxu0 0.0
        %3793 = vmatpush1.xpose.msra.mxu0 0.0
        %3794 = vmatprep.subr.mxu0 0.0
        %3795 = vmatpush1.xpose.msra.mxu0 0.0
        %3796 = vmatprep.subr.mxu0 0.0
        %3797 = vmatpush1.xpose.msra.mxu0 0.0
        %3798 = vmatprep.subr.mxu0 0.0
        %3799 = vmatpush1.xpose.msra.mxu0 0.0
        %3800 = vmatprep.subr.mxu0 0.0
        %3801 = vmatpush1.xpose.msra.mxu0 0.0
        %3802 = vmatprep.subr.mxu0 0.0
        %3803 = vmatpush1.xpose.msra.mxu0 0.0
        %3804 = vmatprep.subr.mxu0 0.0
        %3805 = vmatpush1.xpose.msra.mxu0 0.0
        %3806 = vmatprep.subr.mxu0 0.0
        %3807 = vmatpush1.xpose.msra.mxu0 0.0
        %3808 = vmatprep.subr.mxu0 0.0
        %3809 = vmatpush1.xpose.msra.mxu0 0.0
        %3810 = vmatprep.subr.mxu0 0.0
        %3811 = vmatpush1.xpose.msra.mxu0 0.0
        %3812 = vmatprep.subr.mxu0 0.0
        %3813 = vmatpush1.xpose.msra.mxu0 0.0
        %3814 = vmatprep.subr.mxu0 0.0
        %3815 = vmatpush1.xpose.msra.mxu0 0.0
        %3816 = vmatprep.mubr.f32.mxu0 0.0
        %3817 = vmatmul.mubr.f32.gmra.mrb[0].mxu0 %v3744
        %v3818 = vpop.f32.mrb[0].mxu0
        %v3819 = vadd.f32 0.0, %v3818
        %v3820 = vpop.f32.mrb[0].mxu0
        %3821 = vmatprep.mubr.f32.mxu0 0.0
        %3822 = vmatmul.mubr.f32.gmra.mrb[0].mxu0 %v3747
        %v3823 = vpop.f32.mrb[0].mxu0
        %v3824 = vadd.f32 0.0, %v3823
        %v3825 = vpop.f32.mrb[0].mxu0
        %3826 = vdwg.mxu0
        %v3828 = vsel %vm2580, %v3692, 0
        %v3831 = vsel %vm2580, %v3742, 0
        %v3834 = vsel %vm2580, %v2602, 0
        %3836 = vmatprep.subr.mxu0 0.0
        %3837 = vmatpush1.xpose.msra.mxu0 %v3834
        %3838 = vmatprep.subr.mxu0 0.0
        %3839 = vmatpush1.xpose.msra.mxu0 0.0
        %3840 = vmatprep.subr.mxu0 0.0
        %3841 = vmatpush1.xpose.msra.mxu0 0.0
        %3842 = vmatprep.subr.mxu0 0.0
        %3843 = vmatpush1.xpose.msra.mxu0 0.0
        %3844 = vmatprep.subr.mxu0 0.0
        %3845 = vmatpush1.xpose.msra.mxu0 0.0
        %3846 = vmatprep.subr.mxu0 0.0
        %3847 = vmatpush1.xpose.msra.mxu0 0.0
        %3848 = vmatprep.subr.mxu0 0.0
        %3849 = vmatpush1.xpose.msra.mxu0 0.0
        %3850 = vmatprep.subr.mxu0 0.0
        %3851 = vmatpush1.xpose.msra.mxu0 0.0
        %3852 = vmatprep.subr.mxu0 0.0
        %3853 = vmatpush1.xpose.msra.mxu0 0.0
        %3854 = vmatprep.subr.mxu0 0.0
        %3855 = vmatpush1.xpose.msra.mxu0 0.0
        %3856 = vmatprep.subr.mxu0 0.0
        %3857 = vmatpush1.xpose.msra.mxu0 0.0
        %3858 = vmatprep.subr.mxu0 0.0
        %3859 = vmatpush1.xpose.msra.mxu0 0.0
        %3860 = vmatprep.subr.mxu0 0.0
        %3861 = vmatpush1.xpose.msra.mxu0 0.0
        %3862 = vmatprep.subr.mxu0 0.0
        %3863 = vmatpush1.xpose.msra.mxu0 0.0
        %3864 = vmatprep.subr.mxu0 0.0
        %3865 = vmatpush1.xpose.msra.mxu0 0.0
        %3866 = vmatprep.subr.mxu0 0.0
        %3867 = vmatpush1.xpose.msra.mxu0 0.0
        %3868 = vmatprep.subr.mxu0 0.0
        %3869 = vmatpush1.xpose.msra.mxu0 0.0
        %3870 = vmatprep.subr.mxu0 0.0
        %3871 = vmatpush1.xpose.msra.mxu0 0.0
        %3872 = vmatprep.subr.mxu0 0.0
        %3873 = vmatpush1.xpose.msra.mxu0 0.0
        %3874 = vmatprep.subr.mxu0 0.0
        %3875 = vmatpush1.xpose.msra.mxu0 0.0
        %3876 = vmatprep.subr.mxu0 0.0
        %3877 = vmatpush1.xpose.msra.mxu0 0.0
        %3878 = vmatprep.subr.mxu0 0.0
        %3879 = vmatpush1.xpose.msra.mxu0 0.0
        %3880 = vmatprep.subr.mxu0 0.0
        %3881 = vmatpush1.xpose.msra.mxu0 0.0
        %3882 = vmatprep.subr.mxu0 0.0
        %3883 = vmatpush1.xpose.msra.mxu0 0.0
        %3884 = vmatprep.subr.mxu0 0.0
        %3885 = vmatpush1.xpose.msra.mxu0 0.0
        %3886 = vmatprep.subr.mxu0 0.0
        %3887 = vmatpush1.xpose.msra.mxu0 0.0
        %3888 = vmatprep.subr.mxu0 0.0
        %3889 = vmatpush1.xpose.msra.mxu0 0.0
        %3890 = vmatprep.subr.mxu0 0.0
        %3891 = vmatpush1.xpose.msra.mxu0 0.0
        %3892 = vmatprep.subr.mxu0 0.0
        %3893 = vmatpush1.xpose.msra.mxu0 0.0
        %3894 = vmatprep.subr.mxu0 0.0
        %3895 = vmatpush1.xpose.msra.mxu0 0.0
        %3896 = vmatprep.subr.mxu0 0.0
        %3897 = vmatpush1.xpose.msra.mxu0 0.0
        %3898 = vmatprep.subr.mxu0 0.0
        %3899 = vmatpush1.xpose.msra.mxu0 0.0
        %3900 = vmatprep.mubr.f32.mxu0 0.0
        %3901 = vmatmul.mubr.f32.gmra.mrb[0].mxu0 %v3828
        %v3902 = vpop.f32.mrb[0].mxu0
        %v3903 = vadd.f32 0.0, %v3902
        %v3904 = vpop.f32.mrb[0].mxu0
        %3905 = vmatprep.mubr.f32.mxu0 0.0
        %3906 = vmatmul.mubr.f32.gmra.mrb[0].mxu0 %v3831
        %v3907 = vpop.f32.mrb[0].mxu0
        %v3908 = vadd.f32 0.0, %v3907
        %v3909 = vpop.f32.mrb[0].mxu0
        %3910 = vdwg.mxu0
        %3911 = vxpose.xlu0.b32.start [1/16] %v3819, 128
        %3912 = vxpose.xlu0.b32.cont [2/16] %v3824, 128
        %3913 = vxpose.xlu0.b32.cont [3/16] 0.0, 128
        %3914 = vxpose.xlu0.b32.cont [4/16] 0.0, 128
        %3915 = vxpose.xlu0.b32.cont [5/16] 0.0, 128
        %3916 = vxpose.xlu0.b32.cont [6/16] 0.0, 128
        %3917 = vxpose.xlu0.b32.cont [7/16] 0.0, 128
        %3918 = vxpose.xlu0.b32.cont [8/16] 0.0, 128
        %3919 = vxpose.xlu0.b32.cont [9/16] 0.0, 128
        %3920 = vxpose.xlu0.b32.cont [10/16] 0.0, 128
        %3921 = vxpose.xlu0.b32.cont [11/16] 0.0, 128
        %3922 = vxpose.xlu0.b32.cont [12/16] 0.0, 128
        %3923 = vxpose.xlu0.b32.cont [13/16] 0.0, 128
        %3924 = vxpose.xlu0.b32.cont [14/16] 0.0, 128
        %3925 = vxpose.xlu0.b32.cont [15/16] 0.0, 128
        %3926 = vxpose.xlu0.b32.end [16/16] 0.0, 128
        %v3927 = vpop.trf.xlu0
        %v3928 = vpop.trf.xlu0
        %v3929 = vpop.trf.xlu0
        %v3930 = vpop.trf.xlu0
        %v3931 = vpop.trf.xlu0
        %v3932 = vpop.trf.xlu0
        %v3933 = vpop.trf.xlu0
        %v3934 = vpop.trf.xlu0
        %v3935 = vpop.trf.xlu0
        %v3936 = vpop.trf.xlu0
        %v3937 = vpop.trf.xlu0
        %v3938 = vpop.trf.xlu0
        %v3939 = vpop.trf.xlu0
        %v3940 = vpop.trf.xlu0
        %v3941 = vpop.trf.xlu0
        %v3942 = vpop.trf.xlu0
        %3943 = vxpose.xlu0.b32.start [1/16] %v3903, 128
        %3944 = vxpose.xlu0.b32.cont [2/16] %v3908, 128
        %3945 = vxpose.xlu0.b32.cont [3/16] 0.0, 128
        %3946 = vxpose.xlu0.b32.cont [4/16] 0.0, 128
        %3947 = vxpose.xlu0.b32.cont [5/16] 0.0, 128
        %3948 = vxpose.xlu0.b32.cont [6/16] 0.0, 128
        %3949 = vxpose.xlu0.b32.cont [7/16] 0.0, 128
        %3950 = vxpose.xlu0.b32.cont [8/16] 0.0, 128
        %3951 = vxpose.xlu0.b32.cont [9/16] 0.0, 128
        %3952 = vxpose.xlu0.b32.cont [10/16] 0.0, 128
        %3953 = vxpose.xlu0.b32.cont [11/16] 0.0, 128
        %3954 = vxpose.xlu0.b32.cont [12/16] 0.0, 128
        %3955 = vxpose.xlu0.b32.cont [13/16] 0.0, 128
        %3956 = vxpose.xlu0.b32.cont [14/16] 0.0, 128
        %3957 = vxpose.xlu0.b32.cont [15/16] 0.0, 128
        %3958 = vxpose.xlu0.b32.end [16/16] 0.0, 128
        %v3959 = vpop.trf.xlu0
        %v3960 = vpop.trf.xlu0
        %v3961 = vpop.trf.xlu0
        %v3962 = vpop.trf.xlu0
        %v3963 = vpop.trf.xlu0
        %v3964 = vpop.trf.xlu0
        %v3965 = vpop.trf.xlu0
        %v3966 = vpop.trf.xlu0
        %v3967 = vpop.trf.xlu0
        %v3968 = vpop.trf.xlu0
        %v3969 = vpop.trf.xlu0
        %v3970 = vpop.trf.xlu0
        %v3971 = vpop.trf.xlu0
        %v3972 = vpop.trf.xlu0
        %v3973 = vpop.trf.xlu0
        %v3974 = vpop.trf.xlu0
        %v3975 = vcombine.high %v3927, 0.0
        %v3977 = vunpack.c.l.s4 1983009808
        %v3978 = vunpack.c.0.s8 %v3977
        %v3979 = vlaneseq
        %v3980 = vshrl.u32 %v3979, 7
        %v3981 = vsub.s32 %v3978, %v3980
        %v3982 = vrot.slane %v3927, %v3981
        %v3984 = vunpack.c.l.s4 1983009808
        %v3985 = vunpack.c.0.s8 %v3984
        %v3986 = vlaneseq
        %v3987 = vshrl.u32 %v3986, 7
        %v3988 = vsub.s32 %v3985, %v3987
        %v3989 = vrot.slane %v3975, %v3988
        %v3990 = vcombine.high %v3959, 0.0
        %v3992 = vunpack.c.l.s4 1983009808
        %v3993 = vunpack.c.0.s8 %v3992
        %v3994 = vlaneseq
        %v3995 = vshrl.u32 %v3994, 7
        %v3996 = vsub.s32 %v3993, %v3995
        %v3997 = vrot.slane %v3959, %v3996
        %v3999 = vunpack.c.l.s4 1983009808
        %v4000 = vunpack.c.0.s8 %v3999
        %v4001 = vlaneseq
        %v4002 = vshrl.u32 %v4001, 7
        %v4003 = vsub.s32 %v4000, %v4002
        %v4004 = vrot.slane %v3990, %v4003
        %v4005 = vcombine.low %v3982, %v3997
        %v4006 = vcombine.high %v3982, %v3997
        %v4008 = vunpack.c.l.s4 1934713408
        %v4009 = vunpack.c.0.s8 %v4008
        %v4010 = vlaneseq
        %v4011 = vshrl.u32 %v4010, 7
        %v4012 = vsub.s32 %v4009, %v4011
        %v4013 = vrot.slane %v4005, %v4012
        %v4015 = vunpack.c.l.s4 1934713408
        %v4016 = vunpack.c.0.s8 %v4015
        %v4017 = vlaneseq
        %v4018 = vshrl.u32 %v4017, 7
        %v4019 = vsub.s32 %v4016, %v4018
        %v4020 = vrot.slane %v4006, %v4019
        %v4021 = vcombine.low %v3989, %v4004
        %v4022 = vcombine.high %v3989, %v4004
        %v4024 = vunpack.c.l.s4 1934713408
        %v4025 = vunpack.c.0.s8 %v4024
        %v4026 = vlaneseq
        %v4027 = vshrl.u32 %v4026, 7
        %v4028 = vsub.s32 %v4025, %v4027
        %v4029 = vrot.slane %v4021, %v4028
        %v4031 = vunpack.c.l.s4 1934713408
        %v4032 = vunpack.c.0.s8 %v4031
        %v4033 = vlaneseq
        %v4034 = vshrl.u32 %v4033, 7
        %v4035 = vsub.s32 %v4032, %v4034
        %v4036 = vrot.slane %v4022, %v4035
        %v4037 = vcombine.high %v4013, 0.0
        %v4038 = vcombine.high %v4020, 0.0
        %v4039 = vcombine.high %v4029, 0.0
        %v4040 = vcombine.high %v4036, 0.0
        %v4041 = vcombine.low %v4013, %v4020
        %v4043 = vunpack.c.l.s4 1983009808
        %v4044 = vunpack.c.0.s8 %v4043
        %v4045 = vlaneseq
        %v4046 = vshrl.u32 %v4045, 7
        %v4047 = vsub.s32 %v4044, %v4046
        %v4048 = vrot.slane %v4041, %v4047
        %v4049 = vcombine.low %v4037, %v4038
        %v4051 = vunpack.c.l.s4 1983009808
        %v4052 = vunpack.c.0.s8 %v4051
        %v4053 = vlaneseq
        %v4054 = vshrl.u32 %v4053, 7
        %v4055 = vsub.s32 %v4052, %v4054
        %v4056 = vrot.slane %v4049, %v4055
        %v4057 = vcombine.low %v4029, %v4036
        %v4059 = vunpack.c.l.s4 1983009808
        %v4060 = vunpack.c.0.s8 %v4059
        %v4061 = vlaneseq
        %v4062 = vshrl.u32 %v4061, 7
        %v4063 = vsub.s32 %v4060, %v4062
        %v4064 = vrot.slane %v4057, %v4063
        %v4065 = vcombine.low %v4039, %v4040
        %v4067 = vunpack.c.l.s4 1983009808
        %v4068 = vunpack.c.0.s8 %v4067
        %v4069 = vlaneseq
        %v4070 = vshrl.u32 %v4069, 7
        %v4071 = vsub.s32 %v4068, %v4070
        %v4072 = vrot.slane %v4065, %v4071
        %v4073 = vcombine.low %v4048, %v4056
        %v4075 = vunpack.c.l.s4 1934713408
        %v4076 = vunpack.c.0.s8 %v4075
        %v4077 = vlaneseq
        %v4078 = vshrl.u32 %v4077, 7
        %v4079 = vsub.s32 %v4076, %v4078
        %v4080 = vrot.slane %v4073, %v4079
        %v4081 = vcombine.low %v4064, %v4072
        %v4083 = vunpack.c.l.s4 1934713408
        %v4084 = vunpack.c.0.s8 %v4083
        %v4085 = vlaneseq
        %v4086 = vshrl.u32 %v4085, 7
        %v4087 = vsub.s32 %v4084, %v4086
        %v4088 = vrot.slane %v4081, %v4087
        %v4089 = vcombine.low %v4080, %v4088
        %v4090 = vcombine.high %v4080, %v4088
        %4092 = vrot.lane.b32.xlu0 %v4090, 16
        %v4093 = vpop.permute.xlu0 %4092
        %v4095 = vsel %vm2433, %v4089, %v4093
        %v4096 = vcombine.low %v920, %v927
        %v4098 = vunpack.c.l.s4 1983009808
        %v4099 = vunpack.c.0.s8 %v4098
        %v4100 = vlaneseq
        %v4101 = vshrl.u32 %v4100, 7
        %v4102 = vsub.s32 %v4099, %v4101
        %v4103 = vrot.slane %v4096, %v4102
        %v4104 = vcombine.low %v944, %v945
        %v4106 = vunpack.c.l.s4 1983009808
        %v4107 = vunpack.c.0.s8 %v4106
        %v4108 = vlaneseq
        %v4109 = vshrl.u32 %v4108, 7
        %v4110 = vsub.s32 %v4107, %v4109
        %v4111 = vrot.slane %v4104, %v4110
        %v4112 = vcombine.low %v936, %v943
        %v4114 = vunpack.c.l.s4 1983009808
        %v4115 = vunpack.c.0.s8 %v4114
        %v4116 = vlaneseq
        %v4117 = vshrl.u32 %v4116, 7
        %v4118 = vsub.s32 %v4115, %v4117
        %v4119 = vrot.slane %v4112, %v4118
        %v4120 = vcombine.low %v946, %v947
        %v4122 = vunpack.c.l.s4 1983009808
        %v4123 = vunpack.c.0.s8 %v4122
        %v4124 = vlaneseq
        %v4125 = vshrl.u32 %v4124, 7
        %v4126 = vsub.s32 %v4123, %v4125
        %v4127 = vrot.slane %v4120, %v4126
        %v4128 = vcombine.low %v4103, %v4111
        %v4130 = vunpack.c.l.s4 1934713408
        %v4131 = vunpack.c.0.s8 %v4130
        %v4132 = vlaneseq
        %v4133 = vshrl.u32 %v4132, 7
        %v4134 = vsub.s32 %v4131, %v4133
        %v4135 = vrot.slane %v4128, %v4134
        %v4136 = vcombine.low %v4119, %v4127
        %v4138 = vunpack.c.l.s4 1934713408
        %v4139 = vunpack.c.0.s8 %v4138
        %v4140 = vlaneseq
        %v4141 = vshrl.u32 %v4140, 7
        %v4142 = vsub.s32 %v4139, %v4141
        %v4143 = vrot.slane %v4136, %v4142
        %v4144 = vcombine.low %v4135, %v4143
        %v4145 = vcombine.high %v4135, %v4143
        %4146 = vxpose.xlu0.b32.start [1/16] %v1070, 128
        %4147 = vxpose.xlu0.b32.cont [2/16] 0.0, 128
        %4148 = vxpose.xlu0.b32.cont [3/16] 0.0, 128
        %4149 = vxpose.xlu0.b32.cont [4/16] 0.0, 128
        %4150 = vxpose.xlu0.b32.cont [5/16] 0.0, 128
        %4151 = vxpose.xlu0.b32.cont [6/16] 0.0, 128
        %4152 = vxpose.xlu0.b32.cont [7/16] 0.0, 128
        %4153 = vxpose.xlu0.b32.cont [8/16] 0.0, 128
        %4154 = vxpose.xlu0.b32.cont [9/16] 0.0, 128
        %4155 = vxpose.xlu0.b32.cont [10/16] 0.0, 128
        %4156 = vxpose.xlu0.b32.cont [11/16] 0.0, 128
        %4157 = vxpose.xlu0.b32.cont [12/16] 0.0, 128
        %4158 = vxpose.xlu0.b32.cont [13/16] 0.0, 128
        %4159 = vxpose.xlu0.b32.cont [14/16] 0.0, 128
        %4160 = vxpose.xlu0.b32.cont [15/16] 0.0, 128
        %4161 = vxpose.xlu0.b32.end [16/16] 0.0, 128
        %v4162 = vpop.trf.xlu0
        %v4163 = vpop.trf.xlu0
        %v4164 = vpop.trf.xlu0
        %v4165 = vpop.trf.xlu0
        %v4166 = vpop.trf.xlu0
        %v4167 = vpop.trf.xlu0
        %v4168 = vpop.trf.xlu0
        %v4169 = vpop.trf.xlu0
        %v4170 = vpop.trf.xlu0
        %v4171 = vpop.trf.xlu0
        %v4172 = vpop.trf.xlu0
        %v4173 = vpop.trf.xlu0
        %v4174 = vpop.trf.xlu0
        %v4175 = vpop.trf.xlu0
        %v4176 = vpop.trf.xlu0
        %v4177 = vpop.trf.xlu0
        %4178 = vxpose.xlu0.b32.start [1/16] %v1094, 128
        %4179 = vxpose.xlu0.b32.cont [2/16] 0.0, 128
        %4180 = vxpose.xlu0.b32.cont [3/16] 0.0, 128
        %4181 = vxpose.xlu0.b32.cont [4/16] 0.0, 128
        %4182 = vxpose.xlu0.b32.cont [5/16] 0.0, 128
        %4183 = vxpose.xlu0.b32.cont [6/16] 0.0, 128
        %4184 = vxpose.xlu0.b32.cont [7/16] 0.0, 128
        %4185 = vxpose.xlu0.b32.cont [8/16] 0.0, 128
        %4186 = vxpose.xlu0.b32.cont [9/16] 0.0, 128
        %4187 = vxpose.xlu0.b32.cont [10/16] 0.0, 128
        %4188 = vxpose.xlu0.b32.cont [11/16] 0.0, 128
        %4189 = vxpose.xlu0.b32.cont [12/16] 0.0, 128
        %4190 = vxpose.xlu0.b32.cont [13/16] 0.0, 128
        %4191 = vxpose.xlu0.b32.cont [14/16] 0.0, 128
        %4192 = vxpose.xlu0.b32.cont [15/16] 0.0, 128
        %4193 = vxpose.xlu0.b32.end [16/16] 0.0, 128
        %v4194 = vpop.trf.xlu0
        %v4195 = vpop.trf.xlu0
        %v4196 = vpop.trf.xlu0
        %v4197 = vpop.trf.xlu0
        %v4198 = vpop.trf.xlu0
        %v4199 = vpop.trf.xlu0
        %v4200 = vpop.trf.xlu0
        %v4201 = vpop.trf.xlu0
        %v4202 = vpop.trf.xlu0
        %v4203 = vpop.trf.xlu0
        %v4204 = vpop.trf.xlu0
        %v4205 = vpop.trf.xlu0
        %v4206 = vpop.trf.xlu0
        %v4207 = vpop.trf.xlu0
        %v4208 = vpop.trf.xlu0
        %v4209 = vpop.trf.xlu0
        %4210 = vxpose.xlu0.b32.start [1/16] %v1077, 128
        %4211 = vxpose.xlu0.b32.cont [2/16] 0.0, 128
        %4212 = vxpose.xlu0.b32.cont [3/16] 0.0, 128
        %4213 = vxpose.xlu0.b32.cont [4/16] 0.0, 128
        %4214 = vxpose.xlu0.b32.cont [5/16] 0.0, 128
        %4215 = vxpose.xlu0.b32.cont [6/16] 0.0, 128
        %4216 = vxpose.xlu0.b32.cont [7/16] 0.0, 128
        %4217 = vxpose.xlu0.b32.cont [8/16] 0.0, 128
        %4218 = vxpose.xlu0.b32.cont [9/16] 0.0, 128
        %4219 = vxpose.xlu0.b32.cont [10/16] 0.0, 128
        %4220 = vxpose.xlu0.b32.cont [11/16] 0.0, 128
        %4221 = vxpose.xlu0.b32.cont [12/16] 0.0, 128
        %4222 = vxpose.xlu0.b32.cont [13/16] 0.0, 128
        %4223 = vxpose.xlu0.b32.cont [14/16] 0.0, 128
        %4224 = vxpose.xlu0.b32.cont [15/16] 0.0, 128
        %4225 = vxpose.xlu0.b32.end [16/16] 0.0, 128
        %v4226 = vpop.trf.xlu0
        %v4227 = vpop.trf.xlu0
        %v4228 = vpop.trf.xlu0
        %v4229 = vpop.trf.xlu0
        %v4230 = vpop.trf.xlu0
        %v4231 = vpop.trf.xlu0
        %v4232 = vpop.trf.xlu0
        %v4233 = vpop.trf.xlu0
        %v4234 = vpop.trf.xlu0
        %v4235 = vpop.trf.xlu0
        %v4236 = vpop.trf.xlu0
        %v4237 = vpop.trf.xlu0
        %v4238 = vpop.trf.xlu0
        %v4239 = vpop.trf.xlu0
        %v4240 = vpop.trf.xlu0
        %v4241 = vpop.trf.xlu0
        %4242 = vxpose.xlu0.b32.start [1/16] %v1095, 128
        %4243 = vxpose.xlu0.b32.cont [2/16] 0.0, 128
        %4244 = vxpose.xlu0.b32.cont [3/16] 0.0, 128
        %4245 = vxpose.xlu0.b32.cont [4/16] 0.0, 128
        %4246 = vxpose.xlu0.b32.cont [5/16] 0.0, 128
        %4247 = vxpose.xlu0.b32.cont [6/16] 0.0, 128
        %4248 = vxpose.xlu0.b32.cont [7/16] 0.0, 128
        %4249 = vxpose.xlu0.b32.cont [8/16] 0.0, 128
        %4250 = vxpose.xlu0.b32.cont [9/16] 0.0, 128
        %4251 = vxpose.xlu0.b32.cont [10/16] 0.0, 128
        %4252 = vxpose.xlu0.b32.cont [11/16] 0.0, 128
        %4253 = vxpose.xlu0.b32.cont [12/16] 0.0, 128
        %4254 = vxpose.xlu0.b32.cont [13/16] 0.0, 128
        %4255 = vxpose.xlu0.b32.cont [14/16] 0.0, 128
        %4256 = vxpose.xlu0.b32.cont [15/16] 0.0, 128
        %4257 = vxpose.xlu0.b32.end [16/16] 0.0, 128
        %v4258 = vpop.trf.xlu0
        %v4259 = vpop.trf.xlu0
        %v4260 = vpop.trf.xlu0
        %v4261 = vpop.trf.xlu0
        %v4262 = vpop.trf.xlu0
        %v4263 = vpop.trf.xlu0
        %v4264 = vpop.trf.xlu0
        %v4265 = vpop.trf.xlu0
        %v4266 = vpop.trf.xlu0
        %v4267 = vpop.trf.xlu0
        %v4268 = vpop.trf.xlu0
        %v4269 = vpop.trf.xlu0
        %v4270 = vpop.trf.xlu0
        %v4271 = vpop.trf.xlu0
        %v4272 = vpop.trf.xlu0
        %v4273 = vpop.trf.xlu0
        %4274 = vxpose.xlu0.b32.start [1/16] %v1086, 128
        %4275 = vxpose.xlu0.b32.cont [2/16] 0.0, 128
        %4276 = vxpose.xlu0.b32.cont [3/16] 0.0, 128
        %4277 = vxpose.xlu0.b32.cont [4/16] 0.0, 128
        %4278 = vxpose.xlu0.b32.cont [5/16] 0.0, 128
        %4279 = vxpose.xlu0.b32.cont [6/16] 0.0, 128
        %4280 = vxpose.xlu0.b32.cont [7/16] 0.0, 128
        %4281 = vxpose.xlu0.b32.cont [8/16] 0.0, 128
        %4282 = vxpose.xlu0.b32.cont [9/16] 0.0, 128
        %4283 = vxpose.xlu0.b32.cont [10/16] 0.0, 128
        %4284 = vxpose.xlu0.b32.cont [11/16] 0.0, 128
        %4285 = vxpose.xlu0.b32.cont [12/16] 0.0, 128
        %4286 = vxpose.xlu0.b32.cont [13/16] 0.0, 128
        %4287 = vxpose.xlu0.b32.cont [14/16] 0.0, 128
        %4288 = vxpose.xlu0.b32.cont [15/16] 0.0, 128
        %4289 = vxpose.xlu0.b32.end [16/16] 0.0, 128
        %v4290 = vpop.trf.xlu0
        %v4291 = vpop.trf.xlu0
        %v4292 = vpop.trf.xlu0
        %v4293 = vpop.trf.xlu0
        %v4294 = vpop.trf.xlu0
        %v4295 = vpop.trf.xlu0
        %v4296 = vpop.trf.xlu0
        %v4297 = vpop.trf.xlu0
        %v4298 = vpop.trf.xlu0
        %v4299 = vpop.trf.xlu0
        %v4300 = vpop.trf.xlu0
        %v4301 = vpop.trf.xlu0
        %v4302 = vpop.trf.xlu0
        %v4303 = vpop.trf.xlu0
        %v4304 = vpop.trf.xlu0
        %v4305 = vpop.trf.xlu0
        %4306 = vxpose.xlu0.b32.start [1/16] %v1096, 128
        %4307 = vxpose.xlu0.b32.cont [2/16] 0.0, 128
        %4308 = vxpose.xlu0.b32.cont [3/16] 0.0, 128
        %4309 = vxpose.xlu0.b32.cont [4/16] 0.0, 128
        %4310 = vxpose.xlu0.b32.cont [5/16] 0.0, 128
        %4311 = vxpose.xlu0.b32.cont [6/16] 0.0, 128
        %4312 = vxpose.xlu0.b32.cont [7/16] 0.0, 128
        %4313 = vxpose.xlu0.b32.cont [8/16] 0.0, 128
        %4314 = vxpose.xlu0.b32.cont [9/16] 0.0, 128
        %4315 = vxpose.xlu0.b32.cont [10/16] 0.0, 128
        %4316 = vxpose.xlu0.b32.cont [11/16] 0.0, 128
        %4317 = vxpose.xlu0.b32.cont [12/16] 0.0, 128
        %4318 = vxpose.xlu0.b32.cont [13/16] 0.0, 128
        %4319 = vxpose.xlu0.b32.cont [14/16] 0.0, 128
        %4320 = vxpose.xlu0.b32.cont [15/16] 0.0, 128
        %4321 = vxpose.xlu0.b32.end [16/16] 0.0, 128
        %v4322 = vpop.trf.xlu0
        %v4323 = vpop.trf.xlu0
        %v4324 = vpop.trf.xlu0
        %v4325 = vpop.trf.xlu0
        %v4326 = vpop.trf.xlu0
        %v4327 = vpop.trf.xlu0
        %v4328 = vpop.trf.xlu0
        %v4329 = vpop.trf.xlu0
        %v4330 = vpop.trf.xlu0
        %v4331 = vpop.trf.xlu0
        %v4332 = vpop.trf.xlu0
        %v4333 = vpop.trf.xlu0
        %v4334 = vpop.trf.xlu0
        %v4335 = vpop.trf.xlu0
        %v4336 = vpop.trf.xlu0
        %v4337 = vpop.trf.xlu0
        %4338 = vxpose.xlu0.b32.start [1/16] %v1093, 128
        %4339 = vxpose.xlu0.b32.cont [2/16] 0.0, 128
        %4340 = vxpose.xlu0.b32.cont [3/16] 0.0, 128
        %4341 = vxpose.xlu0.b32.cont [4/16] 0.0, 128
        %4342 = vxpose.xlu0.b32.cont [5/16] 0.0, 128
        %4343 = vxpose.xlu0.b32.cont [6/16] 0.0, 128
        %4344 = vxpose.xlu0.b32.cont [7/16] 0.0, 128
        %4345 = vxpose.xlu0.b32.cont [8/16] 0.0, 128
        %4346 = vxpose.xlu0.b32.cont [9/16] 0.0, 128
        %4347 = vxpose.xlu0.b32.cont [10/16] 0.0, 128
        %4348 = vxpose.xlu0.b32.cont [11/16] 0.0, 128
        %4349 = vxpose.xlu0.b32.cont [12/16] 0.0, 128
        %4350 = vxpose.xlu0.b32.cont [13/16] 0.0, 128
        %4351 = vxpose.xlu0.b32.cont [14/16] 0.0, 128
        %4352 = vxpose.xlu0.b32.cont [15/16] 0.0, 128
        %4353 = vxpose.xlu0.b32.end [16/16] 0.0, 128
        %v4354 = vpop.trf.xlu0
        %v4355 = vpop.trf.xlu0
        %v4356 = vpop.trf.xlu0
        %v4357 = vpop.trf.xlu0
        %v4358 = vpop.trf.xlu0
        %v4359 = vpop.trf.xlu0
        %v4360 = vpop.trf.xlu0
        %v4361 = vpop.trf.xlu0
        %v4362 = vpop.trf.xlu0
        %v4363 = vpop.trf.xlu0
        %v4364 = vpop.trf.xlu0
        %v4365 = vpop.trf.xlu0
        %v4366 = vpop.trf.xlu0
        %v4367 = vpop.trf.xlu0
        %v4368 = vpop.trf.xlu0
        %v4369 = vpop.trf.xlu0
        %4370 = vxpose.xlu0.b32.start [1/16] %v1097, 128
        %4371 = vxpose.xlu0.b32.cont [2/16] 0.0, 128
        %4372 = vxpose.xlu0.b32.cont [3/16] 0.0, 128
        %4373 = vxpose.xlu0.b32.cont [4/16] 0.0, 128
        %4374 = vxpose.xlu0.b32.cont [5/16] 0.0, 128
        %4375 = vxpose.xlu0.b32.cont [6/16] 0.0, 128
        %4376 = vxpose.xlu0.b32.cont [7/16] 0.0, 128
        %4377 = vxpose.xlu0.b32.cont [8/16] 0.0, 128
        %4378 = vxpose.xlu0.b32.cont [9/16] 0.0, 128
        %4379 = vxpose.xlu0.b32.cont [10/16] 0.0, 128
        %4380 = vxpose.xlu0.b32.cont [11/16] 0.0, 128
        %4381 = vxpose.xlu0.b32.cont [12/16] 0.0, 128
        %4382 = vxpose.xlu0.b32.cont [13/16] 0.0, 128
        %4383 = vxpose.xlu0.b32.cont [14/16] 0.0, 128
        %4384 = vxpose.xlu0.b32.cont [15/16] 0.0, 128
        %4385 = vxpose.xlu0.b32.end [16/16] 0.0, 128
        %v4386 = vpop.trf.xlu0
        %v4387 = vpop.trf.xlu0
        %v4388 = vpop.trf.xlu0
        %v4389 = vpop.trf.xlu0
        %v4390 = vpop.trf.xlu0
        %v4391 = vpop.trf.xlu0
        %v4392 = vpop.trf.xlu0
        %v4393 = vpop.trf.xlu0
        %v4394 = vpop.trf.xlu0
        %v4395 = vpop.trf.xlu0
        %v4396 = vpop.trf.xlu0
        %v4397 = vpop.trf.xlu0
        %v4398 = vpop.trf.xlu0
        %v4399 = vpop.trf.xlu0
        %v4400 = vpop.trf.xlu0
        %v4401 = vpop.trf.xlu0
        %v4402 = vcombine.low %v4162, %v4226
        %v4403 = vcombine.high %v4162, %v4226
        %v4405 = vunpack.c.l.s4 1983009808
        %v4406 = vunpack.c.0.s8 %v4405
        %v4407 = vlaneseq
        %v4408 = vshrl.u32 %v4407, 7
        %v4409 = vsub.s32 %v4406, %v4408
        %v4410 = vrot.slane %v4402, %v4409
        %v4412 = vunpack.c.l.s4 1983009808
        %v4413 = vunpack.c.0.s8 %v4412
        %v4414 = vlaneseq
        %v4415 = vshrl.u32 %v4414, 7
        %v4416 = vsub.s32 %v4413, %v4415
        %v4417 = vrot.slane %v4403, %v4416
        %v4418 = vcombine.low %v4194, %v4258
        %v4419 = vcombine.high %v4194, %v4258
        %v4421 = vunpack.c.l.s4 1983009808
        %v4422 = vunpack.c.0.s8 %v4421
        %v4423 = vlaneseq
        %v4424 = vshrl.u32 %v4423, 7
        %v4425 = vsub.s32 %v4422, %v4424
        %v4426 = vrot.slane %v4418, %v4425
        %v4428 = vunpack.c.l.s4 1983009808
        %v4429 = vunpack.c.0.s8 %v4428
        %v4430 = vlaneseq
        %v4431 = vshrl.u32 %v4430, 7
        %v4432 = vsub.s32 %v4429, %v4431
        %v4433 = vrot.slane %v4419, %v4432
        %v4434 = vcombine.low %v4290, %v4354
        %v4435 = vcombine.high %v4290, %v4354
        %v4437 = vunpack.c.l.s4 1983009808
        %v4438 = vunpack.c.0.s8 %v4437
        %v4439 = vlaneseq
        %v4440 = vshrl.u32 %v4439, 7
        %v4441 = vsub.s32 %v4438, %v4440
        %v4442 = vrot.slane %v4434, %v4441
        %v4444 = vunpack.c.l.s4 1983009808
        %v4445 = vunpack.c.0.s8 %v4444
        %v4446 = vlaneseq
        %v4447 = vshrl.u32 %v4446, 7
        %v4448 = vsub.s32 %v4445, %v4447
        %v4449 = vrot.slane %v4435, %v4448
        %v4450 = vcombine.low %v4322, %v4386
        %v4451 = vcombine.high %v4322, %v4386
        %v4453 = vunpack.c.l.s4 1983009808
        %v4454 = vunpack.c.0.s8 %v4453
        %v4455 = vlaneseq
        %v4456 = vshrl.u32 %v4455, 7
        %v4457 = vsub.s32 %v4454, %v4456
        %v4458 = vrot.slane %v4450, %v4457
        %v4460 = vunpack.c.l.s4 1983009808
        %v4461 = vunpack.c.0.s8 %v4460
        %v4462 = vlaneseq
        %v4463 = vshrl.u32 %v4462, 7
        %v4464 = vsub.s32 %v4461, %v4463
        %v4465 = vrot.slane %v4451, %v4464
        %v4466 = vcombine.low %v4410, %v4426
        %v4467 = vcombine.high %v4410, %v4426
        %v4469 = vunpack.c.l.s4 1934713408
        %v4470 = vunpack.c.0.s8 %v4469
        %v4471 = vlaneseq
        %v4472 = vshrl.u32 %v4471, 7
        %v4473 = vsub.s32 %v4470, %v4472
        %v4474 = vrot.slane %v4466, %v4473
        %v4476 = vunpack.c.l.s4 1934713408
        %v4477 = vunpack.c.0.s8 %v4476
        %v4478 = vlaneseq
        %v4479 = vshrl.u32 %v4478, 7
        %v4480 = vsub.s32 %v4477, %v4479
        %v4481 = vrot.slane %v4467, %v4480
        %v4482 = vcombine.low %v4417, %v4433
        %v4483 = vcombine.high %v4417, %v4433
        %v4485 = vunpack.c.l.s4 1934713408
        %v4486 = vunpack.c.0.s8 %v4485
        %v4487 = vlaneseq
        %v4488 = vshrl.u32 %v4487, 7
        %v4489 = vsub.s32 %v4486, %v4488
        %v4490 = vrot.slane %v4482, %v4489
        %v4492 = vunpack.c.l.s4 1934713408
        %v4493 = vunpack.c.0.s8 %v4492
        %v4494 = vlaneseq
        %v4495 = vshrl.u32 %v4494, 7
        %v4496 = vsub.s32 %v4493, %v4495
        %v4497 = vrot.slane %v4483, %v4496
        %v4498 = vcombine.low %v4442, %v4458
        %v4499 = vcombine.high %v4442, %v4458
        %v4501 = vunpack.c.l.s4 1934713408
        %v4502 = vunpack.c.0.s8 %v4501
        %v4503 = vlaneseq
        %v4504 = vshrl.u32 %v4503, 7
        %v4505 = vsub.s32 %v4502, %v4504
        %v4506 = vrot.slane %v4498, %v4505
        %v4508 = vunpack.c.l.s4 1934713408
        %v4509 = vunpack.c.0.s8 %v4508
        %v4510 = vlaneseq
        %v4511 = vshrl.u32 %v4510, 7
        %v4512 = vsub.s32 %v4509, %v4511
        %v4513 = vrot.slane %v4499, %v4512
        %v4514 = vcombine.low %v4449, %v4465
        %v4515 = vcombine.high %v4449, %v4465
        %v4517 = vunpack.c.l.s4 1934713408
        %v4518 = vunpack.c.0.s8 %v4517
        %v4519 = vlaneseq
        %v4520 = vshrl.u32 %v4519, 7
        %v4521 = vsub.s32 %v4518, %v4520
        %v4522 = vrot.slane %v4514, %v4521
        %v4524 = vunpack.c.l.s4 1934713408
        %v4525 = vunpack.c.0.s8 %v4524
        %v4526 = vlaneseq
        %v4527 = vshrl.u32 %v4526, 7
        %v4528 = vsub.s32 %v4525, %v4527
        %v4529 = vrot.slane %v4515, %v4528
        %v4530 = vcombine.low %v4474, %v4506
        %v4531 = vcombine.high %v4474, %v4506
        %v4532 = vcombine.low %v4481, %v4513
        %v4533 = vcombine.high %v4481, %v4513
        %v4534 = vcombine.low %v4490, %v4522
        %v4535 = vcombine.high %v4490, %v4522
        %v4536 = vcombine.low %v4497, %v4529
        %v4537 = vcombine.high %v4497, %v4529
        %v4538 = vcombine.low %v4163, %v4227
        %v4539 = vcombine.high %v4163, %v4227
        %v4541 = vunpack.c.l.s4 1983009808
        %v4542 = vunpack.c.0.s8 %v4541
        %v4543 = vlaneseq
        %v4544 = vshrl.u32 %v4543, 7
        %v4545 = vsub.s32 %v4542, %v4544
        %v4546 = vrot.slane %v4538, %v4545
        %v4548 = vunpack.c.l.s4 1983009808
        %v4549 = vunpack.c.0.s8 %v4548
        %v4550 = vlaneseq
        %v4551 = vshrl.u32 %v4550, 7
        %v4552 = vsub.s32 %v4549, %v4551
        %v4553 = vrot.slane %v4539, %v4552
        %v4554 = vcombine.low %v4195, %v4259
        %v4555 = vcombine.high %v4195, %v4259
        %v4557 = vunpack.c.l.s4 1983009808
        %v4558 = vunpack.c.0.s8 %v4557
        %v4559 = vlaneseq
        %v4560 = vshrl.u32 %v4559, 7
        %v4561 = vsub.s32 %v4558, %v4560
        %v4562 = vrot.slane %v4554, %v4561
        %v4564 = vunpack.c.l.s4 1983009808
        %v4565 = vunpack.c.0.s8 %v4564
        %v4566 = vlaneseq
        %v4567 = vshrl.u32 %v4566, 7
        %v4568 = vsub.s32 %v4565, %v4567
        %v4569 = vrot.slane %v4555, %v4568
        %v4570 = vcombine.low %v4291, %v4355
        %v4571 = vcombine.high %v4291, %v4355
        %v4573 = vunpack.c.l.s4 1983009808
        %v4574 = vunpack.c.0.s8 %v4573
        %v4575 = vlaneseq
        %v4576 = vshrl.u32 %v4575, 7
        %v4577 = vsub.s32 %v4574, %v4576
        %v4578 = vrot.slane %v4570, %v4577
        %v4580 = vunpack.c.l.s4 1983009808
        %v4581 = vunpack.c.0.s8 %v4580
        %v4582 = vlaneseq
        %v4583 = vshrl.u32 %v4582, 7
        %v4584 = vsub.s32 %v4581, %v4583
        %v4585 = vrot.slane %v4571, %v4584
        %v4586 = vcombine.low %v4323, %v4387
        %v4587 = vcombine.high %v4323, %v4387
        %v4589 = vunpack.c.l.s4 1983009808
        %v4590 = vunpack.c.0.s8 %v4589
        %v4591 = vlaneseq
        %v4592 = vshrl.u32 %v4591, 7
        %v4593 = vsub.s32 %v4590, %v4592
        %v4594 = vrot.slane %v4586, %v4593
        %v4596 = vunpack.c.l.s4 1983009808
        %v4597 = vunpack.c.0.s8 %v4596
        %v4598 = vlaneseq
        %v4599 = vshrl.u32 %v4598, 7
        %v4600 = vsub.s32 %v4597, %v4599
        %v4601 = vrot.slane %v4587, %v4600
        %v4602 = vcombine.low %v4546, %v4562
        %v4603 = vcombine.high %v4546, %v4562
        %v4605 = vunpack.c.l.s4 1934713408
        %v4606 = vunpack.c.0.s8 %v4605
        %v4607 = vlaneseq
        %v4608 = vshrl.u32 %v4607, 7
        %v4609 = vsub.s32 %v4606, %v4608
        %v4610 = vrot.slane %v4602, %v4609
        %v4612 = vunpack.c.l.s4 1934713408
        %v4613 = vunpack.c.0.s8 %v4612
        %v4614 = vlaneseq
        %v4615 = vshrl.u32 %v4614, 7
        %v4616 = vsub.s32 %v4613, %v4615
        %v4617 = vrot.slane %v4603, %v4616
        %v4618 = vcombine.low %v4553, %v4569
        %v4619 = vcombine.high %v4553, %v4569
        %v4621 = vunpack.c.l.s4 1934713408
        %v4622 = vunpack.c.0.s8 %v4621
        %v4623 = vlaneseq
        %v4624 = vshrl.u32 %v4623, 7
        %v4625 = vsub.s32 %v4622, %v4624
        %v4626 = vrot.slane %v4618, %v4625
        %v4628 = vunpack.c.l.s4 1934713408
        %v4629 = vunpack.c.0.s8 %v4628
        %v4630 = vlaneseq
        %v4631 = vshrl.u32 %v4630, 7
        %v4632 = vsub.s32 %v4629, %v4631
        %v4633 = vrot.slane %v4619, %v4632
        %v4634 = vcombine.low %v4578, %v4594
        %v4635 = vcombine.high %v4578, %v4594
        %v4637 = vunpack.c.l.s4 1934713408
        %v4638 = vunpack.c.0.s8 %v4637
        %v4639 = vlaneseq
        %v4640 = vshrl.u32 %v4639, 7
        %v4641 = vsub.s32 %v4638, %v4640
        %v4642 = vrot.slane %v4634, %v4641
        %v4644 = vunpack.c.l.s4 1934713408
        %v4645 = vunpack.c.0.s8 %v4644
        %v4646 = vlaneseq
        %v4647 = vshrl.u32 %v4646, 7
        %v4648 = vsub.s32 %v4645, %v4647
        %v4649 = vrot.slane %v4635, %v4648
        %v4650 = vcombine.low %v4585, %v4601
        %v4651 = vcombine.high %v4585, %v4601
        %v4653 = vunpack.c.l.s4 1934713408
        %v4654 = vunpack.c.0.s8 %v4653
        %v4655 = vlaneseq
        %v4656 = vshrl.u32 %v4655, 7
        %v4657 = vsub.s32 %v4654, %v4656
        %v4658 = vrot.slane %v4650, %v4657
        %v4660 = vunpack.c.l.s4 1934713408
        %v4661 = vunpack.c.0.s8 %v4660
        %v4662 = vlaneseq
        %v4663 = vshrl.u32 %v4662, 7
        %v4664 = vsub.s32 %v4661, %v4663
        %v4665 = vrot.slane %v4651, %v4664
        %v4666 = vcombine.low %v4610, %v4642
        %v4667 = vcombine.high %v4610, %v4642
        %v4668 = vcombine.low %v4617, %v4649
        %v4669 = vcombine.high %v4617, %v4649
        %v4670 = vcombine.low %v4626, %v4658
        %v4671 = vcombine.high %v4626, %v4658
        %v4672 = vcombine.low %v4633, %v4665
        %v4673 = vcombine.high %v4633, %v4665
        %4674 = vxpose.xlu0.b32.start [1/16] %v4530, 128
        %4675 = vxpose.xlu0.b32.cont [2/16] 0.0, 128
        %4676 = vxpose.xlu0.b32.cont [3/16] 0.0, 128
        %4677 = vxpose.xlu0.b32.cont [4/16] 0.0, 128
        %4678 = vxpose.xlu0.b32.cont [5/16] 0.0, 128
        %4679 = vxpose.xlu0.b32.cont [6/16] 0.0, 128
        %4680 = vxpose.xlu0.b32.cont [7/16] 0.0, 128
        %4681 = vxpose.xlu0.b32.cont [8/16] 0.0, 128
        %4682 = vxpose.xlu0.b32.cont [9/16] 0.0, 128
        %4683 = vxpose.xlu0.b32.cont [10/16] 0.0, 128
        %4684 = vxpose.xlu0.b32.cont [11/16] 0.0, 128
        %4685 = vxpose.xlu0.b32.cont [12/16] 0.0, 128
        %4686 = vxpose.xlu0.b32.cont [13/16] 0.0, 128
        %4687 = vxpose.xlu0.b32.cont [14/16] 0.0, 128
        %4688 = vxpose.xlu0.b32.cont [15/16] 0.0, 128
        %4689 = vxpose.xlu0.b32.end [16/16] 0.0, 128
        %v4690 = vpop.trf.xlu0
        %v4691 = vpop.trf.xlu0
        %v4692 = vpop.trf.xlu0
        %v4693 = vpop.trf.xlu0
        %v4694 = vpop.trf.xlu0
        %v4695 = vpop.trf.xlu0
        %v4696 = vpop.trf.xlu0
        %v4697 = vpop.trf.xlu0
        %v4698 = vpop.trf.xlu0
        %v4699 = vpop.trf.xlu0
        %v4700 = vpop.trf.xlu0
        %v4701 = vpop.trf.xlu0
        %v4702 = vpop.trf.xlu0
        %v4703 = vpop.trf.xlu0
        %v4704 = vpop.trf.xlu0
        %v4705 = vpop.trf.xlu0
        %4706 = vxpose.xlu0.b32.start [1/16] %v4531, 128
        %4707 = vxpose.xlu0.b32.cont [2/16] 0.0, 128
        %4708 = vxpose.xlu0.b32.cont [3/16] 0.0, 128
        %4709 = vxpose.xlu0.b32.cont [4/16] 0.0, 128
        %4710 = vxpose.xlu0.b32.cont [5/16] 0.0, 128
        %4711 = vxpose.xlu0.b32.cont [6/16] 0.0, 128
        %4712 = vxpose.xlu0.b32.cont [7/16] 0.0, 128
        %4713 = vxpose.xlu0.b32.cont [8/16] 0.0, 128
        %4714 = vxpose.xlu0.b32.cont [9/16] 0.0, 128
        %4715 = vxpose.xlu0.b32.cont [10/16] 0.0, 128
        %4716 = vxpose.xlu0.b32.cont [11/16] 0.0, 128
        %4717 = vxpose.xlu0.b32.cont [12/16] 0.0, 128
        %4718 = vxpose.xlu0.b32.cont [13/16] 0.0, 128
        %4719 = vxpose.xlu0.b32.cont [14/16] 0.0, 128
        %4720 = vxpose.xlu0.b32.cont [15/16] 0.0, 128
        %4721 = vxpose.xlu0.b32.end [16/16] 0.0, 128
        %v4722 = vpop.trf.xlu0
        %v4723 = vpop.trf.xlu0
        %v4724 = vpop.trf.xlu0
        %v4725 = vpop.trf.xlu0
        %v4726 = vpop.trf.xlu0
        %v4727 = vpop.trf.xlu0
        %v4728 = vpop.trf.xlu0
        %v4729 = vpop.trf.xlu0
        %v4730 = vpop.trf.xlu0
        %v4731 = vpop.trf.xlu0
        %v4732 = vpop.trf.xlu0
        %v4733 = vpop.trf.xlu0
        %v4734 = vpop.trf.xlu0
        %v4735 = vpop.trf.xlu0
        %v4736 = vpop.trf.xlu0
        %v4737 = vpop.trf.xlu0
        %4738 = vxpose.xlu0.b32.start [1/16] %v4532, 128
        %4739 = vxpose.xlu0.b32.cont [2/16] 0.0, 128
        %4740 = vxpose.xlu0.b32.cont [3/16] 0.0, 128
        %4741 = vxpose.xlu0.b32.cont [4/16] 0.0, 128
        %4742 = vxpose.xlu0.b32.cont [5/16] 0.0, 128
        %4743 = vxpose.xlu0.b32.cont [6/16] 0.0, 128
        %4744 = vxpose.xlu0.b32.cont [7/16] 0.0, 128
        %4745 = vxpose.xlu0.b32.cont [8/16] 0.0, 128
        %4746 = vxpose.xlu0.b32.cont [9/16] 0.0, 128
        %4747 = vxpose.xlu0.b32.cont [10/16] 0.0, 128
        %4748 = vxpose.xlu0.b32.cont [11/16] 0.0, 128
        %4749 = vxpose.xlu0.b32.cont [12/16] 0.0, 128
        %4750 = vxpose.xlu0.b32.cont [13/16] 0.0, 128
        %4751 = vxpose.xlu0.b32.cont [14/16] 0.0, 128
        %4752 = vxpose.xlu0.b32.cont [15/16] 0.0, 128
        %4753 = vxpose.xlu0.b32.end [16/16] 0.0, 128
        %v4754 = vpop.trf.xlu0
        %v4755 = vpop.trf.xlu0
        %v4756 = vpop.trf.xlu0
        %v4757 = vpop.trf.xlu0
        %v4758 = vpop.trf.xlu0
        %v4759 = vpop.trf.xlu0
        %v4760 = vpop.trf.xlu0
        %v4761 = vpop.trf.xlu0
        %v4762 = vpop.trf.xlu0
        %v4763 = vpop.trf.xlu0
        %v4764 = vpop.trf.xlu0
        %v4765 = vpop.trf.xlu0
        %v4766 = vpop.trf.xlu0
        %v4767 = vpop.trf.xlu0
        %v4768 = vpop.trf.xlu0
        %v4769 = vpop.trf.xlu0
        %4770 = vxpose.xlu0.b32.start [1/16] %v4533, 128
        %4771 = vxpose.xlu0.b32.cont [2/16] 0.0, 128
        %4772 = vxpose.xlu0.b32.cont [3/16] 0.0, 128
        %4773 = vxpose.xlu0.b32.cont [4/16] 0.0, 128
        %4774 = vxpose.xlu0.b32.cont [5/16] 0.0, 128
        %4775 = vxpose.xlu0.b32.cont [6/16] 0.0, 128
        %4776 = vxpose.xlu0.b32.cont [7/16] 0.0, 128
        %4777 = vxpose.xlu0.b32.cont [8/16] 0.0, 128
        %4778 = vxpose.xlu0.b32.cont [9/16] 0.0, 128
        %4779 = vxpose.xlu0.b32.cont [10/16] 0.0, 128
        %4780 = vxpose.xlu0.b32.cont [11/16] 0.0, 128
        %4781 = vxpose.xlu0.b32.cont [12/16] 0.0, 128
        %4782 = vxpose.xlu0.b32.cont [13/16] 0.0, 128
        %4783 = vxpose.xlu0.b32.cont [14/16] 0.0, 128
        %4784 = vxpose.xlu0.b32.cont [15/16] 0.0, 128
        %4785 = vxpose.xlu0.b32.end [16/16] 0.0, 128
        %v4786 = vpop.trf.xlu0
        %v4787 = vpop.trf.xlu0
        %v4788 = vpop.trf.xlu0
        %v4789 = vpop.trf.xlu0
        %v4790 = vpop.trf.xlu0
        %v4791 = vpop.trf.xlu0
        %v4792 = vpop.trf.xlu0
        %v4793 = vpop.trf.xlu0
        %v4794 = vpop.trf.xlu0
        %v4795 = vpop.trf.xlu0
        %v4796 = vpop.trf.xlu0
        %v4797 = vpop.trf.xlu0
        %v4798 = vpop.trf.xlu0
        %v4799 = vpop.trf.xlu0
        %v4800 = vpop.trf.xlu0
        %v4801 = vpop.trf.xlu0
        %4802 = vxpose.xlu0.b32.start [1/16] %v4534, 128
        %4803 = vxpose.xlu0.b32.cont [2/16] 0.0, 128
        %4804 = vxpose.xlu0.b32.cont [3/16] 0.0, 128
        %4805 = vxpose.xlu0.b32.cont [4/16] 0.0, 128
        %4806 = vxpose.xlu0.b32.cont [5/16] 0.0, 128
        %4807 = vxpose.xlu0.b32.cont [6/16] 0.0, 128
        %4808 = vxpose.xlu0.b32.cont [7/16] 0.0, 128
        %4809 = vxpose.xlu0.b32.cont [8/16] 0.0, 128
        %4810 = vxpose.xlu0.b32.cont [9/16] 0.0, 128
        %4811 = vxpose.xlu0.b32.cont [10/16] 0.0, 128
        %4812 = vxpose.xlu0.b32.cont [11/16] 0.0, 128
        %4813 = vxpose.xlu0.b32.cont [12/16] 0.0, 128
        %4814 = vxpose.xlu0.b32.cont [13/16] 0.0, 128
        %4815 = vxpose.xlu0.b32.cont [14/16] 0.0, 128
        %4816 = vxpose.xlu0.b32.cont [15/16] 0.0, 128
        %4817 = vxpose.xlu0.b32.end [16/16] 0.0, 128
        %v4818 = vpop.trf.xlu0
        %v4819 = vpop.trf.xlu0
        %v4820 = vpop.trf.xlu0
        %v4821 = vpop.trf.xlu0
        %v4822 = vpop.trf.xlu0
        %v4823 = vpop.trf.xlu0
        %v4824 = vpop.trf.xlu0
        %v4825 = vpop.trf.xlu0
        %v4826 = vpop.trf.xlu0
        %v4827 = vpop.trf.xlu0
        %v4828 = vpop.trf.xlu0
        %v4829 = vpop.trf.xlu0
        %v4830 = vpop.trf.xlu0
        %v4831 = vpop.trf.xlu0
        %v4832 = vpop.trf.xlu0
        %v4833 = vpop.trf.xlu0
        %4834 = vxpose.xlu0.b32.start [1/16] %v4535, 128
        %4835 = vxpose.xlu0.b32.cont [2/16] 0.0, 128
        %4836 = vxpose.xlu0.b32.cont [3/16] 0.0, 128
        %4837 = vxpose.xlu0.b32.cont [4/16] 0.0, 128
        %4838 = vxpose.xlu0.b32.cont [5/16] 0.0, 128
        %4839 = vxpose.xlu0.b32.cont [6/16] 0.0, 128
        %4840 = vxpose.xlu0.b32.cont [7/16] 0.0, 128
        %4841 = vxpose.xlu0.b32.cont [8/16] 0.0, 128
        %4842 = vxpose.xlu0.b32.cont [9/16] 0.0, 128
        %4843 = vxpose.xlu0.b32.cont [10/16] 0.0, 128
        %4844 = vxpose.xlu0.b32.cont [11/16] 0.0, 128
        %4845 = vxpose.xlu0.b32.cont [12/16] 0.0, 128
        %4846 = vxpose.xlu0.b32.cont [13/16] 0.0, 128
        %4847 = vxpose.xlu0.b32.cont [14/16] 0.0, 128
        %4848 = vxpose.xlu0.b32.cont [15/16] 0.0, 128
        %4849 = vxpose.xlu0.b32.end [16/16] 0.0, 128
        %v4850 = vpop.trf.xlu0
        %v4851 = vpop.trf.xlu0
        %v4852 = vpop.trf.xlu0
        %v4853 = vpop.trf.xlu0
        %v4854 = vpop.trf.xlu0
        %v4855 = vpop.trf.xlu0
        %v4856 = vpop.trf.xlu0
        %v4857 = vpop.trf.xlu0
        %v4858 = vpop.trf.xlu0
        %v4859 = vpop.trf.xlu0
        %v4860 = vpop.trf.xlu0
        %v4861 = vpop.trf.xlu0
        %v4862 = vpop.trf.xlu0
        %v4863 = vpop.trf.xlu0
        %v4864 = vpop.trf.xlu0
        %v4865 = vpop.trf.xlu0
        %4866 = vxpose.xlu0.b32.start [1/16] %v4536, 128
        %4867 = vxpose.xlu0.b32.cont [2/16] 0.0, 128
        %4868 = vxpose.xlu0.b32.cont [3/16] 0.0, 128
        %4869 = vxpose.xlu0.b32.cont [4/16] 0.0, 128
        %4870 = vxpose.xlu0.b32.cont [5/16] 0.0, 128
        %4871 = vxpose.xlu0.b32.cont [6/16] 0.0, 128
        %4872 = vxpose.xlu0.b32.cont [7/16] 0.0, 128
        %4873 = vxpose.xlu0.b32.cont [8/16] 0.0, 128
        %4874 = vxpose.xlu0.b32.cont [9/16] 0.0, 128
        %4875 = vxpose.xlu0.b32.cont [10/16] 0.0, 128
        %4876 = vxpose.xlu0.b32.cont [11/16] 0.0, 128
        %4877 = vxpose.xlu0.b32.cont [12/16] 0.0, 128
        %4878 = vxpose.xlu0.b32.cont [13/16] 0.0, 128
        %4879 = vxpose.xlu0.b32.cont [14/16] 0.0, 128
        %4880 = vxpose.xlu0.b32.cont [15/16] 0.0, 128
        %4881 = vxpose.xlu0.b32.end [16/16] 0.0, 128
        %v4882 = vpop.trf.xlu0
        %v4883 = vpop.trf.xlu0
        %v4884 = vpop.trf.xlu0
        %v4885 = vpop.trf.xlu0
        %v4886 = vpop.trf.xlu0
        %v4887 = vpop.trf.xlu0
        %v4888 = vpop.trf.xlu0
        %v4889 = vpop.trf.xlu0
        %v4890 = vpop.trf.xlu0
        %v4891 = vpop.trf.xlu0
        %v4892 = vpop.trf.xlu0
        %v4893 = vpop.trf.xlu0
        %v4894 = vpop.trf.xlu0
        %v4895 = vpop.trf.xlu0
        %v4896 = vpop.trf.xlu0
        %v4897 = vpop.trf.xlu0
        %4898 = vxpose.xlu0.b32.start [1/16] %v4537, 128
        %4899 = vxpose.xlu0.b32.cont [2/16] 0.0, 128
        %4900 = vxpose.xlu0.b32.cont [3/16] 0.0, 128
        %4901 = vxpose.xlu0.b32.cont [4/16] 0.0, 128
        %4902 = vxpose.xlu0.b32.cont [5/16] 0.0, 128
        %4903 = vxpose.xlu0.b32.cont [6/16] 0.0, 128
        %4904 = vxpose.xlu0.b32.cont [7/16] 0.0, 128
        %4905 = vxpose.xlu0.b32.cont [8/16] 0.0, 128
        %4906 = vxpose.xlu0.b32.cont [9/16] 0.0, 128
        %4907 = vxpose.xlu0.b32.cont [10/16] 0.0, 128
        %4908 = vxpose.xlu0.b32.cont [11/16] 0.0, 128
        %4909 = vxpose.xlu0.b32.cont [12/16] 0.0, 128
        %4910 = vxpose.xlu0.b32.cont [13/16] 0.0, 128
        %4911 = vxpose.xlu0.b32.cont [14/16] 0.0, 128
        %4912 = vxpose.xlu0.b32.cont [15/16] 0.0, 128
        %4913 = vxpose.xlu0.b32.end [16/16] 0.0, 128
        %v4914 = vpop.trf.xlu0
        %v4915 = vpop.trf.xlu0
        %v4916 = vpop.trf.xlu0
        %v4917 = vpop.trf.xlu0
        %v4918 = vpop.trf.xlu0
        %v4919 = vpop.trf.xlu0
        %v4920 = vpop.trf.xlu0
        %v4921 = vpop.trf.xlu0
        %v4922 = vpop.trf.xlu0
        %v4923 = vpop.trf.xlu0
        %v4924 = vpop.trf.xlu0
        %v4925 = vpop.trf.xlu0
        %v4926 = vpop.trf.xlu0
        %v4927 = vpop.trf.xlu0
        %v4928 = vpop.trf.xlu0
        %v4929 = vpop.trf.xlu0
        %4930 = vxpose.xlu0.b32.start [1/16] %v4666, 128
        %4931 = vxpose.xlu0.b32.cont [2/16] 0.0, 128
        %4932 = vxpose.xlu0.b32.cont [3/16] 0.0, 128
        %4933 = vxpose.xlu0.b32.cont [4/16] 0.0, 128
        %4934 = vxpose.xlu0.b32.cont [5/16] 0.0, 128
        %4935 = vxpose.xlu0.b32.cont [6/16] 0.0, 128
        %4936 = vxpose.xlu0.b32.cont [7/16] 0.0, 128
        %4937 = vxpose.xlu0.b32.cont [8/16] 0.0, 128
        %4938 = vxpose.xlu0.b32.cont [9/16] 0.0, 128
        %4939 = vxpose.xlu0.b32.cont [10/16] 0.0, 128
        %4940 = vxpose.xlu0.b32.cont [11/16] 0.0, 128
        %4941 = vxpose.xlu0.b32.cont [12/16] 0.0, 128
        %4942 = vxpose.xlu0.b32.cont [13/16] 0.0, 128
        %4943 = vxpose.xlu0.b32.cont [14/16] 0.0, 128
        %4944 = vxpose.xlu0.b32.cont [15/16] 0.0, 128
        %4945 = vxpose.xlu0.b32.end [16/16] 0.0, 128
        %v4946 = vpop.trf.xlu0
        %v4947 = vpop.trf.xlu0
        %v4948 = vpop.trf.xlu0
        %v4949 = vpop.trf.xlu0
        %v4950 = vpop.trf.xlu0
        %v4951 = vpop.trf.xlu0
        %v4952 = vpop.trf.xlu0
        %v4953 = vpop.trf.xlu0
        %v4954 = vpop.trf.xlu0
        %v4955 = vpop.trf.xlu0
        %v4956 = vpop.trf.xlu0
        %v4957 = vpop.trf.xlu0
        %v4958 = vpop.trf.xlu0
        %v4959 = vpop.trf.xlu0
        %v4960 = vpop.trf.xlu0
        %v4961 = vpop.trf.xlu0
        %4962 = vxpose.xlu0.b32.start [1/16] %v4667, 128
        %4963 = vxpose.xlu0.b32.cont [2/16] 0.0, 128
        %4964 = vxpose.xlu0.b32.cont [3/16] 0.0, 128
        %4965 = vxpose.xlu0.b32.cont [4/16] 0.0, 128
        %4966 = vxpose.xlu0.b32.cont [5/16] 0.0, 128
        %4967 = vxpose.xlu0.b32.cont [6/16] 0.0, 128
        %4968 = vxpose.xlu0.b32.cont [7/16] 0.0, 128
        %4969 = vxpose.xlu0.b32.cont [8/16] 0.0, 128
        %4970 = vxpose.xlu0.b32.cont [9/16] 0.0, 128
        %4971 = vxpose.xlu0.b32.cont [10/16] 0.0, 128
        %4972 = vxpose.xlu0.b32.cont [11/16] 0.0, 128
        %4973 = vxpose.xlu0.b32.cont [12/16] 0.0, 128
        %4974 = vxpose.xlu0.b32.cont [13/16] 0.0, 128
        %4975 = vxpose.xlu0.b32.cont [14/16] 0.0, 128
        %4976 = vxpose.xlu0.b32.cont [15/16] 0.0, 128
        %4977 = vxpose.xlu0.b32.end [16/16] 0.0, 128
        %v4978 = vpop.trf.xlu0
        %v4979 = vpop.trf.xlu0
        %v4980 = vpop.trf.xlu0
        %v4981 = vpop.trf.xlu0
        %v4982 = vpop.trf.xlu0
        %v4983 = vpop.trf.xlu0
        %v4984 = vpop.trf.xlu0
        %v4985 = vpop.trf.xlu0
        %v4986 = vpop.trf.xlu0
        %v4987 = vpop.trf.xlu0
        %v4988 = vpop.trf.xlu0
        %v4989 = vpop.trf.xlu0
        %v4990 = vpop.trf.xlu0
        %v4991 = vpop.trf.xlu0
        %v4992 = vpop.trf.xlu0
        %v4993 = vpop.trf.xlu0
        %4994 = vxpose.xlu0.b32.start [1/16] %v4668, 128
        %4995 = vxpose.xlu0.b32.cont [2/16] 0.0, 128
        %4996 = vxpose.xlu0.b32.cont [3/16] 0.0, 128
        %4997 = vxpose.xlu0.b32.cont [4/16] 0.0, 128
        %4998 = vxpose.xlu0.b32.cont [5/16] 0.0, 128
        %4999 = vxpose.xlu0.b32.cont [6/16] 0.0, 128
        %5000 = vxpose.xlu0.b32.cont [7/16] 0.0, 128
        %5001 = vxpose.xlu0.b32.cont [8/16] 0.0, 128
        %5002 = vxpose.xlu0.b32.cont [9/16] 0.0, 128
        %5003 = vxpose.xlu0.b32.cont [10/16] 0.0, 128
        %5004 = vxpose.xlu0.b32.cont [11/16] 0.0, 128
        %5005 = vxpose.xlu0.b32.cont [12/16] 0.0, 128
        %5006 = vxpose.xlu0.b32.cont [13/16] 0.0, 128
        %5007 = vxpose.xlu0.b32.cont [14/16] 0.0, 128
        %5008 = vxpose.xlu0.b32.cont [15/16] 0.0, 128
        %5009 = vxpose.xlu0.b32.end [16/16] 0.0, 128
        %v5010 = vpop.trf.xlu0
        %v5011 = vpop.trf.xlu0
        %v5012 = vpop.trf.xlu0
        %v5013 = vpop.trf.xlu0
        %v5014 = vpop.trf.xlu0
        %v5015 = vpop.trf.xlu0
        %v5016 = vpop.trf.xlu0
        %v5017 = vpop.trf.xlu0
        %v5018 = vpop.trf.xlu0
        %v5019 = vpop.trf.xlu0
        %v5020 = vpop.trf.xlu0
        %v5021 = vpop.trf.xlu0
        %v5022 = vpop.trf.xlu0
        %v5023 = vpop.trf.xlu0
        %v5024 = vpop.trf.xlu0
        %v5025 = vpop.trf.xlu0
        %5026 = vxpose.xlu0.b32.start [1/16] %v4669, 128
        %5027 = vxpose.xlu0.b32.cont [2/16] 0.0, 128
        %5028 = vxpose.xlu0.b32.cont [3/16] 0.0, 128
        %5029 = vxpose.xlu0.b32.cont [4/16] 0.0, 128
        %5030 = vxpose.xlu0.b32.cont [5/16] 0.0, 128
        %5031 = vxpose.xlu0.b32.cont [6/16] 0.0, 128
        %5032 = vxpose.xlu0.b32.cont [7/16] 0.0, 128
        %5033 = vxpose.xlu0.b32.cont [8/16] 0.0, 128
        %5034 = vxpose.xlu0.b32.cont [9/16] 0.0, 128
        %5035 = vxpose.xlu0.b32.cont [10/16] 0.0, 128
        %5036 = vxpose.xlu0.b32.cont [11/16] 0.0, 128
        %5037 = vxpose.xlu0.b32.cont [12/16] 0.0, 128
        %5038 = vxpose.xlu0.b32.cont [13/16] 0.0, 128
        %5039 = vxpose.xlu0.b32.cont [14/16] 0.0, 128
        %5040 = vxpose.xlu0.b32.cont [15/16] 0.0, 128
        %5041 = vxpose.xlu0.b32.end [16/16] 0.0, 128
        %v5042 = vpop.trf.xlu0
        %v5043 = vpop.trf.xlu0
        %v5044 = vpop.trf.xlu0
        %v5045 = vpop.trf.xlu0
        %v5046 = vpop.trf.xlu0
        %v5047 = vpop.trf.xlu0
        %v5048 = vpop.trf.xlu0
        %v5049 = vpop.trf.xlu0
        %v5050 = vpop.trf.xlu0
        %v5051 = vpop.trf.xlu0
        %v5052 = vpop.trf.xlu0
        %v5053 = vpop.trf.xlu0
        %v5054 = vpop.trf.xlu0
        %v5055 = vpop.trf.xlu0
        %v5056 = vpop.trf.xlu0
        %v5057 = vpop.trf.xlu0
        %5058 = vxpose.xlu0.b32.start [1/16] %v4670, 128
        %5059 = vxpose.xlu0.b32.cont [2/16] 0.0, 128
        %5060 = vxpose.xlu0.b32.cont [3/16] 0.0, 128
        %5061 = vxpose.xlu0.b32.cont [4/16] 0.0, 128
        %5062 = vxpose.xlu0.b32.cont [5/16] 0.0, 128
        %5063 = vxpose.xlu0.b32.cont [6/16] 0.0, 128
        %5064 = vxpose.xlu0.b32.cont [7/16] 0.0, 128
        %5065 = vxpose.xlu0.b32.cont [8/16] 0.0, 128
        %5066 = vxpose.xlu0.b32.cont [9/16] 0.0, 128
        %5067 = vxpose.xlu0.b32.cont [10/16] 0.0, 128
        %5068 = vxpose.xlu0.b32.cont [11/16] 0.0, 128
        %5069 = vxpose.xlu0.b32.cont [12/16] 0.0, 128
        %5070 = vxpose.xlu0.b32.cont [13/16] 0.0, 128
        %5071 = vxpose.xlu0.b32.cont [14/16] 0.0, 128
        %5072 = vxpose.xlu0.b32.cont [15/16] 0.0, 128
        %5073 = vxpose.xlu0.b32.end [16/16] 0.0, 128
        %v5074 = vpop.trf.xlu0
        %v5075 = vpop.trf.xlu0
        %v5076 = vpop.trf.xlu0
        %v5077 = vpop.trf.xlu0
        %v5078 = vpop.trf.xlu0
        %v5079 = vpop.trf.xlu0
        %v5080 = vpop.trf.xlu0
        %v5081 = vpop.trf.xlu0
        %v5082 = vpop.trf.xlu0
        %v5083 = vpop.trf.xlu0
        %v5084 = vpop.trf.xlu0
        %v5085 = vpop.trf.xlu0
        %v5086 = vpop.trf.xlu0
        %v5087 = vpop.trf.xlu0
        %v5088 = vpop.trf.xlu0
        %v5089 = vpop.trf.xlu0
        %5090 = vxpose.xlu0.b32.start [1/16] %v4671, 128
        %5091 = vxpose.xlu0.b32.cont [2/16] 0.0, 128
        %5092 = vxpose.xlu0.b32.cont [3/16] 0.0, 128
        %5093 = vxpose.xlu0.b32.cont [4/16] 0.0, 128
        %5094 = vxpose.xlu0.b32.cont [5/16] 0.0, 128
        %5095 = vxpose.xlu0.b32.cont [6/16] 0.0, 128
        %5096 = vxpose.xlu0.b32.cont [7/16] 0.0, 128
        %5097 = vxpose.xlu0.b32.cont [8/16] 0.0, 128
        %5098 = vxpose.xlu0.b32.cont [9/16] 0.0, 128
        %5099 = vxpose.xlu0.b32.cont [10/16] 0.0, 128
        %5100 = vxpose.xlu0.b32.cont [11/16] 0.0, 128
        %5101 = vxpose.xlu0.b32.cont [12/16] 0.0, 128
        %5102 = vxpose.xlu0.b32.cont [13/16] 0.0, 128
        %5103 = vxpose.xlu0.b32.cont [14/16] 0.0, 128
        %5104 = vxpose.xlu0.b32.cont [15/16] 0.0, 128
        %5105 = vxpose.xlu0.b32.end [16/16] 0.0, 128
        %v5106 = vpop.trf.xlu0
        %v5107 = vpop.trf.xlu0
        %v5108 = vpop.trf.xlu0
        %v5109 = vpop.trf.xlu0
        %v5110 = vpop.trf.xlu0
        %v5111 = vpop.trf.xlu0
        %v5112 = vpop.trf.xlu0
        %v5113 = vpop.trf.xlu0
        %v5114 = vpop.trf.xlu0
        %v5115 = vpop.trf.xlu0
        %v5116 = vpop.trf.xlu0
        %v5117 = vpop.trf.xlu0
        %v5118 = vpop.trf.xlu0
        %v5119 = vpop.trf.xlu0
        %v5120 = vpop.trf.xlu0
        %v5121 = vpop.trf.xlu0
        %5122 = vxpose.xlu0.b32.start [1/16] %v4672, 128
        %5123 = vxpose.xlu0.b32.cont [2/16] 0.0, 128
        %5124 = vxpose.xlu0.b32.cont [3/16] 0.0, 128
        %5125 = vxpose.xlu0.b32.cont [4/16] 0.0, 128
        %5126 = vxpose.xlu0.b32.cont [5/16] 0.0, 128
        %5127 = vxpose.xlu0.b32.cont [6/16] 0.0, 128
        %5128 = vxpose.xlu0.b32.cont [7/16] 0.0, 128
        %5129 = vxpose.xlu0.b32.cont [8/16] 0.0, 128
        %5130 = vxpose.xlu0.b32.cont [9/16] 0.0, 128
        %5131 = vxpose.xlu0.b32.cont [10/16] 0.0, 128
        %5132 = vxpose.xlu0.b32.cont [11/16] 0.0, 128
        %5133 = vxpose.xlu0.b32.cont [12/16] 0.0, 128
        %5134 = vxpose.xlu0.b32.cont [13/16] 0.0, 128
        %5135 = vxpose.xlu0.b32.cont [14/16] 0.0, 128
        %5136 = vxpose.xlu0.b32.cont [15/16] 0.0, 128
        %5137 = vxpose.xlu0.b32.end [16/16] 0.0, 128
        %v5138 = vpop.trf.xlu0
        %v5139 = vpop.trf.xlu0
        %v5140 = vpop.trf.xlu0
        %v5141 = vpop.trf.xlu0
        %v5142 = vpop.trf.xlu0
        %v5143 = vpop.trf.xlu0
        %v5144 = vpop.trf.xlu0
        %v5145 = vpop.trf.xlu0
        %v5146 = vpop.trf.xlu0
        %v5147 = vpop.trf.xlu0
        %v5148 = vpop.trf.xlu0
        %v5149 = vpop.trf.xlu0
        %v5150 = vpop.trf.xlu0
        %v5151 = vpop.trf.xlu0
        %v5152 = vpop.trf.xlu0
        %v5153 = vpop.trf.xlu0
        %5154 = vxpose.xlu0.b32.start [1/16] %v4673, 128
        %5155 = vxpose.xlu0.b32.cont [2/16] 0.0, 128
        %5156 = vxpose.xlu0.b32.cont [3/16] 0.0, 128
        %5157 = vxpose.xlu0.b32.cont [4/16] 0.0, 128
        %5158 = vxpose.xlu0.b32.cont [5/16] 0.0, 128
        %5159 = vxpose.xlu0.b32.cont [6/16] 0.0, 128
        %5160 = vxpose.xlu0.b32.cont [7/16] 0.0, 128
        %5161 = vxpose.xlu0.b32.cont [8/16] 0.0, 128
        %5162 = vxpose.xlu0.b32.cont [9/16] 0.0, 128
        %5163 = vxpose.xlu0.b32.cont [10/16] 0.0, 128
        %5164 = vxpose.xlu0.b32.cont [11/16] 0.0, 128
        %5165 = vxpose.xlu0.b32.cont [12/16] 0.0, 128
        %5166 = vxpose.xlu0.b32.cont [13/16] 0.0, 128
        %5167 = vxpose.xlu0.b32.cont [14/16] 0.0, 128
        %5168 = vxpose.xlu0.b32.cont [15/16] 0.0, 128
        %5169 = vxpose.xlu0.b32.end [16/16] 0.0, 128
        %v5170 = vpop.trf.xlu0
        %v5171 = vpop.trf.xlu0
        %v5172 = vpop.trf.xlu0
        %v5173 = vpop.trf.xlu0
        %v5174 = vpop.trf.xlu0
        %v5175 = vpop.trf.xlu0
        %v5176 = vpop.trf.xlu0
        %v5177 = vpop.trf.xlu0
        %v5178 = vpop.trf.xlu0
        %v5179 = vpop.trf.xlu0
        %v5180 = vpop.trf.xlu0
        %v5181 = vpop.trf.xlu0
        %v5182 = vpop.trf.xlu0
        %v5183 = vpop.trf.xlu0
        %v5184 = vpop.trf.xlu0
        %v5185 = vpop.trf.xlu0
        %v5186 = vcombine.low %v4690, %v4754
        %v5188 = vunpack.c.l.s4 1983009808
        %v5189 = vunpack.c.0.s8 %v5188
        %v5190 = vlaneseq
        %v5191 = vshrl.u32 %v5190, 7
        %v5192 = vsub.s32 %v5189, %v5191
        %v5193 = vrot.slane %v5186, %v5192
        %v5194 = vcombine.low %v4722, %v4786
        %v5196 = vunpack.c.l.s4 1983009808
        %v5197 = vunpack.c.0.s8 %v5196
        %v5198 = vlaneseq
        %v5199 = vshrl.u32 %v5198, 7
        %v5200 = vsub.s32 %v5197, %v5199
        %v5201 = vrot.slane %v5194, %v5200
        %v5202 = vcombine.low %v4818, %v4882
        %v5204 = vunpack.c.l.s4 1983009808
        %v5205 = vunpack.c.0.s8 %v5204
        %v5206 = vlaneseq
        %v5207 = vshrl.u32 %v5206, 7
        %v5208 = vsub.s32 %v5205, %v5207
        %v5209 = vrot.slane %v5202, %v5208
        %v5210 = vcombine.low %v4850, %v4914
        %v5212 = vunpack.c.l.s4 1983009808
        %v5213 = vunpack.c.0.s8 %v5212
        %v5214 = vlaneseq
        %v5215 = vshrl.u32 %v5214, 7
        %v5216 = vsub.s32 %v5213, %v5215
        %v5217 = vrot.slane %v5210, %v5216
        %v5218 = vcombine.low %v5193, %v5201
        %v5220 = vunpack.c.l.s4 1934713408
        %v5221 = vunpack.c.0.s8 %v5220
        %v5222 = vlaneseq
        %v5223 = vshrl.u32 %v5222, 7
        %v5224 = vsub.s32 %v5221, %v5223
        %v5225 = vrot.slane %v5218, %v5224
        %v5226 = vcombine.low %v5209, %v5217
        %v5228 = vunpack.c.l.s4 1934713408
        %v5229 = vunpack.c.0.s8 %v5228
        %v5230 = vlaneseq
        %v5231 = vshrl.u32 %v5230, 7
        %v5232 = vsub.s32 %v5229, %v5231
        %v5233 = vrot.slane %v5226, %v5232
        %v5234 = vcombine.low %v5225, %v5233
        %v5235 = vcombine.high %v5225, %v5233
        %v5236 = vcombine.low %v4946, %v5010
        %v5238 = vunpack.c.l.s4 1983009808
        %v5239 = vunpack.c.0.s8 %v5238
        %v5240 = vlaneseq
        %v5241 = vshrl.u32 %v5240, 7
        %v5242 = vsub.s32 %v5239, %v5241
        %v5243 = vrot.slane %v5236, %v5242
        %v5244 = vcombine.low %v4978, %v5042
        %v5246 = vunpack.c.l.s4 1983009808
        %v5247 = vunpack.c.0.s8 %v5246
        %v5248 = vlaneseq
        %v5249 = vshrl.u32 %v5248, 7
        %v5250 = vsub.s32 %v5247, %v5249
        %v5251 = vrot.slane %v5244, %v5250
        %v5252 = vcombine.low %v5074, %v5138
        %v5254 = vunpack.c.l.s4 1983009808
        %v5255 = vunpack.c.0.s8 %v5254
        %v5256 = vlaneseq
        %v5257 = vshrl.u32 %v5256, 7
        %v5258 = vsub.s32 %v5255, %v5257
        %v5259 = vrot.slane %v5252, %v5258
        %v5260 = vcombine.low %v5106, %v5170
        %v5262 = vunpack.c.l.s4 1983009808
        %v5263 = vunpack.c.0.s8 %v5262
        %v5264 = vlaneseq
        %v5265 = vshrl.u32 %v5264, 7
        %v5266 = vsub.s32 %v5263, %v5265
        %v5267 = vrot.slane %v5260, %v5266
        %v5268 = vcombine.low %v5243, %v5251
        %v5270 = vunpack.c.l.s4 1934713408
        %v5271 = vunpack.c.0.s8 %v5270
        %v5272 = vlaneseq
        %v5273 = vshrl.u32 %v5272, 7
        %v5274 = vsub.s32 %v5271, %v5273
        %v5275 = vrot.slane %v5268, %v5274
        %v5276 = vcombine.low %v5259, %v5267
        %v5278 = vunpack.c.l.s4 1934713408
        %v5279 = vunpack.c.0.s8 %v5278
        %v5280 = vlaneseq
        %v5281 = vshrl.u32 %v5280, 7
        %v5282 = vsub.s32 %v5279, %v5281
        %v5283 = vrot.slane %v5276, %v5282
        %v5284 = vcombine.low %v5275, %v5283
        %v5285 = vcombine.high %v5275, %v5283
        %v5287 = vsel %vm2433, %v4144, 0
        %5289 = vmatprep.subr.mxu0 0.0
        %5290 = vmatpush1.msra.mxu0 %v5234
        %5291 = vmatprep.subr.mxu0 0.0
        %5292 = vmatpush1.msra.mxu0 %v5284
        %5293 = vmatprep.subr.mxu0 0.0
        %5294 = vmatpush1.msra.mxu0 0.0
        %5295 = vmatprep.subr.mxu0 0.0
        %5296 = vmatpush1.msra.mxu0 0.0
        %5297 = vmatprep.subr.mxu0 0.0
        %5298 = vmatpush1.msra.mxu0 0.0
        %5299 = vmatprep.subr.mxu0 0.0
        %5300 = vmatpush1.msra.mxu0 0.0
        %5301 = vmatprep.subr.mxu0 0.0
        %5302 = vmatpush1.msra.mxu0 0.0
        %5303 = vmatprep.subr.mxu0 0.0
        %5304 = vmatpush1.msra.mxu0 0.0
        %5305 = vmatprep.subr.mxu0 0.0
        %5306 = vmatpush1.msra.mxu0 0.0
        %5307 = vmatprep.subr.mxu0 0.0
        %5308 = vmatpush1.msra.mxu0 0.0
        %5309 = vmatprep.subr.mxu0 0.0
        %5310 = vmatpush1.msra.mxu0 0.0
        %5311 = vmatprep.subr.mxu0 0.0
        %5312 = vmatpush1.msra.mxu0 0.0
        %5313 = vmatprep.subr.mxu0 0.0
        %5314 = vmatpush1.msra.mxu0 0.0
        %5315 = vmatprep.subr.mxu0 0.0
        %5316 = vmatpush1.msra.mxu0 0.0
        %5317 = vmatprep.subr.mxu0 0.0
        %5318 = vmatpush1.msra.mxu0 0.0
        %5319 = vmatprep.subr.mxu0 0.0
        %5320 = vmatpush1.msra.mxu0 0.0
        %5321 = vmatprep.subr.mxu0 0.0
        %5322 = vmatpush1.msra.mxu0 0.0
        %5323 = vmatprep.subr.mxu0 0.0
        %5324 = vmatpush1.msra.mxu0 0.0
        %5325 = vmatprep.subr.mxu0 0.0
        %5326 = vmatpush1.msra.mxu0 0.0
        %5327 = vmatprep.subr.mxu0 0.0
        %5328 = vmatpush1.msra.mxu0 0.0
        %5329 = vmatprep.subr.mxu0 0.0
        %5330 = vmatpush1.msra.mxu0 0.0
        %5331 = vmatprep.subr.mxu0 0.0
        %5332 = vmatpush1.msra.mxu0 0.0
        %5333 = vmatprep.subr.mxu0 0.0
        %5334 = vmatpush1.msra.mxu0 0.0
        %5335 = vmatprep.subr.mxu0 0.0
        %5336 = vmatpush1.msra.mxu0 0.0
        %5337 = vmatprep.subr.mxu0 0.0
        %5338 = vmatpush1.msra.mxu0 0.0
        %5339 = vmatprep.subr.mxu0 0.0
        %5340 = vmatpush1.msra.mxu0 0.0
        %5341 = vmatprep.subr.mxu0 0.0
        %5342 = vmatpush1.msra.mxu0 0.0
        %5343 = vmatprep.subr.mxu0 0.0
        %5344 = vmatpush1.msra.mxu0 0.0
        %5345 = vmatprep.subr.mxu0 0.0
        %5346 = vmatpush1.msra.mxu0 0.0
        %5347 = vmatprep.subr.mxu0 0.0
        %5348 = vmatpush1.msra.mxu0 0.0
        %5349 = vmatprep.subr.mxu0 0.0
        %5350 = vmatpush1.msra.mxu0 0.0
        %5351 = vmatprep.subr.mxu0 0.0
        %5352 = vmatpush1.msra.mxu0 0.0
        %5353 = vmatprep.mubr.f32.mxu0 0.0
        %5354 = vmatmul.mubr.f32.gmra.mrb[0].mxu0 %v5287
        %v5355 = vpop.f32.mrb[0].mxu0
        %v5356 = vadd.f32 %v1242, %v5355
        %v5357 = vpop.f32.mrb[0].mxu0
        %5358 = vdwg.mxu0
        %v5360 = vsel %vm2433, %v4145, 0
        %5362 = vmatprep.subr.mxu0 0.0
        %5363 = vmatpush1.msra.mxu0 %v5235
        %5364 = vmatprep.subr.mxu0 0.0
        %5365 = vmatpush1.msra.mxu0 %v5285
        %5366 = vmatprep.subr.mxu0 0.0
        %5367 = vmatpush1.msra.mxu0 0.0
        %5368 = vmatprep.subr.mxu0 0.0
        %5369 = vmatpush1.msra.mxu0 0.0
        %5370 = vmatprep.subr.mxu0 0.0
        %5371 = vmatpush1.msra.mxu0 0.0
        %5372 = vmatprep.subr.mxu0 0.0
        %5373 = vmatpush1.msra.mxu0 0.0
        %5374 = vmatprep.subr.mxu0 0.0
        %5375 = vmatpush1.msra.mxu0 0.0
        %5376 = vmatprep.subr.mxu0 0.0
        %5377 = vmatpush1.msra.mxu0 0.0
        %5378 = vmatprep.subr.mxu0 0.0
        %5379 = vmatpush1.msra.mxu0 0.0
        %5380 = vmatprep.subr.mxu0 0.0
        %5381 = vmatpush1.msra.mxu0 0.0
        %5382 = vmatprep.subr.mxu0 0.0
        %5383 = vmatpush1.msra.mxu0 0.0
        %5384 = vmatprep.subr.mxu0 0.0
        %5385 = vmatpush1.msra.mxu0 0.0
        %5386 = vmatprep.subr.mxu0 0.0
        %5387 = vmatpush1.msra.mxu0 0.0
        %5388 = vmatprep.subr.mxu0 0.0
        %5389 = vmatpush1.msra.mxu0 0.0
        %5390 = vmatprep.subr.mxu0 0.0
        %5391 = vmatpush1.msra.mxu0 0.0
        %5392 = vmatprep.subr.mxu0 0.0
        %5393 = vmatpush1.msra.mxu0 0.0
        %5394 = vmatprep.subr.mxu0 0.0
        %5395 = vmatpush1.msra.mxu0 0.0
        %5396 = vmatprep.subr.mxu0 0.0
        %5397 = vmatpush1.msra.mxu0 0.0
        %5398 = vmatprep.subr.mxu0 0.0
        %5399 = vmatpush1.msra.mxu0 0.0
        %5400 = vmatprep.subr.mxu0 0.0
        %5401 = vmatpush1.msra.mxu0 0.0
        %5402 = vmatprep.subr.mxu0 0.0
        %5403 = vmatpush1.msra.mxu0 0.0
        %5404 = vmatprep.subr.mxu0 0.0
        %5405 = vmatpush1.msra.mxu0 0.0
        %5406 = vmatprep.subr.mxu0 0.0
        %5407 = vmatpush1.msra.mxu0 0.0
        %5408 = vmatprep.subr.mxu0 0.0
        %5409 = vmatpush1.msra.mxu0 0.0
        %5410 = vmatprep.subr.mxu0 0.0
        %5411 = vmatpush1.msra.mxu0 0.0
        %5412 = vmatprep.subr.mxu0 0.0
        %5413 = vmatpush1.msra.mxu0 0.0
        %5414 = vmatprep.subr.mxu0 0.0
        %5415 = vmatpush1.msra.mxu0 0.0
        %5416 = vmatprep.subr.mxu0 0.0
        %5417 = vmatpush1.msra.mxu0 0.0
        %5418 = vmatprep.subr.mxu0 0.0
        %5419 = vmatpush1.msra.mxu0 0.0
        %5420 = vmatprep.subr.mxu0 0.0
        %5421 = vmatpush1.msra.mxu0 0.0
        %5422 = vmatprep.subr.mxu0 0.0
        %5423 = vmatpush1.msra.mxu0 0.0
        %5424 = vmatprep.subr.mxu0 0.0
        %5425 = vmatpush1.msra.mxu0 0.0
        %5426 = vmatprep.mubr.f32.mxu0 0.0
        %5427 = vmatmul.mubr.f32.gmra.mrb[0].mxu0 %v5360
        %v5428 = vpop.f32.mrb[0].mxu0
        %v5429 = vadd.f32 %v1242, %v5428
        %v5430 = vpop.f32.mrb[0].mxu0
        %5431 = vdwg.mxu0
        %v5432 = vsel %vm2580, %v5356, -inf
        %5433 = vmax.xlane.f32.xlu0 %v5432
        %v5434 = vpop.xlane.xlu0 %5433
        %v5435 = vsel %vm2580, %v5429, -inf
        %5436 = vmax.xlane.f32.xlu0 %v5435
        %v5437 = vpop.xlane.xlu0 %5436
        %v5438 = vsub.f32 %v5356, %v5434
        %v5439 = vsub.f32 %v5429, %v5437
        %v5440 = vmul.f32 %v5438, 1.442695
        %v5441 = vpow.pop %v5440
        %v5442 = vmul.f32 %v5439, 1.442695
        %v5443 = vpow.pop %v5442
        %v5444 = vsel %vm2580, %v5441, 0.0
        %5445 = vadd.xlane.f32.xlu0 %v5444
        %v5446 = vpop.xlane.xlu0 %5445
        %v5447 = vsel %vm2580, %v5443, 0.0
        %5448 = vadd.xlane.f32.xlu0 %v5447
        %v5449 = vpop.xlane.xlu0 %5448
        %v5450 = vrcp.pop %v5446
        %v5451 = vmul.f32 %v5441, %v5450
        %v5452 = vrcp.pop %v5449
        %v5453 = vmul.f32 %v5443, %v5452
        %5454 = vxpose.xlu0.b32.start [1/16] %v1214, 128
        %5455 = vxpose.xlu0.b32.cont [2/16] 0.0, 128
        %5456 = vxpose.xlu0.b32.cont [3/16] 0.0, 128
        %5457 = vxpose.xlu0.b32.cont [4/16] 0.0, 128
        %5458 = vxpose.xlu0.b32.cont [5/16] 0.0, 128
        %5459 = vxpose.xlu0.b32.cont [6/16] 0.0, 128
        %5460 = vxpose.xlu0.b32.cont [7/16] 0.0, 128
        %5461 = vxpose.xlu0.b32.cont [8/16] 0.0, 128
        %5462 = vxpose.xlu0.b32.cont [9/16] 0.0, 128
        %5463 = vxpose.xlu0.b32.cont [10/16] 0.0, 128
        %5464 = vxpose.xlu0.b32.cont [11/16] 0.0, 128
        %5465 = vxpose.xlu0.b32.cont [12/16] 0.0, 128
        %5466 = vxpose.xlu0.b32.cont [13/16] 0.0, 128
        %5467 = vxpose.xlu0.b32.cont [14/16] 0.0, 128
        %5468 = vxpose.xlu0.b32.cont [15/16] 0.0, 128
        %5469 = vxpose.xlu0.b32.end [16/16] 0.0, 128
        %v5470 = vpop.trf.xlu0
        %v5471 = vpop.trf.xlu0
        %v5472 = vpop.trf.xlu0
        %v5473 = vpop.trf.xlu0
        %v5474 = vpop.trf.xlu0
        %v5475 = vpop.trf.xlu0
        %v5476 = vpop.trf.xlu0
        %v5477 = vpop.trf.xlu0
        %v5478 = vpop.trf.xlu0
        %v5479 = vpop.trf.xlu0
        %v5480 = vpop.trf.xlu0
        %v5481 = vpop.trf.xlu0
        %v5482 = vpop.trf.xlu0
        %v5483 = vpop.trf.xlu0
        %v5484 = vpop.trf.xlu0
        %v5485 = vpop.trf.xlu0
        %5486 = vxpose.xlu0.b32.start [1/16] %v1238, 128
        %5487 = vxpose.xlu0.b32.cont [2/16] 0.0, 128
        %5488 = vxpose.xlu0.b32.cont [3/16] 0.0, 128
        %5489 = vxpose.xlu0.b32.cont [4/16] 0.0, 128
        %5490 = vxpose.xlu0.b32.cont [5/16] 0.0, 128
        %5491 = vxpose.xlu0.b32.cont [6/16] 0.0, 128
        %5492 = vxpose.xlu0.b32.cont [7/16] 0.0, 128
        %5493 = vxpose.xlu0.b32.cont [8/16] 0.0, 128
        %5494 = vxpose.xlu0.b32.cont [9/16] 0.0, 128
        %5495 = vxpose.xlu0.b32.cont [10/16] 0.0, 128
        %5496 = vxpose.xlu0.b32.cont [11/16] 0.0, 128
        %5497 = vxpose.xlu0.b32.cont [12/16] 0.0, 128
        %5498 = vxpose.xlu0.b32.cont [13/16] 0.0, 128
        %5499 = vxpose.xlu0.b32.cont [14/16] 0.0, 128
        %5500 = vxpose.xlu0.b32.cont [15/16] 0.0, 128
        %5501 = vxpose.xlu0.b32.end [16/16] 0.0, 128
        %v5502 = vpop.trf.xlu0
        %v5503 = vpop.trf.xlu0
        %v5504 = vpop.trf.xlu0
        %v5505 = vpop.trf.xlu0
        %v5506 = vpop.trf.xlu0
        %v5507 = vpop.trf.xlu0
        %v5508 = vpop.trf.xlu0
        %v5509 = vpop.trf.xlu0
        %v5510 = vpop.trf.xlu0
        %v5511 = vpop.trf.xlu0
        %v5512 = vpop.trf.xlu0
        %v5513 = vpop.trf.xlu0
        %v5514 = vpop.trf.xlu0
        %v5515 = vpop.trf.xlu0
        %v5516 = vpop.trf.xlu0
        %v5517 = vpop.trf.xlu0
        %5518 = vxpose.xlu0.b32.start [1/16] %v1221, 128
        %5519 = vxpose.xlu0.b32.cont [2/16] 0.0, 128
        %5520 = vxpose.xlu0.b32.cont [3/16] 0.0, 128
        %5521 = vxpose.xlu0.b32.cont [4/16] 0.0, 128
        %5522 = vxpose.xlu0.b32.cont [5/16] 0.0, 128
        %5523 = vxpose.xlu0.b32.cont [6/16] 0.0, 128
        %5524 = vxpose.xlu0.b32.cont [7/16] 0.0, 128
        %5525 = vxpose.xlu0.b32.cont [8/16] 0.0, 128
        %5526 = vxpose.xlu0.b32.cont [9/16] 0.0, 128
        %5527 = vxpose.xlu0.b32.cont [10/16] 0.0, 128
        %5528 = vxpose.xlu0.b32.cont [11/16] 0.0, 128
        %5529 = vxpose.xlu0.b32.cont [12/16] 0.0, 128
        %5530 = vxpose.xlu0.b32.cont [13/16] 0.0, 128
        %5531 = vxpose.xlu0.b32.cont [14/16] 0.0, 128
        %5532 = vxpose.xlu0.b32.cont [15/16] 0.0, 128
        %5533 = vxpose.xlu0.b32.end [16/16] 0.0, 128
        %v5534 = vpop.trf.xlu0
        %v5535 = vpop.trf.xlu0
        %v5536 = vpop.trf.xlu0
        %v5537 = vpop.trf.xlu0
        %v5538 = vpop.trf.xlu0
        %v5539 = vpop.trf.xlu0
        %v5540 = vpop.trf.xlu0
        %v5541 = vpop.trf.xlu0
        %v5542 = vpop.trf.xlu0
        %v5543 = vpop.trf.xlu0
        %v5544 = vpop.trf.xlu0
        %v5545 = vpop.trf.xlu0
        %v5546 = vpop.trf.xlu0
        %v5547 = vpop.trf.xlu0
        %v5548 = vpop.trf.xlu0
        %v5549 = vpop.trf.xlu0
        %5550 = vxpose.xlu0.b32.start [1/16] %v1239, 128
        %5551 = vxpose.xlu0.b32.cont [2/16] 0.0, 128
        %5552 = vxpose.xlu0.b32.cont [3/16] 0.0, 128
        %5553 = vxpose.xlu0.b32.cont [4/16] 0.0, 128
        %5554 = vxpose.xlu0.b32.cont [5/16] 0.0, 128
        %5555 = vxpose.xlu0.b32.cont [6/16] 0.0, 128
        %5556 = vxpose.xlu0.b32.cont [7/16] 0.0, 128
        %5557 = vxpose.xlu0.b32.cont [8/16] 0.0, 128
        %5558 = vxpose.xlu0.b32.cont [9/16] 0.0, 128
        %5559 = vxpose.xlu0.b32.cont [10/16] 0.0, 128
        %5560 = vxpose.xlu0.b32.cont [11/16] 0.0, 128
        %5561 = vxpose.xlu0.b32.cont [12/16] 0.0, 128
        %5562 = vxpose.xlu0.b32.cont [13/16] 0.0, 128
        %5563 = vxpose.xlu0.b32.cont [14/16] 0.0, 128
        %5564 = vxpose.xlu0.b32.cont [15/16] 0.0, 128
        %5565 = vxpose.xlu0.b32.end [16/16] 0.0, 128
        %v5566 = vpop.trf.xlu0
        %v5567 = vpop.trf.xlu0
        %v5568 = vpop.trf.xlu0
        %v5569 = vpop.trf.xlu0
        %v5570 = vpop.trf.xlu0
        %v5571 = vpop.trf.xlu0
        %v5572 = vpop.trf.xlu0
        %v5573 = vpop.trf.xlu0
        %v5574 = vpop.trf.xlu0
        %v5575 = vpop.trf.xlu0
        %v5576 = vpop.trf.xlu0
        %v5577 = vpop.trf.xlu0
        %v5578 = vpop.trf.xlu0
        %v5579 = vpop.trf.xlu0
        %v5580 = vpop.trf.xlu0
        %v5581 = vpop.trf.xlu0
        %5582 = vxpose.xlu0.b32.start [1/16] %v1230, 128
        %5583 = vxpose.xlu0.b32.cont [2/16] 0.0, 128
        %5584 = vxpose.xlu0.b32.cont [3/16] 0.0, 128
        %5585 = vxpose.xlu0.b32.cont [4/16] 0.0, 128
        %5586 = vxpose.xlu0.b32.cont [5/16] 0.0, 128
        %5587 = vxpose.xlu0.b32.cont [6/16] 0.0, 128
        %5588 = vxpose.xlu0.b32.cont [7/16] 0.0, 128
        %5589 = vxpose.xlu0.b32.cont [8/16] 0.0, 128
        %5590 = vxpose.xlu0.b32.cont [9/16] 0.0, 128
        %5591 = vxpose.xlu0.b32.cont [10/16] 0.0, 128
        %5592 = vxpose.xlu0.b32.cont [11/16] 0.0, 128
        %5593 = vxpose.xlu0.b32.cont [12/16] 0.0, 128
        %5594 = vxpose.xlu0.b32.cont [13/16] 0.0, 128
        %5595 = vxpose.xlu0.b32.cont [14/16] 0.0, 128
        %5596 = vxpose.xlu0.b32.cont [15/16] 0.0, 128
        %5597 = vxpose.xlu0.b32.end [16/16] 0.0, 128
        %v5598 = vpop.trf.xlu0
        %v5599 = vpop.trf.xlu0
        %v5600 = vpop.trf.xlu0
        %v5601 = vpop.trf.xlu0
        %v5602 = vpop.trf.xlu0
        %v5603 = vpop.trf.xlu0
        %v5604 = vpop.trf.xlu0
        %v5605 = vpop.trf.xlu0
        %v5606 = vpop.trf.xlu0
        %v5607 = vpop.trf.xlu0
        %v5608 = vpop.trf.xlu0
        %v5609 = vpop.trf.xlu0
        %v5610 = vpop.trf.xlu0
        %v5611 = vpop.trf.xlu0
        %v5612 = vpop.trf.xlu0
        %v5613 = vpop.trf.xlu0
        %5614 = vxpose.xlu0.b32.start [1/16] %v1240, 128
        %5615 = vxpose.xlu0.b32.cont [2/16] 0.0, 128
        %5616 = vxpose.xlu0.b32.cont [3/16] 0.0, 128
        %5617 = vxpose.xlu0.b32.cont [4/16] 0.0, 128
        %5618 = vxpose.xlu0.b32.cont [5/16] 0.0, 128
        %5619 = vxpose.xlu0.b32.cont [6/16] 0.0, 128
        %5620 = vxpose.xlu0.b32.cont [7/16] 0.0, 128
        %5621 = vxpose.xlu0.b32.cont [8/16] 0.0, 128
        %5622 = vxpose.xlu0.b32.cont [9/16] 0.0, 128
        %5623 = vxpose.xlu0.b32.cont [10/16] 0.0, 128
        %5624 = vxpose.xlu0.b32.cont [11/16] 0.0, 128
        %5625 = vxpose.xlu0.b32.cont [12/16] 0.0, 128
        %5626 = vxpose.xlu0.b32.cont [13/16] 0.0, 128
        %5627 = vxpose.xlu0.b32.cont [14/16] 0.0, 128
        %5628 = vxpose.xlu0.b32.cont [15/16] 0.0, 128
        %5629 = vxpose.xlu0.b32.end [16/16] 0.0, 128
        %v5630 = vpop.trf.xlu0
        %v5631 = vpop.trf.xlu0
        %v5632 = vpop.trf.xlu0
        %v5633 = vpop.trf.xlu0
        %v5634 = vpop.trf.xlu0
        %v5635 = vpop.trf.xlu0
        %v5636 = vpop.trf.xlu0
        %v5637 = vpop.trf.xlu0
        %v5638 = vpop.trf.xlu0
        %v5639 = vpop.trf.xlu0
        %v5640 = vpop.trf.xlu0
        %v5641 = vpop.trf.xlu0
        %v5642 = vpop.trf.xlu0
        %v5643 = vpop.trf.xlu0
        %v5644 = vpop.trf.xlu0
        %v5645 = vpop.trf.xlu0
        %5646 = vxpose.xlu0.b32.start [1/16] %v1237, 128
        %5647 = vxpose.xlu0.b32.cont [2/16] 0.0, 128
        %5648 = vxpose.xlu0.b32.cont [3/16] 0.0, 128
        %5649 = vxpose.xlu0.b32.cont [4/16] 0.0, 128
        %5650 = vxpose.xlu0.b32.cont [5/16] 0.0, 128
        %5651 = vxpose.xlu0.b32.cont [6/16] 0.0, 128
        %5652 = vxpose.xlu0.b32.cont [7/16] 0.0, 128
        %5653 = vxpose.xlu0.b32.cont [8/16] 0.0, 128
        %5654 = vxpose.xlu0.b32.cont [9/16] 0.0, 128
        %5655 = vxpose.xlu0.b32.cont [10/16] 0.0, 128
        %5656 = vxpose.xlu0.b32.cont [11/16] 0.0, 128
        %5657 = vxpose.xlu0.b32.cont [12/16] 0.0, 128
        %5658 = vxpose.xlu0.b32.cont [13/16] 0.0, 128
        %5659 = vxpose.xlu0.b32.cont [14/16] 0.0, 128
        %5660 = vxpose.xlu0.b32.cont [15/16] 0.0, 128
        %5661 = vxpose.xlu0.b32.end [16/16] 0.0, 128
        %v5662 = vpop.trf.xlu0
        %v5663 = vpop.trf.xlu0
        %v5664 = vpop.trf.xlu0
        %v5665 = vpop.trf.xlu0
        %v5666 = vpop.trf.xlu0
        %v5667 = vpop.trf.xlu0
        %v5668 = vpop.trf.xlu0
        %v5669 = vpop.trf.xlu0
        %v5670 = vpop.trf.xlu0
        %v5671 = vpop.trf.xlu0
        %v5672 = vpop.trf.xlu0
        %v5673 = vpop.trf.xlu0
        %v5674 = vpop.trf.xlu0
        %v5675 = vpop.trf.xlu0
        %v5676 = vpop.trf.xlu0
        %v5677 = vpop.trf.xlu0
        %5678 = vxpose.xlu0.b32.start [1/16] %v1241, 128
        %5679 = vxpose.xlu0.b32.cont [2/16] 0.0, 128
        %5680 = vxpose.xlu0.b32.cont [3/16] 0.0, 128
        %5681 = vxpose.xlu0.b32.cont [4/16] 0.0, 128
        %5682 = vxpose.xlu0.b32.cont [5/16] 0.0, 128
        %5683 = vxpose.xlu0.b32.cont [6/16] 0.0, 128
        %5684 = vxpose.xlu0.b32.cont [7/16] 0.0, 128
        %5685 = vxpose.xlu0.b32.cont [8/16] 0.0, 128
        %5686 = vxpose.xlu0.b32.cont [9/16] 0.0, 128
        %5687 = vxpose.xlu0.b32.cont [10/16] 0.0, 128
        %5688 = vxpose.xlu0.b32.cont [11/16] 0.0, 128
        %5689 = vxpose.xlu0.b32.cont [12/16] 0.0, 128
        %5690 = vxpose.xlu0.b32.cont [13/16] 0.0, 128
        %5691 = vxpose.xlu0.b32.cont [14/16] 0.0, 128
        %5692 = vxpose.xlu0.b32.cont [15/16] 0.0, 128
        %5693 = vxpose.xlu0.b32.end [16/16] 0.0, 128
        %v5694 = vpop.trf.xlu0
        %v5695 = vpop.trf.xlu0
        %v5696 = vpop.trf.xlu0
        %v5697 = vpop.trf.xlu0
        %v5698 = vpop.trf.xlu0
        %v5699 = vpop.trf.xlu0
        %v5700 = vpop.trf.xlu0
        %v5701 = vpop.trf.xlu0
        %v5702 = vpop.trf.xlu0
        %v5703 = vpop.trf.xlu0
        %v5704 = vpop.trf.xlu0
        %v5705 = vpop.trf.xlu0
        %v5706 = vpop.trf.xlu0
        %v5707 = vpop.trf.xlu0
        %v5708 = vpop.trf.xlu0
        %v5709 = vpop.trf.xlu0
        %v5710 = vcombine.low %v5470, %v5534
        %v5711 = vcombine.high %v5470, %v5534
        %v5713 = vunpack.c.l.s4 1983009808
        %v5714 = vunpack.c.0.s8 %v5713
        %v5715 = vlaneseq
        %v5716 = vshrl.u32 %v5715, 7
        %v5717 = vsub.s32 %v5714, %v5716
        %v5718 = vrot.slane %v5710, %v5717
        %v5720 = vunpack.c.l.s4 1983009808
        %v5721 = vunpack.c.0.s8 %v5720
        %v5722 = vlaneseq
        %v5723 = vshrl.u32 %v5722, 7
        %v5724 = vsub.s32 %v5721, %v5723
        %v5725 = vrot.slane %v5711, %v5724
        %v5726 = vcombine.low %v5502, %v5566
        %v5727 = vcombine.high %v5502, %v5566
        %v5729 = vunpack.c.l.s4 1983009808
        %v5730 = vunpack.c.0.s8 %v5729
        %v5731 = vlaneseq
        %v5732 = vshrl.u32 %v5731, 7
        %v5733 = vsub.s32 %v5730, %v5732
        %v5734 = vrot.slane %v5726, %v5733
        %v5736 = vunpack.c.l.s4 1983009808
        %v5737 = vunpack.c.0.s8 %v5736
        %v5738 = vlaneseq
        %v5739 = vshrl.u32 %v5738, 7
        %v5740 = vsub.s32 %v5737, %v5739
        %v5741 = vrot.slane %v5727, %v5740
        %v5742 = vcombine.low %v5598, %v5662
        %v5743 = vcombine.high %v5598, %v5662
        %v5745 = vunpack.c.l.s4 1983009808
        %v5746 = vunpack.c.0.s8 %v5745
        %v5747 = vlaneseq
        %v5748 = vshrl.u32 %v5747, 7
        %v5749 = vsub.s32 %v5746, %v5748
        %v5750 = vrot.slane %v5742, %v5749
        %v5752 = vunpack.c.l.s4 1983009808
        %v5753 = vunpack.c.0.s8 %v5752
        %v5754 = vlaneseq
        %v5755 = vshrl.u32 %v5754, 7
        %v5756 = vsub.s32 %v5753, %v5755
        %v5757 = vrot.slane %v5743, %v5756
        %v5758 = vcombine.low %v5630, %v5694
        %v5759 = vcombine.high %v5630, %v5694
        %v5761 = vunpack.c.l.s4 1983009808
        %v5762 = vunpack.c.0.s8 %v5761
        %v5763 = vlaneseq
        %v5764 = vshrl.u32 %v5763, 7
        %v5765 = vsub.s32 %v5762, %v5764
        %v5766 = vrot.slane %v5758, %v5765
        %v5768 = vunpack.c.l.s4 1983009808
        %v5769 = vunpack.c.0.s8 %v5768
        %v5770 = vlaneseq
        %v5771 = vshrl.u32 %v5770, 7
        %v5772 = vsub.s32 %v5769, %v5771
        %v5773 = vrot.slane %v5759, %v5772
        %v5774 = vcombine.low %v5718, %v5734
        %v5775 = vcombine.high %v5718, %v5734
        %v5777 = vunpack.c.l.s4 1934713408
        %v5778 = vunpack.c.0.s8 %v5777
        %v5779 = vlaneseq
        %v5780 = vshrl.u32 %v5779, 7
        %v5781 = vsub.s32 %v5778, %v5780
        %v5782 = vrot.slane %v5774, %v5781
        %v5784 = vunpack.c.l.s4 1934713408
        %v5785 = vunpack.c.0.s8 %v5784
        %v5786 = vlaneseq
        %v5787 = vshrl.u32 %v5786, 7
        %v5788 = vsub.s32 %v5785, %v5787
        %v5789 = vrot.slane %v5775, %v5788
        %v5790 = vcombine.low %v5725, %v5741
        %v5791 = vcombine.high %v5725, %v5741
        %v5793 = vunpack.c.l.s4 1934713408
        %v5794 = vunpack.c.0.s8 %v5793
        %v5795 = vlaneseq
        %v5796 = vshrl.u32 %v5795, 7
        %v5797 = vsub.s32 %v5794, %v5796
        %v5798 = vrot.slane %v5790, %v5797
        %v5800 = vunpack.c.l.s4 1934713408
        %v5801 = vunpack.c.0.s8 %v5800
        %v5802 = vlaneseq
        %v5803 = vshrl.u32 %v5802, 7
        %v5804 = vsub.s32 %v5801, %v5803
        %v5805 = vrot.slane %v5791, %v5804
        %v5806 = vcombine.low %v5750, %v5766
        %v5807 = vcombine.high %v5750, %v5766
        %v5809 = vunpack.c.l.s4 1934713408
        %v5810 = vunpack.c.0.s8 %v5809
        %v5811 = vlaneseq
        %v5812 = vshrl.u32 %v5811, 7
        %v5813 = vsub.s32 %v5810, %v5812
        %v5814 = vrot.slane %v5806, %v5813
        %v5816 = vunpack.c.l.s4 1934713408
        %v5817 = vunpack.c.0.s8 %v5816
        %v5818 = vlaneseq
        %v5819 = vshrl.u32 %v5818, 7
        %v5820 = vsub.s32 %v5817, %v5819
        %v5821 = vrot.slane %v5807, %v5820
        %v5822 = vcombine.low %v5757, %v5773
        %v5823 = vcombine.high %v5757, %v5773
        %v5825 = vunpack.c.l.s4 1934713408
        %v5826 = vunpack.c.0.s8 %v5825
        %v5827 = vlaneseq
        %v5828 = vshrl.u32 %v5827, 7
        %v5829 = vsub.s32 %v5826, %v5828
        %v5830 = vrot.slane %v5822, %v5829
        %v5832 = vunpack.c.l.s4 1934713408
        %v5833 = vunpack.c.0.s8 %v5832
        %v5834 = vlaneseq
        %v5835 = vshrl.u32 %v5834, 7
        %v5836 = vsub.s32 %v5833, %v5835
        %v5837 = vrot.slane %v5823, %v5836
        %v5838 = vcombine.low %v5782, %v5814
        %v5839 = vcombine.high %v5782, %v5814
        %v5840 = vcombine.low %v5789, %v5821
        %v5841 = vcombine.high %v5789, %v5821
        %v5842 = vcombine.low %v5798, %v5830
        %v5843 = vcombine.high %v5798, %v5830
        %v5844 = vcombine.low %v5805, %v5837
        %v5845 = vcombine.high %v5805, %v5837
        %v5846 = vcombine.low %v5471, %v5535
        %v5847 = vcombine.high %v5471, %v5535
        %v5849 = vunpack.c.l.s4 1983009808
        %v5850 = vunpack.c.0.s8 %v5849
        %v5851 = vlaneseq
        %v5852 = vshrl.u32 %v5851, 7
        %v5853 = vsub.s32 %v5850, %v5852
        %v5854 = vrot.slane %v5846, %v5853
        %v5856 = vunpack.c.l.s4 1983009808
        %v5857 = vunpack.c.0.s8 %v5856
        %v5858 = vlaneseq
        %v5859 = vshrl.u32 %v5858, 7
        %v5860 = vsub.s32 %v5857, %v5859
        %v5861 = vrot.slane %v5847, %v5860
        %v5862 = vcombine.low %v5503, %v5567
        %v5863 = vcombine.high %v5503, %v5567
        %v5865 = vunpack.c.l.s4 1983009808
        %v5866 = vunpack.c.0.s8 %v5865
        %v5867 = vlaneseq
        %v5868 = vshrl.u32 %v5867, 7
        %v5869 = vsub.s32 %v5866, %v5868
        %v5870 = vrot.slane %v5862, %v5869
        %v5872 = vunpack.c.l.s4 1983009808
        %v5873 = vunpack.c.0.s8 %v5872
        %v5874 = vlaneseq
        %v5875 = vshrl.u32 %v5874, 7
        %v5876 = vsub.s32 %v5873, %v5875
        %v5877 = vrot.slane %v5863, %v5876
        %v5878 = vcombine.low %v5599, %v5663
        %v5879 = vcombine.high %v5599, %v5663
        %v5881 = vunpack.c.l.s4 1983009808
        %v5882 = vunpack.c.0.s8 %v5881
        %v5883 = vlaneseq
        %v5884 = vshrl.u32 %v5883, 7
        %v5885 = vsub.s32 %v5882, %v5884
        %v5886 = vrot.slane %v5878, %v5885
        %v5888 = vunpack.c.l.s4 1983009808
        %v5889 = vunpack.c.0.s8 %v5888
        %v5890 = vlaneseq
        %v5891 = vshrl.u32 %v5890, 7
        %v5892 = vsub.s32 %v5889, %v5891
        %v5893 = vrot.slane %v5879, %v5892
        %v5894 = vcombine.low %v5631, %v5695
        %v5895 = vcombine.high %v5631, %v5695
        %v5897 = vunpack.c.l.s4 1983009808
        %v5898 = vunpack.c.0.s8 %v5897
        %v5899 = vlaneseq
        %v5900 = vshrl.u32 %v5899, 7
        %v5901 = vsub.s32 %v5898, %v5900
        %v5902 = vrot.slane %v5894, %v5901
        %v5904 = vunpack.c.l.s4 1983009808
        %v5905 = vunpack.c.0.s8 %v5904
        %v5906 = vlaneseq
        %v5907 = vshrl.u32 %v5906, 7
        %v5908 = vsub.s32 %v5905, %v5907
        %v5909 = vrot.slane %v5895, %v5908
        %v5910 = vcombine.low %v5854, %v5870
        %v5911 = vcombine.high %v5854, %v5870
        %v5913 = vunpack.c.l.s4 1934713408
        %v5914 = vunpack.c.0.s8 %v5913
        %v5915 = vlaneseq
        %v5916 = vshrl.u32 %v5915, 7
        %v5917 = vsub.s32 %v5914, %v5916
        %v5918 = vrot.slane %v5910, %v5917
        %v5920 = vunpack.c.l.s4 1934713408
        %v5921 = vunpack.c.0.s8 %v5920
        %v5922 = vlaneseq
        %v5923 = vshrl.u32 %v5922, 7
        %v5924 = vsub.s32 %v5921, %v5923
        %v5925 = vrot.slane %v5911, %v5924
        %v5926 = vcombine.low %v5861, %v5877
        %v5927 = vcombine.high %v5861, %v5877
        %v5929 = vunpack.c.l.s4 1934713408
        %v5930 = vunpack.c.0.s8 %v5929
        %v5931 = vlaneseq
        %v5932 = vshrl.u32 %v5931, 7
        %v5933 = vsub.s32 %v5930, %v5932
        %v5934 = vrot.slane %v5926, %v5933
        %v5936 = vunpack.c.l.s4 1934713408
        %v5937 = vunpack.c.0.s8 %v5936
        %v5938 = vlaneseq
        %v5939 = vshrl.u32 %v5938, 7
        %v5940 = vsub.s32 %v5937, %v5939
        %v5941 = vrot.slane %v5927, %v5940
        %v5942 = vcombine.low %v5886, %v5902
        %v5943 = vcombine.high %v5886, %v5902
        %v5945 = vunpack.c.l.s4 1934713408
        %v5946 = vunpack.c.0.s8 %v5945
        %v5947 = vlaneseq
        %v5948 = vshrl.u32 %v5947, 7
        %v5949 = vsub.s32 %v5946, %v5948
        %v5950 = vrot.slane %v5942, %v5949
        %v5952 = vunpack.c.l.s4 1934713408
        %v5953 = vunpack.c.0.s8 %v5952
        %v5954 = vlaneseq
        %v5955 = vshrl.u32 %v5954, 7
        %v5956 = vsub.s32 %v5953, %v5955
        %v5957 = vrot.slane %v5943, %v5956
        %v5958 = vcombine.low %v5893, %v5909
        %v5959 = vcombine.high %v5893, %v5909
        %v5961 = vunpack.c.l.s4 1934713408
        %v5962 = vunpack.c.0.s8 %v5961
        %v5963 = vlaneseq
        %v5964 = vshrl.u32 %v5963, 7
        %v5965 = vsub.s32 %v5962, %v5964
        %v5966 = vrot.slane %v5958, %v5965
        %v5968 = vunpack.c.l.s4 1934713408
        %v5969 = vunpack.c.0.s8 %v5968
        %v5970 = vlaneseq
        %v5971 = vshrl.u32 %v5970, 7
        %v5972 = vsub.s32 %v5969, %v5971
        %v5973 = vrot.slane %v5959, %v5972
        %v5974 = vcombine.low %v5918, %v5950
        %v5975 = vcombine.high %v5918, %v5950
        %v5976 = vcombine.low %v5925, %v5957
        %v5977 = vcombine.high %v5925, %v5957
        %v5978 = vcombine.low %v5934, %v5966
        %v5979 = vcombine.high %v5934, %v5966
        %v5980 = vcombine.low %v5941, %v5973
        %v5981 = vcombine.high %v5941, %v5973
        %5982 = vxpose.xlu0.b32.start [1/16] %v5838, 128
        %5983 = vxpose.xlu0.b32.cont [2/16] 0.0, 128
        %5984 = vxpose.xlu0.b32.cont [3/16] 0.0, 128
        %5985 = vxpose.xlu0.b32.cont [4/16] 0.0, 128
        %5986 = vxpose.xlu0.b32.cont [5/16] 0.0, 128
        %5987 = vxpose.xlu0.b32.cont [6/16] 0.0, 128
        %5988 = vxpose.xlu0.b32.cont [7/16] 0.0, 128
        %5989 = vxpose.xlu0.b32.cont [8/16] 0.0, 128
        %5990 = vxpose.xlu0.b32.cont [9/16] 0.0, 128
        %5991 = vxpose.xlu0.b32.cont [10/16] 0.0, 128
        %5992 = vxpose.xlu0.b32.cont [11/16] 0.0, 128
        %5993 = vxpose.xlu0.b32.cont [12/16] 0.0, 128
        %5994 = vxpose.xlu0.b32.cont [13/16] 0.0, 128
        %5995 = vxpose.xlu0.b32.cont [14/16] 0.0, 128
        %5996 = vxpose.xlu0.b32.cont [15/16] 0.0, 128
        %5997 = vxpose.xlu0.b32.end [16/16] 0.0, 128
        %v5998 = vpop.trf.xlu0
        %v5999 = vpop.trf.xlu0
        %v6000 = vpop.trf.xlu0
        %v6001 = vpop.trf.xlu0
        %v6002 = vpop.trf.xlu0
        %v6003 = vpop.trf.xlu0
        %v6004 = vpop.trf.xlu0
        %v6005 = vpop.trf.xlu0
        %v6006 = vpop.trf.xlu0
        %v6007 = vpop.trf.xlu0
        %v6008 = vpop.trf.xlu0
        %v6009 = vpop.trf.xlu0
        %v6010 = vpop.trf.xlu0
        %v6011 = vpop.trf.xlu0
        %v6012 = vpop.trf.xlu0
        %v6013 = vpop.trf.xlu0
        %6014 = vxpose.xlu0.b32.start [1/16] %v5839, 128
        %6015 = vxpose.xlu0.b32.cont [2/16] 0.0, 128
        %6016 = vxpose.xlu0.b32.cont [3/16] 0.0, 128
        %6017 = vxpose.xlu0.b32.cont [4/16] 0.0, 128
        %6018 = vxpose.xlu0.b32.cont [5/16] 0.0, 128
        %6019 = vxpose.xlu0.b32.cont [6/16] 0.0, 128
        %6020 = vxpose.xlu0.b32.cont [7/16] 0.0, 128
        %6021 = vxpose.xlu0.b32.cont [8/16] 0.0, 128
        %6022 = vxpose.xlu0.b32.cont [9/16] 0.0, 128
        %6023 = vxpose.xlu0.b32.cont [10/16] 0.0, 128
        %6024 = vxpose.xlu0.b32.cont [11/16] 0.0, 128
        %6025 = vxpose.xlu0.b32.cont [12/16] 0.0, 128
        %6026 = vxpose.xlu0.b32.cont [13/16] 0.0, 128
        %6027 = vxpose.xlu0.b32.cont [14/16] 0.0, 128
        %6028 = vxpose.xlu0.b32.cont [15/16] 0.0, 128
        %6029 = vxpose.xlu0.b32.end [16/16] 0.0, 128
        %v6030 = vpop.trf.xlu0
        %v6031 = vpop.trf.xlu0
        %v6032 = vpop.trf.xlu0
        %v6033 = vpop.trf.xlu0
        %v6034 = vpop.trf.xlu0
        %v6035 = vpop.trf.xlu0
        %v6036 = vpop.trf.xlu0
        %v6037 = vpop.trf.xlu0
        %v6038 = vpop.trf.xlu0
        %v6039 = vpop.trf.xlu0
        %v6040 = vpop.trf.xlu0
        %v6041 = vpop.trf.xlu0
        %v6042 = vpop.trf.xlu0
        %v6043 = vpop.trf.xlu0
        %v6044 = vpop.trf.xlu0
        %v6045 = vpop.trf.xlu0
        %6046 = vxpose.xlu0.b32.start [1/16] %v5840, 128
        %6047 = vxpose.xlu0.b32.cont [2/16] 0.0, 128
        %6048 = vxpose.xlu0.b32.cont [3/16] 0.0, 128
        %6049 = vxpose.xlu0.b32.cont [4/16] 0.0, 128
        %6050 = vxpose.xlu0.b32.cont [5/16] 0.0, 128
        %6051 = vxpose.xlu0.b32.cont [6/16] 0.0, 128
        %6052 = vxpose.xlu0.b32.cont [7/16] 0.0, 128
        %6053 = vxpose.xlu0.b32.cont [8/16] 0.0, 128
        %6054 = vxpose.xlu0.b32.cont [9/16] 0.0, 128
        %6055 = vxpose.xlu0.b32.cont [10/16] 0.0, 128
        %6056 = vxpose.xlu0.b32.cont [11/16] 0.0, 128
        %6057 = vxpose.xlu0.b32.cont [12/16] 0.0, 128
        %6058 = vxpose.xlu0.b32.cont [13/16] 0.0, 128
        %6059 = vxpose.xlu0.b32.cont [14/16] 0.0, 128
        %6060 = vxpose.xlu0.b32.cont [15/16] 0.0, 128
        %6061 = vxpose.xlu0.b32.end [16/16] 0.0, 128
        %v6062 = vpop.trf.xlu0
        %v6063 = vpop.trf.xlu0
        %v6064 = vpop.trf.xlu0
        %v6065 = vpop.trf.xlu0
        %v6066 = vpop.trf.xlu0
        %v6067 = vpop.trf.xlu0
        %v6068 = vpop.trf.xlu0
        %v6069 = vpop.trf.xlu0
        %v6070 = vpop.trf.xlu0
        %v6071 = vpop.trf.xlu0
        %v6072 = vpop.trf.xlu0
        %v6073 = vpop.trf.xlu0
        %v6074 = vpop.trf.xlu0
        %v6075 = vpop.trf.xlu0
        %v6076 = vpop.trf.xlu0
        %v6077 = vpop.trf.xlu0
        %6078 = vxpose.xlu0.b32.start [1/16] %v5841, 128
        %6079 = vxpose.xlu0.b32.cont [2/16] 0.0, 128
        %6080 = vxpose.xlu0.b32.cont [3/16] 0.0, 128
        %6081 = vxpose.xlu0.b32.cont [4/16] 0.0, 128
        %6082 = vxpose.xlu0.b32.cont [5/16] 0.0, 128
        %6083 = vxpose.xlu0.b32.cont [6/16] 0.0, 128
        %6084 = vxpose.xlu0.b32.cont [7/16] 0.0, 128
        %6085 = vxpose.xlu0.b32.cont [8/16] 0.0, 128
        %6086 = vxpose.xlu0.b32.cont [9/16] 0.0, 128
        %6087 = vxpose.xlu0.b32.cont [10/16] 0.0, 128
        %6088 = vxpose.xlu0.b32.cont [11/16] 0.0, 128
        %6089 = vxpose.xlu0.b32.cont [12/16] 0.0, 128
        %6090 = vxpose.xlu0.b32.cont [13/16] 0.0, 128
        %6091 = vxpose.xlu0.b32.cont [14/16] 0.0, 128
        %6092 = vxpose.xlu0.b32.cont [15/16] 0.0, 128
        %6093 = vxpose.xlu0.b32.end [16/16] 0.0, 128
        %v6094 = vpop.trf.xlu0
        %v6095 = vpop.trf.xlu0
        %v6096 = vpop.trf.xlu0
        %v6097 = vpop.trf.xlu0
        %v6098 = vpop.trf.xlu0
        %v6099 = vpop.trf.xlu0
        %v6100 = vpop.trf.xlu0
        %v6101 = vpop.trf.xlu0
        %v6102 = vpop.trf.xlu0
        %v6103 = vpop.trf.xlu0
        %v6104 = vpop.trf.xlu0
        %v6105 = vpop.trf.xlu0
        %v6106 = vpop.trf.xlu0
        %v6107 = vpop.trf.xlu0
        %v6108 = vpop.trf.xlu0
        %v6109 = vpop.trf.xlu0
        %6110 = vxpose.xlu0.b32.start [1/16] %v5842, 128
        %6111 = vxpose.xlu0.b32.cont [2/16] 0.0, 128
        %6112 = vxpose.xlu0.b32.cont [3/16] 0.0, 128
        %6113 = vxpose.xlu0.b32.cont [4/16] 0.0, 128
        %6114 = vxpose.xlu0.b32.cont [5/16] 0.0, 128
        %6115 = vxpose.xlu0.b32.cont [6/16] 0.0, 128
        %6116 = vxpose.xlu0.b32.cont [7/16] 0.0, 128
        %6117 = vxpose.xlu0.b32.cont [8/16] 0.0, 128
        %6118 = vxpose.xlu0.b32.cont [9/16] 0.0, 128
        %6119 = vxpose.xlu0.b32.cont [10/16] 0.0, 128
        %6120 = vxpose.xlu0.b32.cont [11/16] 0.0, 128
        %6121 = vxpose.xlu0.b32.cont [12/16] 0.0, 128
        %6122 = vxpose.xlu0.b32.cont [13/16] 0.0, 128
        %6123 = vxpose.xlu0.b32.cont [14/16] 0.0, 128
        %6124 = vxpose.xlu0.b32.cont [15/16] 0.0, 128
        %6125 = vxpose.xlu0.b32.end [16/16] 0.0, 128
        %v6126 = vpop.trf.xlu0
        %v6127 = vpop.trf.xlu0
        %v6128 = vpop.trf.xlu0
        %v6129 = vpop.trf.xlu0
        %v6130 = vpop.trf.xlu0
        %v6131 = vpop.trf.xlu0
        %v6132 = vpop.trf.xlu0
        %v6133 = vpop.trf.xlu0
        %v6134 = vpop.trf.xlu0
        %v6135 = vpop.trf.xlu0
        %v6136 = vpop.trf.xlu0
        %v6137 = vpop.trf.xlu0
        %v6138 = vpop.trf.xlu0
        %v6139 = vpop.trf.xlu0
        %v6140 = vpop.trf.xlu0
        %v6141 = vpop.trf.xlu0
        %6142 = vxpose.xlu0.b32.start [1/16] %v5843, 128
        %6143 = vxpose.xlu0.b32.cont [2/16] 0.0, 128
        %6144 = vxpose.xlu0.b32.cont [3/16] 0.0, 128
        %6145 = vxpose.xlu0.b32.cont [4/16] 0.0, 128
        %6146 = vxpose.xlu0.b32.cont [5/16] 0.0, 128
        %6147 = vxpose.xlu0.b32.cont [6/16] 0.0, 128
        %6148 = vxpose.xlu0.b32.cont [7/16] 0.0, 128
        %6149 = vxpose.xlu0.b32.cont [8/16] 0.0, 128
        %6150 = vxpose.xlu0.b32.cont [9/16] 0.0, 128
        %6151 = vxpose.xlu0.b32.cont [10/16] 0.0, 128
        %6152 = vxpose.xlu0.b32.cont [11/16] 0.0, 128
        %6153 = vxpose.xlu0.b32.cont [12/16] 0.0, 128
        %6154 = vxpose.xlu0.b32.cont [13/16] 0.0, 128
        %6155 = vxpose.xlu0.b32.cont [14/16] 0.0, 128
        %6156 = vxpose.xlu0.b32.cont [15/16] 0.0, 128
        %6157 = vxpose.xlu0.b32.end [16/16] 0.0, 128
        %v6158 = vpop.trf.xlu0
        %v6159 = vpop.trf.xlu0
        %v6160 = vpop.trf.xlu0
        %v6161 = vpop.trf.xlu0
        %v6162 = vpop.trf.xlu0
        %v6163 = vpop.trf.xlu0
        %v6164 = vpop.trf.xlu0
        %v6165 = vpop.trf.xlu0
        %v6166 = vpop.trf.xlu0
        %v6167 = vpop.trf.xlu0
        %v6168 = vpop.trf.xlu0
        %v6169 = vpop.trf.xlu0
        %v6170 = vpop.trf.xlu0
        %v6171 = vpop.trf.xlu0
        %v6172 = vpop.trf.xlu0
        %v6173 = vpop.trf.xlu0
        %6174 = vxpose.xlu0.b32.start [1/16] %v5844, 128
        %6175 = vxpose.xlu0.b32.cont [2/16] 0.0, 128
        %6176 = vxpose.xlu0.b32.cont [3/16] 0.0, 128
        %6177 = vxpose.xlu0.b32.cont [4/16] 0.0, 128
        %6178 = vxpose.xlu0.b32.cont [5/16] 0.0, 128
        %6179 = vxpose.xlu0.b32.cont [6/16] 0.0, 128
        %6180 = vxpose.xlu0.b32.cont [7/16] 0.0, 128
        %6181 = vxpose.xlu0.b32.cont [8/16] 0.0, 128
        %6182 = vxpose.xlu0.b32.cont [9/16] 0.0, 128
        %6183 = vxpose.xlu0.b32.cont [10/16] 0.0, 128
        %6184 = vxpose.xlu0.b32.cont [11/16] 0.0, 128
        %6185 = vxpose.xlu0.b32.cont [12/16] 0.0, 128
        %6186 = vxpose.xlu0.b32.cont [13/16] 0.0, 128
        %6187 = vxpose.xlu0.b32.cont [14/16] 0.0, 128
        %6188 = vxpose.xlu0.b32.cont [15/16] 0.0, 128
        %6189 = vxpose.xlu0.b32.end [16/16] 0.0, 128
        %v6190 = vpop.trf.xlu0
        %v6191 = vpop.trf.xlu0
        %v6192 = vpop.trf.xlu0
        %v6193 = vpop.trf.xlu0
        %v6194 = vpop.trf.xlu0
        %v6195 = vpop.trf.xlu0
        %v6196 = vpop.trf.xlu0
        %v6197 = vpop.trf.xlu0
        %v6198 = vpop.trf.xlu0
        %v6199 = vpop.trf.xlu0
        %v6200 = vpop.trf.xlu0
        %v6201 = vpop.trf.xlu0
        %v6202 = vpop.trf.xlu0
        %v6203 = vpop.trf.xlu0
        %v6204 = vpop.trf.xlu0
        %v6205 = vpop.trf.xlu0
        %6206 = vxpose.xlu0.b32.start [1/16] %v5845, 128
        %6207 = vxpose.xlu0.b32.cont [2/16] 0.0, 128
        %6208 = vxpose.xlu0.b32.cont [3/16] 0.0, 128
        %6209 = vxpose.xlu0.b32.cont [4/16] 0.0, 128
        %6210 = vxpose.xlu0.b32.cont [5/16] 0.0, 128
        %6211 = vxpose.xlu0.b32.cont [6/16] 0.0, 128
        %6212 = vxpose.xlu0.b32.cont [7/16] 0.0, 128
        %6213 = vxpose.xlu0.b32.cont [8/16] 0.0, 128
        %6214 = vxpose.xlu0.b32.cont [9/16] 0.0, 128
        %6215 = vxpose.xlu0.b32.cont [10/16] 0.0, 128
        %6216 = vxpose.xlu0.b32.cont [11/16] 0.0, 128
        %6217 = vxpose.xlu0.b32.cont [12/16] 0.0, 128
        %6218 = vxpose.xlu0.b32.cont [13/16] 0.0, 128
        %6219 = vxpose.xlu0.b32.cont [14/16] 0.0, 128
        %6220 = vxpose.xlu0.b32.cont [15/16] 0.0, 128
        %6221 = vxpose.xlu0.b32.end [16/16] 0.0, 128
        %v6222 = vpop.trf.xlu0
        %v6223 = vpop.trf.xlu0
        %v6224 = vpop.trf.xlu0
        %v6225 = vpop.trf.xlu0
        %v6226 = vpop.trf.xlu0
        %v6227 = vpop.trf.xlu0
        %v6228 = vpop.trf.xlu0
        %v6229 = vpop.trf.xlu0
        %v6230 = vpop.trf.xlu0
        %v6231 = vpop.trf.xlu0
        %v6232 = vpop.trf.xlu0
        %v6233 = vpop.trf.xlu0
        %v6234 = vpop.trf.xlu0
        %v6235 = vpop.trf.xlu0
        %v6236 = vpop.trf.xlu0
        %v6237 = vpop.trf.xlu0
        %6238 = vxpose.xlu0.b32.start [1/16] %v5974, 128
        %6239 = vxpose.xlu0.b32.cont [2/16] 0.0, 128
        %6240 = vxpose.xlu0.b32.cont [3/16] 0.0, 128
        %6241 = vxpose.xlu0.b32.cont [4/16] 0.0, 128
        %6242 = vxpose.xlu0.b32.cont [5/16] 0.0, 128
        %6243 = vxpose.xlu0.b32.cont [6/16] 0.0, 128
        %6244 = vxpose.xlu0.b32.cont [7/16] 0.0, 128
        %6245 = vxpose.xlu0.b32.cont [8/16] 0.0, 128
        %6246 = vxpose.xlu0.b32.cont [9/16] 0.0, 128
        %6247 = vxpose.xlu0.b32.cont [10/16] 0.0, 128
        %6248 = vxpose.xlu0.b32.cont [11/16] 0.0, 128
        %6249 = vxpose.xlu0.b32.cont [12/16] 0.0, 128
        %6250 = vxpose.xlu0.b32.cont [13/16] 0.0, 128
        %6251 = vxpose.xlu0.b32.cont [14/16] 0.0, 128
        %6252 = vxpose.xlu0.b32.cont [15/16] 0.0, 128
        %6253 = vxpose.xlu0.b32.end [16/16] 0.0, 128
        %v6254 = vpop.trf.xlu0
        %v6255 = vpop.trf.xlu0
        %v6256 = vpop.trf.xlu0
        %v6257 = vpop.trf.xlu0
        %v6258 = vpop.trf.xlu0
        %v6259 = vpop.trf.xlu0
        %v6260 = vpop.trf.xlu0
        %v6261 = vpop.trf.xlu0
        %v6262 = vpop.trf.xlu0
        %v6263 = vpop.trf.xlu0
        %v6264 = vpop.trf.xlu0
        %v6265 = vpop.trf.xlu0
        %v6266 = vpop.trf.xlu0
        %v6267 = vpop.trf.xlu0
        %v6268 = vpop.trf.xlu0
        %v6269 = vpop.trf.xlu0
        %6270 = vxpose.xlu0.b32.start [1/16] %v5975, 128
        %6271 = vxpose.xlu0.b32.cont [2/16] 0.0, 128
        %6272 = vxpose.xlu0.b32.cont [3/16] 0.0, 128
        %6273 = vxpose.xlu0.b32.cont [4/16] 0.0, 128
        %6274 = vxpose.xlu0.b32.cont [5/16] 0.0, 128
        %6275 = vxpose.xlu0.b32.cont [6/16] 0.0, 128
        %6276 = vxpose.xlu0.b32.cont [7/16] 0.0, 128
        %6277 = vxpose.xlu0.b32.cont [8/16] 0.0, 128
        %6278 = vxpose.xlu0.b32.cont [9/16] 0.0, 128
        %6279 = vxpose.xlu0.b32.cont [10/16] 0.0, 128
        %6280 = vxpose.xlu0.b32.cont [11/16] 0.0, 128
        %6281 = vxpose.xlu0.b32.cont [12/16] 0.0, 128
        %6282 = vxpose.xlu0.b32.cont [13/16] 0.0, 128
        %6283 = vxpose.xlu0.b32.cont [14/16] 0.0, 128
        %6284 = vxpose.xlu0.b32.cont [15/16] 0.0, 128
        %6285 = vxpose.xlu0.b32.end [16/16] 0.0, 128
        %v6286 = vpop.trf.xlu0
        %v6287 = vpop.trf.xlu0
        %v6288 = vpop.trf.xlu0
        %v6289 = vpop.trf.xlu0
        %v6290 = vpop.trf.xlu0
        %v6291 = vpop.trf.xlu0
        %v6292 = vpop.trf.xlu0
        %v6293 = vpop.trf.xlu0
        %v6294 = vpop.trf.xlu0
        %v6295 = vpop.trf.xlu0
        %v6296 = vpop.trf.xlu0
        %v6297 = vpop.trf.xlu0
        %v6298 = vpop.trf.xlu0
        %v6299 = vpop.trf.xlu0
        %v6300 = vpop.trf.xlu0
        %v6301 = vpop.trf.xlu0
        %6302 = vxpose.xlu0.b32.start [1/16] %v5976, 128
        %6303 = vxpose.xlu0.b32.cont [2/16] 0.0, 128
        %6304 = vxpose.xlu0.b32.cont [3/16] 0.0, 128
        %6305 = vxpose.xlu0.b32.cont [4/16] 0.0, 128
        %6306 = vxpose.xlu0.b32.cont [5/16] 0.0, 128
        %6307 = vxpose.xlu0.b32.cont [6/16] 0.0, 128
        %6308 = vxpose.xlu0.b32.cont [7/16] 0.0, 128
        %6309 = vxpose.xlu0.b32.cont [8/16] 0.0, 128
        %6310 = vxpose.xlu0.b32.cont [9/16] 0.0, 128
        %6311 = vxpose.xlu0.b32.cont [10/16] 0.0, 128
        %6312 = vxpose.xlu0.b32.cont [11/16] 0.0, 128
        %6313 = vxpose.xlu0.b32.cont [12/16] 0.0, 128
        %6314 = vxpose.xlu0.b32.cont [13/16] 0.0, 128
        %6315 = vxpose.xlu0.b32.cont [14/16] 0.0, 128
        %6316 = vxpose.xlu0.b32.cont [15/16] 0.0, 128
        %6317 = vxpose.xlu0.b32.end [16/16] 0.0, 128
        %v6318 = vpop.trf.xlu0
        %v6319 = vpop.trf.xlu0
        %v6320 = vpop.trf.xlu0
        %v6321 = vpop.trf.xlu0
        %v6322 = vpop.trf.xlu0
        %v6323 = vpop.trf.xlu0
        %v6324 = vpop.trf.xlu0
        %v6325 = vpop.trf.xlu0
        %v6326 = vpop.trf.xlu0
        %v6327 = vpop.trf.xlu0
        %v6328 = vpop.trf.xlu0
        %v6329 = vpop.trf.xlu0
        %v6330 = vpop.trf.xlu0
        %v6331 = vpop.trf.xlu0
        %v6332 = vpop.trf.xlu0
        %v6333 = vpop.trf.xlu0
        %6334 = vxpose.xlu0.b32.start [1/16] %v5977, 128
        %6335 = vxpose.xlu0.b32.cont [2/16] 0.0, 128
        %6336 = vxpose.xlu0.b32.cont [3/16] 0.0, 128
        %6337 = vxpose.xlu0.b32.cont [4/16] 0.0, 128
        %6338 = vxpose.xlu0.b32.cont [5/16] 0.0, 128
        %6339 = vxpose.xlu0.b32.cont [6/16] 0.0, 128
        %6340 = vxpose.xlu0.b32.cont [7/16] 0.0, 128
        %6341 = vxpose.xlu0.b32.cont [8/16] 0.0, 128
        %6342 = vxpose.xlu0.b32.cont [9/16] 0.0, 128
        %6343 = vxpose.xlu0.b32.cont [10/16] 0.0, 128
        %6344 = vxpose.xlu0.b32.cont [11/16] 0.0, 128
        %6345 = vxpose.xlu0.b32.cont [12/16] 0.0, 128
        %6346 = vxpose.xlu0.b32.cont [13/16] 0.0, 128
        %6347 = vxpose.xlu0.b32.cont [14/16] 0.0, 128
        %6348 = vxpose.xlu0.b32.cont [15/16] 0.0, 128
        %6349 = vxpose.xlu0.b32.end [16/16] 0.0, 128
        %v6350 = vpop.trf.xlu0
        %v6351 = vpop.trf.xlu0
        %v6352 = vpop.trf.xlu0
        %v6353 = vpop.trf.xlu0
        %v6354 = vpop.trf.xlu0
        %v6355 = vpop.trf.xlu0
        %v6356 = vpop.trf.xlu0
        %v6357 = vpop.trf.xlu0
        %v6358 = vpop.trf.xlu0
        %v6359 = vpop.trf.xlu0
        %v6360 = vpop.trf.xlu0
        %v6361 = vpop.trf.xlu0
        %v6362 = vpop.trf.xlu0
        %v6363 = vpop.trf.xlu0
        %v6364 = vpop.trf.xlu0
        %v6365 = vpop.trf.xlu0
        %6366 = vxpose.xlu0.b32.start [1/16] %v5978, 128
        %6367 = vxpose.xlu0.b32.cont [2/16] 0.0, 128
        %6368 = vxpose.xlu0.b32.cont [3/16] 0.0, 128
        %6369 = vxpose.xlu0.b32.cont [4/16] 0.0, 128
        %6370 = vxpose.xlu0.b32.cont [5/16] 0.0, 128
        %6371 = vxpose.xlu0.b32.cont [6/16] 0.0, 128
        %6372 = vxpose.xlu0.b32.cont [7/16] 0.0, 128
        %6373 = vxpose.xlu0.b32.cont [8/16] 0.0, 128
        %6374 = vxpose.xlu0.b32.cont [9/16] 0.0, 128
        %6375 = vxpose.xlu0.b32.cont [10/16] 0.0, 128
        %6376 = vxpose.xlu0.b32.cont [11/16] 0.0, 128
        %6377 = vxpose.xlu0.b32.cont [12/16] 0.0, 128
        %6378 = vxpose.xlu0.b32.cont [13/16] 0.0, 128
        %6379 = vxpose.xlu0.b32.cont [14/16] 0.0, 128
        %6380 = vxpose.xlu0.b32.cont [15/16] 0.0, 128
        %6381 = vxpose.xlu0.b32.end [16/16] 0.0, 128
        %v6382 = vpop.trf.xlu0
        %v6383 = vpop.trf.xlu0
        %v6384 = vpop.trf.xlu0
        %v6385 = vpop.trf.xlu0
        %v6386 = vpop.trf.xlu0
        %v6387 = vpop.trf.xlu0
        %v6388 = vpop.trf.xlu0
        %v6389 = vpop.trf.xlu0
        %v6390 = vpop.trf.xlu0
        %v6391 = vpop.trf.xlu0
        %v6392 = vpop.trf.xlu0
        %v6393 = vpop.trf.xlu0
        %v6394 = vpop.trf.xlu0
        %v6395 = vpop.trf.xlu0
        %v6396 = vpop.trf.xlu0
        %v6397 = vpop.trf.xlu0
        %6398 = vxpose.xlu0.b32.start [1/16] %v5979, 128
        %6399 = vxpose.xlu0.b32.cont [2/16] 0.0, 128
        %6400 = vxpose.xlu0.b32.cont [3/16] 0.0, 128
        %6401 = vxpose.xlu0.b32.cont [4/16] 0.0, 128
        %6402 = vxpose.xlu0.b32.cont [5/16] 0.0, 128
        %6403 = vxpose.xlu0.b32.cont [6/16] 0.0, 128
        %6404 = vxpose.xlu0.b32.cont [7/16] 0.0, 128
        %6405 = vxpose.xlu0.b32.cont [8/16] 0.0, 128
        %6406 = vxpose.xlu0.b32.cont [9/16] 0.0, 128
        %6407 = vxpose.xlu0.b32.cont [10/16] 0.0, 128
        %6408 = vxpose.xlu0.b32.cont [11/16] 0.0, 128
        %6409 = vxpose.xlu0.b32.cont [12/16] 0.0, 128
        %6410 = vxpose.xlu0.b32.cont [13/16] 0.0, 128
        %6411 = vxpose.xlu0.b32.cont [14/16] 0.0, 128
        %6412 = vxpose.xlu0.b32.cont [15/16] 0.0, 128
        %6413 = vxpose.xlu0.b32.end [16/16] 0.0, 128
        %v6414 = vpop.trf.xlu0
        %v6415 = vpop.trf.xlu0
        %v6416 = vpop.trf.xlu0
        %v6417 = vpop.trf.xlu0
        %v6418 = vpop.trf.xlu0
        %v6419 = vpop.trf.xlu0
        %v6420 = vpop.trf.xlu0
        %v6421 = vpop.trf.xlu0
        %v6422 = vpop.trf.xlu0
        %v6423 = vpop.trf.xlu0
        %v6424 = vpop.trf.xlu0
        %v6425 = vpop.trf.xlu0
        %v6426 = vpop.trf.xlu0
        %v6427 = vpop.trf.xlu0
        %v6428 = vpop.trf.xlu0
        %v6429 = vpop.trf.xlu0
        %6430 = vxpose.xlu0.b32.start [1/16] %v5980, 128
        %6431 = vxpose.xlu0.b32.cont [2/16] 0.0, 128
        %6432 = vxpose.xlu0.b32.cont [3/16] 0.0, 128
        %6433 = vxpose.xlu0.b32.cont [4/16] 0.0, 128
        %6434 = vxpose.xlu0.b32.cont [5/16] 0.0, 128
        %6435 = vxpose.xlu0.b32.cont [6/16] 0.0, 128
        %6436 = vxpose.xlu0.b32.cont [7/16] 0.0, 128
        %6437 = vxpose.xlu0.b32.cont [8/16] 0.0, 128
        %6438 = vxpose.xlu0.b32.cont [9/16] 0.0, 128
        %6439 = vxpose.xlu0.b32.cont [10/16] 0.0, 128
        %6440 = vxpose.xlu0.b32.cont [11/16] 0.0, 128
        %6441 = vxpose.xlu0.b32.cont [12/16] 0.0, 128
        %6442 = vxpose.xlu0.b32.cont [13/16] 0.0, 128
        %6443 = vxpose.xlu0.b32.cont [14/16] 0.0, 128
        %6444 = vxpose.xlu0.b32.cont [15/16] 0.0, 128
        %6445 = vxpose.xlu0.b32.end [16/16] 0.0, 128
        %v6446 = vpop.trf.xlu0
        %v6447 = vpop.trf.xlu0
        %v6448 = vpop.trf.xlu0
        %v6449 = vpop.trf.xlu0
        %v6450 = vpop.trf.xlu0
        %v6451 = vpop.trf.xlu0
        %v6452 = vpop.trf.xlu0
        %v6453 = vpop.trf.xlu0
        %v6454 = vpop.trf.xlu0
        %v6455 = vpop.trf.xlu0
        %v6456 = vpop.trf.xlu0
        %v6457 = vpop.trf.xlu0
        %v6458 = vpop.trf.xlu0
        %v6459 = vpop.trf.xlu0
        %v6460 = vpop.trf.xlu0
        %v6461 = vpop.trf.xlu0
        %6462 = vxpose.xlu0.b32.start [1/16] %v5981, 128
        %6463 = vxpose.xlu0.b32.cont [2/16] 0.0, 128
        %6464 = vxpose.xlu0.b32.cont [3/16] 0.0, 128
        %6465 = vxpose.xlu0.b32.cont [4/16] 0.0, 128
        %6466 = vxpose.xlu0.b32.cont [5/16] 0.0, 128
        %6467 = vxpose.xlu0.b32.cont [6/16] 0.0, 128
        %6468 = vxpose.xlu0.b32.cont [7/16] 0.0, 128
        %6469 = vxpose.xlu0.b32.cont [8/16] 0.0, 128
        %6470 = vxpose.xlu0.b32.cont [9/16] 0.0, 128
        %6471 = vxpose.xlu0.b32.cont [10/16] 0.0, 128
        %6472 = vxpose.xlu0.b32.cont [11/16] 0.0, 128
        %6473 = vxpose.xlu0.b32.cont [12/16] 0.0, 128
        %6474 = vxpose.xlu0.b32.cont [13/16] 0.0, 128
        %6475 = vxpose.xlu0.b32.cont [14/16] 0.0, 128
        %6476 = vxpose.xlu0.b32.cont [15/16] 0.0, 128
        %6477 = vxpose.xlu0.b32.end [16/16] 0.0, 128
        %v6478 = vpop.trf.xlu0
        %v6479 = vpop.trf.xlu0
        %v6480 = vpop.trf.xlu0
        %v6481 = vpop.trf.xlu0
        %v6482 = vpop.trf.xlu0
        %v6483 = vpop.trf.xlu0
        %v6484 = vpop.trf.xlu0
        %v6485 = vpop.trf.xlu0
        %v6486 = vpop.trf.xlu0
        %v6487 = vpop.trf.xlu0
        %v6488 = vpop.trf.xlu0
        %v6489 = vpop.trf.xlu0
        %v6490 = vpop.trf.xlu0
        %v6491 = vpop.trf.xlu0
        %v6492 = vpop.trf.xlu0
        %v6493 = vpop.trf.xlu0
        %v6494 = vcombine.low %v5998, %v6062
        %v6496 = vunpack.c.l.s4 1983009808
        %v6497 = vunpack.c.0.s8 %v6496
        %v6498 = vlaneseq
        %v6499 = vshrl.u32 %v6498, 7
        %v6500 = vsub.s32 %v6497, %v6499
        %v6501 = vrot.slane %v6494, %v6500
        %v6502 = vcombine.low %v6030, %v6094
        %v6504 = vunpack.c.l.s4 1983009808
        %v6505 = vunpack.c.0.s8 %v6504
        %v6506 = vlaneseq
        %v6507 = vshrl.u32 %v6506, 7
        %v6508 = vsub.s32 %v6505, %v6507
        %v6509 = vrot.slane %v6502, %v6508
        %v6510 = vcombine.low %v6126, %v6190
        %v6512 = vunpack.c.l.s4 1983009808
        %v6513 = vunpack.c.0.s8 %v6512
        %v6514 = vlaneseq
        %v6515 = vshrl.u32 %v6514, 7
        %v6516 = vsub.s32 %v6513, %v6515
        %v6517 = vrot.slane %v6510, %v6516
        %v6518 = vcombine.low %v6158, %v6222
        %v6520 = vunpack.c.l.s4 1983009808
        %v6521 = vunpack.c.0.s8 %v6520
        %v6522 = vlaneseq
        %v6523 = vshrl.u32 %v6522, 7
        %v6524 = vsub.s32 %v6521, %v6523
        %v6525 = vrot.slane %v6518, %v6524
        %v6526 = vcombine.low %v6501, %v6509
        %v6528 = vunpack.c.l.s4 1934713408
        %v6529 = vunpack.c.0.s8 %v6528
        %v6530 = vlaneseq
        %v6531 = vshrl.u32 %v6530, 7
        %v6532 = vsub.s32 %v6529, %v6531
        %v6533 = vrot.slane %v6526, %v6532
        %v6534 = vcombine.low %v6517, %v6525
        %v6536 = vunpack.c.l.s4 1934713408
        %v6537 = vunpack.c.0.s8 %v6536
        %v6538 = vlaneseq
        %v6539 = vshrl.u32 %v6538, 7
        %v6540 = vsub.s32 %v6537, %v6539
        %v6541 = vrot.slane %v6534, %v6540
        %v6542 = vcombine.low %v6533, %v6541
        %v6543 = vcombine.high %v6533, %v6541
        %v6544 = vcombine.low %v6254, %v6318
        %v6546 = vunpack.c.l.s4 1983009808
        %v6547 = vunpack.c.0.s8 %v6546
        %v6548 = vlaneseq
        %v6549 = vshrl.u32 %v6548, 7
        %v6550 = vsub.s32 %v6547, %v6549
        %v6551 = vrot.slane %v6544, %v6550
        %v6552 = vcombine.low %v6286, %v6350
        %v6554 = vunpack.c.l.s4 1983009808
        %v6555 = vunpack.c.0.s8 %v6554
        %v6556 = vlaneseq
        %v6557 = vshrl.u32 %v6556, 7
        %v6558 = vsub.s32 %v6555, %v6557
        %v6559 = vrot.slane %v6552, %v6558
        %v6560 = vcombine.low %v6382, %v6446
        %v6562 = vunpack.c.l.s4 1983009808
        %v6563 = vunpack.c.0.s8 %v6562
        %v6564 = vlaneseq
        %v6565 = vshrl.u32 %v6564, 7
        %v6566 = vsub.s32 %v6563, %v6565
        %v6567 = vrot.slane %v6560, %v6566
        %v6568 = vcombine.low %v6414, %v6478
        %v6570 = vunpack.c.l.s4 1983009808
        %v6571 = vunpack.c.0.s8 %v6570
        %v6572 = vlaneseq
        %v6573 = vshrl.u32 %v6572, 7
        %v6574 = vsub.s32 %v6571, %v6573
        %v6575 = vrot.slane %v6568, %v6574
        %v6576 = vcombine.low %v6551, %v6559
        %v6578 = vunpack.c.l.s4 1934713408
        %v6579 = vunpack.c.0.s8 %v6578
        %v6580 = vlaneseq
        %v6581 = vshrl.u32 %v6580, 7
        %v6582 = vsub.s32 %v6579, %v6581
        %v6583 = vrot.slane %v6576, %v6582
        %v6584 = vcombine.low %v6567, %v6575
        %v6586 = vunpack.c.l.s4 1934713408
        %v6587 = vunpack.c.0.s8 %v6586
        %v6588 = vlaneseq
        %v6589 = vshrl.u32 %v6588, 7
        %v6590 = vsub.s32 %v6587, %v6589
        %v6591 = vrot.slane %v6584, %v6590
        %v6592 = vcombine.low %v6583, %v6591
        %v6593 = vcombine.high %v6583, %v6591
        %v6595 = vsel %vm2580, %v6542, 0
        %v6598 = vsel %vm2580, %v6592, 0
        %v6601 = vsel %vm2580, %v5451, 0
        %6603 = vmatprep.subr.mxu0 0.0
        %6604 = vmatpush1.xpose.msra.mxu0 %v6601
        %6605 = vmatprep.subr.mxu0 0.0
        %6606 = vmatpush1.xpose.msra.mxu0 0.0
        %6607 = vmatprep.subr.mxu0 0.0
        %6608 = vmatpush1.xpose.msra.mxu0 0.0
        %6609 = vmatprep.subr.mxu0 0.0
        %6610 = vmatpush1.xpose.msra.mxu0 0.0
        %6611 = vmatprep.subr.mxu0 0.0
        %6612 = vmatpush1.xpose.msra.mxu0 0.0
        %6613 = vmatprep.subr.mxu0 0.0
        %6614 = vmatpush1.xpose.msra.mxu0 0.0
        %6615 = vmatprep.subr.mxu0 0.0
        %6616 = vmatpush1.xpose.msra.mxu0 0.0
        %6617 = vmatprep.subr.mxu0 0.0
        %6618 = vmatpush1.xpose.msra.mxu0 0.0
        %6619 = vmatprep.subr.mxu0 0.0
        %6620 = vmatpush1.xpose.msra.mxu0 0.0
        %6621 = vmatprep.subr.mxu0 0.0
        %6622 = vmatpush1.xpose.msra.mxu0 0.0
        %6623 = vmatprep.subr.mxu0 0.0
        %6624 = vmatpush1.xpose.msra.mxu0 0.0
        %6625 = vmatprep.subr.mxu0 0.0
        %6626 = vmatpush1.xpose.msra.mxu0 0.0
        %6627 = vmatprep.subr.mxu0 0.0
        %6628 = vmatpush1.xpose.msra.mxu0 0.0
        %6629 = vmatprep.subr.mxu0 0.0
        %6630 = vmatpush1.xpose.msra.mxu0 0.0
        %6631 = vmatprep.subr.mxu0 0.0
        %6632 = vmatpush1.xpose.msra.mxu0 0.0
        %6633 = vmatprep.subr.mxu0 0.0
        %6634 = vmatpush1.xpose.msra.mxu0 0.0
        %6635 = vmatprep.subr.mxu0 0.0
        %6636 = vmatpush1.xpose.msra.mxu0 0.0
        %6637 = vmatprep.subr.mxu0 0.0
        %6638 = vmatpush1.xpose.msra.mxu0 0.0
        %6639 = vmatprep.subr.mxu0 0.0
        %6640 = vmatpush1.xpose.msra.mxu0 0.0
        %6641 = vmatprep.subr.mxu0 0.0
        %6642 = vmatpush1.xpose.msra.mxu0 0.0
        %6643 = vmatprep.subr.mxu0 0.0
        %6644 = vmatpush1.xpose.msra.mxu0 0.0
        %6645 = vmatprep.subr.mxu0 0.0
        %6646 = vmatpush1.xpose.msra.mxu0 0.0
        %6647 = vmatprep.subr.mxu0 0.0
        %6648 = vmatpush1.xpose.msra.mxu0 0.0
        %6649 = vmatprep.subr.mxu0 0.0
        %6650 = vmatpush1.xpose.msra.mxu0 0.0
        %6651 = vmatprep.subr.mxu0 0.0
        %6652 = vmatpush1.xpose.msra.mxu0 0.0
        %6653 = vmatprep.subr.mxu0 0.0
        %6654 = vmatpush1.xpose.msra.mxu0 0.0
        %6655 = vmatprep.subr.mxu0 0.0
        %6656 = vmatpush1.xpose.msra.mxu0 0.0
        %6657 = vmatprep.subr.mxu0 0.0
        %6658 = vmatpush1.xpose.msra.mxu0 0.0
        %6659 = vmatprep.subr.mxu0 0.0
        %6660 = vmatpush1.xpose.msra.mxu0 0.0
        %6661 = vmatprep.subr.mxu0 0.0
        %6662 = vmatpush1.xpose.msra.mxu0 0.0
        %6663 = vmatprep.subr.mxu0 0.0
        %6664 = vmatpush1.xpose.msra.mxu0 0.0
        %6665 = vmatprep.subr.mxu0 0.0
        %6666 = vmatpush1.xpose.msra.mxu0 0.0
        %6667 = vmatprep.mubr.f32.mxu0 0.0
        %6668 = vmatmul.mubr.f32.gmra.mrb[0].mxu0 %v6595
        %v6669 = vpop.f32.mrb[0].mxu0
        %v6670 = vadd.f32 0.0, %v6669
        %v6671 = vpop.f32.mrb[0].mxu0
        %6672 = vmatprep.mubr.f32.mxu0 0.0
        %6673 = vmatmul.mubr.f32.gmra.mrb[0].mxu0 %v6598
        %v6674 = vpop.f32.mrb[0].mxu0
        %v6675 = vadd.f32 0.0, %v6674
        %v6676 = vpop.f32.mrb[0].mxu0
        %6677 = vdwg.mxu0
        %v6679 = vsel %vm2580, %v6543, 0
        %v6682 = vsel %vm2580, %v6593, 0
        %v6685 = vsel %vm2580, %v5453, 0
        %6687 = vmatprep.subr.mxu0 0.0
        %6688 = vmatpush1.xpose.msra.mxu0 %v6685
        %6689 = vmatprep.subr.mxu0 0.0
        %6690 = vmatpush1.xpose.msra.mxu0 0.0
        %6691 = vmatprep.subr.mxu0 0.0
        %6692 = vmatpush1.xpose.msra.mxu0 0.0
        %6693 = vmatprep.subr.mxu0 0.0
        %6694 = vmatpush1.xpose.msra.mxu0 0.0
        %6695 = vmatprep.subr.mxu0 0.0
        %6696 = vmatpush1.xpose.msra.mxu0 0.0
        %6697 = vmatprep.subr.mxu0 0.0
        %6698 = vmatpush1.xpose.msra.mxu0 0.0
        %6699 = vmatprep.subr.mxu0 0.0
        %6700 = vmatpush1.xpose.msra.mxu0 0.0
        %6701 = vmatprep.subr.mxu0 0.0
        %6702 = vmatpush1.xpose.msra.mxu0 0.0
        %6703 = vmatprep.subr.mxu0 0.0
        %6704 = vmatpush1.xpose.msra.mxu0 0.0
        %6705 = vmatprep.subr.mxu0 0.0
        %6706 = vmatpush1.xpose.msra.mxu0 0.0
        %6707 = vmatprep.subr.mxu0 0.0
        %6708 = vmatpush1.xpose.msra.mxu0 0.0
        %6709 = vmatprep.subr.mxu0 0.0
        %6710 = vmatpush1.xpose.msra.mxu0 0.0
        %6711 = vmatprep.subr.mxu0 0.0
        %6712 = vmatpush1.xpose.msra.mxu0 0.0
        %6713 = vmatprep.subr.mxu0 0.0
        %6714 = vmatpush1.xpose.msra.mxu0 0.0
        %6715 = vmatprep.subr.mxu0 0.0
        %6716 = vmatpush1.xpose.msra.mxu0 0.0
        %6717 = vmatprep.subr.mxu0 0.0
        %6718 = vmatpush1.xpose.msra.mxu0 0.0
        %6719 = vmatprep.subr.mxu0 0.0
        %6720 = vmatpush1.xpose.msra.mxu0 0.0
        %6721 = vmatprep.subr.mxu0 0.0
        %6722 = vmatpush1.xpose.msra.mxu0 0.0
        %6723 = vmatprep.subr.mxu0 0.0
        %6724 = vmatpush1.xpose.msra.mxu0 0.0
        %6725 = vmatprep.subr.mxu0 0.0
        %6726 = vmatpush1.xpose.msra.mxu0 0.0
        %6727 = vmatprep.subr.mxu0 0.0
        %6728 = vmatpush1.xpose.msra.mxu0 0.0
        %6729 = vmatprep.subr.mxu0 0.0
        %6730 = vmatpush1.xpose.msra.mxu0 0.0
        %6731 = vmatprep.subr.mxu0 0.0
        %6732 = vmatpush1.xpose.msra.mxu0 0.0
        %6733 = vmatprep.subr.mxu0 0.0
        %6734 = vmatpush1.xpose.msra.mxu0 0.0
        %6735 = vmatprep.subr.mxu0 0.0
        %6736 = vmatpush1.xpose.msra.mxu0 0.0
        %6737 = vmatprep.subr.mxu0 0.0
        %6738 = vmatpush1.xpose.msra.mxu0 0.0
        %6739 = vmatprep.subr.mxu0 0.0
        %6740 = vmatpush1.xpose.msra.mxu0 0.0
        %6741 = vmatprep.subr.mxu0 0.0
        %6742 = vmatpush1.xpose.msra.mxu0 0.0
        %6743 = vmatprep.subr.mxu0 0.0
        %6744 = vmatpush1.xpose.msra.mxu0 0.0
        %6745 = vmatprep.subr.mxu0 0.0
        %6746 = vmatpush1.xpose.msra.mxu0 0.0
        %6747 = vmatprep.subr.mxu0 0.0
        %6748 = vmatpush1.xpose.msra.mxu0 0.0
        %6749 = vmatprep.subr.mxu0 0.0
        %6750 = vmatpush1.xpose.msra.mxu0 0.0
        %6751 = vmatprep.mubr.f32.mxu0 0.0
        %6752 = vmatmul.mubr.f32.gmra.mrb[0].mxu0 %v6679
        %v6753 = vpop.f32.mrb[0].mxu0
        %v6754 = vadd.f32 0.0, %v6753
        %v6755 = vpop.f32.mrb[0].mxu0
        %6756 = vmatprep.mubr.f32.mxu0 0.0
        %6757 = vmatmul.mubr.f32.gmra.mrb[0].mxu0 %v6682
        %v6758 = vpop.f32.mrb[0].mxu0
        %v6759 = vadd.f32 0.0, %v6758
        %v6760 = vpop.f32.mrb[0].mxu0
        %6761 = vdwg.mxu0
        %6762 = vxpose.xlu0.b32.start [1/16] %v6670, 128
        %6763 = vxpose.xlu0.b32.cont [2/16] %v6675, 128
        %6764 = vxpose.xlu0.b32.cont [3/16] 0.0, 128
        %6765 = vxpose.xlu0.b32.cont [4/16] 0.0, 128
        %6766 = vxpose.xlu0.b32.cont [5/16] 0.0, 128
        %6767 = vxpose.xlu0.b32.cont [6/16] 0.0, 128
        %6768 = vxpose.xlu0.b32.cont [7/16] 0.0, 128
        %6769 = vxpose.xlu0.b32.cont [8/16] 0.0, 128
        %6770 = vxpose.xlu0.b32.cont [9/16] 0.0, 128
        %6771 = vxpose.xlu0.b32.cont [10/16] 0.0, 128
        %6772 = vxpose.xlu0.b32.cont [11/16] 0.0, 128
        %6773 = vxpose.xlu0.b32.cont [12/16] 0.0, 128
        %6774 = vxpose.xlu0.b32.cont [13/16] 0.0, 128
        %6775 = vxpose.xlu0.b32.cont [14/16] 0.0, 128
        %6776 = vxpose.xlu0.b32.cont [15/16] 0.0, 128
        %6777 = vxpose.xlu0.b32.end [16/16] 0.0, 128
        %v6778 = vpop.trf.xlu0
        %v6779 = vpop.trf.xlu0
        %v6780 = vpop.trf.xlu0
        %v6781 = vpop.trf.xlu0
        %v6782 = vpop.trf.xlu0
        %v6783 = vpop.trf.xlu0
        %v6784 = vpop.trf.xlu0
        %v6785 = vpop.trf.xlu0
        %v6786 = vpop.trf.xlu0
        %v6787 = vpop.trf.xlu0
        %v6788 = vpop.trf.xlu0
        %v6789 = vpop.trf.xlu0
        %v6790 = vpop.trf.xlu0
        %v6791 = vpop.trf.xlu0
        %v6792 = vpop.trf.xlu0
        %v6793 = vpop.trf.xlu0
        %6794 = vxpose.xlu0.b32.start [1/16] %v6754, 128
        %6795 = vxpose.xlu0.b32.cont [2/16] %v6759, 128
        %6796 = vxpose.xlu0.b32.cont [3/16] 0.0, 128
        %6797 = vxpose.xlu0.b32.cont [4/16] 0.0, 128
        %6798 = vxpose.xlu0.b32.cont [5/16] 0.0, 128
        %6799 = vxpose.xlu0.b32.cont [6/16] 0.0, 128
        %6800 = vxpose.xlu0.b32.cont [7/16] 0.0, 128
        %6801 = vxpose.xlu0.b32.cont [8/16] 0.0, 128
        %6802 = vxpose.xlu0.b32.cont [9/16] 0.0, 128
        %6803 = vxpose.xlu0.b32.cont [10/16] 0.0, 128
        %6804 = vxpose.xlu0.b32.cont [11/16] 0.0, 128
        %6805 = vxpose.xlu0.b32.cont [12/16] 0.0, 128
        %6806 = vxpose.xlu0.b32.cont [13/16] 0.0, 128
        %6807 = vxpose.xlu0.b32.cont [14/16] 0.0, 128
        %6808 = vxpose.xlu0.b32.cont [15/16] 0.0, 128
        %6809 = vxpose.xlu0.b32.end [16/16] 0.0, 128
        %v6810 = vpop.trf.xlu0
        %v6811 = vpop.trf.xlu0
        %v6812 = vpop.trf.xlu0
        %v6813 = vpop.trf.xlu0
        %v6814 = vpop.trf.xlu0
        %v6815 = vpop.trf.xlu0
        %v6816 = vpop.trf.xlu0
        %v6817 = vpop.trf.xlu0
        %v6818 = vpop.trf.xlu0
        %v6819 = vpop.trf.xlu0
        %v6820 = vpop.trf.xlu0
        %v6821 = vpop.trf.xlu0
        %v6822 = vpop.trf.xlu0
        %v6823 = vpop.trf.xlu0
        %v6824 = vpop.trf.xlu0
        %v6825 = vpop.trf.xlu0
        %v6826 = vcombine.high %v6778, 0.0
        %v6828 = vunpack.c.l.s4 1983009808
        %v6829 = vunpack.c.0.s8 %v6828
        %v6830 = vlaneseq
        %v6831 = vshrl.u32 %v6830, 7
        %v6832 = vsub.s32 %v6829, %v6831
        %v6833 = vrot.slane %v6778, %v6832
        %v6835 = vunpack.c.l.s4 1983009808
        %v6836 = vunpack.c.0.s8 %v6835
        %v6837 = vlaneseq
        %v6838 = vshrl.u32 %v6837, 7
        %v6839 = vsub.s32 %v6836, %v6838
        %v6840 = vrot.slane %v6826, %v6839
        %v6841 = vcombine.high %v6810, 0.0
        %v6843 = vunpack.c.l.s4 1983009808
        %v6844 = vunpack.c.0.s8 %v6843
        %v6845 = vlaneseq
        %v6846 = vshrl.u32 %v6845, 7
        %v6847 = vsub.s32 %v6844, %v6846
        %v6848 = vrot.slane %v6810, %v6847
        %v6850 = vunpack.c.l.s4 1983009808
        %v6851 = vunpack.c.0.s8 %v6850
        %v6852 = vlaneseq
        %v6853 = vshrl.u32 %v6852, 7
        %v6854 = vsub.s32 %v6851, %v6853
        %v6855 = vrot.slane %v6841, %v6854
        %v6856 = vcombine.low %v6833, %v6848
        %v6857 = vcombine.high %v6833, %v6848
        %v6859 = vunpack.c.l.s4 1934713408
        %v6860 = vunpack.c.0.s8 %v6859
        %v6861 = vlaneseq
        %v6862 = vshrl.u32 %v6861, 7
        %v6863 = vsub.s32 %v6860, %v6862
        %v6864 = vrot.slane %v6856, %v6863
        %v6866 = vunpack.c.l.s4 1934713408
        %v6867 = vunpack.c.0.s8 %v6866
        %v6868 = vlaneseq
        %v6869 = vshrl.u32 %v6868, 7
        %v6870 = vsub.s32 %v6867, %v6869
        %v6871 = vrot.slane %v6857, %v6870
        %v6872 = vcombine.low %v6840, %v6855
        %v6873 = vcombine.high %v6840, %v6855
        %v6875 = vunpack.c.l.s4 1934713408
        %v6876 = vunpack.c.0.s8 %v6875
        %v6877 = vlaneseq
        %v6878 = vshrl.u32 %v6877, 7
        %v6879 = vsub.s32 %v6876, %v6878
        %v6880 = vrot.slane %v6872, %v6879
        %v6882 = vunpack.c.l.s4 1934713408
        %v6883 = vunpack.c.0.s8 %v6882
        %v6884 = vlaneseq
        %v6885 = vshrl.u32 %v6884, 7
        %v6886 = vsub.s32 %v6883, %v6885
        %v6887 = vrot.slane %v6873, %v6886
        %v6888 = vcombine.high %v6864, 0.0
        %v6889 = vcombine.high %v6871, 0.0
        %v6890 = vcombine.high %v6880, 0.0
        %v6891 = vcombine.high %v6887, 0.0
        %v6892 = vcombine.low %v6864, %v6871
        %v6894 = vunpack.c.l.s4 1983009808
        %v6895 = vunpack.c.0.s8 %v6894
        %v6896 = vlaneseq
        %v6897 = vshrl.u32 %v6896, 7
        %v6898 = vsub.s32 %v6895, %v6897
        %v6899 = vrot.slane %v6892, %v6898
        %v6900 = vcombine.low %v6888, %v6889
        %v6902 = vunpack.c.l.s4 1983009808
        %v6903 = vunpack.c.0.s8 %v6902
        %v6904 = vlaneseq
        %v6905 = vshrl.u32 %v6904, 7
        %v6906 = vsub.s32 %v6903, %v6905
        %v6907 = vrot.slane %v6900, %v6906
        %v6908 = vcombine.low %v6880, %v6887
        %v6910 = vunpack.c.l.s4 1983009808
        %v6911 = vunpack.c.0.s8 %v6910
        %v6912 = vlaneseq
        %v6913 = vshrl.u32 %v6912, 7
        %v6914 = vsub.s32 %v6911, %v6913
        %v6915 = vrot.slane %v6908, %v6914
        %v6916 = vcombine.low %v6890, %v6891
        %v6918 = vunpack.c.l.s4 1983009808
        %v6919 = vunpack.c.0.s8 %v6918
        %v6920 = vlaneseq
        %v6921 = vshrl.u32 %v6920, 7
        %v6922 = vsub.s32 %v6919, %v6921
        %v6923 = vrot.slane %v6916, %v6922
        %v6924 = vcombine.low %v6899, %v6907
        %v6926 = vunpack.c.l.s4 1934713408
        %v6927 = vunpack.c.0.s8 %v6926
        %v6928 = vlaneseq
        %v6929 = vshrl.u32 %v6928, 7
        %v6930 = vsub.s32 %v6927, %v6929
        %v6931 = vrot.slane %v6924, %v6930
        %v6932 = vcombine.low %v6915, %v6923
        %v6934 = vunpack.c.l.s4 1934713408
        %v6935 = vunpack.c.0.s8 %v6934
        %v6936 = vlaneseq
        %v6937 = vshrl.u32 %v6936, 7
        %v6938 = vsub.s32 %v6935, %v6937
        %v6939 = vrot.slane %v6932, %v6938
        %v6940 = vcombine.low %v6931, %v6939
        %v6941 = vcombine.high %v6931, %v6939
        %6943 = vrot.lane.b32.xlu0 %v6941, 16
        %v6944 = vpop.permute.xlu0 %6943
        %v6946 = vsel %vm2433, %v6940, %v6944
        %v6947 = vpack.c.bf16 %v6946, %v4095
        %v6948 = vld [vmem:[%s654] sm:$0xf]
        %v6949 = vld [vmem:[%s654 + $0x4] sm:$0xf]
        %v6950 = vld [vmem:[%s654 + $0x8] sm:$0xf]
        %v6951 = vld [vmem:[%s654 + $0xc] sm:$0xf]
        %v6952 = vld [vmem:[%s657] sm:$0x1]
        %v6954 = vlaneseq
        %v6955 = vshrl.u32 %v6954, 7
        %v6956 = vsub.s32 0, %v6955
        %v6957 = vrot.slane %v6952, %v6956
        %v6963 = vunpack.c.l.b16 %v6948
        %v6964 = vunpack.c.l.b16 %v6949
        %v6965 = vunpack.c.l.b16 %v6950
        %v6966 = vunpack.c.l.b16 %v6951
        %v6967 = vpack.c.b16 %v6964, %v6963
        %v6968 = vpack.c.b16 %v6966, %v6965
        %v6972 = vsel %vm694, %v6947, 0
        %6974 = vmatprep.subr.bf16.mxu0 0
        %6975 = vmatpush1.bf16.msra.mxu0 %v6967
        %6976 = vmatprep.subr.bf16.mxu0 0
        %6977 = vmatpush1.bf16.msra.mxu0 %v6968
        %6978 = vmatprep.subr.bf16.mxu0 0
        %6979 = vmatpush1.bf16.msra.mxu0 0
        %6980 = vmatprep.subr.bf16.mxu0 0
        %6981 = vmatpush1.bf16.msra.mxu0 0
        %6982 = vmatprep.subr.bf16.mxu0 0
        %6983 = vmatpush1.bf16.msra.mxu0 0
        %6984 = vmatprep.subr.bf16.mxu0 0
        %6985 = vmatpush1.bf16.msra.mxu0 0
        %6986 = vmatprep.subr.bf16.mxu0 0
        %6987 = vmatpush1.bf16.msra.mxu0 0
        %6988 = vmatprep.subr.bf16.mxu0 0
        %6989 = vmatpush1.bf16.msra.mxu0 0
        %6990 = vmatprep.subr.bf16.mxu0 0
        %6991 = vmatpush1.bf16.msra.mxu0 0
        %6992 = vmatprep.subr.bf16.mxu0 0
        %6993 = vmatpush1.bf16.msra.mxu0 0
        %6994 = vmatprep.subr.bf16.mxu0 0
        %6995 = vmatpush1.bf16.msra.mxu0 0
        %6996 = vmatprep.subr.bf16.mxu0 0
        %6997 = vmatpush1.bf16.msra.mxu0 0
        %6998 = vmatprep.subr.bf16.mxu0 0
        %6999 = vmatpush1.bf16.msra.mxu0 0
        %7000 = vmatprep.subr.bf16.mxu0 0
        %7001 = vmatpush1.bf16.msra.mxu0 0
        %7002 = vmatprep.subr.bf16.mxu0 0
        %7003 = vmatpush1.bf16.msra.mxu0 0
        %7004 = vmatprep.subr.bf16.mxu0 0
        %7005 = vmatpush1.bf16.msra.mxu0 0
        %7006 = vmatprep.mubr.bf16.mxu0 0
        %7007 = vmatmul.mubr.bf16.gmra.mrb[0].mxu0 %v6972
        %v7008 = vpop.f32.mrb[0].mxu0
        %v7009 = vadd.f32 %v6957, %v7008
        %v7010 = vpop.f32.mrb[0].mxu0
        %v7011 = vpop.f32.mrb[0].mxu0
        %v7012 = vadd.f32 %v6957, %v7011
        %v7013 = vpop.f32.mrb[0].mxu0
        %7014 = vdwg.mxu0
        %v7015 = vadd.f32 %v690, %v7009
        %v7016 = vadd.f32 %v691, %v7012
        %v7017 = vld [vmem:[%s660] sm:$0x1]
        %v7018 = vld [vmem:[%s663] sm:$0x1]
        %v7019 = vsel %vm694, %v7015, 0.0
        %7020 = vadd.xlane.f32.xlu0 %v7019
        %v7021 = vpop.xlane.xlu0 %7020
        %v7022 = vsel %vm694, %v7016, 0.0
        %7023 = vadd.xlane.f32.xlu0 %v7022
        %v7024 = vpop.xlane.xlu0 %7023
        %v7025 = vmul.f32 %v7021, %v701
        %v7026 = vmul.f32 %v7024, %v701
        %v7027 = vsub.f32 %v7015, %v7025
        %v7028 = vsub.f32 %v7016, %v7026
        %v7029 = vmul.f32 %v7027, %v7027
        %v7030 = vmul.f32 %v7028, %v7028
        %v7031 = vsel %vm694, %v7029, 0.0
        %7032 = vadd.xlane.f32.xlu0 %v7031
        %v7033 = vpop.xlane.xlu0 %7032
        %v7034 = vsel %vm694, %v7030, 0.0
        %7035 = vadd.xlane.f32.xlu0 %v7034
        %v7036 = vpop.xlane.xlu0 %7035
        %v7037 = vmul.f32 %v7033, %v701
        %v7038 = vmul.f32 %v7036, %v701
        %v7039 = vadd.f32 %v7037, 1e-05
        %v7040 = vadd.f32 %v7038, 1e-05
        %v7041 = vrsqrt.pop %v7039
        %v7042 = vrsqrt.pop %v7040
        %v7043 = vmul.f32 %v7027, %v7041
        %v7044 = vmul.f32 %v7028, %v7042
        %v7046 = vlaneseq
        %v7047 = vshrl.u32 %v7046, 7
        %v7048 = vsub.s32 0, %v7047
        %v7049 = vrot.slane %v7017, %v7048
        %v7051 = vmul.f32 %v7043, %v7049
        %v7052 = vmul.f32 %v7044, %v7049
        %v7054 = vlaneseq
        %v7055 = vshrl.u32 %v7054, 7
        %v7056 = vsub.s32 0, %v7055
        %v7057 = vrot.slane %v7018, %v7056
        %v7059 = vadd.f32 %v7051, %v7057
        %v7060 = vadd.f32 %v7052, %v7057
        %v7061 = vpack.c.bf16 %v7060, %v7059
        %v7062 = vld [vmem:[%s668] sm:$0xf]
        %v7063 = vld [vmem:[%s668 + $0x4] sm:$0xf]
        %v7064 = vld [vmem:[%s668 + $0x8] sm:$0xf]
        %v7065 = vld [vmem:[%s668 + $0xc] sm:$0xf]
        %v7066 = vld [vmem:[%s671] sm:$0x1]
        %v7068 = vlaneseq
        %v7069 = vshrl.u32 %v7068, 7
        %v7070 = vsub.s32 0, %v7069
        %v7071 = vrot.slane %v7066, %v7070
        %v7077 = vunpack.c.l.b16 %v7062
        %v7078 = vunpack.c.l.b16 %v7063
        %v7079 = vunpack.c.l.b16 %v7064
        %v7080 = vunpack.c.l.b16 %v7065
        %v7081 = vpack.c.b16 %v7078, %v7077
        %v7082 = vpack.c.b16 %v7080, %v7079
        %v7086 = vsel %vm694, %v7061, 0
        %7088 = vmatprep.subr.bf16.mxu0 0
        %7089 = vmatpush1.bf16.msra.mxu0 %v7081
        %7090 = vmatprep.subr.bf16.mxu0 0
        %7091 = vmatpush1.bf16.msra.mxu0 %v7082
        %7092 = vmatprep.subr.bf16.mxu0 0
        %7093 = vmatpush1.bf16.msra.mxu0 0
        %7094 = vmatprep.subr.bf16.mxu0 0
        %7095 = vmatpush1.bf16.msra.mxu0 0
        %7096 = vmatprep.subr.bf16.mxu0 0
        %7097 = vmatpush1.bf16.msra.mxu0 0
        %7098 = vmatprep.subr.bf16.mxu0 0
        %7099 = vmatpush1.bf16.msra.mxu0 0
        %7100 = vmatprep.subr.bf16.mxu0 0
        %7101 = vmatpush1.bf16.msra.mxu0 0
        %7102 = vmatprep.subr.bf16.mxu0 0
        %7103 = vmatpush1.bf16.msra.mxu0 0
        %7104 = vmatprep.subr.bf16.mxu0 0
        %7105 = vmatpush1.bf16.msra.mxu0 0
        %7106 = vmatprep.subr.bf16.mxu0 0
        %7107 = vmatpush1.bf16.msra.mxu0 0
        %7108 = vmatprep.subr.bf16.mxu0 0
        %7109 = vmatpush1.bf16.msra.mxu0 0
        %7110 = vmatprep.subr.bf16.mxu0 0
        %7111 = vmatpush1.bf16.msra.mxu0 0
        %7112 = vmatprep.subr.bf16.mxu0 0
        %7113 = vmatpush1.bf16.msra.mxu0 0
        %7114 = vmatprep.subr.bf16.mxu0 0
        %7115 = vmatpush1.bf16.msra.mxu0 0
        %7116 = vmatprep.subr.bf16.mxu0 0
        %7117 = vmatpush1.bf16.msra.mxu0 0
        %7118 = vmatprep.subr.bf16.mxu0 0
        %7119 = vmatpush1.bf16.msra.mxu0 0
        %7120 = vmatprep.mubr.bf16.mxu0 0
        %7121 = vmatmul.mubr.bf16.gmra.mrb[0].mxu0 %v7086
        %v7122 = vpop.f32.mrb[0].mxu0
        %v7123 = vadd.f32 %v7071, %v7122
        %v7124 = vpop.f32.mrb[0].mxu0
        %v7125 = vpop.f32.mrb[0].mxu0
        %v7126 = vadd.f32 %v7071, %v7125
        %v7127 = vpop.f32.mrb[0].mxu0
        %7128 = vdwg.mxu0
        %v7129 = vmul.f32 %v7123, 1.702
        %v7130 = vmul.f32 %v7126, 1.702
        %v7131 = vxor.u32 %v7129, 2147483648
        %v7132 = vxor.u32 %v7130, 2147483648
        %v7133 = vmul.f32 %v7131, 1.442695
        %v7134 = vpow.pop %v7133
        %v7135 = vmul.f32 %v7132, 1.442695
        %v7136 = vpow.pop %v7135
        %v7137 = vadd.f32 %v7134, 1.0
        %v7138 = vadd.f32 %v7136, 1.0
        %v7139 = vrcp.pop %v7137
        %v7140 = vmul.f32 1.0, %v7139
        %v7141 = vrcp.pop %v7138
        %v7142 = vmul.f32 1.0, %v7141
        %v7143 = vmul.f32 %v7123, %v7140
        %v7144 = vmul.f32 %v7126, %v7142
        %v7145 = vpack.c.bf16 %v7144, %v7143
        %v7146 = vld [vmem:[%s676] sm:$0xf]
        %v7147 = vld [vmem:[%s676 + $0x4] sm:$0xf]
        %v7148 = vld [vmem:[%s676 + $0x8] sm:$0xf]
        %v7149 = vld [vmem:[%s676 + $0xc] sm:$0xf]
        %v7150 = vld [vmem:[%s676 + $0x10] sm:$0xf]
        %v7151 = vld [vmem:[%s676 + $0x14] sm:$0xf]
        %v7152 = vld [vmem:[%s676 + $0x18] sm:$0xf]
        %v7153 = vld [vmem:[%s676 + $0x1c] sm:$0xf]
        %v7154 = vld [vmem:[%s676 + $0x20] sm:$0xf]
        %v7155 = vld [vmem:[%s676 + $0x24] sm:$0xf]
        %v7156 = vld [vmem:[%s676 + $0x28] sm:$0xf]
        %v7157 = vld [vmem:[%s676 + $0x2c] sm:$0xf]
        %v7158 = vld [vmem:[%s676 + $0x30] sm:$0xf]
        %v7159 = vld [vmem:[%s676 + $0x34] sm:$0xf]
        %v7160 = vld [vmem:[%s676 + $0x38] sm:$0xf]
        %v7161 = vld [vmem:[%s676 + $0x3c] sm:$0xf]
        %v7162 = vld [vmem:[%s679] sm:$0x1]
        %v7164 = vlaneseq
        %v7165 = vshrl.u32 %v7164, 7
        %v7166 = vsub.s32 0, %v7165
        %v7167 = vrot.slane %v7162, %v7166
        %v7185 = vunpack.c.l.b16 %v7146
        %v7186 = vunpack.c.l.b16 %v7147
        %v7187 = vunpack.c.l.b16 %v7148
        %v7188 = vunpack.c.l.b16 %v7149
        %v7189 = vunpack.c.l.b16 %v7150
        %v7190 = vunpack.c.l.b16 %v7151
        %v7191 = vunpack.c.l.b16 %v7152
        %v7192 = vunpack.c.l.b16 %v7153
        %v7193 = vunpack.c.l.b16 %v7154
        %v7194 = vunpack.c.l.b16 %v7155
        %v7195 = vunpack.c.l.b16 %v7156
        %v7196 = vunpack.c.l.b16 %v7157
        %v7197 = vunpack.c.l.b16 %v7158
        %v7198 = vunpack.c.l.b16 %v7159
        %v7199 = vunpack.c.l.b16 %v7160
        %v7200 = vunpack.c.l.b16 %v7161
        %v7201 = vpack.c.b16 %v7186, %v7185
        %v7202 = vpack.c.b16 %v7188, %v7187
        %v7203 = vpack.c.b16 %v7190, %v7189
        %v7204 = vpack.c.b16 %v7192, %v7191
        %v7205 = vpack.c.b16 %v7194, %v7193
        %v7206 = vpack.c.b16 %v7196, %v7195
        %v7207 = vpack.c.b16 %v7198, %v7197
        %v7208 = vpack.c.b16 %v7200, %v7199
        %7217 = vmatprep.subr.bf16.mxu0 0
        %7218 = vmatpush1.bf16.msra.mxu0 %v7201
        %7219 = vmatprep.subr.bf16.mxu0 0
        %7220 = vmatpush1.bf16.msra.mxu0 %v7202
        %7221 = vmatprep.subr.bf16.mxu0 0
        %7222 = vmatpush1.bf16.msra.mxu0 %v7203
        %7223 = vmatprep.subr.bf16.mxu0 0
        %7224 = vmatpush1.bf16.msra.mxu0 %v7204
        %7225 = vmatprep.subr.bf16.mxu0 0
        %7226 = vmatpush1.bf16.msra.mxu0 %v7205
        %7227 = vmatprep.subr.bf16.mxu0 0
        %7228 = vmatpush1.bf16.msra.mxu0 %v7206
        %7229 = vmatprep.subr.bf16.mxu0 0
        %7230 = vmatpush1.bf16.msra.mxu0 %v7207
        %7231 = vmatprep.subr.bf16.mxu0 0
        %7232 = vmatpush1.bf16.msra.mxu0 %v7208
        %7233 = vmatprep.subr.bf16.mxu0 0
        %7234 = vmatpush1.bf16.msra.mxu0 0
        %7235 = vmatprep.subr.bf16.mxu0 0
        %7236 = vmatpush1.bf16.msra.mxu0 0
        %7237 = vmatprep.subr.bf16.mxu0 0
        %7238 = vmatpush1.bf16.msra.mxu0 0
        %7239 = vmatprep.subr.bf16.mxu0 0
        %7240 = vmatpush1.bf16.msra.mxu0 0
        %7241 = vmatprep.subr.bf16.mxu0 0
        %7242 = vmatpush1.bf16.msra.mxu0 0
        %7243 = vmatprep.subr.bf16.mxu0 0
        %7244 = vmatpush1.bf16.msra.mxu0 0
        %7245 = vmatprep.subr.bf16.mxu0 0
        %7246 = vmatpush1.bf16.msra.mxu0 0
        %7247 = vmatprep.subr.bf16.mxu0 0
        %7248 = vmatpush1.bf16.msra.mxu0 0
        %7249 = vmatprep.mubr.bf16.mxu0 0
        %7250 = vmatmul.mubr.bf16.gmra.mrb[0].mxu0 %v7145
        %v7251 = vpop.f32.mrb[0].mxu0
        %v7252 = vadd.f32 %v7167, %v7251
        %v7253 = vpop.f32.mrb[0].mxu0
        %v7254 = vpop.f32.mrb[0].mxu0
        %v7255 = vadd.f32 %v7167, %v7254
        %v7256 = vpop.f32.mrb[0].mxu0
        %7257 = vdwg.mxu0
        %v7258 = vadd.f32 %v7015, %v7252
        %v7259 = vadd.f32 %v7016, %v7255
        %7260 = vst.msk [vmem:[#allocation2] sm:$0xff] %vm694, %v7258
        %7261 = vst.msk [vmem:[#allocation2 + $0x8] sm:$0xff] %vm694, %v7259
        %p7262 = scmp.eq.s32.totalorder %s28, 1
        // Predicated region
        $region89: #{tpu_custom_call.1} parent=83 // pred_check
          %p7263 = pneg %p7262
        $region90: #{tpu_custom_call.1} parent=83 // pred_check_branch
          %7265 = sbr.rel (%p7263) target = $region92
        $region91: #{tpu_custom_call.1} parent=83 // pred_region
          %v7266 = vld [vmem:[#allocation2] sm:$0xff]
          %v7267 = vld [vmem:[#allocation2 + $0x8] sm:$0xff]
          %v7268 = vld [vmem:[%s14] sm:$0x1]
          %v7269 = vld [vmem:[%s15] sm:$0x1]
          %v7270 = vsel %vm694, %v7266, 0.0
          %7271 = vadd.xlane.f32.xlu0 %v7270
          %v7272 = vpop.xlane.xlu0 %7271
          %v7273 = vsel %vm694, %v7267, 0.0
          %7274 = vadd.xlane.f32.xlu0 %v7273
          %v7275 = vpop.xlane.xlu0 %7274
          %v7276 = vmul.f32 %v7272, %v701
          %v7277 = vmul.f32 %v7275, %v701
          %v7278 = vsub.f32 %v7266, %v7276
          %v7279 = vsub.f32 %v7267, %v7277
          %v7280 = vmul.f32 %v7278, %v7278
          %v7281 = vmul.f32 %v7279, %v7279
          %v7282 = vsel %vm694, %v7280, 0.0
          %7283 = vadd.xlane.f32.xlu0 %v7282
          %v7284 = vpop.xlane.xlu0 %7283
          %v7285 = vsel %vm694, %v7281, 0.0
          %7286 = vadd.xlane.f32.xlu0 %v7285
          %v7287 = vpop.xlane.xlu0 %7286
          %v7288 = vmul.f32 %v7284, %v701
          %v7289 = vmul.f32 %v7287, %v701
          %v7290 = vadd.f32 %v7288, 1e-05
          %v7291 = vadd.f32 %v7289, 1e-05
          %v7292 = vrsqrt.pop %v7290
          %v7293 = vrsqrt.pop %v7291
          %v7294 = vmul.f32 %v7278, %v7292
          %v7295 = vmul.f32 %v7279, %v7293
          %v7297 = vlaneseq
          %v7298 = vshrl.u32 %v7297, 7
          %v7299 = vsub.s32 0, %v7298
          %v7300 = vrot.slane %v7268, %v7299
          %v7302 = vmul.f32 %v7294, %v7300
          %v7303 = vmul.f32 %v7295, %v7300
          %v7305 = vlaneseq
          %v7306 = vshrl.u32 %v7305, 7
          %v7307 = vsub.s32 0, %v7306
          %v7308 = vrot.slane %v7269, %v7307
          %v7310 = vadd.f32 %v7302, %v7308
          %v7311 = vadd.f32 %v7303, %v7308
          %7312 = vst.msk [vmem:[#allocation2] sm:$0xff] %vm694, %v7310
          %7313 = vst.msk [vmem:[#allocation2 + $0x8] sm:$0xff] %vm694, %v7311
        $region92: #{tpu_custom_call.1} parent=83 // pred_fallthru
          _
        // Predicated region
        $region93: #{tpu_custom_call.1} parent=83 // pred_check
          %p7314 = pneg %p437
        $region94: #{tpu_custom_call.1} parent=83 // pred_check_branch
          %7316 = sbr.rel (%p7314) target = $region96
        $region95: #{tpu_custom_call.1} parent=83 // pred_region
          %s7318 = ssub.s32 256, 256
          %7319 = vsyncadd [#allocation3], %s7318
          %s7320 = sshll.u32 [#allocation2], 4
          %s7321 = int_to_ptr.vmem [resolvable:$true] %s7320
          %7326 = dma.vmem_to_hbm [thread:$0]  %s7321, 256, %s16, [#allocation3], 128, 128, 8
        $region96: #{tpu_custom_call.1} parent=83 // pred_fallthru
          _
        // Predicated region
        $region97: #{tpu_custom_call.1} parent=83 // pred_check
          %p7327 = pneg %p437
        $region98: #{tpu_custom_call.1} parent=83 // pred_check_branch
          %7329 = sbr.rel (%p7327) target = $region100
        $region99: #{tpu_custom_call.1} parent=83 // pred_region
          %7330 = dma.done [#allocation3], 256
        $region100: #{tpu_custom_call.1} parent=83 // pred_fallthru
          _
      $region84: #{tpu_custom_call.1} parent=5 // pred_fallthru
        _
      %p7331 = scmp.le.s32.totalorder 2, %s23
      // Predicated region
      $region101: #{tpu_custom_call.1} parent=5 // pred_check
        %p7332 = pneg %p7331
      $region102: #{tpu_custom_call.1} parent=5 // pred_check_branch
        %7334 = sbr.rel (%p7332) target = $region104
      $region103: #{tpu_custom_call.1} parent=5 // pred_region
        %s7335 = ssub.s32 %s23, 2
      $region104: #{tpu_custom_call.1} parent=5 // pred_fallthru
        _
    $region6: #{tpu_custom_call.1} parent=1 // loop_footer
      %s27 = sadd.s32 1, %s23
    $region7: #{tpu_custom_call.1} parent=1 // loop_footer_branch
      %22 = sbr.rel target = $region3
    $region8: #{tpu_custom_call.1} parent=1 // loop_exit
      _
    %7336 = vsyncpa [#allocation3], 1
    %s7337 = scalar_lea.sflag [#allocation3], 1
    %7338 = vsyncpa %s7337, 1

</llo_original>
